<compile_context>
chip_gen: v7x
topology: tpu7x:2x2x1
jax: 0.10.0
libtpu: 0.0.40
codegen_flags: <defaults>
</compile_context>

<pallas_src>
import functools
import math

import numpy as np
import jax
import jax.numpy as jnp
from jax.experimental import pallas as pl
from jax.experimental.pallas import tpu as pltpu

# ----------------------------------------------------------------------------
# Synthetic config (the original pulls these from a global CONFIG / RADIUS)
# ----------------------------------------------------------------------------
SIZE_SUBMAP = 64
CONFIG = {
    'Matcher': {'depth_period': 1.0},
    'PointNet2': {'dim_output': 32, 'r1': 0.5, 'r2': 1.0},
    'SetAbstraction': {'max_num_neighbors': 16},
    'Descriptor': {'dim_output': 32, 'max_num_neighbors': 16},
    'Detector': {'ratio': 0.25},
}
RADIUS = {'submap': 2.0, 'patch': 0.5}

VMEM = pltpu.MemorySpace.VMEM

# Static activation schedule of every MLP stack (torch_geometric MLP with
# plain_last semantics; detector ends in Softplus).  sa3/fp3 schedules are
# hard-coded inside their fused kernel.
ACTS = {
    'sa1': ('relu', None),
    'sa2': ('relu', None),
    'fp2': ('relu', None),
    'fp1': ('relu', 'relu', None),
    'final': ('relu', 'relu', None),
    'det': ('relu', None, 'softplus'),
    'desc': ('relu', None),
}


# ----------------------------------------------------------------------------
# Pallas kernels
# ----------------------------------------------------------------------------
def _act(h, act):
    if act == 'relu':
        return jnp.maximum(h, 0.0)
    if act == 'softplus':
        # torch.nn.Softplus (beta=1, threshold=20)
        return jnp.where(h > 20.0, h, jnp.log1p(jnp.exp(jnp.minimum(h, 20.0))))
    return h


def _bf16_dot(h, w_ref):
    """bf16 MXU operands, f32 accumulate (VPU math stays f32)."""
    return jnp.dot(h.astype(jnp.bfloat16), w_ref[...],
                   preferred_element_type=jnp.float32)


def _fused_mlp_kernel(*refs, acts):
    """refs = (x, w0, b0, w1, b1, ..., out): a whole MLP stack in one kernel."""
    x_ref, o_ref = refs[0], refs[-1]
    wb = refs[1:-1]
    h = x_ref[...]
    for i, act in enumerate(acts):
        h = _act(_bf16_dot(h, wb[2 * i]) + wb[2 * i + 1][...], act)
    o_ref[...] = h.astype(o_ref.dtype)


def mlp_fused(x, layers, acts):
    """Run an entire MLP stack as a single pallas_call (intermediates stay in VMEM)."""
    m = x.shape[0]
    n_out = layers[-1][0].shape[1]
    args = [x.astype(jnp.float32)]
    for (w, b) in layers:
        args += [w.astype(jnp.bfloat16), b.reshape(1, -1).astype(jnp.float32)]
    return pl.pallas_call(
        functools.partial(_fused_mlp_kernel, acts=tuple(acts)),
        out_shape=jax.ShapeDtypeStruct((m, n_out), jnp.float32),
        in_specs=[pl.BlockSpec(memory_space=VMEM)] * len(args),
        out_specs=pl.BlockSpec(memory_space=VMEM),
    )(*args)


def _head_kernel(*refs, acts_body, acts_det, feat_dim, out_width):
    """FP1 + final + detector MLPs chained; one lane-dense [M, out_width] slab:
    cols [0, feat_dim) = dense features, col feat_dim.. = detector score."""
    x_ref, o_ref = refs[0], refs[-1]
    wb = refs[1:-1]
    h = x_ref[...]
    k = 0
    for act in acts_body:
        h = _act(_bf16_dot(h, wb[k]) + wb[k + 1][...], act)
        k += 2
    feat = h                                         # [M, feat_dim]
    for act in acts_det:
        h = _act(_bf16_dot(h, wb[k]) + wb[k + 1][...], act)
        k += 2                                       # h: [M, 1] softplus score
    score = jnp.broadcast_to(h, (h.shape[0], out_width - feat_dim))
    o_ref[...] = jnp.concatenate([feat, score], axis=1).astype(o_ref.dtype)


def head_fused(x, body_layers, det_layers, acts_body, acts_det, out_width=128):
    m = x.shape[0]
    feat_dim = body_layers[-1][0].shape[1]
    args = [x.astype(jnp.float32)]
    for (w, b) in list(body_layers) + list(det_layers):
        args += [w.astype(jnp.bfloat16), b.reshape(1, -1).astype(jnp.float32)]
    return pl.pallas_call(
        functools.partial(_head_kernel, acts_body=tuple(acts_body),
                          acts_det=tuple(acts_det), feat_dim=feat_dim,
                          out_width=out_width),
        out_shape=jax.ShapeDtypeStruct((m, out_width), jnp.float32),
        in_specs=[pl.BlockSpec(memory_space=VMEM)] * len(args),
        out_specs=pl.BlockSpec(memory_space=VMEM),
    )(*args)


def _sa3_fp3_kernel(rows_ref, x2_ref, ws0, bs0, ws1, bs1,
                    wfa, wfb, bf0, wf1, bf1, o_ref, *, n2):
    """SA3 MLP([67,64,64]) + per-cloud global max pool + FP3 MLP([128,64,64])
    with split first-layer weights (x3-part / x2-part) fused in one kernel."""
    h = rows_ref[...]                                # [2*n2, 67]
    h = _act(_bf16_dot(h, ws0) + bs0[...], 'relu')
    h = _bf16_dot(h, ws1) + bs1[...]                 # [2*n2, 64]  (plain last)
    m, f = h.shape
    rid = jax.lax.broadcasted_iota(jnp.int32, (m, f), 0)
    neg = jnp.full_like(h, -1e30)
    x3s = jnp.max(jnp.where(rid < n2, h, neg), axis=0, keepdims=True)   # [1, 64]
    x3t = jnp.max(jnp.where(rid >= n2, h, neg), axis=0, keepdims=True)
    x2 = x2_ref[...]                                 # [2*n2, 64]
    gx2 = _bf16_dot(x2, wfb)                         # [2*n2, 64]
    gs = _bf16_dot(x3s, wfa)                         # [1, 64]
    gt = _bf16_dot(x3t, wfa)
    nf = gx2.shape[1]
    rid2 = jax.lax.broadcasted_iota(jnp.int32, (m, nf), 0)
    add = jnp.where(rid2 < n2, jnp.broadcast_to(gs, (m, nf)),
                    jnp.broadcast_to(gt, (m, nf)))
    g = _act(gx2 + add + bf0[...], 'relu')
    g = _bf16_dot(g, wf1) + bf1[...]                 # plain last
    o_ref[...] = g.astype(o_ref.dtype)


def sa3_fp3_fused(rows, x2, sa3_layers, fp3_layers, n2):
    (ws0, bs0), (ws1, bs1) = sa3_layers
    (wf0, bf0), (wf1, bf1) = fp3_layers
    d_interp = wf0.shape[0] - x2.shape[1]            # rows of wf0 for the x3 part
    wfa, wfb = wf0[:d_interp], wf0[d_interp:]
    m = rows.shape[0]
    n_out = wf1.shape[1]
    args = [rows.astype(jnp.float32), x2.astype(jnp.float32),
            ws0.astype(jnp.bfloat16), bs0.reshape(1, -1).astype(jnp.float32),
            ws1.astype(jnp.bfloat16), bs1.reshape(1, -1).astype(jnp.float32),
            wfa.astype(jnp.bfloat16), wfb.astype(jnp.bfloat16),
            bf0.reshape(1, -1).astype(jnp.float32),
            wf1.astype(jnp.bfloat16), bf1.reshape(1, -1).astype(jnp.float32)]
    return pl.pallas_call(
        functools.partial(_sa3_fp3_kernel, n2=n2),
        out_shape=jax.ShapeDtypeStruct((m, n_out), jnp.float32),
        in_specs=[pl.BlockSpec(memory_space=VMEM)] * len(args),
        out_specs=pl.BlockSpec(memory_space=VMEM),
    )(*args)


def _pointconv_kernel(*refs, acts, l2norm):
    """refs = (msg[M*K, Fin], mask[M, K, 1], w0, b0, ..., out[M, Fout]).

    Per-edge MLP + masked max aggregation over the K neighbors (+ optional
    per-row L2 norm) fused: the [M*K, Fout] activations never leave VMEM.
    """
    msg_ref, mask_ref, o_ref = refs[0], refs[1], refs[-1]
    wb = refs[2:-1]
    h = msg_ref[...]                               # [M*K, Fin]
    for i, act in enumerate(acts):
        h = _act(_bf16_dot(h, wb[2 * i]) + wb[2 * i + 1][...], act)
    msk = mask_ref[...]                            # [M, K, 1]
    M, K, _ = mask_ref.shape                       # K is always a multiple of 8
    h = h.reshape(M, K, h.shape[-1])               # [M, K, Fout]
    hm = jnp.where(msk > 0.0, h, jnp.full_like(h, -1e30))
    out = jnp.max(hm, axis=1)                      # [M, Fout]
    has = jnp.max(msk, axis=1) > 0.0               # [M, 1]
    out = jnp.where(has, out, 0.0)
    if l2norm:
        # F.normalize(dim=-1, eps=1e-12) via rsqrt on the EUP slot
        ss = jnp.sum(out * out, axis=-1, keepdims=True)
        out = out * jax.lax.rsqrt(jnp.maximum(ss, 1e-24))
    o_ref[...] = out.astype(o_ref.dtype)


def pointconv_fused(msg, mask, layers, acts, l2norm=False):
    """msg: [M, K, Fin], mask: [M, K, 1] -> [M, Fout] (one pallas_call)."""
    m, k, fin = msg.shape
    msg2d = msg.reshape(m * k, fin).astype(jnp.float32)
    n_out = layers[-1][0].shape[1]
    args = [msg2d, mask.astype(jnp.float32)]
    for (w, b) in layers:
        args += [w.astype(jnp.bfloat16), b.reshape(1, -1).astype(jnp.float32)]
    return pl.pallas_call(
        functools.partial(_pointconv_kernel, acts=tuple(acts), l2norm=l2norm),
        out_shape=jax.ShapeDtypeStruct((m, n_out), jnp.float32),
        in_specs=[pl.BlockSpec(memory_space=VMEM)] * len(args),
        out_specs=pl.BlockSpec(memory_space=VMEM),
    )(*args)


def _pdist_kernel(p_ref, pt_ref, o_ref):
    """Direct per-coordinate difference-square-sum (exact-zero diagonal, no
    |a|^2+|b|^2-2ab cancellation); one invocation for both clouds."""
    p = p_ref[...]                                  # [B, N, D]
    pt = pt_ref[...]                                # [B, D, N]
    acc = None
    for k in range(p_ref.shape[-1]):                # D static (=3), unrolled
        col = jax.lax.slice_in_dim(p, k, k + 1, axis=2)    # [B, N, 1]
        row = jax.lax.slice_in_dim(pt, k, k + 1, axis=1)   # [B, 1, N]
        diff = col - row                                   # [B, N, N]
        acc = diff * diff if acc is None else acc + diff * diff
    o_ref[...] = jnp.sqrt(acc)


def pairwise_self_dists(pos_pair):
    """pos_pair: [B, N, D] -> [B, N, N]; single grid-less kernel invocation."""
    b, n, d = pos_pair.shape
    p = pos_pair.astype(jnp.float32)
    pt = jnp.swapaxes(p, 1, 2)                      # [B, D, N]
    return pl.pallas_call(
        _pdist_kernel,
        out_shape=jax.ShapeDtypeStruct((b, n, n), jnp.float32),
        in_specs=[pl.BlockSpec(memory_space=VMEM)] * 2,
        out_specs=pl.BlockSpec(memory_space=VMEM),
    )(p, pt)


# ----------------------------------------------------------------------------
# Graph / sampling glue (data-dependent, plain JAX, runs under jit)
# ----------------------------------------------------------------------------
def fps_indices(dmat, n_samples):
    # TODO(synk): torch_cluster.fps uses a random start point; we use index 0.
    # Statically unrolled (n_samples <= 13) to remove while-loop overhead.
    sel = [jnp.int32(0)]
    if n_samples <= 1:
        return jnp.stack(sel)
    dist = jnp.full((dmat.shape[0],), jnp.inf, jnp.float32)
    for _ in range(1, n_samples):
        dist = jnp.minimum(dist, dmat[sel[-1]])      # precomputed distance row
        sel.append(jnp.argmax(dist).astype(jnp.int32))
    return jnp.stack(sel)


def radius_from_d(d, r, max_num):
    """d: [n_dst, n_src].  Up to max_num nearest src within radius r.
    Always returns exactly max_num columns (padded, masked) so the fused
    PointNetConv kernel always sees K == 16 (multiple of 8)."""
    n_src = d.shape[1]
    d_masked = jnp.where(d <= r, d, jnp.inf)
    if n_src < max_num:
        pad = jnp.full((d.shape[0], max_num - n_src), jnp.inf, d.dtype)
        d_masked = jnp.concatenate([d_masked, pad], axis=1)
    neg_vals, idx = jax.lax.top_k(-d_masked, max_num)
    mask = neg_vals > -jnp.inf
    idx = jnp.minimum(idx, n_src - 1)                # clamp padded indices
    return idx, mask


def build_messages(x_src, pos_src, pos_dst, nbr_idx, nbr_mask):
    """PointNetConv message: [x_j, pos_j - pos_i] per edge; mask as [n, k, 1]."""
    rel = pos_src[nbr_idx] - pos_dst[:, None, :]
    msg = rel if x_src is None else jnp.concatenate([x_src[nbr_idx], rel], axis=-1)
    return msg.astype(jnp.float32), nbr_mask.astype(jnp.float32)[..., None]


def knn_interp_from_d(x_src, d, k):
    k = min(k, d.shape[1])
    negd, idx = jax.lax.top_k(-d, k)
    dk = -negd
    w = 1.0 / jnp.maximum(dk * dk, 1e-16)
    return jnp.sum(x_src[idx] * w[..., None], axis=1) / jnp.sum(w, axis=1, keepdims=True)


# ----------------------------------------------------------------------------
# Model pieces (batch_size == 1 per cloud; src/tgt clouds batched together)
# ----------------------------------------------------------------------------
def pointnet2_and_head(p_pn2, p_det, xs, poss, dmats):
    """Shared PointNet2 backbone + detector head over the (src, tgt) pair; rows
    of both clouds are concatenated so every fused kernel launches exactly once
    per stage.  Returns (dense_src, dense_tgt), (scores_src, scores_tgt)."""
    max_nn = CONFIG['SetAbstraction']['max_num_neighbors']
    r1, r2 = CONFIG['PointNet2']['r1'], CONFIG['PointNet2']['r2']
    n0 = poss[0].shape[0]
    n1 = max(1, math.ceil(0.2 * n0))
    n2 = max(1, math.ceil(0.25 * n1))
    out_dim = p_pn2['final'][-1][0].shape[1]

    # ---- SA1: fps ratio 0.2, radius r1, MLP([1+3, 32, 32]) ----
    idx1s, pos1s, msgs, masks = [], [], [], []
    for c in range(2):
        idx1 = fps_indices(dmats[c], n1)
        pos1 = poss[c][idx1]
        nidx, nmask = radius_from_d(dmats[c][idx1], r1, max_nn)
        msg, m = build_messages(xs[c], poss[c], pos1, nidx, nmask)
        idx1s.append(idx1); pos1s.append(pos1); msgs.append(msg); masks.append(m)
    x1_cat = pointconv_fused(jnp.concatenate(msgs, 0), jnp.concatenate(masks, 0),
                             p_pn2['sa1'], ACTS['sa1'])
    x1s = (x1_cat[:n1], x1_cat[n1:])

    # ---- SA2: fps ratio 0.25, radius r2, MLP([32+3, 32, 64]) ----
    idx2s, pos2s, msgs, masks = [], [], [], []
    for c in range(2):
        dsub = dmats[c][idx1s[c]][:, idx1s[c]]
        idx2 = idx1s[c][fps_indices(dsub, n2)]
        pos2 = poss[c][idx2]
        nidx, nmask = radius_from_d(dmats[c][idx2][:, idx1s[c]], r2, max_nn)
        msg, m = build_messages(x1s[c], pos1s[c], pos2, nidx, nmask)
        idx2s.append(idx2); pos2s.append(pos2); msgs.append(msg); masks.append(m)
    x2_cat = pointconv_fused(jnp.concatenate(msgs, 0), jnp.concatenate(masks, 0),
                             p_pn2['sa2'], ACTS['sa2'])
    x2s = (x2_cat[:n2], x2_cat[n2:])

    # ---- SA3 (global MLP + max pool) + FP3 (knn k=1 broadcast) fused ----
    sa3_rows = jnp.concatenate(
        [jnp.concatenate([x2s[c], pos2s[c]], axis=1) for c in range(2)], axis=0)
    f3_cat = sa3_fp3_fused(sa3_rows, x2_cat, p_pn2['sa3'], p_pn2['fp3'], n2)
    f3s = (f3_cat[:n2], f3_cat[n2:])

    # ---- FP2: knn k=3, MLP([96, 32, 32]) ----
    fp2_rows = jnp.concatenate(
        [jnp.concatenate([knn_interp_from_d(f3s[c], dmats[c][idx1s[c]][:, idx2s[c]], 3),
                          x1s[c]], axis=1) for c in range(2)], axis=0)
    f2_cat = mlp_fused(fp2_rows, p_pn2['fp2'], ACTS['fp2'])
    f2s = (f2_cat[:n1], f2_cat[n1:])

    # ---- FP1 + final MLP + detector head, one kernel, lane-dense output ----
    fp1_rows = jnp.concatenate(
        [jnp.concatenate([knn_interp_from_d(f2s[c], dmats[c][:, idx1s[c]], 3),
                          xs[c]], axis=1) for c in range(2)], axis=0)
    slab = head_fused(fp1_rows,
                      list(p_pn2['fp1']) + list(p_pn2['final']), p_det,
                      ACTS['fp1'] + ACTS['final'], ACTS['det'], out_width=128)
    dense_cat = slab[:, :out_dim]                    # [2*n0, 32]
    score_cat = slab[:, out_dim]                     # [2*n0]
    return ((dense_cat[:n0], dense_cat[n0:]),
            (score_cat[:n0], score_cat[n0:]))


def descriptor_all(p_desc, dense_pair, pos_pair, dmats, ki_pair):
    """Descriptors for ALL k_pos keypoint candidates of both clouds (static
    shapes -> one compile); threshold slicing happens host-side afterwards."""
    max_nn = CONFIG['Descriptor']['max_num_neighbors']
    msgs, masks = [], []
    for c in range(2):
        idx = ki_pair[c]
        pos_key = pos_pair[c][idx]
        nidx, nmask = radius_from_d(dmats[c][idx], RADIUS['patch'], max_nn)
        msg, m = build_messages(dense_pair[c], pos_pair[c], pos_key, nidx, nmask)
        msgs.append(msg); masks.append(m)
    return pointconv_fused(jnp.concatenate(msgs, 0), jnp.concatenate(masks, 0),
                           p_desc, ACTS['desc'], l2norm=True)


# ----------------------------------------------------------------------------
# Deterministic parameter init (synthetic, no checkpoint)
# ----------------------------------------------------------------------------
def init_mlp(key, channels):
    layers = []
    for i in range(len(channels) - 1):
        key, kw, kb = jax.random.split(key, 3)
        w = jax.random.normal(kw, (channels[i], channels[i + 1]), jnp.float32)
        w = w / np.sqrt(channels[i])
        b = 0.01 * jax.random.normal(kb, (channels[i + 1],), jnp.float32)
        layers.append((w, b))
    return layers


def init_params(key):
    # TODO(synk): BatchNorm layers inside torch_geometric MLP are folded to
    #             identity (eval-mode affine with synthetic weights).
    out_dim = CONFIG['PointNet2']['dim_output']
    desc_dim = CONFIG['Descriptor']['dim_output']
    ks = jax.random.split(key, 9)
    pn2 = {
        'sa1': init_mlp(ks[0], [1 + 3, 32, 32]),
        'sa2': init_mlp(ks[1], [32 + 3, 32, 64]),
        'sa3': init_mlp(ks[2], [64 + 3, 64, 64]),
        'fp3': init_mlp(ks[3], [64 + 64, 64, 64]),
        'fp2': init_mlp(ks[4], [64 + 32, 32, 32]),
        'fp1': init_mlp(ks[5], [32 + 1, 32, 32, 32]),
        'final': init_mlp(ks[6], [32, 32, 32, out_dim]),
    }
    det = init_mlp(ks[7], [out_dim, 16, 8, 1])
    desc = init_mlp(ks[8], [out_dim + 3, 32, desc_dim])
    return {'pn2': pn2, 'det': det, 'desc': desc}


# ----------------------------------------------------------------------------
# MatcherTest.forward  (batch_size == 1 per cloud)
# ----------------------------------------------------------------------------
@jax.jit
def matcher_device(params, pos1, pos2):
    """Backbone + detector + quantile threshold + descriptors for all keypoint
    candidates of both clouds: one on-device dispatch, no host syncs, fixed
    shapes (one Mosaic compile ever)."""
    depth_period = CONFIG['Matcher']['depth_period']
    k_pos = int(SIZE_SUBMAP * CONFIG['Detector']['ratio'])
    x1 = jnp.sin(depth_period * pos1[:, -2:-1])
    x2 = jnp.sin(depth_period * pos2[:, -2:-1])
    dmats = pairwise_self_dists(jnp.stack([pos1, pos2], axis=0))   # [2, N, N]
    dense_pair, score_pair = pointnet2_and_head(
        params['pn2'], params['det'], (x1, x2), (pos1, pos2), (dmats[0], dmats[1]))

    # Detector: k_pos points nearest to the (local-frame) xy origin.
    kws, kis = [], []
    for c in range(2):
        xy = (pos1, pos2)[c][:, :2]
        dist_center = jnp.sqrt(jnp.sum(xy * xy, axis=-1))
        _, indices1 = jax.lax.top_k(-dist_center, k_pos)
        # TODO(synk): after load_model k == k_pos so fps(ratio=1) only permutes
        #             the selected set; permutation omitted (set semantics equal).
        kws.append(score_pair[c][indices1])
        kis.append(indices1.astype(jnp.int32))
    qthresh = jnp.minimum(jnp.quantile(kws[0], 0.7), jnp.quantile(kws[1], 0.7))

    feat_all = descriptor_all(params['desc'], dense_pair, (pos1, pos2), dmats, kis)
    return kws[0], kis[0], kws[1], kis[1], qthresh, feat_all


def matcher_test_forward(params, pos1_6, pos2_6, keypoint_thresh=None):
    assert pos1_6.shape[1] == 6 and pos2_6.shape[1] == 6
    pos1, pos2 = pos1_6[:, :3], pos2_6[:, :3]
    abs_pos1, abs_pos2 = pos1_6[:, 3:], pos2_6[:, 3:]

    kw1, ki1, kw2, ki2, qthresh, feat_all = matcher_device(params, pos1, pos2)

    # single device->host sync for everything
    (kw1_np, ki1_np, kw2_np, ki2_np, qt_np, feat_np,
     p1_np, p2_np, a1_np, a2_np) = jax.device_get(
        (kw1, ki1, kw2, ki2, qthresh, feat_all, pos1, pos2, abs_pos1, abs_pos2))

    data_points = {'anc': np.array(p1_np, copy=True), 'pos': np.array(p2_np, copy=True)}
    data_points['anc'][:, -1] = a1_np[:, -1]
    data_points['pos'][:, -1] = a2_np[:, -1]

    thresh = float(keypoint_thresh) if keypoint_thresh else float(qt_np)
    m1 = kw1_np > thresh
    m2 = kw2_np > thresh
    if keypoint_thresh and (m1.sum() == 0 or m2.sum() == 0):
        return [data_points]

    idx1 = ki1_np[m1]
    idx2 = ki2_np[m2]
    k_pos = kw1_np.shape[0]
    feat1 = np.asarray(feat_np[:k_pos][m1]).squeeze()
    feat2 = np.asarray(feat_np[k_pos:][m2]).squeeze()
    if feat1.ndim == 1:
        feat1 = np.expand_dims(feat1, axis=0)
    if feat2.ndim == 1:
        feat2 = np.expand_dims(feat2, axis=0)

    abs1, abs2 = a1_np[idx1], a2_np[idx2]
    data_keypoints = {'anc': p1_np[idx1], 'pos': p2_np[idx2]}

    return data_points, data_keypoints, feat1, feat2, abs1, abs2


# ----------------------------------------------------------------------------
if __name__ == "__main__":
    key = jax.random.PRNGKey(0)
    kp, kd1, kd2 = jax.random.split(key, 3)
    params = init_params(kp)

    # data.pos layout: [SIZE_SUBMAP, 6] = [local xyz | absolute xyz], batch == 1
    local1 = jax.random.uniform(kd1, (SIZE_SUBMAP, 3), jnp.float32, -1.0, 1.0)
    local2 = jax.random.uniform(kd2, (SIZE_SUBMAP, 3), jnp.float32, -1.0, 1.0)
    pos1_6 = jnp.concatenate(
        [local1, local1 + jnp.array([[10.0, -5.0, 2.0]], jnp.float32)], axis=1)
    pos2_6 = jnp.concatenate(
        [local2, local2 + jnp.array([[10.5, -4.5, 2.0]], jnp.float32)], axis=1)

    out = matcher_test_forward(params, pos1_6, pos2_6)
    data_points, data_keypoints, feat1, feat2, abs1, abs2 = out

    jax.block_until_ready(jnp.asarray(feat1))
    jax.block_until_ready(jnp.asarray(feat2))

    assert data_points['anc'].shape == (SIZE_SUBMAP, 3)
    assert feat1.shape[1] == CONFIG['Descriptor']['dim_output']
    assert feat2.shape[1] == CONFIG['Descriptor']['dim_output']
    assert abs1.shape[0] == data_keypoints['anc'].shape[0] == feat1.shape[0]

    print("KERNEL_OK")
</pallas_src>

<mosaic_0001>
module attributes {stable_mosaic.version = 11 : i64} {
  func.func @_pdist_kernel(%arg0: memref<2x64x3xf32, #tpu.memory_space<vmem>>, %arg1: memref<2x3x64xf32, #tpu.memory_space<vmem>>, %arg2: memref<2x64x64xf32, #tpu.memory_space<vmem>>) attributes {dimension_semantics = [], scalar_prefetch = 0 : i64, scratch_operands = 0 : i64, tpu.core_type = #tpu.core_type<tc>} {
    %c0 = arith.constant 0 : index
    %c0_0 = arith.constant 0 : index
    %c0_1 = arith.constant 0 : index
    %0 = vector.load %arg0[%c0, %c0_0, %c0_1] : memref<2x64x3xf32, #tpu.memory_space<vmem>>, vector<2x64x3xf32>
    %c0_2 = arith.constant 0 : index
    %c0_3 = arith.constant 0 : index
    %c0_4 = arith.constant 0 : index
    %1 = vector.load %arg1[%c0_2, %c0_3, %c0_4] : memref<2x3x64xf32, #tpu.memory_space<vmem>>, vector<2x3x64xf32>
    %2 = vector.extract_strided_slice %0 {offsets = [0, 0, 0], sizes = [2, 64, 1], strides = [1, 1, 1]} : vector<2x64x3xf32> to vector<2x64x1xf32>
    %3 = vector.extract_strided_slice %1 {offsets = [0, 0, 0], sizes = [2, 1, 64], strides = [1, 1, 1]} : vector<2x3x64xf32> to vector<2x1x64xf32>
    %4 = vector.broadcast %2 : vector<2x64x1xf32> to vector<2x64x64xf32>
    %5 = vector.broadcast %3 : vector<2x1x64xf32> to vector<2x64x64xf32>
    %6 = arith.subf %4, %5 : vector<2x64x64xf32>
    %7 = arith.mulf %6, %6 : vector<2x64x64xf32>
    %8 = vector.extract_strided_slice %0 {offsets = [0, 0, 1], sizes = [2, 64, 1], strides = [1, 1, 1]} : vector<2x64x3xf32> to vector<2x64x1xf32>
    %9 = vector.extract_strided_slice %1 {offsets = [0, 1, 0], sizes = [2, 1, 64], strides = [1, 1, 1]} : vector<2x3x64xf32> to vector<2x1x64xf32>
    %10 = vector.broadcast %8 : vector<2x64x1xf32> to vector<2x64x64xf32>
    %11 = vector.broadcast %9 : vector<2x1x64xf32> to vector<2x64x64xf32>
    %12 = arith.subf %10, %11 : vector<2x64x64xf32>
    %13 = arith.mulf %12, %12 : vector<2x64x64xf32>
    %14 = arith.addf %7, %13 : vector<2x64x64xf32>
    %15 = vector.extract_strided_slice %0 {offsets = [0, 0, 2], sizes = [2, 64, 1], strides = [1, 1, 1]} : vector<2x64x3xf32> to vector<2x64x1xf32>
    %16 = vector.extract_strided_slice %1 {offsets = [0, 2, 0], sizes = [2, 1, 64], strides = [1, 1, 1]} : vector<2x3x64xf32> to vector<2x1x64xf32>
    %17 = vector.broadcast %15 : vector<2x64x1xf32> to vector<2x64x64xf32>
    %18 = vector.broadcast %16 : vector<2x1x64xf32> to vector<2x64x64xf32>
    %19 = arith.subf %17, %18 : vector<2x64x64xf32>
    %20 = arith.mulf %19, %19 : vector<2x64x64xf32>
    %21 = arith.addf %14, %20 : vector<2x64x64xf32>
    %22 = math.sqrt %21 : vector<2x64x64xf32>
    %c0_5 = arith.constant 0 : index
    %c0_6 = arith.constant 0 : index
    %c0_7 = arith.constant 0 : index
    %23 = vector.load %arg2[%c0_5, %c0_6, %c0_7] : memref<2x64x64xf32, #tpu.memory_space<vmem>>, vector<2x64x64xf32>
    tpu.vector_store %arg2[%c0_5, %c0_6, %c0_7], %22 {strides = array<i32>} : memref<2x64x64xf32, #tpu.memory_space<vmem>>, vector<2x64x64xf32>,
    return
  }
}

module attributes {stable_mosaic.version = 11 : i64} {
  func.func @_pointconv_kernel(%arg0: memref<416x4xf32, #tpu.memory_space<vmem>>, %arg1: memref<26x16x1xf32, #tpu.memory_space<vmem>>, %arg2: memref<4x32xbf16, #tpu.memory_space<vmem>>, %arg3: memref<1x32xf32, #tpu.memory_space<vmem>>, %arg4: memref<32x32xbf16, #tpu.memory_space<vmem>>, %arg5: memref<1x32xf32, #tpu.memory_space<vmem>>, %arg6: memref<26x32xf32, #tpu.memory_space<vmem>>) attributes {dimension_semantics = [], scalar_prefetch = 0 : i64, scratch_operands = 0 : i64, tpu.core_type = #tpu.core_type<tc>} {
    %c0 = arith.constant 0 : index
    %c0_0 = arith.constant 0 : index
    %0 = vector.load %arg0[%c0, %c0_0] : memref<416x4xf32, #tpu.memory_space<vmem>>, vector<416x4xf32>
    %1 = arith.truncf %0 : vector<416x4xf32> to vector<416x4xbf16>
    %c0_1 = arith.constant 0 : index
    %c0_2 = arith.constant 0 : index
    %2 = vector.load %arg2[%c0_1, %c0_2] : memref<4x32xbf16, #tpu.memory_space<vmem>>, vector<4x32xbf16>
    %cst = arith.constant dense<0.000000e+00> : vector<416x32xf32>
    %3 = tpu.matmul %1, %2, %cst {dimension_numbers = #tpu.dot_dimension_numbers<[1], [0], [0], [1], [0, 0, 1, 1], [], []>} : vector<416x4xbf16>, vector<4x32xbf16>, vector<416x32xf32> -> vector<416x32xf32>
    %c0_3 = arith.constant 0 : index
    %c0_4 = arith.constant 0 : index
    %4 = vector.load %arg3[%c0_3, %c0_4] : memref<1x32xf32, #tpu.memory_space<vmem>>, vector<1x32xf32>
    %5 = vector.broadcast %4 : vector<1x32xf32> to vector<416x32xf32>
    %6 = arith.addf %3, %5 : vector<416x32xf32>
    %cst_5 = arith.constant 0.000000e+00 : f32
    %7 = vector.broadcast %cst_5 : f32 to vector<416x32xf32>
    %8 = arith.maximumf %6, %7 : vector<416x32xf32>
    %9 = arith.truncf %8 : vector<416x32xf32> to vector<416x32xbf16>
    %c0_6 = arith.constant 0 : index
    %c0_7 = arith.constant 0 : index
    %10 = vector.load %arg4[%c0_6, %c0_7] : memref<32x32xbf16, #tpu.memory_space<vmem>>, vector<32x32xbf16>
    %cst_8 = arith.constant dense<0.000000e+00> : vector<416x32xf32>
    %11 = tpu.matmul %9, %10, %cst_8 {dimension_numbers = #tpu.dot_dimension_numbers<[1], [0], [0], [1], [0, 0, 1, 1], [], []>} : vector<416x32xbf16>, vector<32x32xbf16>, vector<416x32xf32> -> vector<416x32xf32>
    %c0_9 = arith.constant 0 : index
    %c0_10 = arith.constant 0 : index
    %12 = vector.load %arg5[%c0_9, %c0_10] : memref<1x32xf32, #tpu.memory_space<vmem>>, vector<1x32xf32>
    %13 = vector.broadcast %12 : vector<1x32xf32> to vector<416x32xf32>
    %14 = arith.addf %11, %13 : vector<416x32xf32>
    %c0_11 = arith.constant 0 : index
    %c0_12 = arith.constant 0 : index
    %c0_13 = arith.constant 0 : index
    %15 = vector.load %arg1[%c0_11, %c0_12, %c0_13] : memref<26x16x1xf32, #tpu.memory_space<vmem>>, vector<26x16x1xf32>
    %16 = vector.shape_cast %14 : vector<416x32xf32> to vector<26x16x32xf32>
    %cst_14 = arith.constant 0.000000e+00 : f32
    %17 = vector.broadcast %cst_14 : f32 to vector<26x16x1xf32>
    %18 = arith.cmpf ogt, %15, %17 : vector<26x16x1xf32>
    %cst_15 = arith.constant -1.000000e+30 : f32
    %19 = vector.broadcast %cst_15 : f32 to vector<26x16x32xf32>
    %20 = vector.shape_cast %18 : vector<26x16x1xi1> to vector<26x16x1xi1>
    %21 = vector.broadcast %20 : vector<26x16x1xi1> to vector<26x16x32xi1>
    %22 = arith.select %21, %16, %19 : vector<26x16x32xi1>, vector<26x16x32xf32>
    %cst_16 = arith.constant dense<0xFF800000> : vector<26x32xf32>
    %23 = vector.multi_reduction <maximumf>, %22, %cst_16 [1] : vector<26x16x32xf32> to vector<26x32xf32>
    %cst_17 = arith.constant dense<0xFF800000> : vector<26x1xf32>
    %24 = vector.multi_reduction <maximumf>, %15, %cst_17 [1] : vector<26x16x1xf32> to vector<26x1xf32>
    %cst_18 = arith.constant 0.000000e+00 : f32
    %25 = vector.broadcast %cst_18 : f32 to vector<26x1xf32>
    %26 = arith.cmpf ogt, %24, %25 : vector<26x1xf32>
    %cst_19 = arith.constant 0.000000e+00 : f32
    %27 = vector.shape_cast %26 : vector<26x1xi1> to vector<26x1xi1>
    %28 = vector.broadcast %27 : vector<26x1xi1> to vector<26x32xi1>
    %29 = vector.broadcast %cst_19 : f32 to vector<26x32xf32>
    %30 = arith.select %28, %23, %29 : vector<26x32xi1>, vector<26x32xf32>
    %c0_20 = arith.constant 0 : index
    %c0_21 = arith.constant 0 : index
    %31 = vector.load %arg6[%c0_20, %c0_21] : memref<26x32xf32, #tpu.memory_space<vmem>>, vector<26x32xf32>
    tpu.vector_store %arg6[%c0_20, %c0_21], %30 {strides = array<i32>} : memref<26x32xf32, #tpu.memory_space<vmem>>, vector<26x32xf32>,
    return
  }
}

module attributes {stable_mosaic.version = 11 : i64} {
  func.func @_sa3_fp3_kernel(%arg0: memref<8x67xf32, #tpu.memory_space<vmem>>, %arg1: memref<8x64xf32, #tpu.memory_space<vmem>>, %arg2: memref<67x64xbf16, #tpu.memory_space<vmem>>, %arg3: memref<1x64xf32, #tpu.memory_space<vmem>>, %arg4: memref<64x64xbf16, #tpu.memory_space<vmem>>, %arg5: memref<1x64xf32, #tpu.memory_space<vmem>>, %arg6: memref<64x64xbf16, #tpu.memory_space<vmem>>, %arg7: memref<64x64xbf16, #tpu.memory_space<vmem>>, %arg8: memref<1x64xf32, #tpu.memory_space<vmem>>, %arg9: memref<64x64xbf16, #tpu.memory_space<vmem>>, %arg10: memref<1x64xf32, #tpu.memory_space<vmem>>, %arg11: memref<8x64xf32, #tpu.memory_space<vmem>>) attributes {dimension_semantics = [], scalar_prefetch = 0 : i64, scratch_operands = 0 : i64, tpu.core_type = #tpu.core_type<tc>} {
    %c0 = arith.constant 0 : index
    %c0_0 = arith.constant 0 : index
    %0 = vector.load %arg0[%c0, %c0_0] : memref<8x67xf32, #tpu.memory_space<vmem>>, vector<8x67xf32>
    %1 = arith.truncf %0 : vector<8x67xf32> to vector<8x67xbf16>
    %c0_1 = arith.constant 0 : index
    %c0_2 = arith.constant 0 : index
    %2 = vector.load %arg2[%c0_1, %c0_2] : memref<67x64xbf16, #tpu.memory_space<vmem>>, vector<67x64xbf16>
    %cst = arith.constant dense<0.000000e+00> : vector<8x64xf32>
    %3 = tpu.matmul %1, %2, %cst {dimension_numbers = #tpu.dot_dimension_numbers<[1], [0], [0], [1], [0, 0, 1, 1], [], []>} : vector<8x67xbf16>, vector<67x64xbf16>, vector<8x64xf32> -> vector<8x64xf32>
    %c0_3 = arith.constant 0 : index
    %c0_4 = arith.constant 0 : index
    %4 = vector.load %arg3[%c0_3, %c0_4] : memref<1x64xf32, #tpu.memory_space<vmem>>, vector<1x64xf32>
    %5 = vector.broadcast %4 : vector<1x64xf32> to vector<8x64xf32>
    %6 = arith.addf %3, %5 : vector<8x64xf32>
    %cst_5 = arith.constant 0.000000e+00 : f32
    %7 = vector.broadcast %cst_5 : f32 to vector<8x64xf32>
    %8 = arith.maximumf %6, %7 : vector<8x64xf32>
    %9 = arith.truncf %8 : vector<8x64xf32> to vector<8x64xbf16>
    %c0_6 = arith.constant 0 : index
    %c0_7 = arith.constant 0 : index
    %10 = vector.load %arg4[%c0_6, %c0_7] : memref<64x64xbf16, #tpu.memory_space<vmem>>, vector<64x64xbf16>
    %cst_8 = arith.constant dense<0.000000e+00> : vector<8x64xf32>
    %11 = tpu.matmul %9, %10, %cst_8 {dimension_numbers = #tpu.dot_dimension_numbers<[1], [0], [0], [1], [0, 0, 1, 1], [], []>} : vector<8x64xbf16>, vector<64x64xbf16>, vector<8x64xf32> -> vector<8x64xf32>
    %c0_9 = arith.constant 0 : index
    %c0_10 = arith.constant 0 : index
    %12 = vector.load %arg5[%c0_9, %c0_10] : memref<1x64xf32, #tpu.memory_space<vmem>>, vector<1x64xf32>
    %13 = vector.broadcast %12 : vector<1x64xf32> to vector<8x64xf32>
    %14 = arith.addf %11, %13 : vector<8x64xf32>
    %15 = tpu.iota {dimensions = array<i32: 0>} : vector<8x64xi32>
    %cst_11 = arith.constant -1.000000e+30 : f32
    %16 = vector.broadcast %cst_11 : f32 to vector<8x64xf32>
    %c4_i32 = arith.constant 4 : i32
    %17 = vector.broadcast %c4_i32 : i32 to vector<8x64xi32>
    %18 = arith.cmpi slt, %15, %17 : vector<8x64xi32>
    %19 = arith.select %18, %14, %16 : vector<8x64xi1>, vector<8x64xf32>
    %cst_12 = arith.constant dense<0xFF800000> : vector<64xf32>
    %20 = vector.multi_reduction <maximumf>, %19, %cst_12 [0] : vector<8x64xf32> to vector<64xf32>
    %21 = vector.shape_cast %20 : vector<64xf32> to vector<1x64xf32>
    %c4_i32_13 = arith.constant 4 : i32
    %22 = vector.broadcast %c4_i32_13 : i32 to vector<8x64xi32>
    %23 = arith.cmpi sge, %15, %22 : vector<8x64xi32>
    %24 = arith.select %23, %14, %16 : vector<8x64xi1>, vector<8x64xf32>
    %cst_14 = arith.constant dense<0xFF800000> : vector<64xf32>
    %25 = vector.multi_reduction <maximumf>, %24, %cst_14 [0] : vector<8x64xf32> to vector<64xf32>
    %26 = vector.shape_cast %25 : vector<64xf32> to vector<1x64xf32>
    %c0_15 = arith.constant 0 : index
    %c0_16 = arith.constant 0 : index
    %27 = vector.load %arg1[%c0_15, %c0_16] : memref<8x64xf32, #tpu.memory_space<vmem>>, vector<8x64xf32>
    %28 = arith.truncf %27 : vector<8x64xf32> to vector<8x64xbf16>
    %c0_17 = arith.constant 0 : index
    %c0_18 = arith.constant 0 : index
    %29 = vector.load %arg7[%c0_17, %c0_18] : memref<64x64xbf16, #tpu.memory_space<vmem>>, vector<64x64xbf16>
    %cst_19 = arith.constant dense<0.000000e+00> : vector<8x64xf32>
    %30 = tpu.matmul %28, %29, %cst_19 {dimension_numbers = #tpu.dot_dimension_numbers<[1], [0], [0], [1], [0, 0, 1, 1], [], []>} : vector<8x64xbf16>, vector<64x64xbf16>, vector<8x64xf32> -> vector<8x64xf32>
    %31 = arith.truncf %21 : vector<1x64xf32> to vector<1x64xbf16>
    %c0_20 = arith.constant 0 : index
    %c0_21 = arith.constant 0 : index
    %32 = vector.load %arg6[%c0_20, %c0_21] : memref<64x64xbf16, #tpu.memory_space<vmem>>, vector<64x64xbf16>
    %cst_22 = arith.constant dense<0.000000e+00> : vector<1x64xf32>
    %33 = tpu.matmul %31, %32, %cst_22 {dimension_numbers = #tpu.dot_dimension_numbers<[1], [0], [0], [1], [0, 0, 1, 1], [], []>} : vector<1x64xbf16>, vector<64x64xbf16>, vector<1x64xf32> -> vector<1x64xf32>
    %34 = arith.truncf %26 : vector<1x64xf32> to vector<1x64xbf16>
    %c0_23 = arith.constant 0 : index
    %c0_24 = arith.constant 0 : index
    %35 = vector.load %arg6[%c0_23, %c0_24] : memref<64x64xbf16, #tpu.memory_space<vmem>>, vector<64x64xbf16>
    %cst_25 = arith.constant dense<0.000000e+00> : vector<1x64xf32>
    %36 = tpu.matmul %34, %35, %cst_25 {dimension_numbers = #tpu.dot_dimension_numbers<[1], [0], [0], [1], [0, 0, 1, 1], [], []>} : vector<1x64xbf16>, vector<64x64xbf16>, vector<1x64xf32> -> vector<1x64xf32>
    %37 = tpu.iota {dimensions = array<i32: 0>} : vector<8x64xi32>
    %c4_i32_26 = arith.constant 4 : i32
    %38 = vector.broadcast %c4_i32_26 : i32 to vector<8x64xi32>
    %39 = arith.cmpi slt, %37, %38 : vector<8x64xi32>
    %40 = vector.shape_cast %33 : vector<1x64xf32> to vector<1x64xf32>
    %41 = vector.broadcast %40 : vector<1x64xf32> to vector<8x64xf32>
    %42 = vector.shape_cast %36 : vector<1x64xf32> to vector<1x64xf32>
    %43 = vector.broadcast %42 : vector<1x64xf32> to vector<8x64xf32>
    %44 = arith.select %39, %41, %43 : vector<8x64xi1>, vector<8x64xf32>
    %45 = arith.addf %30, %44 : vector<8x64xf32>
    %c0_27 = arith.constant 0 : index
    %c0_28 = arith.constant 0 : index
    %46 = vector.load %arg8[%c0_27, %c0_28] : memref<1x64xf32, #tpu.memory_space<vmem>>, vector<1x64xf32>
    %47 = vector.broadcast %46 : vector<1x64xf32> to vector<8x64xf32>
    %48 = arith.addf %45, %47 : vector<8x64xf32>
    %cst_29 = arith.constant 0.000000e+00 : f32
    %49 = vector.broadcast %cst_29 : f32 to vector<8x64xf32>
    %50 = arith.maximumf %48, %49 : vector<8x64xf32>
    %51 = arith.truncf %50 : vector<8x64xf32> to vector<8x64xbf16>
    %c0_30 = arith.constant 0 : index
    %c0_31 = arith.constant 0 : index
    %52 = vector.load %arg9[%c0_30, %c0_31] : memref<64x64xbf16, #tpu.memory_space<vmem>>, vector<64x64xbf16>
    %cst_32 = arith.constant dense<0.000000e+00> : vector<8x64xf32>
    %53 = tpu.matmul %51, %52, %cst_32 {dimension_numbers = #tpu.dot_dimension_numbers<[1], [0], [0], [1], [0, 0, 1, 1], [], []>} : vector<8x64xbf16>, vector<64x64xbf16>, vector<8x64xf32> -> vector<8x64xf32>
    %c0_33 = arith.constant 0 : index
    %c0_34 = arith.constant 0 : index
    %54 = vector.load %arg10[%c0_33, %c0_34] : memref<1x64xf32, #tpu.memory_space<vmem>>, vector<1x64xf32>
    %55 = vector.broadcast %54 : vector<1x64xf32> to vector<8x64xf32>
    %56 = arith.addf %53, %55 : vector<8x64xf32>
    %c0_35 = arith.constant 0 : index
    %c0_36 = arith.constant 0 : index
    %57 = vector.load %arg11[%c0_35, %c0_36] : memref<8x64xf32, #tpu.memory_space<vmem>>, vector<8x64xf32>
    tpu.vector_store %arg11[%c0_35, %c0_36], %56 {strides = array<i32>} : memref<8x64xf32, #tpu.memory_space<vmem>>, vector<8x64xf32>,
    return
  }
}

module attributes {stable_mosaic.version = 11 : i64} {
  func.func @_pointconv_kernel(%arg0: memref<128x35xf32, #tpu.memory_space<vmem>>, %arg1: memref<8x16x1xf32, #tpu.memory_space<vmem>>, %arg2: memref<35x32xbf16, #tpu.memory_space<vmem>>, %arg3: memref<1x32xf32, #tpu.memory_space<vmem>>, %arg4: memref<32x64xbf16, #tpu.memory_space<vmem>>, %arg5: memref<1x64xf32, #tpu.memory_space<vmem>>, %arg6: memref<8x64xf32, #tpu.memory_space<vmem>>) attributes {dimension_semantics = [], scalar_prefetch = 0 : i64, scratch_operands = 0 : i64, tpu.core_type = #tpu.core_type<tc>} {
    %c0 = arith.constant 0 : index
    %c0_0 = arith.constant 0 : index
    %0 = vector.load %arg0[%c0, %c0_0] : memref<128x35xf32, #tpu.memory_space<vmem>>, vector<128x35xf32>
    %1 = arith.truncf %0 : vector<128x35xf32> to vector<128x35xbf16>
    %c0_1 = arith.constant 0 : index
    %c0_2 = arith.constant 0 : index
    %2 = vector.load %arg2[%c0_1, %c0_2] : memref<35x32xbf16, #tpu.memory_space<vmem>>, vector<35x32xbf16>
    %cst = arith.constant dense<0.000000e+00> : vector<128x32xf32>
    %3 = tpu.matmul %1, %2, %cst {dimension_numbers = #tpu.dot_dimension_numbers<[1], [0], [0], [1], [0, 0, 1, 1], [], []>} : vector<128x35xbf16>, vector<35x32xbf16>, vector<128x32xf32> -> vector<128x32xf32>
    %c0_3 = arith.constant 0 : index
    %c0_4 = arith.constant 0 : index
    %4 = vector.load %arg3[%c0_3, %c0_4] : memref<1x32xf32, #tpu.memory_space<vmem>>, vector<1x32xf32>
    %5 = vector.broadcast %4 : vector<1x32xf32> to vector<128x32xf32>
    %6 = arith.addf %3, %5 : vector<128x32xf32>
    %cst_5 = arith.constant 0.000000e+00 : f32
    %7 = vector.broadcast %cst_5 : f32 to vector<128x32xf32>
    %8 = arith.maximumf %6, %7 : vector<128x32xf32>
    %9 = arith.truncf %8 : vector<128x32xf32> to vector<128x32xbf16>
    %c0_6 = arith.constant 0 : index
    %c0_7 = arith.constant 0 : index
    %10 = vector.load %arg4[%c0_6, %c0_7] : memref<32x64xbf16, #tpu.memory_space<vmem>>, vector<32x64xbf16>
    %cst_8 = arith.constant dense<0.000000e+00> : vector<128x64xf32>
    %11 = tpu.matmul %9, %10, %cst_8 {dimension_numbers = #tpu.dot_dimension_numbers<[1], [0], [0], [1], [0, 0, 1, 1], [], []>} : vector<128x32xbf16>, vector<32x64xbf16>, vector<128x64xf32> -> vector<128x64xf32>
    %c0_9 = arith.constant 0 : index
    %c0_10 = arith.constant 0 : index
    %12 = vector.load %arg5[%c0_9, %c0_10] : memref<1x64xf32, #tpu.memory_space<vmem>>, vector<1x64xf32>
    %13 = vector.broadcast %12 : vector<1x64xf32> to vector<128x64xf32>
    %14 = arith.addf %11, %13 : vector<128x64xf32>
    %c0_11 = arith.constant 0 : index
    %c0_12 = arith.constant 0 : index
    %c0_13 = arith.constant 0 : index
    %15 = vector.load %arg1[%c0_11, %c0_12, %c0_13] : memref<8x16x1xf32, #tpu.memory_space<vmem>>, vector<8x16x1xf32>
    %16 = vector.shape_cast %14 : vector<128x64xf32> to vector<8x16x64xf32>
    %cst_14 = arith.constant 0.000000e+00 : f32
    %17 = vector.broadcast %cst_14 : f32 to vector<8x16x1xf32>
    %18 = arith.cmpf ogt, %15, %17 : vector<8x16x1xf32>
    %cst_15 = arith.constant -1.000000e+30 : f32
    %19 = vector.broadcast %cst_15 : f32 to vector<8x16x64xf32>
    %20 = vector.shape_cast %18 : vector<8x16x1xi1> to vector<8x16x1xi1>
    %21 = vector.broadcast %20 : vector<8x16x1xi1> to vector<8x16x64xi1>
    %22 = arith.select %21, %16, %19 : vector<8x16x64xi1>, vector<8x16x64xf32>
    %cst_16 = arith.constant dense<0xFF800000> : vector<8x64xf32>
    %23 = vector.multi_reduction <maximumf>, %22, %cst_16 [1] : vector<8x16x64xf32> to vector<8x64xf32>
    %cst_17 = arith.constant dense<0xFF800000> : vector<8x1xf32>
    %24 = vector.multi_reduction <maximumf>, %15, %cst_17 [1] : vector<8x16x1xf32> to vector<8x1xf32>
    %cst_18 = arith.constant 0.000000e+00 : f32
    %25 = vector.broadcast %cst_18 : f32 to vector<8x1xf32>
    %26 = arith.cmpf ogt, %24, %25 : vector<8x1xf32>
    %cst_19 = arith.constant 0.000000e+00 : f32
    %27 = vector.shape_cast %26 : vector<8x1xi1> to vector<8x1xi1>
    %28 = vector.broadcast %27 : vector<8x1xi1> to vector<8x64xi1>
    %29 = vector.broadcast %cst_19 : f32 to vector<8x64xf32>
    %30 = arith.select %28, %23, %29 : vector<8x64xi1>, vector<8x64xf32>
    %c0_20 = arith.constant 0 : index
    %c0_21 = arith.constant 0 : index
    %31 = vector.load %arg6[%c0_20, %c0_21] : memref<8x64xf32, #tpu.memory_space<vmem>>, vector<8x64xf32>
    tpu.vector_store %arg6[%c0_20, %c0_21], %30 {strides = array<i32>} : memref<8x64xf32, #tpu.memory_space<vmem>>, vector<8x64xf32>,
    return
  }
}

module attributes {stable_mosaic.version = 11 : i64} {
  func.func @_fused_mlp_kernel(%arg0: memref<26x96xf32, #tpu.memory_space<vmem>>, %arg1: memref<96x32xbf16, #tpu.memory_space<vmem>>, %arg2: memref<1x32xf32, #tpu.memory_space<vmem>>, %arg3: memref<32x32xbf16, #tpu.memory_space<vmem>>, %arg4: memref<1x32xf32, #tpu.memory_space<vmem>>, %arg5: memref<26x32xf32, #tpu.memory_space<vmem>>) attributes {dimension_semantics = [], scalar_prefetch = 0 : i64, scratch_operands = 0 : i64, tpu.core_type = #tpu.core_type<tc>} {
    %c0 = arith.constant 0 : index
    %c0_0 = arith.constant 0 : index
    %0 = vector.load %arg0[%c0, %c0_0] : memref<26x96xf32, #tpu.memory_space<vmem>>, vector<26x96xf32>
    %1 = arith.truncf %0 : vector<26x96xf32> to vector<26x96xbf16>
    %c0_1 = arith.constant 0 : index
    %c0_2 = arith.constant 0 : index
    %2 = vector.load %arg1[%c0_1, %c0_2] : memref<96x32xbf16, #tpu.memory_space<vmem>>, vector<96x32xbf16>
    %cst = arith.constant dense<0.000000e+00> : vector<26x32xf32>
    %3 = tpu.matmul %1, %2, %cst {dimension_numbers = #tpu.dot_dimension_numbers<[1], [0], [0], [1], [0, 0, 1, 1], [], []>} : vector<26x96xbf16>, vector<96x32xbf16>, vector<26x32xf32> -> vector<26x32xf32>
    %c0_3 = arith.constant 0 : index
    %c0_4 = arith.constant 0 : index
    %4 = vector.load %arg2[%c0_3, %c0_4] : memref<1x32xf32, #tpu.memory_space<vmem>>, vector<1x32xf32>
    %5 = vector.broadcast %4 : vector<1x32xf32> to vector<26x32xf32>
    %6 = arith.addf %3, %5 : vector<26x32xf32>
    %cst_5 = arith.constant 0.000000e+00 : f32
    %7 = vector.broadcast %cst_5 : f32 to vector<26x32xf32>
    %8 = arith.maximumf %6, %7 : vector<26x32xf32>
    %9 = arith.truncf %8 : vector<26x32xf32> to vector<26x32xbf16>
    %c0_6 = arith.constant 0 : index
    %c0_7 = arith.constant 0 : index
    %10 = vector.load %arg3[%c0_6, %c0_7] : memref<32x32xbf16, #tpu.memory_space<vmem>>, vector<32x32xbf16>
    %cst_8 = arith.constant dense<0.000000e+00> : vector<26x32xf32>
    %11 = tpu.matmul %9, %10, %cst_8 {dimension_numbers = #tpu.dot_dimension_numbers<[1], [0], [0], [1], [0, 0, 1, 1], [], []>} : vector<26x32xbf16>, vector<32x32xbf16>, vector<26x32xf32> -> vector<26x32xf32>
    %c0_9 = arith.constant 0 : index
    %c0_10 = arith.constant 0 : index
    %12 = vector.load %arg4[%c0_9, %c0_10] : memref<1x32xf32, #tpu.memory_space<vmem>>, vector<1x32xf32>
    %13 = vector.broadcast %12 : vector<1x32xf32> to vector<26x32xf32>
    %14 = arith.addf %11, %13 : vector<26x32xf32>
    %c0_11 = arith.constant 0 : index
    %c0_12 = arith.constant 0 : index
    %15 = vector.load %arg5[%c0_11, %c0_12] : memref<26x32xf32, #tpu.memory_space<vmem>>, vector<26x32xf32>
    tpu.vector_store %arg5[%c0_11, %c0_12], %14 {strides = array<i32>} : memref<26x32xf32, #tpu.memory_space<vmem>>, vector<26x32xf32>,
    return
  }
}

module attributes {stable_mosaic.version = 11 : i64} {
  func.func @_head_kernel(%arg0: memref<128x33xf32, #tpu.memory_space<vmem>>, %arg1: memref<33x32xbf16, #tpu.memory_space<vmem>>, %arg2: memref<1x32xf32, #tpu.memory_space<vmem>>, %arg3: memref<32x32xbf16, #tpu.memory_space<vmem>>, %arg4: memref<1x32xf32, #tpu.memory_space<vmem>>, %arg5: memref<32x32xbf16, #tpu.memory_space<vmem>>, %arg6: memref<1x32xf32, #tpu.memory_space<vmem>>, %arg7: memref<32x32xbf16, #tpu.memory_space<vmem>>, %arg8: memref<1x32xf32, #tpu.memory_space<vmem>>, %arg9: memref<32x32xbf16, #tpu.memory_space<vmem>>, %arg10: memref<1x32xf32, #tpu.memory_space<vmem>>, %arg11: memref<32x32xbf16, #tpu.memory_space<vmem>>, %arg12: memref<1x32xf32, #tpu.memory_space<vmem>>, %arg13: memref<32x16xbf16, #tpu.memory_space<vmem>>, %arg14: memref<1x16xf32, #tpu.memory_space<vmem>>, %arg15: memref<16x8xbf16, #tpu.memory_space<vmem>>, %arg16: memref<1x8xf32, #tpu.memory_space<vmem>>, %arg17: memref<8x1xbf16, #tpu.memory_space<vmem>>, %arg18: memref<1x1xf32, #tpu.memory_space<vmem>>, %arg19: memref<128x128xf32, #tpu.memory_space<vmem>>) attributes {dimension_semantics = [], scalar_prefetch = 0 : i64, scratch_operands = 0 : i64, tpu.core_type = #tpu.core_type<tc>} {
    %c0 = arith.constant 0 : index
    %c0_0 = arith.constant 0 : index
    %0 = vector.load %arg0[%c0, %c0_0] : memref<128x33xf32, #tpu.memory_space<vmem>>, vector<128x33xf32>
    %1 = arith.truncf %0 : vector<128x33xf32> to vector<128x33xbf16>
    %c0_1 = arith.constant 0 : index
    %c0_2 = arith.constant 0 : index
    %2 = vector.load %arg1[%c0_1, %c0_2] : memref<33x32xbf16, #tpu.memory_space<vmem>>, vector<33x32xbf16>
    %cst = arith.constant dense<0.000000e+00> : vector<128x32xf32>
    %3 = tpu.matmul %1, %2, %cst {dimension_numbers = #tpu.dot_dimension_numbers<[1], [0], [0], [1], [0, 0, 1, 1], [], []>} : vector<128x33xbf16>, vector<33x32xbf16>, vector<128x32xf32> -> vector<128x32xf32>
    %c0_3 = arith.constant 0 : index
    %c0_4 = arith.constant 0 : index
    %4 = vector.load %arg2[%c0_3, %c0_4] : memref<1x32xf32, #tpu.memory_space<vmem>>, vector<1x32xf32>
    %5 = vector.broadcast %4 : vector<1x32xf32> to vector<128x32xf32>
    %6 = arith.addf %3, %5 : vector<128x32xf32>
    %cst_5 = arith.constant 0.000000e+00 : f32
    %7 = vector.broadcast %cst_5 : f32 to vector<128x32xf32>
    %8 = arith.maximumf %6, %7 : vector<128x32xf32>
    %9 = arith.truncf %8 : vector<128x32xf32> to vector<128x32xbf16>
    %c0_6 = arith.constant 0 : index
    %c0_7 = arith.constant 0 : index
    %10 = vector.load %arg3[%c0_6, %c0_7] : memref<32x32xbf16, #tpu.memory_space<vmem>>, vector<32x32xbf16>
    %cst_8 = arith.constant dense<0.000000e+00> : vector<128x32xf32>
    %11 = tpu.matmul %9, %10, %cst_8 {dimension_numbers = #tpu.dot_dimension_numbers<[1], [0], [0], [1], [0, 0, 1, 1], [], []>} : vector<128x32xbf16>, vector<32x32xbf16>, vector<128x32xf32> -> vector<128x32xf32>
    %c0_9 = arith.constant 0 : index
    %c0_10 = arith.constant 0 : index
    %12 = vector.load %arg4[%c0_9, %c0_10] : memref<1x32xf32, #tpu.memory_space<vmem>>, vector<1x32xf32>
    %13 = vector.broadcast %12 : vector<1x32xf32> to vector<128x32xf32>
    %14 = arith.addf %11, %13 : vector<128x32xf32>
    %cst_11 = arith.constant 0.000000e+00 : f32
    %15 = vector.broadcast %cst_11 : f32 to vector<128x32xf32>
    %16 = arith.maximumf %14, %15 : vector<128x32xf32>
    %17 = arith.truncf %16 : vector<128x32xf32> to vector<128x32xbf16>
    %c0_12 = arith.constant 0 : index
    %c0_13 = arith.constant 0 : index
    %18 = vector.load %arg5[%c0_12, %c0_13] : memref<32x32xbf16, #tpu.memory_space<vmem>>, vector<32x32xbf16>
    %cst_14 = arith.constant dense<0.000000e+00> : vector<128x32xf32>
    %19 = tpu.matmul %17, %18, %cst_14 {dimension_numbers = #tpu.dot_dimension_numbers<[1], [0], [0], [1], [0, 0, 1, 1], [], []>} : vector<128x32xbf16>, vector<32x32xbf16>, vector<128x32xf32> -> vector<128x32xf32>
    %c0_15 = arith.constant 0 : index
    %c0_16 = arith.constant 0 : index
    %20 = vector.load %arg6[%c0_15, %c0_16] : memref<1x32xf32, #tpu.memory_space<vmem>>, vector<1x32xf32>
    %21 = vector.broadcast %20 : vector<1x32xf32> to vector<128x32xf32>
    %22 = arith.addf %19, %21 : vector<128x32xf32>
    %23 = arith.truncf %22 : vector<128x32xf32> to vector<128x32xbf16>
    %c0_17 = arith.constant 0 : index
    %c0_18 = arith.constant 0 : index
    %24 = vector.load %arg7[%c0_17, %c0_18] : memref<32x32xbf16, #tpu.memory_space<vmem>>, vector<32x32xbf16>
    %cst_19 = arith.constant dense<0.000000e+00> : vector<128x32xf32>
    %25 = tpu.matmul %23, %24, %cst_19 {dimension_numbers = #tpu.dot_dimension_numbers<[1], [0], [0], [1], [0, 0, 1, 1], [], []>} : vector<128x32xbf16>, vector<32x32xbf16>, vector<128x32xf32> -> vector<128x32xf32>
    %c0_20 = arith.constant 0 : index
    %c0_21 = arith.constant 0 : index
    %26 = vector.load %arg8[%c0_20, %c0_21] : memref<1x32xf32, #tpu.memory_space<vmem>>, vector<1x32xf32>
    %27 = vector.broadcast %26 : vector<1x32xf32> to vector<128x32xf32>
    %28 = arith.addf %25, %27 : vector<128x32xf32>
    %cst_22 = arith.constant 0.000000e+00 : f32
    %29 = vector.broadcast %cst_22 : f32 to vector<128x32xf32>
    %30 = arith.maximumf %28, %29 : vector<128x32xf32>
    %31 = arith.truncf %30 : vector<128x32xf32> to vector<128x32xbf16>
    %c0_23 = arith.constant 0 : index
    %c0_24 = arith.constant 0 : index
    %32 = vector.load %arg9[%c0_23, %c0_24] : memref<32x32xbf16, #tpu.memory_space<vmem>>, vector<32x32xbf16>
    %cst_25 = arith.constant dense<0.000000e+00> : vector<128x32xf32>
    %33 = tpu.matmul %31, %32, %cst_25 {dimension_numbers = #tpu.dot_dimension_numbers<[1], [0], [0], [1], [0, 0, 1, 1], [], []>} : vector<128x32xbf16>, vector<32x32xbf16>, vector<128x32xf32> -> vector<128x32xf32>
    %c0_26 = arith.constant 0 : index
    %c0_27 = arith.constant 0 : index
    %34 = vector.load %arg10[%c0_26, %c0_27] : memref<1x32xf32, #tpu.memory_space<vmem>>, vector<1x32xf32>
    %35 = vector.broadcast %34 : vector<1x32xf32> to vector<128x32xf32>
    %36 = arith.addf %33, %35 : vector<128x32xf32>
    %cst_28 = arith.constant 0.000000e+00 : f32
    %37 = vector.broadcast %cst_28 : f32 to vector<128x32xf32>
    %38 = arith.maximumf %36, %37 : vector<128x32xf32>
    %39 = arith.truncf %38 : vector<128x32xf32> to vector<128x32xbf16>
    %c0_29 = arith.constant 0 : index
    %c0_30 = arith.constant 0 : index
    %40 = vector.load %arg11[%c0_29, %c0_30] : memref<32x32xbf16, #tpu.memory_space<vmem>>, vector<32x32xbf16>
    %cst_31 = arith.constant dense<0.000000e+00> : vector<128x32xf32>
    %41 = tpu.matmul %39, %40, %cst_31 {dimension_numbers = #tpu.dot_dimension_numbers<[1], [0], [0], [1], [0, 0, 1, 1], [], []>} : vector<128x32xbf16>, vector<32x32xbf16>, vector<128x32xf32> -> vector<128x32xf32>
    %c0_32 = arith.constant 0 : index
    %c0_33 = arith.constant 0 : index
    %42 = vector.load %arg12[%c0_32, %c0_33] : memref<1x32xf32, #tpu.memory_space<vmem>>, vector<1x32xf32>
    %43 = vector.broadcast %42 : vector<1x32xf32> to vector<128x32xf32>
    %44 = arith.addf %41, %43 : vector<128x32xf32>
    %45 = arith.truncf %44 : vector<128x32xf32> to vector<128x32xbf16>
    %c0_34 = arith.constant 0 : index
    %c0_35 = arith.constant 0 : index
    %46 = vector.load %arg13[%c0_34, %c0_35] : memref<32x16xbf16, #tpu.memory_space<vmem>>, vector<32x16xbf16>
    %cst_36 = arith.constant dense<0.000000e+00> : vector<128x16xf32>
    %47 = tpu.matmul %45, %46, %cst_36 {dimension_numbers = #tpu.dot_dimension_numbers<[1], [0], [0], [1], [0, 0, 1, 1], [], []>} : vector<128x32xbf16>, vector<32x16xbf16>, vector<128x16xf32> -> vector<128x16xf32>
    %c0_37 = arith.constant 0 : index
    %c0_38 = arith.constant 0 : index
    %48 = vector.load %arg14[%c0_37, %c0_38] : memref<1x16xf32, #tpu.memory_space<vmem>>, vector<1x16xf32>
    %49 = vector.broadcast %48 : vector<1x16xf32> to vector<128x16xf32>
    %50 = arith.addf %47, %49 : vector<128x16xf32>
    %cst_39 = arith.constant 0.000000e+00 : f32
    %51 = vector.broadcast %cst_39 : f32 to vector<128x16xf32>
    %52 = arith.maximumf %50, %51 : vector<128x16xf32>
    %53 = arith.truncf %52 : vector<128x16xf32> to vector<128x16xbf16>
    %c0_40 = arith.constant 0 : index
    %c0_41 = arith.constant 0 : index
    %54 = vector.load %arg15[%c0_40, %c0_41] : memref<16x8xbf16, #tpu.memory_space<vmem>>, vector<16x8xbf16>
    %cst_42 = arith.constant dense<0.000000e+00> : vector<128x8xf32>
    %55 = tpu.matmul %53, %54, %cst_42 {dimension_numbers = #tpu.dot_dimension_numbers<[1], [0], [0], [1], [0, 0, 1, 1], [], []>} : vector<128x16xbf16>, vector<16x8xbf16>, vector<128x8xf32> -> vector<128x8xf32>
    %c0_43 = arith.constant 0 : index
    %c0_44 = arith.constant 0 : index
    %56 = vector.load %arg16[%c0_43, %c0_44] : memref<1x8xf32, #tpu.memory_space<vmem>>, vector<1x8xf32>
    %57 = vector.broadcast %56 : vector<1x8xf32> to vector<128x8xf32>
    %58 = arith.addf %55, %57 : vector<128x8xf32>
    %59 = arith.truncf %58 : vector<128x8xf32> to vector<128x8xbf16>
    %c0_45 = arith.constant 0 : index
    %c0_46 = arith.constant 0 : index
    %60 = vector.load %arg17[%c0_45, %c0_46] : memref<8x1xbf16, #tpu.memory_space<vmem>>, vector<8x1xbf16>
    %cst_47 = arith.constant dense<0.000000e+00> : vector<128x1xf32>
    %61 = tpu.matmul %59, %60, %cst_47 {dimension_numbers = #tpu.dot_dimension_numbers<[1], [0], [0], [1], [0, 0, 1, 1], [], []>} : vector<128x8xbf16>, vector<8x1xbf16>, vector<128x1xf32> -> vector<128x1xf32>
    %c0_48 = arith.constant 0 : index
    %c0_49 = arith.constant 0 : index
    %62 = vector.load %arg18[%c0_48, %c0_49] : memref<1x1xf32, #tpu.memory_space<vmem>>, vector<1x1xf32>
    %63 = vector.broadcast %62 : vector<1x1xf32> to vector<128x1xf32>
    %64 = arith.addf %61, %63 : vector<128x1xf32>
    %cst_50 = arith.constant 2.000000e+01 : f32
    %65 = vector.broadcast %cst_50 : f32 to vector<128x1xf32>
    %66 = arith.cmpf ogt, %64, %65 : vector<128x1xf32>
    %cst_51 = arith.constant 2.000000e+01 : f32
    %67 = vector.broadcast %cst_51 : f32 to vector<128x1xf32>
    %68 = arith.minimumf %64, %67 : vector<128x1xf32>
    %69 = math.exp %68 : vector<128x1xf32>
    %70 = math.log1p %69 : vector<128x1xf32>
    %71 = arith.select %66, %64, %70 : vector<128x1xi1>, vector<128x1xf32>
    %72 = vector.shape_cast %71 : vector<128x1xf32> to vector<128x1xf32>
    %73 = vector.broadcast %72 : vector<128x1xf32> to vector<128x96xf32>
    %74 = tpu.concatenate %44, %73 in 1 : vector<128x32xf32>, vector<128x96xf32> -> vector<128x128xf32>
    %c0_52 = arith.constant 0 : index
    %c0_53 = arith.constant 0 : index
    %75 = vector.load %arg19[%c0_52, %c0_53] : memref<128x128xf32, #tpu.memory_space<vmem>>, vector<128x128xf32>
    tpu.vector_store %arg19[%c0_52, %c0_53], %74 {strides = array<i32>} : memref<128x128xf32, #tpu.memory_space<vmem>>, vector<128x128xf32>,
    return
  }
}

module attributes {stable_mosaic.version = 11 : i64} {
  func.func @_pointconv_kernel(%arg0: memref<512x35xf32, #tpu.memory_space<vmem>>, %arg1: memref<32x16x1xf32, #tpu.memory_space<vmem>>, %arg2: memref<35x32xbf16, #tpu.memory_space<vmem>>, %arg3: memref<1x32xf32, #tpu.memory_space<vmem>>, %arg4: memref<32x32xbf16, #tpu.memory_space<vmem>>, %arg5: memref<1x32xf32, #tpu.memory_space<vmem>>, %arg6: memref<32x32xf32, #tpu.memory_space<vmem>>) attributes {dimension_semantics = [], scalar_prefetch = 0 : i64, scratch_operands = 0 : i64, tpu.core_type = #tpu.core_type<tc>} {
    %c0 = arith.constant 0 : index
    %c0_0 = arith.constant 0 : index
    %0 = vector.load %arg0[%c0, %c0_0] : memref<512x35xf32, #tpu.memory_space<vmem>>, vector<512x35xf32>
    %1 = arith.truncf %0 : vector<512x35xf32> to vector<512x35xbf16>
    %c0_1 = arith.constant 0 : index
    %c0_2 = arith.constant 0 : index
    %2 = vector.load %arg2[%c0_1, %c0_2] : memref<35x32xbf16, #tpu.memory_space<vmem>>, vector<35x32xbf16>
    %cst = arith.constant dense<0.000000e+00> : vector<512x32xf32>
    %3 = tpu.matmul %1, %2, %cst {dimension_numbers = #tpu.dot_dimension_numbers<[1], [0], [0], [1], [0, 0, 1, 1], [], []>} : vector<512x35xbf16>, vector<35x32xbf16>, vector<512x32xf32> -> vector<512x32xf32>
    %c0_3 = arith.constant 0 : index
    %c0_4 = arith.constant 0 : index
    %4 = vector.load %arg3[%c0_3, %c0_4] : memref<1x32xf32, #tpu.memory_space<vmem>>, vector<1x32xf32>
    %5 = vector.broadcast %4 : vector<1x32xf32> to vector<512x32xf32>
    %6 = arith.addf %3, %5 : vector<512x32xf32>
    %cst_5 = arith.constant 0.000000e+00 : f32
    %7 = vector.broadcast %cst_5 : f32 to vector<512x32xf32>
    %8 = arith.maximumf %6, %7 : vector<512x32xf32>
    %9 = arith.truncf %8 : vector<512x32xf32> to vector<512x32xbf16>
    %c0_6 = arith.constant 0 : index
    %c0_7 = arith.constant 0 : index
    %10 = vector.load %arg4[%c0_6, %c0_7] : memref<32x32xbf16, #tpu.memory_space<vmem>>, vector<32x32xbf16>
    %cst_8 = arith.constant dense<0.000000e+00> : vector<512x32xf32>
    %11 = tpu.matmul %9, %10, %cst_8 {dimension_numbers = #tpu.dot_dimension_numbers<[1], [0], [0], [1], [0, 0, 1, 1], [], []>} : vector<512x32xbf16>, vector<32x32xbf16>, vector<512x32xf32> -> vector<512x32xf32>
    %c0_9 = arith.constant 0 : index
    %c0_10 = arith.constant 0 : index
    %12 = vector.load %arg5[%c0_9, %c0_10] : memref<1x32xf32, #tpu.memory_space<vmem>>, vector<1x32xf32>
    %13 = vector.broadcast %12 : vector<1x32xf32> to vector<512x32xf32>
    %14 = arith.addf %11, %13 : vector<512x32xf32>
    %c0_11 = arith.constant 0 : index
    %c0_12 = arith.constant 0 : index
    %c0_13 = arith.constant 0 : index
    %15 = vector.load %arg1[%c0_11, %c0_12, %c0_13] : memref<32x16x1xf32, #tpu.memory_space<vmem>>, vector<32x16x1xf32>
    %16 = vector.shape_cast %14 : vector<512x32xf32> to vector<32x16x32xf32>
    %cst_14 = arith.constant 0.000000e+00 : f32
    %17 = vector.broadcast %cst_14 : f32 to vector<32x16x1xf32>
    %18 = arith.cmpf ogt, %15, %17 : vector<32x16x1xf32>
    %cst_15 = arith.constant -1.000000e+30 : f32
    %19 = vector.broadcast %cst_15 : f32 to vector<32x16x32xf32>
    %20 = vector.shape_cast %18 : vector<32x16x1xi1> to vector<32x16x1xi1>
    %21 = vector.broadcast %20 : vector<32x16x1xi1> to vector<32x16x32xi1>
    %22 = arith.select %21, %16, %19 : vector<32x16x32xi1>, vector<32x16x32xf32>
    %cst_16 = arith.constant dense<0xFF800000> : vector<32x32xf32>
    %23 = vector.multi_reduction <maximumf>, %22, %cst_16 [1] : vector<32x16x32xf32> to vector<32x32xf32>
    %cst_17 = arith.constant dense<0xFF800000> : vector<32x1xf32>
    %24 = vector.multi_reduction <maximumf>, %15, %cst_17 [1] : vector<32x16x1xf32> to vector<32x1xf32>
    %cst_18 = arith.constant 0.000000e+00 : f32
    %25 = vector.broadcast %cst_18 : f32 to vector<32x1xf32>
    %26 = arith.cmpf ogt, %24, %25 : vector<32x1xf32>
    %cst_19 = arith.constant 0.000000e+00 : f32
    %27 = vector.shape_cast %26 : vector<32x1xi1> to vector<32x1xi1>
    %28 = vector.broadcast %27 : vector<32x1xi1> to vector<32x32xi1>
    %29 = vector.broadcast %cst_19 : f32 to vector<32x32xf32>
    %30 = arith.select %28, %23, %29 : vector<32x32xi1>, vector<32x32xf32>
    %31 = arith.mulf %30, %30 : vector<32x32xf32>
    %cst_20 = arith.constant dense<0.000000e+00> : vector<32xf32>
    %32 = vector.multi_reduction <add>, %31, %cst_20 [1] : vector<32x32xf32> to vector<32xf32>
    %33 = vector.shape_cast %32 : vector<32xf32> to vector<32x1xf32>
    %cst_21 = arith.constant 1.000000e-24 : f32
    %34 = vector.broadcast %cst_21 : f32 to vector<32x1xf32>
    %35 = arith.maximumf %33, %34 : vector<32x1xf32>
    %36 = math.rsqrt %35 : vector<32x1xf32>
    %37 = vector.broadcast %36 : vector<32x1xf32> to vector<32x32xf32>
    %38 = arith.mulf %30, %37 : vector<32x32xf32>
    %c0_22 = arith.constant 0 : index
    %c0_23 = arith.constant 0 : index
    %39 = vector.load %arg6[%c0_22, %c0_23] : memref<32x32xf32, #tpu.memory_space<vmem>>, vector<32x32xf32>
    tpu.vector_store %arg6[%c0_22, %c0_23], %38 {strides = array<i32>} : memref<32x32xf32, #tpu.memory_space<vmem>>, vector<32x32xf32>,
    return
  }
}

</mosaic_0001>

<llo_original>
// kernel: sin.3
$region0: #{sin.3}
  #allocation0 [shape = 's32[1]{0}', space=sflag, size = 0x4, scoped, tag = 'scoped memory for sin.3']
  %s0 = inlined_call_operand.vmem [shape: f32[64,1], index: 0, kind: input, shape index: {}]
  %s1 = inlined_call_operand.vmem [shape: f32[64,1], index: 1, kind: output, shape index: {}]
  %v2 = vld [vmem:[%s0] sm:$0xff]
  %v3 = vand.u32 2147483647, %v2
  %vm4 = vcmp.le.f32.partialorder %v3, 0.7853982
  %vm5 = vcmp.lt.s32.totalorder %v2, 0
  %v6 = vand.u32 %v2, 2139095040
  %v7 = vshrl.u32 %v6, 23
  %v8 = vsub.s32 %v7, 127
  %v9 = vand.u32 2147483647, %v2
  %v10 = vand.u32 %v9, 8388607
  %v11 = vor.u32 %v10, 8388608
  %v12 = vsub.s32 0, %v11
  %v13 = vadd.s32 %v8, 1
  %vm14 = vcmp.gt.s32.totalorder %v13, 0
  %v15 = vsel %vm14, %v13, 0
  %v16 = vshrl.u32 %v15, 5
  %v17 = vand.u32 %v15, 31
  %v18 = vsub.s32 32, %v17
  %v19 = vshrl.u32 683565275, %v18
  %v20 = vshll.u32 683565275, %v17
  %v21 = vshrl.u32 2475754826, %v18
  %v22 = vor.u32 %v20, %v21
  %v23 = vshll.u32 2475754826, %v17
  %v24 = vshrl.u32 2131351028, %v18
  %v25 = vor.u32 %v23, %v24
  %v26 = vshll.u32 2131351028, %v17
  %v27 = vshrl.u32 2102212464, %v18
  %v28 = vor.u32 %v26, %v27
  %v29 = vshll.u32 2102212464, %v17
  %v30 = vshrl.u32 920167782, %v18
  %v31 = vor.u32 %v29, %v30
  %v32 = vshll.u32 920167782, %v17
  %v33 = vshrl.u32 1326507024, %v18
  %v34 = vor.u32 %v32, %v33
  %vm35 = vcmp.lt.s32.totalorder %v16, 1
  %vm36 = vcmp.lt.s32.totalorder %v16, 2
  %vm37 = vcmp.lt.s32.totalorder %v16, 3
  %vm38 = vcmp.lt.s32.totalorder %v16, 4
  %v39 = vsel %vm35, %v19, %v22
  %v40 = vsel %vm38, %v28, 2102212464
  %v41 = vsel %vm37, %v25, %v40
  %v42 = vsel %vm36, %v39, %v41
  %v43 = vsel %vm35, %v22, %v25
  %v44 = vsel %vm38, %v31, 920167782
  %v45 = vsel %vm37, %v28, %v44
  %v46 = vsel %vm36, %v43, %v45
  %v47 = vsel %vm35, %v25, %v28
  %v48 = vsel %vm38, %v34, 1326507024
  %v49 = vsel %vm37, %v31, %v48
  %v50 = vsel %vm36, %v47, %v49
  %v51 = vshll.u32 %v11, 8
  %v52 = vmul.u32.u64.compose %v51, %v50
  %v53 = vextract.low.u32 %v52
  %v54 = vextract.high.u32 %v52
  %v55 = vmul.u32.u64.compose %v51, %v46
  %v56 = vextract.low.u32 %v55
  %v57 = vextract.high.u32 %v55
  %v58 = vmul.u32 %v51, %v42
  %v59 = vadd.s32 %v54, %v56
  %vm60 = vc.u32 %v54, %v56
  %v61 = vadd.s32 %v57, 1
  %v62 = vsel %vm60, %v61, %v57
  %v63 = vadd.s32 %v58, %v62
  %v64 = vadd.s32 %v63, 536870912
  %v65 = vshrl.u32 %v64, 30
  %v66 = vshll.u32 %v65, 30
  %v67 = vsub.s32 %v63, %v66
  %vm68 = vcmp.lt.s32.totalorder %v67, 0
  %v69 = vsub.s32 0, %v67
  %v70 = vsel %vm68, %v69, %v67
  %v71 = vclz %v70
  %v72 = vsub.s32 %v71, 2
  %vm73 = vcmp.gt.s32.totalorder 0, %v72
  %v74 = vsel %vm73, 0, %v72
  %v75 = vsub.s32 32, %v74
  %v76 = vshll.u32 %v67, %v74
  %v77 = vshrl.u32 %v59, %v75
  %v78 = vor.u32 %v76, %v77
  %v79 = vsub.s32 4294967266, %v74
  %v80 = vadd.s32 %v79, 127
  %v81 = vshll.u32 %v80, 23
  %v82 = vor.u32 4788187, %v81
  %v83 = vand.u32 2147483647, %v82
  %v85 = vcvt.s32.f32 %v78
  %v86 = vmul.f32 %v85, %v83
  %v87 = vxor.u32 %v86, 2147483648
  %v88 = vsel %vm5, %v87, %v86
  %v89 = vsub.s32 4, %v65
  %v90 = vsel %vm5, %v89, %v65
  %v91 = vsel %vm4, %v2, %v88
  %v92 = vsel %vm4, 0, %v90
  %v93 = vcosq.f32.pop %v91
  %v94 = vsinq.f32.pop %v91
  %vm95 = vweird.f32 %v2
  %v96 = vadd.s32 %v92, 3
  %v97 = vand.u32 %v96, 3
  %vm98 = vcmp.lt.s32.totalorder %v97, 2
  %vm99 = vcmp.eq.s32.totalorder %v97, 0
  %v100 = vxor.u32 %v94, 2147483648
  %v101 = vsel %vm99, %v93, %v100
  %vm102 = vcmp.eq.s32.totalorder %v97, 2
  %v103 = vxor.u32 %v93, 2147483648
  %v104 = vsel %vm102, %v103, %v94
  %v105 = vsel %vm98, %v101, %v104
  %v106 = vsel %vm95, nan, %v105
  %107 = vst [vmem:[%s1] sm:$0xff] %v106
  %s108 = scalar_lea.vmem %s0, 8
  %v109 = vld [vmem:[%s108] sm:$0xff]
  %v110 = vand.u32 2147483647, %v109
  %vm111 = vcmp.le.f32.partialorder %v110, 0.7853982
  %vm112 = vcmp.lt.s32.totalorder %v109, 0
  %v113 = vand.u32 %v109, 2139095040
  %v114 = vshrl.u32 %v113, 23
  %v115 = vsub.s32 %v114, 127
  %v116 = vand.u32 2147483647, %v109
  %v117 = vand.u32 %v116, 8388607
  %v118 = vor.u32 %v117, 8388608
  %v119 = vsub.s32 0, %v118
  %v120 = vadd.s32 %v115, 1
  %vm121 = vcmp.gt.s32.totalorder %v120, 0
  %v122 = vsel %vm121, %v120, 0
  %v123 = vshrl.u32 %v122, 5
  %v124 = vand.u32 %v122, 31
  %v125 = vsub.s32 32, %v124
  %v126 = vshrl.u32 683565275, %v125
  %v127 = vshll.u32 683565275, %v124
  %v128 = vshrl.u32 2475754826, %v125
  %v129 = vor.u32 %v127, %v128
  %v130 = vshll.u32 2475754826, %v124
  %v131 = vshrl.u32 2131351028, %v125
  %v132 = vor.u32 %v130, %v131
  %v133 = vshll.u32 2131351028, %v124
  %v134 = vshrl.u32 2102212464, %v125
  %v135 = vor.u32 %v133, %v134
  %v136 = vshll.u32 2102212464, %v124
  %v137 = vshrl.u32 920167782, %v125
  %v138 = vor.u32 %v136, %v137
  %v139 = vshll.u32 920167782, %v124
  %v140 = vshrl.u32 1326507024, %v125
  %v141 = vor.u32 %v139, %v140
  %vm142 = vcmp.lt.s32.totalorder %v123, 1
  %vm143 = vcmp.lt.s32.totalorder %v123, 2
  %vm144 = vcmp.lt.s32.totalorder %v123, 3
  %vm145 = vcmp.lt.s32.totalorder %v123, 4
  %v146 = vsel %vm142, %v126, %v129
  %v147 = vsel %vm145, %v135, 2102212464
  %v148 = vsel %vm144, %v132, %v147
  %v149 = vsel %vm143, %v146, %v148
  %v150 = vsel %vm142, %v129, %v132
  %v151 = vsel %vm145, %v138, 920167782
  %v152 = vsel %vm144, %v135, %v151
  %v153 = vsel %vm143, %v150, %v152
  %v154 = vsel %vm142, %v132, %v135
  %v155 = vsel %vm145, %v141, 1326507024
  %v156 = vsel %vm144, %v138, %v155
  %v157 = vsel %vm143, %v154, %v156
  %v158 = vshll.u32 %v118, 8
  %v159 = vmul.u32.u64.compose %v158, %v157
  %v160 = vextract.low.u32 %v159
  %v161 = vextract.high.u32 %v159
  %v162 = vmul.u32.u64.compose %v158, %v153
  %v163 = vextract.low.u32 %v162
  %v164 = vextract.high.u32 %v162
  %v165 = vmul.u32 %v158, %v149
  %v166 = vadd.s32 %v161, %v163
  %vm167 = vc.u32 %v161, %v163
  %v168 = vadd.s32 %v164, 1
  %v169 = vsel %vm167, %v168, %v164
  %v170 = vadd.s32 %v165, %v169
  %v171 = vadd.s32 %v170, 536870912
  %v172 = vshrl.u32 %v171, 30
  %v173 = vshll.u32 %v172, 30
  %v174 = vsub.s32 %v170, %v173
  %vm175 = vcmp.lt.s32.totalorder %v174, 0
  %v176 = vsub.s32 0, %v174
  %v177 = vsel %vm175, %v176, %v174
  %v178 = vclz %v177
  %v179 = vsub.s32 %v178, 2
  %vm180 = vcmp.gt.s32.totalorder 0, %v179
  %v181 = vsel %vm180, 0, %v179
  %v182 = vsub.s32 32, %v181
  %v183 = vshll.u32 %v174, %v181
  %v184 = vshrl.u32 %v166, %v182
  %v185 = vor.u32 %v183, %v184
  %v186 = vsub.s32 4294967266, %v181
  %v187 = vadd.s32 %v186, 127
  %v188 = vshll.u32 %v187, 23
  %v189 = vor.u32 4788187, %v188
  %v190 = vand.u32 2147483647, %v189
  %v192 = vcvt.s32.f32 %v185
  %v193 = vmul.f32 %v192, %v190
  %v194 = vxor.u32 %v193, 2147483648
  %v195 = vsel %vm112, %v194, %v193
  %v196 = vsub.s32 4, %v172
  %v197 = vsel %vm112, %v196, %v172
  %v198 = vsel %vm111, %v109, %v195
  %v199 = vsel %vm111, 0, %v197
  %v200 = vcosq.f32.pop %v198
  %v201 = vsinq.f32.pop %v198
  %vm202 = vweird.f32 %v109
  %v203 = vadd.s32 %v199, 3
  %v204 = vand.u32 %v203, 3
  %vm205 = vcmp.lt.s32.totalorder %v204, 2
  %vm206 = vcmp.eq.s32.totalorder %v204, 0
  %v207 = vxor.u32 %v201, 2147483648
  %v208 = vsel %vm206, %v200, %v207
  %vm209 = vcmp.eq.s32.totalorder %v204, 2
  %v210 = vxor.u32 %v200, 2147483648
  %v211 = vsel %vm209, %v210, %v201
  %v212 = vsel %vm205, %v208, %v211
  %v213 = vsel %vm202, nan, %v212
  %s214 = scalar_lea.vmem %s1, 8
  %215 = vst [vmem:[%s214] sm:$0xff] %v213
  %s216 = scalar_lea.vmem %s0, 16
  %v217 = vld [vmem:[%s216] sm:$0xff]
  %v218 = vand.u32 2147483647, %v217
  %vm219 = vcmp.le.f32.partialorder %v218, 0.7853982
  %vm220 = vcmp.lt.s32.totalorder %v217, 0
  %v221 = vand.u32 %v217, 2139095040
  %v222 = vshrl.u32 %v221, 23
  %v223 = vsub.s32 %v222, 127
  %v224 = vand.u32 2147483647, %v217
  %v225 = vand.u32 %v224, 8388607
  %v226 = vor.u32 %v225, 8388608
  %v227 = vsub.s32 0, %v226
  %v228 = vadd.s32 %v223, 1
  %vm229 = vcmp.gt.s32.totalorder %v228, 0
  %v230 = vsel %vm229, %v228, 0
  %v231 = vshrl.u32 %v230, 5
  %v232 = vand.u32 %v230, 31
  %v233 = vsub.s32 32, %v232
  %v234 = vshrl.u32 683565275, %v233
  %v235 = vshll.u32 683565275, %v232
  %v236 = vshrl.u32 2475754826, %v233
  %v237 = vor.u32 %v235, %v236
  %v238 = vshll.u32 2475754826, %v232
  %v239 = vshrl.u32 2131351028, %v233
  %v240 = vor.u32 %v238, %v239
  %v241 = vshll.u32 2131351028, %v232
  %v242 = vshrl.u32 2102212464, %v233
  %v243 = vor.u32 %v241, %v242
  %v244 = vshll.u32 2102212464, %v232
  %v245 = vshrl.u32 920167782, %v233
  %v246 = vor.u32 %v244, %v245
  %v247 = vshll.u32 920167782, %v232
  %v248 = vshrl.u32 1326507024, %v233
  %v249 = vor.u32 %v247, %v248
  %vm250 = vcmp.lt.s32.totalorder %v231, 1
  %vm251 = vcmp.lt.s32.totalorder %v231, 2
  %vm252 = vcmp.lt.s32.totalorder %v231, 3
  %vm253 = vcmp.lt.s32.totalorder %v231, 4
  %v254 = vsel %vm250, %v234, %v237
  %v255 = vsel %vm253, %v243, 2102212464
  %v256 = vsel %vm252, %v240, %v255
  %v257 = vsel %vm251, %v254, %v256
  %v258 = vsel %vm250, %v237, %v240
  %v259 = vsel %vm253, %v246, 920167782
  %v260 = vsel %vm252, %v243, %v259
  %v261 = vsel %vm251, %v258, %v260
  %v262 = vsel %vm250, %v240, %v243
  %v263 = vsel %vm253, %v249, 1326507024
  %v264 = vsel %vm252, %v246, %v263
  %v265 = vsel %vm251, %v262, %v264
  %v266 = vshll.u32 %v226, 8
  %v267 = vmul.u32.u64.compose %v266, %v265
  %v268 = vextract.low.u32 %v267
  %v269 = vextract.high.u32 %v267
  %v270 = vmul.u32.u64.compose %v266, %v261
  %v271 = vextract.low.u32 %v270
  %v272 = vextract.high.u32 %v270
  %v273 = vmul.u32 %v266, %v257
  %v274 = vadd.s32 %v269, %v271
  %vm275 = vc.u32 %v269, %v271
  %v276 = vadd.s32 %v272, 1
  %v277 = vsel %vm275, %v276, %v272
  %v278 = vadd.s32 %v273, %v277
  %v279 = vadd.s32 %v278, 536870912
  %v280 = vshrl.u32 %v279, 30
  %v281 = vshll.u32 %v280, 30
  %v282 = vsub.s32 %v278, %v281
  %vm283 = vcmp.lt.s32.totalorder %v282, 0
  %v284 = vsub.s32 0, %v282
  %v285 = vsel %vm283, %v284, %v282
  %v286 = vclz %v285
  %v287 = vsub.s32 %v286, 2
  %vm288 = vcmp.gt.s32.totalorder 0, %v287
  %v289 = vsel %vm288, 0, %v287
  %v290 = vsub.s32 32, %v289
  %v291 = vshll.u32 %v282, %v289
  %v292 = vshrl.u32 %v274, %v290
  %v293 = vor.u32 %v291, %v292
  %v294 = vsub.s32 4294967266, %v289
  %v295 = vadd.s32 %v294, 127
  %v296 = vshll.u32 %v295, 23
  %v297 = vor.u32 4788187, %v296
  %v298 = vand.u32 2147483647, %v297
  %v300 = vcvt.s32.f32 %v293
  %v301 = vmul.f32 %v300, %v298
  %v302 = vxor.u32 %v301, 2147483648
  %v303 = vsel %vm220, %v302, %v301
  %v304 = vsub.s32 4, %v280
  %v305 = vsel %vm220, %v304, %v280
  %v306 = vsel %vm219, %v217, %v303
  %v307 = vsel %vm219, 0, %v305
  %v308 = vcosq.f32.pop %v306
  %v309 = vsinq.f32.pop %v306
  %vm310 = vweird.f32 %v217
  %v311 = vadd.s32 %v307, 3
  %v312 = vand.u32 %v311, 3
  %vm313 = vcmp.lt.s32.totalorder %v312, 2
  %vm314 = vcmp.eq.s32.totalorder %v312, 0
  %v315 = vxor.u32 %v309, 2147483648
  %v316 = vsel %vm314, %v308, %v315
  %vm317 = vcmp.eq.s32.totalorder %v312, 2
  %v318 = vxor.u32 %v308, 2147483648
  %v319 = vsel %vm317, %v318, %v309
  %v320 = vsel %vm313, %v316, %v319
  %v321 = vsel %vm310, nan, %v320
  %s322 = scalar_lea.vmem %s1, 16
  %323 = vst [vmem:[%s322] sm:$0xff] %v321
  %s324 = scalar_lea.vmem %s0, 24
  %v325 = vld [vmem:[%s324] sm:$0xff]
  %v326 = vand.u32 2147483647, %v325
  %vm327 = vcmp.le.f32.partialorder %v326, 0.7853982
  %vm328 = vcmp.lt.s32.totalorder %v325, 0
  %v329 = vand.u32 %v325, 2139095040
  %v330 = vshrl.u32 %v329, 23
  %v331 = vsub.s32 %v330, 127
  %v332 = vand.u32 2147483647, %v325
  %v333 = vand.u32 %v332, 8388607
  %v334 = vor.u32 %v333, 8388608
  %v335 = vsub.s32 0, %v334
  %v336 = vadd.s32 %v331, 1
  %vm337 = vcmp.gt.s32.totalorder %v336, 0
  %v338 = vsel %vm337, %v336, 0
  %v339 = vshrl.u32 %v338, 5
  %v340 = vand.u32 %v338, 31
  %v341 = vsub.s32 32, %v340
  %v342 = vshrl.u32 683565275, %v341
  %v343 = vshll.u32 683565275, %v340
  %v344 = vshrl.u32 2475754826, %v341
  %v345 = vor.u32 %v343, %v344
  %v346 = vshll.u32 2475754826, %v340
  %v347 = vshrl.u32 2131351028, %v341
  %v348 = vor.u32 %v346, %v347
  %v349 = vshll.u32 2131351028, %v340
  %v350 = vshrl.u32 2102212464, %v341
  %v351 = vor.u32 %v349, %v350
  %v352 = vshll.u32 2102212464, %v340
  %v353 = vshrl.u32 920167782, %v341
  %v354 = vor.u32 %v352, %v353
  %v355 = vshll.u32 920167782, %v340
  %v356 = vshrl.u32 1326507024, %v341
  %v357 = vor.u32 %v355, %v356
  %vm358 = vcmp.lt.s32.totalorder %v339, 1
  %vm359 = vcmp.lt.s32.totalorder %v339, 2
  %vm360 = vcmp.lt.s32.totalorder %v339, 3
  %vm361 = vcmp.lt.s32.totalorder %v339, 4
  %v362 = vsel %vm358, %v342, %v345
  %v363 = vsel %vm361, %v351, 2102212464
  %v364 = vsel %vm360, %v348, %v363
  %v365 = vsel %vm359, %v362, %v364
  %v366 = vsel %vm358, %v345, %v348
  %v367 = vsel %vm361, %v354, 920167782
  %v368 = vsel %vm360, %v351, %v367
  %v369 = vsel %vm359, %v366, %v368
  %v370 = vsel %vm358, %v348, %v351
  %v371 = vsel %vm361, %v357, 1326507024
  %v372 = vsel %vm360, %v354, %v371
  %v373 = vsel %vm359, %v370, %v372
  %v374 = vshll.u32 %v334, 8
  %v375 = vmul.u32.u64.compose %v374, %v373
  %v376 = vextract.low.u32 %v375
  %v377 = vextract.high.u32 %v375
  %v378 = vmul.u32.u64.compose %v374, %v369
  %v379 = vextract.low.u32 %v378
  %v380 = vextract.high.u32 %v378
  %v381 = vmul.u32 %v374, %v365
  %v382 = vadd.s32 %v377, %v379
  %vm383 = vc.u32 %v377, %v379
  %v384 = vadd.s32 %v380, 1
  %v385 = vsel %vm383, %v384, %v380
  %v386 = vadd.s32 %v381, %v385
  %v387 = vadd.s32 %v386, 536870912
  %v388 = vshrl.u32 %v387, 30
  %v389 = vshll.u32 %v388, 30
  %v390 = vsub.s32 %v386, %v389
  %vm391 = vcmp.lt.s32.totalorder %v390, 0
  %v392 = vsub.s32 0, %v390
  %v393 = vsel %vm391, %v392, %v390
  %v394 = vclz %v393
  %v395 = vsub.s32 %v394, 2
  %vm396 = vcmp.gt.s32.totalorder 0, %v395
  %v397 = vsel %vm396, 0, %v395
  %v398 = vsub.s32 32, %v397
  %v399 = vshll.u32 %v390, %v397
  %v400 = vshrl.u32 %v382, %v398
  %v401 = vor.u32 %v399, %v400
  %v402 = vsub.s32 4294967266, %v397
  %v403 = vadd.s32 %v402, 127
  %v404 = vshll.u32 %v403, 23
  %v405 = vor.u32 4788187, %v404
  %v406 = vand.u32 2147483647, %v405
  %v408 = vcvt.s32.f32 %v401
  %v409 = vmul.f32 %v408, %v406
  %v410 = vxor.u32 %v409, 2147483648
  %v411 = vsel %vm328, %v410, %v409
  %v412 = vsub.s32 4, %v388
  %v413 = vsel %vm328, %v412, %v388
  %v414 = vsel %vm327, %v325, %v411
  %v415 = vsel %vm327, 0, %v413
  %v416 = vcosq.f32.pop %v414
  %v417 = vsinq.f32.pop %v414
  %vm418 = vweird.f32 %v325
  %v419 = vadd.s32 %v415, 3
  %v420 = vand.u32 %v419, 3
  %vm421 = vcmp.lt.s32.totalorder %v420, 2
  %vm422 = vcmp.eq.s32.totalorder %v420, 0
  %v423 = vxor.u32 %v417, 2147483648
  %v424 = vsel %vm422, %v416, %v423
  %vm425 = vcmp.eq.s32.totalorder %v420, 2
  %v426 = vxor.u32 %v416, 2147483648
  %v427 = vsel %vm425, %v426, %v417
  %v428 = vsel %vm421, %v424, %v427
  %v429 = vsel %vm418, nan, %v428
  %s430 = scalar_lea.vmem %s1, 24
  %431 = vst [vmem:[%s430] sm:$0xff] %v429
  %s432 = scalar_lea.vmem %s0, 32
  %v433 = vld [vmem:[%s432] sm:$0xff]
  %v434 = vand.u32 2147483647, %v433
  %vm435 = vcmp.le.f32.partialorder %v434, 0.7853982
  %vm436 = vcmp.lt.s32.totalorder %v433, 0
  %v437 = vand.u32 %v433, 2139095040
  %v438 = vshrl.u32 %v437, 23
  %v439 = vsub.s32 %v438, 127
  %v440 = vand.u32 2147483647, %v433
  %v441 = vand.u32 %v440, 8388607
  %v442 = vor.u32 %v441, 8388608
  %v443 = vsub.s32 0, %v442
  %v444 = vadd.s32 %v439, 1
  %vm445 = vcmp.gt.s32.totalorder %v444, 0
  %v446 = vsel %vm445, %v444, 0
  %v447 = vshrl.u32 %v446, 5
  %v448 = vand.u32 %v446, 31
  %v449 = vsub.s32 32, %v448
  %v450 = vshrl.u32 683565275, %v449
  %v451 = vshll.u32 683565275, %v448
  %v452 = vshrl.u32 2475754826, %v449
  %v453 = vor.u32 %v451, %v452
  %v454 = vshll.u32 2475754826, %v448
  %v455 = vshrl.u32 2131351028, %v449
  %v456 = vor.u32 %v454, %v455
  %v457 = vshll.u32 2131351028, %v448
  %v458 = vshrl.u32 2102212464, %v449
  %v459 = vor.u32 %v457, %v458
  %v460 = vshll.u32 2102212464, %v448
  %v461 = vshrl.u32 920167782, %v449
  %v462 = vor.u32 %v460, %v461
  %v463 = vshll.u32 920167782, %v448
  %v464 = vshrl.u32 1326507024, %v449
  %v465 = vor.u32 %v463, %v464
  %vm466 = vcmp.lt.s32.totalorder %v447, 1
  %vm467 = vcmp.lt.s32.totalorder %v447, 2
  %vm468 = vcmp.lt.s32.totalorder %v447, 3
  %vm469 = vcmp.lt.s32.totalorder %v447, 4
  %v470 = vsel %vm466, %v450, %v453
  %v471 = vsel %vm469, %v459, 2102212464
  %v472 = vsel %vm468, %v456, %v471
  %v473 = vsel %vm467, %v470, %v472
  %v474 = vsel %vm466, %v453, %v456
  %v475 = vsel %vm469, %v462, 920167782
  %v476 = vsel %vm468, %v459, %v475
  %v477 = vsel %vm467, %v474, %v476
  %v478 = vsel %vm466, %v456, %v459
  %v479 = vsel %vm469, %v465, 1326507024
  %v480 = vsel %vm468, %v462, %v479
  %v481 = vsel %vm467, %v478, %v480
  %v482 = vshll.u32 %v442, 8
  %v483 = vmul.u32.u64.compose %v482, %v481
  %v484 = vextract.low.u32 %v483
  %v485 = vextract.high.u32 %v483
  %v486 = vmul.u32.u64.compose %v482, %v477
  %v487 = vextract.low.u32 %v486
  %v488 = vextract.high.u32 %v486
  %v489 = vmul.u32 %v482, %v473
  %v490 = vadd.s32 %v485, %v487
  %vm491 = vc.u32 %v485, %v487
  %v492 = vadd.s32 %v488, 1
  %v493 = vsel %vm491, %v492, %v488
  %v494 = vadd.s32 %v489, %v493
  %v495 = vadd.s32 %v494, 536870912
  %v496 = vshrl.u32 %v495, 30
  %v497 = vshll.u32 %v496, 30
  %v498 = vsub.s32 %v494, %v497
  %vm499 = vcmp.lt.s32.totalorder %v498, 0
  %v500 = vsub.s32 0, %v498
  %v501 = vsel %vm499, %v500, %v498
  %v502 = vclz %v501
  %v503 = vsub.s32 %v502, 2
  %vm504 = vcmp.gt.s32.totalorder 0, %v503
  %v505 = vsel %vm504, 0, %v503
  %v506 = vsub.s32 32, %v505
  %v507 = vshll.u32 %v498, %v505
  %v508 = vshrl.u32 %v490, %v506
  %v509 = vor.u32 %v507, %v508
  %v510 = vsub.s32 4294967266, %v505
  %v511 = vadd.s32 %v510, 127
  %v512 = vshll.u32 %v511, 23
  %v513 = vor.u32 4788187, %v512
  %v514 = vand.u32 2147483647, %v513
  %v516 = vcvt.s32.f32 %v509
  %v517 = vmul.f32 %v516, %v514
  %v518 = vxor.u32 %v517, 2147483648
  %v519 = vsel %vm436, %v518, %v517
  %v520 = vsub.s32 4, %v496
  %v521 = vsel %vm436, %v520, %v496
  %v522 = vsel %vm435, %v433, %v519
  %v523 = vsel %vm435, 0, %v521
  %v524 = vcosq.f32.pop %v522
  %v525 = vsinq.f32.pop %v522
  %vm526 = vweird.f32 %v433
  %v527 = vadd.s32 %v523, 3
  %v528 = vand.u32 %v527, 3
  %vm529 = vcmp.lt.s32.totalorder %v528, 2
  %vm530 = vcmp.eq.s32.totalorder %v528, 0
  %v531 = vxor.u32 %v525, 2147483648
  %v532 = vsel %vm530, %v524, %v531
  %vm533 = vcmp.eq.s32.totalorder %v528, 2
  %v534 = vxor.u32 %v524, 2147483648
  %v535 = vsel %vm533, %v534, %v525
  %v536 = vsel %vm529, %v532, %v535
  %v537 = vsel %vm526, nan, %v536
  %s538 = scalar_lea.vmem %s1, 32
  %539 = vst [vmem:[%s538] sm:$0xff] %v537
  %s540 = scalar_lea.vmem %s0, 40
  %v541 = vld [vmem:[%s540] sm:$0xff]
  %v542 = vand.u32 2147483647, %v541
  %vm543 = vcmp.le.f32.partialorder %v542, 0.7853982
  %vm544 = vcmp.lt.s32.totalorder %v541, 0
  %v545 = vand.u32 %v541, 2139095040
  %v546 = vshrl.u32 %v545, 23
  %v547 = vsub.s32 %v546, 127
  %v548 = vand.u32 2147483647, %v541
  %v549 = vand.u32 %v548, 8388607
  %v550 = vor.u32 %v549, 8388608
  %v551 = vsub.s32 0, %v550
  %v552 = vadd.s32 %v547, 1
  %vm553 = vcmp.gt.s32.totalorder %v552, 0
  %v554 = vsel %vm553, %v552, 0
  %v555 = vshrl.u32 %v554, 5
  %v556 = vand.u32 %v554, 31
  %v557 = vsub.s32 32, %v556
  %v558 = vshrl.u32 683565275, %v557
  %v559 = vshll.u32 683565275, %v556
  %v560 = vshrl.u32 2475754826, %v557
  %v561 = vor.u32 %v559, %v560
  %v562 = vshll.u32 2475754826, %v556
  %v563 = vshrl.u32 2131351028, %v557
  %v564 = vor.u32 %v562, %v563
  %v565 = vshll.u32 2131351028, %v556
  %v566 = vshrl.u32 2102212464, %v557
  %v567 = vor.u32 %v565, %v566
  %v568 = vshll.u32 2102212464, %v556
  %v569 = vshrl.u32 920167782, %v557
  %v570 = vor.u32 %v568, %v569
  %v571 = vshll.u32 920167782, %v556
  %v572 = vshrl.u32 1326507024, %v557
  %v573 = vor.u32 %v571, %v572
  %vm574 = vcmp.lt.s32.totalorder %v555, 1
  %vm575 = vcmp.lt.s32.totalorder %v555, 2
  %vm576 = vcmp.lt.s32.totalorder %v555, 3
  %vm577 = vcmp.lt.s32.totalorder %v555, 4
  %v578 = vsel %vm574, %v558, %v561
  %v579 = vsel %vm577, %v567, 2102212464
  %v580 = vsel %vm576, %v564, %v579
  %v581 = vsel %vm575, %v578, %v580
  %v582 = vsel %vm574, %v561, %v564
  %v583 = vsel %vm577, %v570, 920167782
  %v584 = vsel %vm576, %v567, %v583
  %v585 = vsel %vm575, %v582, %v584
  %v586 = vsel %vm574, %v564, %v567
  %v587 = vsel %vm577, %v573, 1326507024
  %v588 = vsel %vm576, %v570, %v587
  %v589 = vsel %vm575, %v586, %v588
  %v590 = vshll.u32 %v550, 8
  %v591 = vmul.u32.u64.compose %v590, %v589
  %v592 = vextract.low.u32 %v591
  %v593 = vextract.high.u32 %v591
  %v594 = vmul.u32.u64.compose %v590, %v585
  %v595 = vextract.low.u32 %v594
  %v596 = vextract.high.u32 %v594
  %v597 = vmul.u32 %v590, %v581
  %v598 = vadd.s32 %v593, %v595
  %vm599 = vc.u32 %v593, %v595
  %v600 = vadd.s32 %v596, 1
  %v601 = vsel %vm599, %v600, %v596
  %v602 = vadd.s32 %v597, %v601
  %v603 = vadd.s32 %v602, 536870912
  %v604 = vshrl.u32 %v603, 30
  %v605 = vshll.u32 %v604, 30
  %v606 = vsub.s32 %v602, %v605
  %vm607 = vcmp.lt.s32.totalorder %v606, 0
  %v608 = vsub.s32 0, %v606
  %v609 = vsel %vm607, %v608, %v606
  %v610 = vclz %v609
  %v611 = vsub.s32 %v610, 2
  %vm612 = vcmp.gt.s32.totalorder 0, %v611
  %v613 = vsel %vm612, 0, %v611
  %v614 = vsub.s32 32, %v613
  %v615 = vshll.u32 %v606, %v613
  %v616 = vshrl.u32 %v598, %v614
  %v617 = vor.u32 %v615, %v616
  %v618 = vsub.s32 4294967266, %v613
  %v619 = vadd.s32 %v618, 127
  %v620 = vshll.u32 %v619, 23
  %v621 = vor.u32 4788187, %v620
  %v622 = vand.u32 2147483647, %v621
  %v624 = vcvt.s32.f32 %v617
  %v625 = vmul.f32 %v624, %v622
  %v626 = vxor.u32 %v625, 2147483648
  %v627 = vsel %vm544, %v626, %v625
  %v628 = vsub.s32 4, %v604
  %v629 = vsel %vm544, %v628, %v604
  %v630 = vsel %vm543, %v541, %v627
  %v631 = vsel %vm543, 0, %v629
  %v632 = vcosq.f32.pop %v630
  %v633 = vsinq.f32.pop %v630
  %vm634 = vweird.f32 %v541
  %v635 = vadd.s32 %v631, 3
  %v636 = vand.u32 %v635, 3
  %vm637 = vcmp.lt.s32.totalorder %v636, 2
  %vm638 = vcmp.eq.s32.totalorder %v636, 0
  %v639 = vxor.u32 %v633, 2147483648
  %v640 = vsel %vm638, %v632, %v639
  %vm641 = vcmp.eq.s32.totalorder %v636, 2
  %v642 = vxor.u32 %v632, 2147483648
  %v643 = vsel %vm641, %v642, %v633
  %v644 = vsel %vm637, %v640, %v643
  %v645 = vsel %vm634, nan, %v644
  %s646 = scalar_lea.vmem %s1, 40
  %647 = vst [vmem:[%s646] sm:$0xff] %v645
  %s648 = scalar_lea.vmem %s0, 48
  %v649 = vld [vmem:[%s648] sm:$0xff]
  %v650 = vand.u32 2147483647, %v649
  %vm651 = vcmp.le.f32.partialorder %v650, 0.7853982
  %vm652 = vcmp.lt.s32.totalorder %v649, 0
  %v653 = vand.u32 %v649, 2139095040
  %v654 = vshrl.u32 %v653, 23
  %v655 = vsub.s32 %v654, 127
  %v656 = vand.u32 2147483647, %v649
  %v657 = vand.u32 %v656, 8388607
  %v658 = vor.u32 %v657, 8388608
  %v659 = vsub.s32 0, %v658
  %v660 = vadd.s32 %v655, 1
  %vm661 = vcmp.gt.s32.totalorder %v660, 0
  %v662 = vsel %vm661, %v660, 0
  %v663 = vshrl.u32 %v662, 5
  %v664 = vand.u32 %v662, 31
  %v665 = vsub.s32 32, %v664
  %v666 = vshrl.u32 683565275, %v665
  %v667 = vshll.u32 683565275, %v664
  %v668 = vshrl.u32 2475754826, %v665
  %v669 = vor.u32 %v667, %v668
  %v670 = vshll.u32 2475754826, %v664
  %v671 = vshrl.u32 2131351028, %v665
  %v672 = vor.u32 %v670, %v671
  %v673 = vshll.u32 2131351028, %v664
  %v674 = vshrl.u32 2102212464, %v665
  %v675 = vor.u32 %v673, %v674
  %v676 = vshll.u32 2102212464, %v664
  %v677 = vshrl.u32 920167782, %v665
  %v678 = vor.u32 %v676, %v677
  %v679 = vshll.u32 920167782, %v664
  %v680 = vshrl.u32 1326507024, %v665
  %v681 = vor.u32 %v679, %v680
  %vm682 = vcmp.lt.s32.totalorder %v663, 1
  %vm683 = vcmp.lt.s32.totalorder %v663, 2
  %vm684 = vcmp.lt.s32.totalorder %v663, 3
  %vm685 = vcmp.lt.s32.totalorder %v663, 4
  %v686 = vsel %vm682, %v666, %v669
  %v687 = vsel %vm685, %v675, 2102212464
  %v688 = vsel %vm684, %v672, %v687
  %v689 = vsel %vm683, %v686, %v688
  %v690 = vsel %vm682, %v669, %v672
  %v691 = vsel %vm685, %v678, 920167782
  %v692 = vsel %vm684, %v675, %v691
  %v693 = vsel %vm683, %v690, %v692
  %v694 = vsel %vm682, %v672, %v675
  %v695 = vsel %vm685, %v681, 1326507024
  %v696 = vsel %vm684, %v678, %v695
  %v697 = vsel %vm683, %v694, %v696
  %v698 = vshll.u32 %v658, 8
  %v699 = vmul.u32.u64.compose %v698, %v697
  %v700 = vextract.low.u32 %v699
  %v701 = vextract.high.u32 %v699
  %v702 = vmul.u32.u64.compose %v698, %v693
  %v703 = vextract.low.u32 %v702
  %v704 = vextract.high.u32 %v702
  %v705 = vmul.u32 %v698, %v689
  %v706 = vadd.s32 %v701, %v703
  %vm707 = vc.u32 %v701, %v703
  %v708 = vadd.s32 %v704, 1
  %v709 = vsel %vm707, %v708, %v704
  %v710 = vadd.s32 %v705, %v709
  %v711 = vadd.s32 %v710, 536870912
  %v712 = vshrl.u32 %v711, 30
  %v713 = vshll.u32 %v712, 30
  %v714 = vsub.s32 %v710, %v713
  %vm715 = vcmp.lt.s32.totalorder %v714, 0
  %v716 = vsub.s32 0, %v714
  %v717 = vsel %vm715, %v716, %v714
  %v718 = vclz %v717
  %v719 = vsub.s32 %v718, 2
  %vm720 = vcmp.gt.s32.totalorder 0, %v719
  %v721 = vsel %vm720, 0, %v719
  %v722 = vsub.s32 32, %v721
  %v723 = vshll.u32 %v714, %v721
  %v724 = vshrl.u32 %v706, %v722
  %v725 = vor.u32 %v723, %v724
  %v726 = vsub.s32 4294967266, %v721
  %v727 = vadd.s32 %v726, 127
  %v728 = vshll.u32 %v727, 23
  %v729 = vor.u32 4788187, %v728
  %v730 = vand.u32 2147483647, %v729
  %v732 = vcvt.s32.f32 %v725
  %v733 = vmul.f32 %v732, %v730
  %v734 = vxor.u32 %v733, 2147483648
  %v735 = vsel %vm652, %v734, %v733
  %v736 = vsub.s32 4, %v712
  %v737 = vsel %vm652, %v736, %v712
  %v738 = vsel %vm651, %v649, %v735
  %v739 = vsel %vm651, 0, %v737
  %v740 = vcosq.f32.pop %v738
  %v741 = vsinq.f32.pop %v738
  %vm742 = vweird.f32 %v649
  %v743 = vadd.s32 %v739, 3
  %v744 = vand.u32 %v743, 3
  %vm745 = vcmp.lt.s32.totalorder %v744, 2
  %vm746 = vcmp.eq.s32.totalorder %v744, 0
  %v747 = vxor.u32 %v741, 2147483648
  %v748 = vsel %vm746, %v740, %v747
  %vm749 = vcmp.eq.s32.totalorder %v744, 2
  %v750 = vxor.u32 %v740, 2147483648
  %v751 = vsel %vm749, %v750, %v741
  %v752 = vsel %vm745, %v748, %v751
  %v753 = vsel %vm742, nan, %v752
  %s754 = scalar_lea.vmem %s1, 48
  %755 = vst [vmem:[%s754] sm:$0xff] %v753
  %s756 = scalar_lea.vmem %s0, 56
  %v757 = vld [vmem:[%s756] sm:$0xff]
  %v758 = vand.u32 2147483647, %v757
  %vm759 = vcmp.le.f32.partialorder %v758, 0.7853982
  %vm760 = vcmp.lt.s32.totalorder %v757, 0
  %v761 = vand.u32 %v757, 2139095040
  %v762 = vshrl.u32 %v761, 23
  %v763 = vsub.s32 %v762, 127
  %v764 = vand.u32 2147483647, %v757
  %v765 = vand.u32 %v764, 8388607
  %v766 = vor.u32 %v765, 8388608
  %v767 = vsub.s32 0, %v766
  %v768 = vadd.s32 %v763, 1
  %vm769 = vcmp.gt.s32.totalorder %v768, 0
  %v770 = vsel %vm769, %v768, 0
  %v771 = vshrl.u32 %v770, 5
  %v772 = vand.u32 %v770, 31
  %v773 = vsub.s32 32, %v772
  %v774 = vshrl.u32 683565275, %v773
  %v775 = vshll.u32 683565275, %v772
  %v776 = vshrl.u32 2475754826, %v773
  %v777 = vor.u32 %v775, %v776
  %v778 = vshll.u32 2475754826, %v772
  %v779 = vshrl.u32 2131351028, %v773
  %v780 = vor.u32 %v778, %v779
  %v781 = vshll.u32 2131351028, %v772
  %v782 = vshrl.u32 2102212464, %v773
  %v783 = vor.u32 %v781, %v782
  %v784 = vshll.u32 2102212464, %v772
  %v785 = vshrl.u32 920167782, %v773
  %v786 = vor.u32 %v784, %v785
  %v787 = vshll.u32 920167782, %v772
  %v788 = vshrl.u32 1326507024, %v773
  %v789 = vor.u32 %v787, %v788
  %vm790 = vcmp.lt.s32.totalorder %v771, 1
  %vm791 = vcmp.lt.s32.totalorder %v771, 2
  %vm792 = vcmp.lt.s32.totalorder %v771, 3
  %vm793 = vcmp.lt.s32.totalorder %v771, 4
  %v794 = vsel %vm790, %v774, %v777
  %v795 = vsel %vm793, %v783, 2102212464
  %v796 = vsel %vm792, %v780, %v795
  %v797 = vsel %vm791, %v794, %v796
  %v798 = vsel %vm790, %v777, %v780
  %v799 = vsel %vm793, %v786, 920167782
  %v800 = vsel %vm792, %v783, %v799
  %v801 = vsel %vm791, %v798, %v800
  %v802 = vsel %vm790, %v780, %v783
  %v803 = vsel %vm793, %v789, 1326507024
  %v804 = vsel %vm792, %v786, %v803
  %v805 = vsel %vm791, %v802, %v804
  %v806 = vshll.u32 %v766, 8
  %v807 = vmul.u32.u64.compose %v806, %v805
  %v808 = vextract.low.u32 %v807
  %v809 = vextract.high.u32 %v807
  %v810 = vmul.u32.u64.compose %v806, %v801
  %v811 = vextract.low.u32 %v810
  %v812 = vextract.high.u32 %v810
  %v813 = vmul.u32 %v806, %v797
  %v814 = vadd.s32 %v809, %v811
  %vm815 = vc.u32 %v809, %v811
  %v816 = vadd.s32 %v812, 1
  %v817 = vsel %vm815, %v816, %v812
  %v818 = vadd.s32 %v813, %v817
  %v819 = vadd.s32 %v818, 536870912
  %v820 = vshrl.u32 %v819, 30
  %v821 = vshll.u32 %v820, 30
  %v822 = vsub.s32 %v818, %v821
  %vm823 = vcmp.lt.s32.totalorder %v822, 0
  %v824 = vsub.s32 0, %v822
  %v825 = vsel %vm823, %v824, %v822
  %v826 = vclz %v825
  %v827 = vsub.s32 %v826, 2
  %vm828 = vcmp.gt.s32.totalorder 0, %v827
  %v829 = vsel %vm828, 0, %v827
  %v830 = vsub.s32 32, %v829
  %v831 = vshll.u32 %v822, %v829
  %v832 = vshrl.u32 %v814, %v830
  %v833 = vor.u32 %v831, %v832
  %v834 = vsub.s32 4294967266, %v829
  %v835 = vadd.s32 %v834, 127
  %v836 = vshll.u32 %v835, 23
  %v837 = vor.u32 4788187, %v836
  %v838 = vand.u32 2147483647, %v837
  %v840 = vcvt.s32.f32 %v833
  %v841 = vmul.f32 %v840, %v838
  %v842 = vxor.u32 %v841, 2147483648
  %v843 = vsel %vm760, %v842, %v841
  %v844 = vsub.s32 4, %v820
  %v845 = vsel %vm760, %v844, %v820
  %v846 = vsel %vm759, %v757, %v843
  %v847 = vsel %vm759, 0, %v845
  %v848 = vcosq.f32.pop %v846
  %v849 = vsinq.f32.pop %v846
  %vm850 = vweird.f32 %v757
  %v851 = vadd.s32 %v847, 3
  %v852 = vand.u32 %v851, 3
  %vm853 = vcmp.lt.s32.totalorder %v852, 2
  %vm854 = vcmp.eq.s32.totalorder %v852, 0
  %v855 = vxor.u32 %v849, 2147483648
  %v856 = vsel %vm854, %v848, %v855
  %vm857 = vcmp.eq.s32.totalorder %v852, 2
  %v858 = vxor.u32 %v848, 2147483648
  %v859 = vsel %vm857, %v858, %v849
  %v860 = vsel %vm853, %v856, %v859
  %v861 = vsel %vm850, nan, %v860
  %s862 = scalar_lea.vmem %s1, 56
  %863 = vst [vmem:[%s862] sm:$0xff] %v861

// kernel: matcher_device.7
$region0: #{matcher_device.7}
  #allocation0 [shape = 'u32[]', space=smem, size = 0x4, offset = 0x4, fixed_abs, tag = 'smem constant byte address 0x4 - core index']
  #allocation1 [shape = 'u32[144,128]{1,0:T(1,128)}', space=vmem, size = 0x12000, scoped, tag = 'internal scratch']
  %s0 = inlined_call_operand.vmem [shape: f32[2,64,3], index: 0, kind: input, shape index: {}]
  %s1 = inlined_call_operand.vmem [shape: f32[2,3,64], index: 1, kind: input, shape index: {}]
  %s2 = inlined_call_operand.vmem [shape: f32[2,64,64], index: 2, kind: output, shape index: {}]
  %s3 = sld [smem:[#allocation0]]
  $region18: #{matcher_device.7} parent=0
    _
  %s5 = ssub.s32 1, %s3
  %s6 = scalar_select 0, %s5, %s3
  // Predicated region
  $region2: #{matcher_device.7} parent=0 // pred_check
    _
  $region3: #{matcher_device.7} parent=0 // pred_check_branch
    %8 = sbr.rel (0) target = $region5
  $region4: #{matcher_device.7} parent=0 // pred_region
    _
  $region5: #{matcher_device.7} parent=0 // pred_fallthru
    _
  // Predicated region
  $region6: #{matcher_device.7} parent=0 // pred_check
    _
  $region7: #{matcher_device.7} parent=0 // pred_check_branch
    %10 = sbr.rel (0) target = $region9
  $region8: #{matcher_device.7} parent=0 // pred_region
    _
  $region9: #{matcher_device.7} parent=0 // pred_fallthru
    _
  %v11 = vld [vmem:[%s0] sm:$0xff]
  %v12 = vld [vmem:[%s0 + $0x8] sm:$0xff]
  %v13 = vld [vmem:[%s0 + $0x10] sm:$0xff]
  %v14 = vld [vmem:[%s0 + $0x18] sm:$0xff]
  %v15 = vld [vmem:[%s0 + $0x20] sm:$0xff]
  %v16 = vld [vmem:[%s0 + $0x28] sm:$0xff]
  %v17 = vld [vmem:[%s0 + $0x30] sm:$0xff]
  %v18 = vld [vmem:[%s0 + $0x38] sm:$0xff]
  %v19 = vld [vmem:[%s0 + $0x40] sm:$0xff]
  %v20 = vld [vmem:[%s0 + $0x48] sm:$0xff]
  %v21 = vld [vmem:[%s0 + $0x50] sm:$0xff]
  %v22 = vld [vmem:[%s0 + $0x58] sm:$0xff]
  %v23 = vld [vmem:[%s0 + $0x60] sm:$0xff]
  %v24 = vld [vmem:[%s0 + $0x68] sm:$0xff]
  %v25 = vld [vmem:[%s0 + $0x70] sm:$0xff]
  %v26 = vld [vmem:[%s0 + $0x78] sm:$0xff]
  %v27 = vld [vmem:[%s1] sm:$0x7]
  %v28 = vld [vmem:[%s1 + $0x4] sm:$0x7]
  %30 = vset.pattern.permute.xlu0 0
  %31 = vperm.xlu0 %30, %v11
  %v32 = vpop.permute.xlu0 %31
  %35 = vset.pattern.permute.xlu0 0
  %36 = vperm.xlu0 %35, %v12
  %v37 = vpop.permute.xlu0 %36
  %40 = vset.pattern.permute.xlu0 0
  %41 = vperm.xlu0 %40, %v13
  %v42 = vpop.permute.xlu0 %41
  %45 = vset.pattern.permute.xlu0 0
  %46 = vperm.xlu0 %45, %v14
  %v47 = vpop.permute.xlu0 %46
  %50 = vset.pattern.permute.xlu0 0
  %51 = vperm.xlu0 %50, %v15
  %v52 = vpop.permute.xlu0 %51
  %55 = vset.pattern.permute.xlu0 0
  %56 = vperm.xlu0 %55, %v16
  %v57 = vpop.permute.xlu0 %56
  %60 = vset.pattern.permute.xlu0 0
  %61 = vperm.xlu0 %60, %v17
  %v62 = vpop.permute.xlu0 %61
  %65 = vset.pattern.permute.xlu0 0
  %66 = vperm.xlu0 %65, %v18
  %v67 = vpop.permute.xlu0 %66
  %70 = vset.pattern.permute.xlu0 0
  %71 = vperm.xlu0 %70, %v19
  %v72 = vpop.permute.xlu0 %71
  %75 = vset.pattern.permute.xlu0 0
  %76 = vperm.xlu0 %75, %v20
  %v77 = vpop.permute.xlu0 %76
  %80 = vset.pattern.permute.xlu0 0
  %81 = vperm.xlu0 %80, %v21
  %v82 = vpop.permute.xlu0 %81
  %85 = vset.pattern.permute.xlu0 0
  %86 = vperm.xlu0 %85, %v22
  %v87 = vpop.permute.xlu0 %86
  %90 = vset.pattern.permute.xlu0 0
  %91 = vperm.xlu0 %90, %v23
  %v92 = vpop.permute.xlu0 %91
  %95 = vset.pattern.permute.xlu0 0
  %96 = vperm.xlu0 %95, %v24
  %v97 = vpop.permute.xlu0 %96
  %100 = vset.pattern.permute.xlu0 0
  %101 = vperm.xlu0 %100, %v25
  %v102 = vpop.permute.xlu0 %101
  %105 = vset.pattern.permute.xlu0 0
  %106 = vperm.xlu0 %105, %v26
  %v107 = vpop.permute.xlu0 %106
  %v109 = vlaneseq
  %v110 = vshrl.u32 %v109, 7
  %v111 = vsub.s32 0, %v110
  %v112 = vrot.slane %v27, %v111
  %v113 = vlaneseq
  %v114 = vshrl.u32 %v113, 7
  %v115 = vsub.s32 0, %v114
  %v116 = vrot.slane %v28, %v115
  %v117 = vsub.f32 %v32, %v112
  %v118 = vsub.f32 %v37, %v112
  %v119 = vsub.f32 %v42, %v112
  %v120 = vsub.f32 %v47, %v112
  %v121 = vsub.f32 %v52, %v112
  %v122 = vsub.f32 %v57, %v112
  %v123 = vsub.f32 %v62, %v112
  %v124 = vsub.f32 %v67, %v112
  %v125 = vsub.f32 %v72, %v116
  %v126 = vsub.f32 %v77, %v116
  %v127 = vsub.f32 %v82, %v116
  %v128 = vsub.f32 %v87, %v116
  %v129 = vsub.f32 %v92, %v116
  %v130 = vsub.f32 %v97, %v116
  %v131 = vsub.f32 %v102, %v116
  %v132 = vsub.f32 %v107, %v116
  %v133 = vmul.f32 %v117, %v117
  %v134 = vmul.f32 %v118, %v118
  %v135 = vmul.f32 %v119, %v119
  %v136 = vmul.f32 %v120, %v120
  %v137 = vmul.f32 %v121, %v121
  %v138 = vmul.f32 %v122, %v122
  %v139 = vmul.f32 %v123, %v123
  %v140 = vmul.f32 %v124, %v124
  %v141 = vmul.f32 %v125, %v125
  %v142 = vmul.f32 %v126, %v126
  %v143 = vmul.f32 %v127, %v127
  %v144 = vmul.f32 %v128, %v128
  %v145 = vmul.f32 %v129, %v129
  %v146 = vmul.f32 %v130, %v130
  %v147 = vmul.f32 %v131, %v131
  %v148 = vmul.f32 %v132, %v132
  %149 = vset.pattern.permute.xlu0 1
  %150 = vperm.xlu0 %149, %v11
  %v151 = vpop.permute.xlu0 %150
  %153 = vset.pattern.permute.xlu0 1
  %154 = vperm.xlu0 %153, %v12
  %v155 = vpop.permute.xlu0 %154
  %157 = vset.pattern.permute.xlu0 1
  %158 = vperm.xlu0 %157, %v13
  %v159 = vpop.permute.xlu0 %158
  %161 = vset.pattern.permute.xlu0 1
  %162 = vperm.xlu0 %161, %v14
  %v163 = vpop.permute.xlu0 %162
  %165 = vset.pattern.permute.xlu0 1
  %166 = vperm.xlu0 %165, %v15
  %v167 = vpop.permute.xlu0 %166
  %169 = vset.pattern.permute.xlu0 1
  %170 = vperm.xlu0 %169, %v16
  %v171 = vpop.permute.xlu0 %170
  %173 = vset.pattern.permute.xlu0 1
  %174 = vperm.xlu0 %173, %v17
  %v175 = vpop.permute.xlu0 %174
  %177 = vset.pattern.permute.xlu0 1
  %178 = vperm.xlu0 %177, %v18
  %v179 = vpop.permute.xlu0 %178
  %181 = vset.pattern.permute.xlu0 1
  %182 = vperm.xlu0 %181, %v19
  %v183 = vpop.permute.xlu0 %182
  %185 = vset.pattern.permute.xlu0 1
  %186 = vperm.xlu0 %185, %v20
  %v187 = vpop.permute.xlu0 %186
  %189 = vset.pattern.permute.xlu0 1
  %190 = vperm.xlu0 %189, %v21
  %v191 = vpop.permute.xlu0 %190
  %193 = vset.pattern.permute.xlu0 1
  %194 = vperm.xlu0 %193, %v22
  %v195 = vpop.permute.xlu0 %194
  %197 = vset.pattern.permute.xlu0 1
  %198 = vperm.xlu0 %197, %v23
  %v199 = vpop.permute.xlu0 %198
  %201 = vset.pattern.permute.xlu0 1
  %202 = vperm.xlu0 %201, %v24
  %v203 = vpop.permute.xlu0 %202
  %205 = vset.pattern.permute.xlu0 1
  %206 = vperm.xlu0 %205, %v25
  %v207 = vpop.permute.xlu0 %206
  %209 = vset.pattern.permute.xlu0 1
  %210 = vperm.xlu0 %209, %v26
  %v211 = vpop.permute.xlu0 %210
  %v213 = vlaneseq
  %v214 = vshrl.u32 %v213, 7
  %v215 = vsub.s32 1, %v214
  %v216 = vrot.slane %v27, %v215
  %v217 = vlaneseq
  %v218 = vshrl.u32 %v217, 7
  %v219 = vsub.s32 1, %v218
  %v220 = vrot.slane %v28, %v219
  %v221 = vsub.f32 %v151, %v216
  %v222 = vsub.f32 %v155, %v216
  %v223 = vsub.f32 %v159, %v216
  %v224 = vsub.f32 %v163, %v216
  %v225 = vsub.f32 %v167, %v216
  %v226 = vsub.f32 %v171, %v216
  %v227 = vsub.f32 %v175, %v216
  %v228 = vsub.f32 %v179, %v216
  %v229 = vsub.f32 %v183, %v220
  %v230 = vsub.f32 %v187, %v220
  %v231 = vsub.f32 %v191, %v220
  %v232 = vsub.f32 %v195, %v220
  %v233 = vsub.f32 %v199, %v220
  %v234 = vsub.f32 %v203, %v220
  %v235 = vsub.f32 %v207, %v220
  %v236 = vsub.f32 %v211, %v220
  %v237 = vmul.f32 %v221, %v221
  %v238 = vmul.f32 %v222, %v222
  %v239 = vmul.f32 %v223, %v223
  %v240 = vmul.f32 %v224, %v224
  %v241 = vmul.f32 %v225, %v225
  %v242 = vmul.f32 %v226, %v226
  %v243 = vmul.f32 %v227, %v227
  %v244 = vmul.f32 %v228, %v228
  %v245 = vmul.f32 %v229, %v229
  %v246 = vmul.f32 %v230, %v230
  %v247 = vmul.f32 %v231, %v231
  %v248 = vmul.f32 %v232, %v232
  %v249 = vmul.f32 %v233, %v233
  %v250 = vmul.f32 %v234, %v234
  %v251 = vmul.f32 %v235, %v235
  %v252 = vmul.f32 %v236, %v236
  %v253 = vadd.f32 %v133, %v237
  %v254 = vadd.f32 %v134, %v238
  %v255 = vadd.f32 %v135, %v239
  %v256 = vadd.f32 %v136, %v240
  %v257 = vadd.f32 %v137, %v241
  %v258 = vadd.f32 %v138, %v242
  %v259 = vadd.f32 %v139, %v243
  %v260 = vadd.f32 %v140, %v244
  %v261 = vadd.f32 %v141, %v245
  %v262 = vadd.f32 %v142, %v246
  %v263 = vadd.f32 %v143, %v247
  %v264 = vadd.f32 %v144, %v248
  %v265 = vadd.f32 %v145, %v249
  %v266 = vadd.f32 %v146, %v250
  %v267 = vadd.f32 %v147, %v251
  %v268 = vadd.f32 %v148, %v252
  %269 = vset.pattern.permute.xlu0 2
  %270 = vperm.xlu0 %269, %v11
  %v271 = vpop.permute.xlu0 %270
  %273 = vset.pattern.permute.xlu0 2
  %274 = vperm.xlu0 %273, %v12
  %v275 = vpop.permute.xlu0 %274
  %277 = vset.pattern.permute.xlu0 2
  %278 = vperm.xlu0 %277, %v13
  %v279 = vpop.permute.xlu0 %278
  %281 = vset.pattern.permute.xlu0 2
  %282 = vperm.xlu0 %281, %v14
  %v283 = vpop.permute.xlu0 %282
  %285 = vset.pattern.permute.xlu0 2
  %286 = vperm.xlu0 %285, %v15
  %v287 = vpop.permute.xlu0 %286
  %289 = vset.pattern.permute.xlu0 2
  %290 = vperm.xlu0 %289, %v16
  %v291 = vpop.permute.xlu0 %290
  %293 = vset.pattern.permute.xlu0 2
  %294 = vperm.xlu0 %293, %v17
  %v295 = vpop.permute.xlu0 %294
  %297 = vset.pattern.permute.xlu0 2
  %298 = vperm.xlu0 %297, %v18
  %v299 = vpop.permute.xlu0 %298
  %301 = vset.pattern.permute.xlu0 2
  %302 = vperm.xlu0 %301, %v19
  %v303 = vpop.permute.xlu0 %302
  %305 = vset.pattern.permute.xlu0 2
  %306 = vperm.xlu0 %305, %v20
  %v307 = vpop.permute.xlu0 %306
  %309 = vset.pattern.permute.xlu0 2
  %310 = vperm.xlu0 %309, %v21
  %v311 = vpop.permute.xlu0 %310
  %313 = vset.pattern.permute.xlu0 2
  %314 = vperm.xlu0 %313, %v22
  %v315 = vpop.permute.xlu0 %314
  %317 = vset.pattern.permute.xlu0 2
  %318 = vperm.xlu0 %317, %v23
  %v319 = vpop.permute.xlu0 %318
  %321 = vset.pattern.permute.xlu0 2
  %322 = vperm.xlu0 %321, %v24
  %v323 = vpop.permute.xlu0 %322
  %325 = vset.pattern.permute.xlu0 2
  %326 = vperm.xlu0 %325, %v25
  %v327 = vpop.permute.xlu0 %326
  %329 = vset.pattern.permute.xlu0 2
  %330 = vperm.xlu0 %329, %v26
  %v331 = vpop.permute.xlu0 %330
  %v333 = vlaneseq
  %v334 = vshrl.u32 %v333, 7
  %v335 = vsub.s32 2, %v334
  %v336 = vrot.slane %v27, %v335
  %v337 = vlaneseq
  %v338 = vshrl.u32 %v337, 7
  %v339 = vsub.s32 2, %v338
  %v340 = vrot.slane %v28, %v339
  %v341 = vsub.f32 %v271, %v336
  %v342 = vsub.f32 %v275, %v336
  %v343 = vsub.f32 %v279, %v336
  %v344 = vsub.f32 %v283, %v336
  %v345 = vsub.f32 %v287, %v336
  %v346 = vsub.f32 %v291, %v336
  %v347 = vsub.f32 %v295, %v336
  %v348 = vsub.f32 %v299, %v336
  %v349 = vsub.f32 %v303, %v340
  %v350 = vsub.f32 %v307, %v340
  %v351 = vsub.f32 %v311, %v340
  %v352 = vsub.f32 %v315, %v340
  %v353 = vsub.f32 %v319, %v340
  %v354 = vsub.f32 %v323, %v340
  %v355 = vsub.f32 %v327, %v340
  %v356 = vsub.f32 %v331, %v340
  %v357 = vmul.f32 %v341, %v341
  %v358 = vmul.f32 %v342, %v342
  %v359 = vmul.f32 %v343, %v343
  %v360 = vmul.f32 %v344, %v344
  %v361 = vmul.f32 %v345, %v345
  %v362 = vmul.f32 %v346, %v346
  %v363 = vmul.f32 %v347, %v347
  %v364 = vmul.f32 %v348, %v348
  %v365 = vmul.f32 %v349, %v349
  %v366 = vmul.f32 %v350, %v350
  %v367 = vmul.f32 %v351, %v351
  %v368 = vmul.f32 %v352, %v352
  %v369 = vmul.f32 %v353, %v353
  %v370 = vmul.f32 %v354, %v354
  %v371 = vmul.f32 %v355, %v355
  %v372 = vmul.f32 %v356, %v356
  %v373 = vadd.f32 %v253, %v357
  %v374 = vadd.f32 %v254, %v358
  %v375 = vadd.f32 %v255, %v359
  %v376 = vadd.f32 %v256, %v360
  %v377 = vadd.f32 %v257, %v361
  %v378 = vadd.f32 %v258, %v362
  %v379 = vadd.f32 %v259, %v363
  %v380 = vadd.f32 %v260, %v364
  %v381 = vadd.f32 %v261, %v365
  %v382 = vadd.f32 %v262, %v366
  %v383 = vadd.f32 %v263, %v367
  %v384 = vadd.f32 %v264, %v368
  %v385 = vadd.f32 %v265, %v369
  %v386 = vadd.f32 %v266, %v370
  %v387 = vadd.f32 %v267, %v371
  %v388 = vadd.f32 %v268, %v372
  %v389 = vrsqrt.pop %v373
  %v390 = vmul.f32 %v373, %v389
  %vm391 = vcmp.eq.f32.partialorder %v373, inf
  %v392 = vsel %vm391, %v373, %v390
  %vm393 = vcmp.eq.f32.partialorder %v373, 0.0
  %v394 = vand.u32 %v373, 2147483648
  %v395 = vsel %vm393, %v394, %v392
  %v396 = vrsqrt.pop %v374
  %v397 = vmul.f32 %v374, %v396
  %vm398 = vcmp.eq.f32.partialorder %v374, inf
  %v399 = vsel %vm398, %v374, %v397
  %vm400 = vcmp.eq.f32.partialorder %v374, 0.0
  %v401 = vand.u32 %v374, 2147483648
  %v402 = vsel %vm400, %v401, %v399
  %v403 = vrsqrt.pop %v375
  %v404 = vmul.f32 %v375, %v403
  %vm405 = vcmp.eq.f32.partialorder %v375, inf
  %v406 = vsel %vm405, %v375, %v404
  %vm407 = vcmp.eq.f32.partialorder %v375, 0.0
  %v408 = vand.u32 %v375, 2147483648
  %v409 = vsel %vm407, %v408, %v406
  %v410 = vrsqrt.pop %v376
  %v411 = vmul.f32 %v376, %v410
  %vm412 = vcmp.eq.f32.partialorder %v376, inf
  %v413 = vsel %vm412, %v376, %v411
  %vm414 = vcmp.eq.f32.partialorder %v376, 0.0
  %v415 = vand.u32 %v376, 2147483648
  %v416 = vsel %vm414, %v415, %v413
  %v417 = vrsqrt.pop %v377
  %v418 = vmul.f32 %v377, %v417
  %vm419 = vcmp.eq.f32.partialorder %v377, inf
  %v420 = vsel %vm419, %v377, %v418
  %vm421 = vcmp.eq.f32.partialorder %v377, 0.0
  %v422 = vand.u32 %v377, 2147483648
  %v423 = vsel %vm421, %v422, %v420
  %v424 = vrsqrt.pop %v378
  %v425 = vmul.f32 %v378, %v424
  %vm426 = vcmp.eq.f32.partialorder %v378, inf
  %v427 = vsel %vm426, %v378, %v425
  %vm428 = vcmp.eq.f32.partialorder %v378, 0.0
  %v429 = vand.u32 %v378, 2147483648
  %v430 = vsel %vm428, %v429, %v427
  %v431 = vrsqrt.pop %v379
  %v432 = vmul.f32 %v379, %v431
  %vm433 = vcmp.eq.f32.partialorder %v379, inf
  %v434 = vsel %vm433, %v379, %v432
  %vm435 = vcmp.eq.f32.partialorder %v379, 0.0
  %v436 = vand.u32 %v379, 2147483648
  %v437 = vsel %vm435, %v436, %v434
  %v438 = vrsqrt.pop %v380
  %v439 = vmul.f32 %v380, %v438
  %vm440 = vcmp.eq.f32.partialorder %v380, inf
  %v441 = vsel %vm440, %v380, %v439
  %vm442 = vcmp.eq.f32.partialorder %v380, 0.0
  %v443 = vand.u32 %v380, 2147483648
  %v444 = vsel %vm442, %v443, %v441
  %v445 = vrsqrt.pop %v381
  %v446 = vmul.f32 %v381, %v445
  %vm447 = vcmp.eq.f32.partialorder %v381, inf
  %v448 = vsel %vm447, %v381, %v446
  %vm449 = vcmp.eq.f32.partialorder %v381, 0.0
  %v450 = vand.u32 %v381, 2147483648
  %v451 = vsel %vm449, %v450, %v448
  %v452 = vrsqrt.pop %v382
  %v453 = vmul.f32 %v382, %v452
  %vm454 = vcmp.eq.f32.partialorder %v382, inf
  %v455 = vsel %vm454, %v382, %v453
  %vm456 = vcmp.eq.f32.partialorder %v382, 0.0
  %v457 = vand.u32 %v382, 2147483648
  %v458 = vsel %vm456, %v457, %v455
  %v459 = vrsqrt.pop %v383
  %v460 = vmul.f32 %v383, %v459
  %vm461 = vcmp.eq.f32.partialorder %v383, inf
  %v462 = vsel %vm461, %v383, %v460
  %vm463 = vcmp.eq.f32.partialorder %v383, 0.0
  %v464 = vand.u32 %v383, 2147483648
  %v465 = vsel %vm463, %v464, %v462
  %v466 = vrsqrt.pop %v384
  %v467 = vmul.f32 %v384, %v466
  %vm468 = vcmp.eq.f32.partialorder %v384, inf
  %v469 = vsel %vm468, %v384, %v467
  %vm470 = vcmp.eq.f32.partialorder %v384, 0.0
  %v471 = vand.u32 %v384, 2147483648
  %v472 = vsel %vm470, %v471, %v469
  %v473 = vrsqrt.pop %v385
  %v474 = vmul.f32 %v385, %v473
  %vm475 = vcmp.eq.f32.partialorder %v385, inf
  %v476 = vsel %vm475, %v385, %v474
  %vm477 = vcmp.eq.f32.partialorder %v385, 0.0
  %v478 = vand.u32 %v385, 2147483648
  %v479 = vsel %vm477, %v478, %v476
  %v480 = vrsqrt.pop %v386
  %v481 = vmul.f32 %v386, %v480
  %vm482 = vcmp.eq.f32.partialorder %v386, inf
  %v483 = vsel %vm482, %v386, %v481
  %vm484 = vcmp.eq.f32.partialorder %v386, 0.0
  %v485 = vand.u32 %v386, 2147483648
  %v486 = vsel %vm484, %v485, %v483
  %v487 = vrsqrt.pop %v387
  %v488 = vmul.f32 %v387, %v487
  %vm489 = vcmp.eq.f32.partialorder %v387, inf
  %v490 = vsel %vm489, %v387, %v488
  %vm491 = vcmp.eq.f32.partialorder %v387, 0.0
  %v492 = vand.u32 %v387, 2147483648
  %v493 = vsel %vm491, %v492, %v490
  %v494 = vrsqrt.pop %v388
  %v495 = vmul.f32 %v388, %v494
  %vm496 = vcmp.eq.f32.partialorder %v388, inf
  %v497 = vsel %vm496, %v388, %v495
  %vm498 = vcmp.eq.f32.partialorder %v388, 0.0
  %v499 = vand.u32 %v388, 2147483648
  %v500 = vsel %vm498, %v499, %v497
  %vm501 = vcmask 523264
  %502 = vst.msk [vmem:[%s2] sm:$0xff] %vm501, %v395
  %503 = vst.msk [vmem:[%s2 + $0x8] sm:$0xff] %vm501, %v402
  %504 = vst.msk [vmem:[%s2 + $0x10] sm:$0xff] %vm501, %v409
  %505 = vst.msk [vmem:[%s2 + $0x18] sm:$0xff] %vm501, %v416
  %506 = vst.msk [vmem:[%s2 + $0x20] sm:$0xff] %vm501, %v423
  %507 = vst.msk [vmem:[%s2 + $0x28] sm:$0xff] %vm501, %v430
  %508 = vst.msk [vmem:[%s2 + $0x30] sm:$0xff] %vm501, %v437
  %509 = vst.msk [vmem:[%s2 + $0x38] sm:$0xff] %vm501, %v444
  %510 = vst.msk [vmem:[%s2 + $0x40] sm:$0xff] %vm501, %v451
  %511 = vst.msk [vmem:[%s2 + $0x48] sm:$0xff] %vm501, %v458
  %512 = vst.msk [vmem:[%s2 + $0x50] sm:$0xff] %vm501, %v465
  %513 = vst.msk [vmem:[%s2 + $0x58] sm:$0xff] %vm501, %v472
  %514 = vst.msk [vmem:[%s2 + $0x60] sm:$0xff] %vm501, %v479
  %515 = vst.msk [vmem:[%s2 + $0x68] sm:$0xff] %vm501, %v486
  %516 = vst.msk [vmem:[%s2 + $0x70] sm:$0xff] %vm501, %v493
  %517 = vst.msk [vmem:[%s2 + $0x78] sm:$0xff] %vm501, %v500
  // Predicated region
  $region10: #{matcher_device.7} parent=0 // pred_check
    _
  $region11: #{matcher_device.7} parent=0 // pred_check_branch
    %519 = sbr.rel (0) target = $region13
  $region12: #{matcher_device.7} parent=0 // pred_region
    _
  $region13: #{matcher_device.7} parent=0 // pred_fallthru
    _
  // Predicated region
  $region14: #{matcher_device.7} parent=0 // pred_check
    _
  $region15: #{matcher_device.7} parent=0 // pred_check_branch
    %521 = sbr.rel (0) target = $region17
  $region16: #{matcher_device.7} parent=0 // pred_region
    _
  $region17: #{matcher_device.7} parent=0 // pred_fallthru
    _

// kernel: matcher_device.8
$region0: #{matcher_device.8}
  #allocation0 [shape = 'u32[]', space=smem, size = 0x4, offset = 0x4, fixed_abs, tag = 'smem constant byte address 0x4 - core index']
  #allocation1 [shape = 'u32[144,128]{1,0:T(1,128)}', space=vmem, size = 0x12000, scoped, tag = 'internal scratch']
  %s0 = inlined_call_operand.vmem [shape: f32[416,4], index: 0, kind: input, shape index: {}]
  %s1 = inlined_call_operand.vmem [shape: f32[26,16,1], index: 1, kind: input, shape index: {}]
  %s2 = inlined_call_operand.vmem [shape: bf16[4,32], index: 2, kind: input, shape index: {}]
  %s3 = inlined_call_operand.vmem [shape: f32[1,32], index: 3, kind: input, shape index: {}]
  %s4 = inlined_call_operand.vmem [shape: bf16[32,32], index: 4, kind: input, shape index: {}]
  %s5 = inlined_call_operand.vmem [shape: f32[1,32], index: 5, kind: input, shape index: {}]
  %s6 = inlined_call_operand.vmem [shape: f32[26,32], index: 6, kind: output, shape index: {}]
  %s7 = sld [smem:[#allocation0]]
  $region34: #{matcher_device.8} parent=0
    _
  %s9 = ssub.s32 1, %s7
  %s10 = scalar_select 0, %s9, %s7
  // Predicated region
  $region2: #{matcher_device.8} parent=0 // pred_check
    _
  $region3: #{matcher_device.8} parent=0 // pred_check_branch
    %12 = sbr.rel (0) target = $region5
  $region4: #{matcher_device.8} parent=0 // pred_region
    _
  $region5: #{matcher_device.8} parent=0 // pred_fallthru
    _
  // Predicated region
  $region6: #{matcher_device.8} parent=0 // pred_check
    _
  $region7: #{matcher_device.8} parent=0 // pred_check_branch
    %14 = sbr.rel (0) target = $region9
  $region8: #{matcher_device.8} parent=0 // pred_region
    _
  $region9: #{matcher_device.8} parent=0 // pred_fallthru
    _
  // Predicated region
  $region10: #{matcher_device.8} parent=0 // pred_check
    _
  $region11: #{matcher_device.8} parent=0 // pred_check_branch
    %16 = sbr.rel (0) target = $region13
  $region12: #{matcher_device.8} parent=0 // pred_region
    _
  $region13: #{matcher_device.8} parent=0 // pred_fallthru
    _
  // Predicated region
  $region14: #{matcher_device.8} parent=0 // pred_check
    _
  $region15: #{matcher_device.8} parent=0 // pred_check_branch
    %18 = sbr.rel (0) target = $region17
  $region16: #{matcher_device.8} parent=0 // pred_region
    _
  $region17: #{matcher_device.8} parent=0 // pred_fallthru
    _
  // Predicated region
  $region18: #{matcher_device.8} parent=0 // pred_check
    _
  $region19: #{matcher_device.8} parent=0 // pred_check_branch
    %20 = sbr.rel (0) target = $region21
  $region20: #{matcher_device.8} parent=0 // pred_region
    _
  $region21: #{matcher_device.8} parent=0 // pred_fallthru
    _
  // Predicated region
  $region22: #{matcher_device.8} parent=0 // pred_check
    _
  $region23: #{matcher_device.8} parent=0 // pred_check_branch
    %22 = sbr.rel (0) target = $region25
  $region24: #{matcher_device.8} parent=0 // pred_region
    _
  $region25: #{matcher_device.8} parent=0 // pred_fallthru
    _
  %v24 = vld [vmem:[%s0] sm:$0xff]
  %v25 = vld [vmem:[%s0 + $0x8] sm:$0xff]
  %v26 = vld [vmem:[%s0 + $0x10] sm:$0xff]
  %v27 = vld [vmem:[%s0 + $0x18] sm:$0xff]
  %v28 = vld [vmem:[%s0 + $0x20] sm:$0xff]
  %v29 = vld [vmem:[%s0 + $0x28] sm:$0xff]
  %v30 = vld [vmem:[%s0 + $0x30] sm:$0xff]
  %v31 = vld [vmem:[%s0 + $0x38] sm:$0xff]
  %v32 = vld [vmem:[%s0 + $0x40] sm:$0xff]
  %v33 = vld [vmem:[%s0 + $0x48] sm:$0xff]
  %v34 = vld [vmem:[%s0 + $0x50] sm:$0xff]
  %v35 = vld [vmem:[%s0 + $0x58] sm:$0xff]
  %v36 = vld [vmem:[%s0 + $0x60] sm:$0xff]
  %v37 = vld [vmem:[%s0 + $0x68] sm:$0xff]
  %v38 = vld [vmem:[%s0 + $0x70] sm:$0xff]
  %v39 = vld [vmem:[%s0 + $0x78] sm:$0xff]
  %v40 = vld [vmem:[%s0 + $0x80] sm:$0xff]
  %v41 = vld [vmem:[%s0 + $0x88] sm:$0xff]
  %v42 = vld [vmem:[%s0 + $0x90] sm:$0xff]
  %v43 = vld [vmem:[%s0 + $0x98] sm:$0xff]
  %v44 = vld [vmem:[%s0 + $0xa0] sm:$0xff]
  %v45 = vld [vmem:[%s0 + $0xa8] sm:$0xff]
  %v46 = vld [vmem:[%s0 + $0xb0] sm:$0xff]
  %v47 = vld [vmem:[%s0 + $0xb8] sm:$0xff]
  %v48 = vld [vmem:[%s0 + $0xc0] sm:$0xff]
  %v49 = vld [vmem:[%s0 + $0xc8] sm:$0xff]
  %v50 = vld [vmem:[%s0 + $0xd0] sm:$0xff]
  %v51 = vld [vmem:[%s0 + $0xd8] sm:$0xff]
  %v52 = vld [vmem:[%s0 + $0xe0] sm:$0xff]
  %v53 = vld [vmem:[%s0 + $0xe8] sm:$0xff]
  %v54 = vld [vmem:[%s0 + $0xf0] sm:$0xff]
  %v55 = vld [vmem:[%s0 + $0xf8] sm:$0xff]
  %v56 = vld [vmem:[%s0 + $0x100] sm:$0xff]
  %v57 = vld [vmem:[%s0 + $0x108] sm:$0xff]
  %v58 = vld [vmem:[%s0 + $0x110] sm:$0xff]
  %v59 = vld [vmem:[%s0 + $0x118] sm:$0xff]
  %v60 = vld [vmem:[%s0 + $0x120] sm:$0xff]
  %v61 = vld [vmem:[%s0 + $0x128] sm:$0xff]
  %v62 = vld [vmem:[%s0 + $0x130] sm:$0xff]
  %v63 = vld [vmem:[%s0 + $0x138] sm:$0xff]
  %v64 = vld [vmem:[%s0 + $0x140] sm:$0xff]
  %v65 = vld [vmem:[%s0 + $0x148] sm:$0xff]
  %v66 = vld [vmem:[%s0 + $0x150] sm:$0xff]
  %v67 = vld [vmem:[%s0 + $0x158] sm:$0xff]
  %v68 = vld [vmem:[%s0 + $0x160] sm:$0xff]
  %v69 = vld [vmem:[%s0 + $0x168] sm:$0xff]
  %v70 = vld [vmem:[%s0 + $0x170] sm:$0xff]
  %v71 = vld [vmem:[%s0 + $0x178] sm:$0xff]
  %v72 = vld [vmem:[%s0 + $0x180] sm:$0xff]
  %v73 = vld [vmem:[%s0 + $0x188] sm:$0xff]
  %v74 = vld [vmem:[%s0 + $0x190] sm:$0xff]
  %v75 = vld [vmem:[%s0 + $0x198] sm:$0xff]
  %v76 = vpack.c.bf16 %v25, %v24
  %v77 = vpack.c.bf16 %v27, %v26
  %v78 = vpack.c.bf16 %v29, %v28
  %v79 = vpack.c.bf16 %v31, %v30
  %v80 = vpack.c.bf16 %v33, %v32
  %v81 = vpack.c.bf16 %v35, %v34
  %v82 = vpack.c.bf16 %v37, %v36
  %v83 = vpack.c.bf16 %v39, %v38
  %v84 = vpack.c.bf16 %v41, %v40
  %v85 = vpack.c.bf16 %v43, %v42
  %v86 = vpack.c.bf16 %v45, %v44
  %v87 = vpack.c.bf16 %v47, %v46
  %v88 = vpack.c.bf16 %v49, %v48
  %v89 = vpack.c.bf16 %v51, %v50
  %v90 = vpack.c.bf16 %v53, %v52
  %v91 = vpack.c.bf16 %v55, %v54
  %v92 = vpack.c.bf16 %v57, %v56
  %v93 = vpack.c.bf16 %v59, %v58
  %v94 = vpack.c.bf16 %v61, %v60
  %v95 = vpack.c.bf16 %v63, %v62
  %v96 = vpack.c.bf16 %v65, %v64
  %v97 = vpack.c.bf16 %v67, %v66
  %v98 = vpack.c.bf16 %v69, %v68
  %v99 = vpack.c.bf16 %v71, %v70
  %v100 = vpack.c.bf16 %v73, %v72
  %v101 = vpack.c.bf16 %v75, %v74
  %v102 = vld [vmem:[%s2] sm:$0x3]
  %v103 = vld [vmem:[%s3] sm:$0x1]
  %v105 = vlaneseq
  %v106 = vshrl.u32 %v105, 7
  %v107 = vsub.s32 0, %v106
  %v108 = vrot.slane %v103, %v107
  %vm110 = vcmask 31744
  %v112 = vsel %vm110, %v76, 0
  %v115 = vsel %vm110, %v77, 0
  %v118 = vsel %vm110, %v78, 0
  %v121 = vsel %vm110, %v79, 0
  %v124 = vsel %vm110, %v80, 0
  %v127 = vsel %vm110, %v81, 0
  %v130 = vsel %vm110, %v82, 0
  %v133 = vsel %vm110, %v83, 0
  %v136 = vsel %vm110, %v84, 0
  %v139 = vsel %vm110, %v85, 0
  %v142 = vsel %vm110, %v86, 0
  %v145 = vsel %vm110, %v87, 0
  %v148 = vsel %vm110, %v88, 0
  %v151 = vsel %vm110, %v89, 0
  %v154 = vsel %vm110, %v90, 0
  %v157 = vsel %vm110, %v91, 0
  %v160 = vsel %vm110, %v92, 0
  %v163 = vsel %vm110, %v93, 0
  %v166 = vsel %vm110, %v94, 0
  %v169 = vsel %vm110, %v95, 0
  %v172 = vsel %vm110, %v96, 0
  %v175 = vsel %vm110, %v97, 0
  %v178 = vsel %vm110, %v98, 0
  %v181 = vsel %vm110, %v99, 0
  %v184 = vsel %vm110, %v100, 0
  %v187 = vsel %vm110, %v101, 0
  %vm189 = vcmask 1041408
  %v191 = vsel %vm189, %v102, 0
  %193 = vmatprep.subr.bf16.mxu0 0
  %194 = vmatpush1.bf16.msra.mxu0 %v191
  %195 = vmatprep.subr.bf16.mxu0 0
  %196 = vmatpush1.bf16.msra.mxu0 0
  %197 = vmatprep.subr.bf16.mxu0 0
  %198 = vmatpush1.bf16.msra.mxu0 0
  %199 = vmatprep.subr.bf16.mxu0 0
  %200 = vmatpush1.bf16.msra.mxu0 0
  %201 = vmatprep.subr.bf16.mxu0 0
  %202 = vmatpush1.bf16.msra.mxu0 0
  %203 = vmatprep.subr.bf16.mxu0 0
  %204 = vmatpush1.bf16.msra.mxu0 0
  %205 = vmatprep.subr.bf16.mxu0 0
  %206 = vmatpush1.bf16.msra.mxu0 0
  %207 = vmatprep.subr.bf16.mxu0 0
  %208 = vmatpush1.bf16.msra.mxu0 0
  %209 = vmatprep.subr.bf16.mxu0 0
  %210 = vmatpush1.bf16.msra.mxu0 0
  %211 = vmatprep.subr.bf16.mxu0 0
  %212 = vmatpush1.bf16.msra.mxu0 0
  %213 = vmatprep.subr.bf16.mxu0 0
  %214 = vmatpush1.bf16.msra.mxu0 0
  %215 = vmatprep.subr.bf16.mxu0 0
  %216 = vmatpush1.bf16.msra.mxu0 0
  %217 = vmatprep.subr.bf16.mxu0 0
  %218 = vmatpush1.bf16.msra.mxu0 0
  %219 = vmatprep.subr.bf16.mxu0 0
  %220 = vmatpush1.bf16.msra.mxu0 0
  %221 = vmatprep.subr.bf16.mxu0 0
  %222 = vmatpush1.bf16.msra.mxu0 0
  %223 = vmatprep.subr.bf16.mxu0 0
  %224 = vmatpush1.bf16.msra.mxu0 0
  %225 = vmatprep.mubr.bf16.mxu0 0
  %226 = vmatmul.mubr.bf16.gmra.mrb[0].mxu0 %v112
  %v227 = vpop.f32.mrb[0].mxu0
  %v228 = vadd.f32 %v108, %v227
  %v229 = vpop.f32.mrb[0].mxu0
  %v230 = vpop.f32.mrb[0].mxu0
  %v231 = vadd.f32 %v108, %v230
  %v232 = vpop.f32.mrb[0].mxu0
  %233 = vmatprep.mubr.bf16.mxu0 0
  %234 = vmatmul.mubr.bf16.gmra.mrb[0].mxu0 %v115
  %v235 = vpop.f32.mrb[0].mxu0
  %v236 = vadd.f32 %v108, %v235
  %v237 = vpop.f32.mrb[0].mxu0
  %v238 = vpop.f32.mrb[0].mxu0
  %v239 = vadd.f32 %v108, %v238
  %v240 = vpop.f32.mrb[0].mxu0
  %241 = vmatprep.mubr.bf16.mxu0 0
  %242 = vmatmul.mubr.bf16.gmra.mrb[0].mxu0 %v118
  %v243 = vpop.f32.mrb[0].mxu0
  %v244 = vadd.f32 %v108, %v243
  %v245 = vpop.f32.mrb[0].mxu0
  %v246 = vpop.f32.mrb[0].mxu0
  %v247 = vadd.f32 %v108, %v246
  %v248 = vpop.f32.mrb[0].mxu0
  %249 = vmatprep.mubr.bf16.mxu0 0
  %250 = vmatmul.mubr.bf16.gmra.mrb[0].mxu0 %v121
  %v251 = vpop.f32.mrb[0].mxu0
  %v252 = vadd.f32 %v108, %v251
  %v253 = vpop.f32.mrb[0].mxu0
  %v254 = vpop.f32.mrb[0].mxu0
  %v255 = vadd.f32 %v108, %v254
  %v256 = vpop.f32.mrb[0].mxu0
  %257 = vmatprep.mubr.bf16.mxu0 0
  %258 = vmatmul.mubr.bf16.gmra.mrb[0].mxu0 %v124
  %v259 = vpop.f32.mrb[0].mxu0
  %v260 = vadd.f32 %v108, %v259
  %v261 = vpop.f32.mrb[0].mxu0
  %v262 = vpop.f32.mrb[0].mxu0
  %v263 = vadd.f32 %v108, %v262
  %v264 = vpop.f32.mrb[0].mxu0
  %265 = vmatprep.mubr.bf16.mxu0 0
  %266 = vmatmul.mubr.bf16.gmra.mrb[0].mxu0 %v127
  %v267 = vpop.f32.mrb[0].mxu0
  %v268 = vadd.f32 %v108, %v267
  %v269 = vpop.f32.mrb[0].mxu0
  %v270 = vpop.f32.mrb[0].mxu0
  %v271 = vadd.f32 %v108, %v270
  %v272 = vpop.f32.mrb[0].mxu0
  %273 = vmatprep.mubr.bf16.mxu0 0
  %274 = vmatmul.mubr.bf16.gmra.mrb[0].mxu0 %v130
  %v275 = vpop.f32.mrb[0].mxu0
  %v276 = vadd.f32 %v108, %v275
  %v277 = vpop.f32.mrb[0].mxu0
  %v278 = vpop.f32.mrb[0].mxu0
  %v279 = vadd.f32 %v108, %v278
  %v280 = vpop.f32.mrb[0].mxu0
  %281 = vmatprep.mubr.bf16.mxu0 0
  %282 = vmatmul.mubr.bf16.gmra.mrb[0].mxu0 %v133
  %v283 = vpop.f32.mrb[0].mxu0
  %v284 = vadd.f32 %v108, %v283
  %v285 = vpop.f32.mrb[0].mxu0
  %v286 = vpop.f32.mrb[0].mxu0
  %v287 = vadd.f32 %v108, %v286
  %v288 = vpop.f32.mrb[0].mxu0
  %289 = vmatprep.mubr.bf16.mxu0 0
  %290 = vmatmul.mubr.bf16.gmra.mrb[0].mxu0 %v136
  %v291 = vpop.f32.mrb[0].mxu0
  %v292 = vadd.f32 %v108, %v291
  %v293 = vpop.f32.mrb[0].mxu0
  %v294 = vpop.f32.mrb[0].mxu0
  %v295 = vadd.f32 %v108, %v294
  %v296 = vpop.f32.mrb[0].mxu0
  %297 = vmatprep.mubr.bf16.mxu0 0
  %298 = vmatmul.mubr.bf16.gmra.mrb[0].mxu0 %v139
  %v299 = vpop.f32.mrb[0].mxu0
  %v300 = vadd.f32 %v108, %v299
  %v301 = vpop.f32.mrb[0].mxu0
  %v302 = vpop.f32.mrb[0].mxu0
  %v303 = vadd.f32 %v108, %v302
  %v304 = vpop.f32.mrb[0].mxu0
  %305 = vmatprep.mubr.bf16.mxu0 0
  %306 = vmatmul.mubr.bf16.gmra.mrb[0].mxu0 %v142
  %v307 = vpop.f32.mrb[0].mxu0
  %v308 = vadd.f32 %v108, %v307
  %v309 = vpop.f32.mrb[0].mxu0
  %v310 = vpop.f32.mrb[0].mxu0
  %v311 = vadd.f32 %v108, %v310
  %v312 = vpop.f32.mrb[0].mxu0
  %313 = vmatprep.mubr.bf16.mxu0 0
  %314 = vmatmul.mubr.bf16.gmra.mrb[0].mxu0 %v145
  %v315 = vpop.f32.mrb[0].mxu0
  %v316 = vadd.f32 %v108, %v315
  %v317 = vpop.f32.mrb[0].mxu0
  %v318 = vpop.f32.mrb[0].mxu0
  %v319 = vadd.f32 %v108, %v318
  %v320 = vpop.f32.mrb[0].mxu0
  %321 = vmatprep.mubr.bf16.mxu0 0
  %322 = vmatmul.mubr.bf16.gmra.mrb[0].mxu0 %v148
  %v323 = vpop.f32.mrb[0].mxu0
  %v324 = vadd.f32 %v108, %v323
  %v325 = vpop.f32.mrb[0].mxu0
  %v326 = vpop.f32.mrb[0].mxu0
  %v327 = vadd.f32 %v108, %v326
  %v328 = vpop.f32.mrb[0].mxu0
  %329 = vmatprep.mubr.bf16.mxu0 0
  %330 = vmatmul.mubr.bf16.gmra.mrb[0].mxu0 %v151
  %v331 = vpop.f32.mrb[0].mxu0
  %v332 = vadd.f32 %v108, %v331
  %v333 = vpop.f32.mrb[0].mxu0
  %v334 = vpop.f32.mrb[0].mxu0
  %v335 = vadd.f32 %v108, %v334
  %v336 = vpop.f32.mrb[0].mxu0
  %337 = vmatprep.mubr.bf16.mxu0 0
  %338 = vmatmul.mubr.bf16.gmra.mrb[0].mxu0 %v154
  %v339 = vpop.f32.mrb[0].mxu0
  %v340 = vadd.f32 %v108, %v339
  %v341 = vpop.f32.mrb[0].mxu0
  %v342 = vpop.f32.mrb[0].mxu0
  %v343 = vadd.f32 %v108, %v342
  %v344 = vpop.f32.mrb[0].mxu0
  %345 = vmatprep.mubr.bf16.mxu0 0
  %346 = vmatmul.mubr.bf16.gmra.mrb[0].mxu0 %v157
  %v347 = vpop.f32.mrb[0].mxu0
  %v348 = vadd.f32 %v108, %v347
  %v349 = vpop.f32.mrb[0].mxu0
  %v350 = vpop.f32.mrb[0].mxu0
  %v351 = vadd.f32 %v108, %v350
  %v352 = vpop.f32.mrb[0].mxu0
  %353 = vmatprep.mubr.bf16.mxu0 0
  %354 = vmatmul.mubr.bf16.gmra.mrb[0].mxu0 %v160
  %v355 = vpop.f32.mrb[0].mxu0
  %v356 = vadd.f32 %v108, %v355
  %v357 = vpop.f32.mrb[0].mxu0
  %v358 = vpop.f32.mrb[0].mxu0
  %v359 = vadd.f32 %v108, %v358
  %v360 = vpop.f32.mrb[0].mxu0
  %361 = vmatprep.mubr.bf16.mxu0 0
  %362 = vmatmul.mubr.bf16.gmra.mrb[0].mxu0 %v163
  %v363 = vpop.f32.mrb[0].mxu0
  %v364 = vadd.f32 %v108, %v363
  %v365 = vpop.f32.mrb[0].mxu0
  %v366 = vpop.f32.mrb[0].mxu0
  %v367 = vadd.f32 %v108, %v366
  %v368 = vpop.f32.mrb[0].mxu0
  %369 = vmatprep.mubr.bf16.mxu0 0
  %370 = vmatmul.mubr.bf16.gmra.mrb[0].mxu0 %v166
  %v371 = vpop.f32.mrb[0].mxu0
  %v372 = vadd.f32 %v108, %v371
  %v373 = vpop.f32.mrb[0].mxu0
  %v374 = vpop.f32.mrb[0].mxu0
  %v375 = vadd.f32 %v108, %v374
  %v376 = vpop.f32.mrb[0].mxu0
  %377 = vmatprep.mubr.bf16.mxu0 0
  %378 = vmatmul.mubr.bf16.gmra.mrb[0].mxu0 %v169
  %v379 = vpop.f32.mrb[0].mxu0
  %v380 = vadd.f32 %v108, %v379
  %v381 = vpop.f32.mrb[0].mxu0
  %v382 = vpop.f32.mrb[0].mxu0
  %v383 = vadd.f32 %v108, %v382
  %v384 = vpop.f32.mrb[0].mxu0
  %385 = vmatprep.mubr.bf16.mxu0 0
  %386 = vmatmul.mubr.bf16.gmra.mrb[0].mxu0 %v172
  %v387 = vpop.f32.mrb[0].mxu0
  %v388 = vadd.f32 %v108, %v387
  %v389 = vpop.f32.mrb[0].mxu0
  %v390 = vpop.f32.mrb[0].mxu0
  %v391 = vadd.f32 %v108, %v390
  %v392 = vpop.f32.mrb[0].mxu0
  %393 = vmatprep.mubr.bf16.mxu0 0
  %394 = vmatmul.mubr.bf16.gmra.mrb[0].mxu0 %v175
  %v395 = vpop.f32.mrb[0].mxu0
  %v396 = vadd.f32 %v108, %v395
  %v397 = vpop.f32.mrb[0].mxu0
  %v398 = vpop.f32.mrb[0].mxu0
  %v399 = vadd.f32 %v108, %v398
  %v400 = vpop.f32.mrb[0].mxu0
  %401 = vmatprep.mubr.bf16.mxu0 0
  %402 = vmatmul.mubr.bf16.gmra.mrb[0].mxu0 %v178
  %v403 = vpop.f32.mrb[0].mxu0
  %v404 = vadd.f32 %v108, %v403
  %v405 = vpop.f32.mrb[0].mxu0
  %v406 = vpop.f32.mrb[0].mxu0
  %v407 = vadd.f32 %v108, %v406
  %v408 = vpop.f32.mrb[0].mxu0
  %409 = vmatprep.mubr.bf16.mxu0 0
  %410 = vmatmul.mubr.bf16.gmra.mrb[0].mxu0 %v181
  %v411 = vpop.f32.mrb[0].mxu0
  %v412 = vadd.f32 %v108, %v411
  %v413 = vpop.f32.mrb[0].mxu0
  %v414 = vpop.f32.mrb[0].mxu0
  %v415 = vadd.f32 %v108, %v414
  %v416 = vpop.f32.mrb[0].mxu0
  %417 = vmatprep.mubr.bf16.mxu0 0
  %418 = vmatmul.mubr.bf16.gmra.mrb[0].mxu0 %v184
  %v419 = vpop.f32.mrb[0].mxu0
  %v420 = vadd.f32 %v108, %v419
  %v421 = vpop.f32.mrb[0].mxu0
  %v422 = vpop.f32.mrb[0].mxu0
  %v423 = vadd.f32 %v108, %v422
  %v424 = vpop.f32.mrb[0].mxu0
  %425 = vmatprep.mubr.bf16.mxu0 0
  %426 = vmatmul.mubr.bf16.gmra.mrb[0].mxu0 %v187
  %v427 = vpop.f32.mrb[0].mxu0
  %v428 = vadd.f32 %v108, %v427
  %v429 = vpop.f32.mrb[0].mxu0
  %v430 = vpop.f32.mrb[0].mxu0
  %v431 = vadd.f32 %v108, %v430
  %v432 = vpop.f32.mrb[0].mxu0
  %433 = vdwg.mxu0
  %v434 = vmax.f32 %v228, 0.0
  %v435 = vmax.f32 %v231, 0.0
  %v436 = vmax.f32 %v236, 0.0
  %v437 = vmax.f32 %v239, 0.0
  %v438 = vmax.f32 %v244, 0.0
  %v439 = vmax.f32 %v247, 0.0
  %v440 = vmax.f32 %v252, 0.0
  %v441 = vmax.f32 %v255, 0.0
  %v442 = vmax.f32 %v260, 0.0
  %v443 = vmax.f32 %v263, 0.0
  %v444 = vmax.f32 %v268, 0.0
  %v445 = vmax.f32 %v271, 0.0
  %v446 = vmax.f32 %v276, 0.0
  %v447 = vmax.f32 %v279, 0.0
  %v448 = vmax.f32 %v284, 0.0
  %v449 = vmax.f32 %v287, 0.0
  %v450 = vmax.f32 %v292, 0.0
  %v451 = vmax.f32 %v295, 0.0
  %v452 = vmax.f32 %v300, 0.0
  %v453 = vmax.f32 %v303, 0.0
  %v454 = vmax.f32 %v308, 0.0
  %v455 = vmax.f32 %v311, 0.0
  %v456 = vmax.f32 %v316, 0.0
  %v457 = vmax.f32 %v319, 0.0
  %v458 = vmax.f32 %v324, 0.0
  %v459 = vmax.f32 %v327, 0.0
  %v460 = vmax.f32 %v332, 0.0
  %v461 = vmax.f32 %v335, 0.0
  %v462 = vmax.f32 %v340, 0.0
  %v463 = vmax.f32 %v343, 0.0
  %v464 = vmax.f32 %v348, 0.0
  %v465 = vmax.f32 %v351, 0.0
  %v466 = vmax.f32 %v356, 0.0
  %v467 = vmax.f32 %v359, 0.0
  %v468 = vmax.f32 %v364, 0.0
  %v469 = vmax.f32 %v367, 0.0
  %v470 = vmax.f32 %v372, 0.0
  %v471 = vmax.f32 %v375, 0.0
  %v472 = vmax.f32 %v380, 0.0
  %v473 = vmax.f32 %v383, 0.0
  %v474 = vmax.f32 %v388, 0.0
  %v475 = vmax.f32 %v391, 0.0
  %v476 = vmax.f32 %v396, 0.0
  %v477 = vmax.f32 %v399, 0.0
  %v478 = vmax.f32 %v404, 0.0
  %v479 = vmax.f32 %v407, 0.0
  %v480 = vmax.f32 %v412, 0.0
  %v481 = vmax.f32 %v415, 0.0
  %v482 = vmax.f32 %v420, 0.0
  %v483 = vmax.f32 %v423, 0.0
  %v484 = vmax.f32 %v428, 0.0
  %v485 = vmax.f32 %v431, 0.0
  %v486 = vpack.c.bf16 %v435, %v434
  %v487 = vpack.c.bf16 %v437, %v436
  %v488 = vpack.c.bf16 %v439, %v438
  %v489 = vpack.c.bf16 %v441, %v440
  %v490 = vpack.c.bf16 %v443, %v442
  %v491 = vpack.c.bf16 %v445, %v444
  %v492 = vpack.c.bf16 %v447, %v446
  %v493 = vpack.c.bf16 %v449, %v448
  %v494 = vpack.c.bf16 %v451, %v450
  %v495 = vpack.c.bf16 %v453, %v452
  %v496 = vpack.c.bf16 %v455, %v454
  %v497 = vpack.c.bf16 %v457, %v456
  %v498 = vpack.c.bf16 %v459, %v458
  %v499 = vpack.c.bf16 %v461, %v460
  %v500 = vpack.c.bf16 %v463, %v462
  %v501 = vpack.c.bf16 %v465, %v464
  %v502 = vpack.c.bf16 %v467, %v466
  %v503 = vpack.c.bf16 %v469, %v468
  %v504 = vpack.c.bf16 %v471, %v470
  %v505 = vpack.c.bf16 %v473, %v472
  %v506 = vpack.c.bf16 %v475, %v474
  %v507 = vpack.c.bf16 %v477, %v476
  %v508 = vpack.c.bf16 %v479, %v478
  %v509 = vpack.c.bf16 %v481, %v480
  %v510 = vpack.c.bf16 %v483, %v482
  %v511 = vpack.c.bf16 %v485, %v484
  %v512 = vld [vmem:[%s4] sm:$0xf]
  %v513 = vld [vmem:[%s4 + $0x4] sm:$0xf]
  %v514 = vld [vmem:[%s4 + $0x8] sm:$0xf]
  %v515 = vld [vmem:[%s4 + $0xc] sm:$0xf]
  %v516 = vld [vmem:[%s5] sm:$0x1]
  %v518 = vlaneseq
  %v519 = vshrl.u32 %v518, 7
  %v520 = vsub.s32 0, %v519
  %v521 = vrot.slane %v516, %v520
  %v527 = vunpack.c.l.b16 %v512
  %v528 = vunpack.c.l.b16 %v513
  %v529 = vunpack.c.l.b16 %v514
  %v530 = vunpack.c.l.b16 %v515
  %v531 = vpack.c.b16 %v528, %v527
  %v532 = vpack.c.b16 %v530, %v529
  %vm535 = vcmask 261120
  %v537 = vsel %vm535, %v486, 0
  %v540 = vsel %vm535, %v487, 0
  %v543 = vsel %vm535, %v488, 0
  %v546 = vsel %vm535, %v489, 0
  %v549 = vsel %vm535, %v490, 0
  %v552 = vsel %vm535, %v491, 0
  %v555 = vsel %vm535, %v492, 0
  %v558 = vsel %vm535, %v493, 0
  %v561 = vsel %vm535, %v494, 0
  %v564 = vsel %vm535, %v495, 0
  %v567 = vsel %vm535, %v496, 0
  %v570 = vsel %vm535, %v497, 0
  %v573 = vsel %vm535, %v498, 0
  %v576 = vsel %vm535, %v499, 0
  %v579 = vsel %vm535, %v500, 0
  %v582 = vsel %vm535, %v501, 0
  %v585 = vsel %vm535, %v502, 0
  %v588 = vsel %vm535, %v503, 0
  %v591 = vsel %vm535, %v504, 0
  %v594 = vsel %vm535, %v505, 0
  %v597 = vsel %vm535, %v506, 0
  %v600 = vsel %vm535, %v507, 0
  %v603 = vsel %vm535, %v508, 0
  %v606 = vsel %vm535, %v509, 0
  %v609 = vsel %vm535, %v510, 0
  %v612 = vsel %vm535, %v511, 0
  %614 = vmatprep.subr.bf16.mxu0 0
  %615 = vmatpush1.bf16.msra.mxu0 %v531
  %616 = vmatprep.subr.bf16.mxu0 0
  %617 = vmatpush1.bf16.msra.mxu0 %v532
  %618 = vmatprep.subr.bf16.mxu0 0
  %619 = vmatpush1.bf16.msra.mxu0 0
  %620 = vmatprep.subr.bf16.mxu0 0
  %621 = vmatpush1.bf16.msra.mxu0 0
  %622 = vmatprep.subr.bf16.mxu0 0
  %623 = vmatpush1.bf16.msra.mxu0 0
  %624 = vmatprep.subr.bf16.mxu0 0
  %625 = vmatpush1.bf16.msra.mxu0 0
  %626 = vmatprep.subr.bf16.mxu0 0
  %627 = vmatpush1.bf16.msra.mxu0 0
  %628 = vmatprep.subr.bf16.mxu0 0
  %629 = vmatpush1.bf16.msra.mxu0 0
  %630 = vmatprep.subr.bf16.mxu0 0
  %631 = vmatpush1.bf16.msra.mxu0 0
  %632 = vmatprep.subr.bf16.mxu0 0
  %633 = vmatpush1.bf16.msra.mxu0 0
  %634 = vmatprep.subr.bf16.mxu0 0
  %635 = vmatpush1.bf16.msra.mxu0 0
  %636 = vmatprep.subr.bf16.mxu0 0
  %637 = vmatpush1.bf16.msra.mxu0 0
  %638 = vmatprep.subr.bf16.mxu0 0
  %639 = vmatpush1.bf16.msra.mxu0 0
  %640 = vmatprep.subr.bf16.mxu0 0
  %641 = vmatpush1.bf16.msra.mxu0 0
  %642 = vmatprep.subr.bf16.mxu0 0
  %643 = vmatpush1.bf16.msra.mxu0 0
  %644 = vmatprep.subr.bf16.mxu0 0
  %645 = vmatpush1.bf16.msra.mxu0 0
  %646 = vmatprep.mubr.bf16.mxu0 0
  %647 = vmatmul.mubr.bf16.gmra.mrb[0].mxu0 %v537
  %v648 = vpop.f32.mrb[0].mxu0
  %v649 = vadd.f32 %v521, %v648
  %v650 = vpop.f32.mrb[0].mxu0
  %v651 = vpop.f32.mrb[0].mxu0
  %v652 = vadd.f32 %v521, %v651
  %v653 = vpop.f32.mrb[0].mxu0
  %654 = vmatprep.mubr.bf16.mxu0 0
  %655 = vmatmul.mubr.bf16.gmra.mrb[0].mxu0 %v540
  %v656 = vpop.f32.mrb[0].mxu0
  %v657 = vadd.f32 %v521, %v656
  %v658 = vpop.f32.mrb[0].mxu0
  %v659 = vpop.f32.mrb[0].mxu0
  %v660 = vadd.f32 %v521, %v659
  %v661 = vpop.f32.mrb[0].mxu0
  %662 = vmatprep.mubr.bf16.mxu0 0
  %663 = vmatmul.mubr.bf16.gmra.mrb[0].mxu0 %v543
  %v664 = vpop.f32.mrb[0].mxu0
  %v665 = vadd.f32 %v521, %v664
  %v666 = vpop.f32.mrb[0].mxu0
  %v667 = vpop.f32.mrb[0].mxu0
  %v668 = vadd.f32 %v521, %v667
  %v669 = vpop.f32.mrb[0].mxu0
  %670 = vmatprep.mubr.bf16.mxu0 0
  %671 = vmatmul.mubr.bf16.gmra.mrb[0].mxu0 %v546
  %v672 = vpop.f32.mrb[0].mxu0
  %v673 = vadd.f32 %v521, %v672
  %v674 = vpop.f32.mrb[0].mxu0
  %v675 = vpop.f32.mrb[0].mxu0
  %v676 = vadd.f32 %v521, %v675
  %v677 = vpop.f32.mrb[0].mxu0
  %678 = vmatprep.mubr.bf16.mxu0 0
  %679 = vmatmul.mubr.bf16.gmra.mrb[0].mxu0 %v549
  %v680 = vpop.f32.mrb[0].mxu0
  %v681 = vadd.f32 %v521, %v680
  %v682 = vpop.f32.mrb[0].mxu0
  %v683 = vpop.f32.mrb[0].mxu0
  %v684 = vadd.f32 %v521, %v683
  %v685 = vpop.f32.mrb[0].mxu0
  %686 = vmatprep.mubr.bf16.mxu0 0
  %687 = vmatmul.mubr.bf16.gmra.mrb[0].mxu0 %v552
  %v688 = vpop.f32.mrb[0].mxu0
  %v689 = vadd.f32 %v521, %v688
  %v690 = vpop.f32.mrb[0].mxu0
  %v691 = vpop.f32.mrb[0].mxu0
  %v692 = vadd.f32 %v521, %v691
  %v693 = vpop.f32.mrb[0].mxu0
  %694 = vmatprep.mubr.bf16.mxu0 0
  %695 = vmatmul.mubr.bf16.gmra.mrb[0].mxu0 %v555
  %v696 = vpop.f32.mrb[0].mxu0
  %v697 = vadd.f32 %v521, %v696
  %v698 = vpop.f32.mrb[0].mxu0
  %v699 = vpop.f32.mrb[0].mxu0
  %v700 = vadd.f32 %v521, %v699
  %v701 = vpop.f32.mrb[0].mxu0
  %702 = vmatprep.mubr.bf16.mxu0 0
  %703 = vmatmul.mubr.bf16.gmra.mrb[0].mxu0 %v558
  %v704 = vpop.f32.mrb[0].mxu0
  %v705 = vadd.f32 %v521, %v704
  %v706 = vpop.f32.mrb[0].mxu0
  %v707 = vpop.f32.mrb[0].mxu0
  %v708 = vadd.f32 %v521, %v707
  %v709 = vpop.f32.mrb[0].mxu0
  %710 = vmatprep.mubr.bf16.mxu0 0
  %711 = vmatmul.mubr.bf16.gmra.mrb[0].mxu0 %v561
  %v712 = vpop.f32.mrb[0].mxu0
  %v713 = vadd.f32 %v521, %v712
  %v714 = vpop.f32.mrb[0].mxu0
  %v715 = vpop.f32.mrb[0].mxu0
  %v716 = vadd.f32 %v521, %v715
  %v717 = vpop.f32.mrb[0].mxu0
  %718 = vmatprep.mubr.bf16.mxu0 0
  %719 = vmatmul.mubr.bf16.gmra.mrb[0].mxu0 %v564
  %v720 = vpop.f32.mrb[0].mxu0
  %v721 = vadd.f32 %v521, %v720
  %v722 = vpop.f32.mrb[0].mxu0
  %v723 = vpop.f32.mrb[0].mxu0
  %v724 = vadd.f32 %v521, %v723
  %v725 = vpop.f32.mrb[0].mxu0
  %726 = vmatprep.mubr.bf16.mxu0 0
  %727 = vmatmul.mubr.bf16.gmra.mrb[0].mxu0 %v567
  %v728 = vpop.f32.mrb[0].mxu0
  %v729 = vadd.f32 %v521, %v728
  %v730 = vpop.f32.mrb[0].mxu0
  %v731 = vpop.f32.mrb[0].mxu0
  %v732 = vadd.f32 %v521, %v731
  %v733 = vpop.f32.mrb[0].mxu0
  %734 = vmatprep.mubr.bf16.mxu0 0
  %735 = vmatmul.mubr.bf16.gmra.mrb[0].mxu0 %v570
  %v736 = vpop.f32.mrb[0].mxu0
  %v737 = vadd.f32 %v521, %v736
  %v738 = vpop.f32.mrb[0].mxu0
  %v739 = vpop.f32.mrb[0].mxu0
  %v740 = vadd.f32 %v521, %v739
  %v741 = vpop.f32.mrb[0].mxu0
  %742 = vmatprep.mubr.bf16.mxu0 0
  %743 = vmatmul.mubr.bf16.gmra.mrb[0].mxu0 %v573
  %v744 = vpop.f32.mrb[0].mxu0
  %v745 = vadd.f32 %v521, %v744
  %v746 = vpop.f32.mrb[0].mxu0
  %v747 = vpop.f32.mrb[0].mxu0
  %v748 = vadd.f32 %v521, %v747
  %v749 = vpop.f32.mrb[0].mxu0
  %750 = vmatprep.mubr.bf16.mxu0 0
  %751 = vmatmul.mubr.bf16.gmra.mrb[0].mxu0 %v576
  %v752 = vpop.f32.mrb[0].mxu0
  %v753 = vadd.f32 %v521, %v752
  %v754 = vpop.f32.mrb[0].mxu0
  %v755 = vpop.f32.mrb[0].mxu0
  %v756 = vadd.f32 %v521, %v755
  %v757 = vpop.f32.mrb[0].mxu0
  %758 = vmatprep.mubr.bf16.mxu0 0
  %759 = vmatmul.mubr.bf16.gmra.mrb[0].mxu0 %v579
  %v760 = vpop.f32.mrb[0].mxu0
  %v761 = vadd.f32 %v521, %v760
  %v762 = vpop.f32.mrb[0].mxu0
  %v763 = vpop.f32.mrb[0].mxu0
  %v764 = vadd.f32 %v521, %v763
  %v765 = vpop.f32.mrb[0].mxu0
  %766 = vmatprep.mubr.bf16.mxu0 0
  %767 = vmatmul.mubr.bf16.gmra.mrb[0].mxu0 %v582
  %v768 = vpop.f32.mrb[0].mxu0
  %v769 = vadd.f32 %v521, %v768
  %v770 = vpop.f32.mrb[0].mxu0
  %v771 = vpop.f32.mrb[0].mxu0
  %v772 = vadd.f32 %v521, %v771
  %v773 = vpop.f32.mrb[0].mxu0
  %774 = vmatprep.mubr.bf16.mxu0 0
  %775 = vmatmul.mubr.bf16.gmra.mrb[0].mxu0 %v585
  %v776 = vpop.f32.mrb[0].mxu0
  %v777 = vadd.f32 %v521, %v776
  %v778 = vpop.f32.mrb[0].mxu0
  %v779 = vpop.f32.mrb[0].mxu0
  %v780 = vadd.f32 %v521, %v779
  %v781 = vpop.f32.mrb[0].mxu0
  %782 = vmatprep.mubr.bf16.mxu0 0
  %783 = vmatmul.mubr.bf16.gmra.mrb[0].mxu0 %v588
  %v784 = vpop.f32.mrb[0].mxu0
  %v785 = vadd.f32 %v521, %v784
  %v786 = vpop.f32.mrb[0].mxu0
  %v787 = vpop.f32.mrb[0].mxu0
  %v788 = vadd.f32 %v521, %v787
  %v789 = vpop.f32.mrb[0].mxu0
  %790 = vmatprep.mubr.bf16.mxu0 0
  %791 = vmatmul.mubr.bf16.gmra.mrb[0].mxu0 %v591
  %v792 = vpop.f32.mrb[0].mxu0
  %v793 = vadd.f32 %v521, %v792
  %v794 = vpop.f32.mrb[0].mxu0
  %v795 = vpop.f32.mrb[0].mxu0
  %v796 = vadd.f32 %v521, %v795
  %v797 = vpop.f32.mrb[0].mxu0
  %798 = vmatprep.mubr.bf16.mxu0 0
  %799 = vmatmul.mubr.bf16.gmra.mrb[0].mxu0 %v594
  %v800 = vpop.f32.mrb[0].mxu0
  %v801 = vadd.f32 %v521, %v800
  %v802 = vpop.f32.mrb[0].mxu0
  %v803 = vpop.f32.mrb[0].mxu0
  %v804 = vadd.f32 %v521, %v803
  %v805 = vpop.f32.mrb[0].mxu0
  %806 = vmatprep.mubr.bf16.mxu0 0
  %807 = vmatmul.mubr.bf16.gmra.mrb[0].mxu0 %v597
  %v808 = vpop.f32.mrb[0].mxu0
  %v809 = vadd.f32 %v521, %v808
  %v810 = vpop.f32.mrb[0].mxu0
  %v811 = vpop.f32.mrb[0].mxu0
  %v812 = vadd.f32 %v521, %v811
  %v813 = vpop.f32.mrb[0].mxu0
  %814 = vmatprep.mubr.bf16.mxu0 0
  %815 = vmatmul.mubr.bf16.gmra.mrb[0].mxu0 %v600
  %v816 = vpop.f32.mrb[0].mxu0
  %v817 = vadd.f32 %v521, %v816
  %v818 = vpop.f32.mrb[0].mxu0
  %v819 = vpop.f32.mrb[0].mxu0
  %v820 = vadd.f32 %v521, %v819
  %v821 = vpop.f32.mrb[0].mxu0
  %822 = vmatprep.mubr.bf16.mxu0 0
  %823 = vmatmul.mubr.bf16.gmra.mrb[0].mxu0 %v603
  %v824 = vpop.f32.mrb[0].mxu0
  %v825 = vadd.f32 %v521, %v824
  %v826 = vpop.f32.mrb[0].mxu0
  %v827 = vpop.f32.mrb[0].mxu0
  %v828 = vadd.f32 %v521, %v827
  %v829 = vpop.f32.mrb[0].mxu0
  %830 = vmatprep.mubr.bf16.mxu0 0
  %831 = vmatmul.mubr.bf16.gmra.mrb[0].mxu0 %v606
  %v832 = vpop.f32.mrb[0].mxu0
  %v833 = vadd.f32 %v521, %v832
  %v834 = vpop.f32.mrb[0].mxu0
  %v835 = vpop.f32.mrb[0].mxu0
  %v836 = vadd.f32 %v521, %v835
  %v837 = vpop.f32.mrb[0].mxu0
  %838 = vmatprep.mubr.bf16.mxu0 0
  %839 = vmatmul.mubr.bf16.gmra.mrb[0].mxu0 %v609
  %v840 = vpop.f32.mrb[0].mxu0
  %v841 = vadd.f32 %v521, %v840
  %v842 = vpop.f32.mrb[0].mxu0
  %v843 = vpop.f32.mrb[0].mxu0
  %v844 = vadd.f32 %v521, %v843
  %v845 = vpop.f32.mrb[0].mxu0
  %846 = vmatprep.mubr.bf16.mxu0 0
  %847 = vmatmul.mubr.bf16.gmra.mrb[0].mxu0 %v612
  %v848 = vpop.f32.mrb[0].mxu0
  %v849 = vadd.f32 %v521, %v848
  %v850 = vpop.f32.mrb[0].mxu0
  %v851 = vpop.f32.mrb[0].mxu0
  %v852 = vadd.f32 %v521, %v851
  %v853 = vpop.f32.mrb[0].mxu0
  %854 = vdwg.mxu0
  %v855 = vld [vmem:[%s1] sm:$0xff]
  %v856 = vld [vmem:[%s1 + $0x8] sm:$0xff]
  %v857 = vld [vmem:[%s1 + $0x10] sm:$0xff]
  %v858 = vld [vmem:[%s1 + $0x18] sm:$0xff]
  %v859 = vld [vmem:[%s1 + $0x20] sm:$0xff]
  %v860 = vld [vmem:[%s1 + $0x28] sm:$0xff]
  %v861 = vld [vmem:[%s1 + $0x30] sm:$0xff]
  %v862 = vld [vmem:[%s1 + $0x38] sm:$0xff]
  %v863 = vld [vmem:[%s1 + $0x40] sm:$0xff]
  %v864 = vld [vmem:[%s1 + $0x48] sm:$0xff]
  %v865 = vld [vmem:[%s1 + $0x50] sm:$0xff]
  %v866 = vld [vmem:[%s1 + $0x58] sm:$0xff]
  %v867 = vld [vmem:[%s1 + $0x60] sm:$0xff]
  %v868 = vld [vmem:[%s1 + $0x68] sm:$0xff]
  %v869 = vld [vmem:[%s1 + $0x70] sm:$0xff]
  %v870 = vld [vmem:[%s1 + $0x78] sm:$0xff]
  %v871 = vld [vmem:[%s1 + $0x80] sm:$0xff]
  %v872 = vld [vmem:[%s1 + $0x88] sm:$0xff]
  %v873 = vld [vmem:[%s1 + $0x90] sm:$0xff]
  %v874 = vld [vmem:[%s1 + $0x98] sm:$0xff]
  %v875 = vld [vmem:[%s1 + $0xa0] sm:$0xff]
  %v876 = vld [vmem:[%s1 + $0xa8] sm:$0xff]
  %v877 = vld [vmem:[%s1 + $0xb0] sm:$0xff]
  %v878 = vld [vmem:[%s1 + $0xb8] sm:$0xff]
  %v879 = vld [vmem:[%s1 + $0xc0] sm:$0xff]
  %v880 = vld [vmem:[%s1 + $0xc8] sm:$0xff]
  %v881 = vld [vmem:[%s1 + $0xd0] sm:$0xff]
  %v882 = vld [vmem:[%s1 + $0xd8] sm:$0xff]
  %v883 = vld [vmem:[%s1 + $0xe0] sm:$0xff]
  %v884 = vld [vmem:[%s1 + $0xe8] sm:$0xff]
  %v885 = vld [vmem:[%s1 + $0xf0] sm:$0xff]
  %v886 = vld [vmem:[%s1 + $0xf8] sm:$0xff]
  %v887 = vld [vmem:[%s1 + $0x100] sm:$0xff]
  %v888 = vld [vmem:[%s1 + $0x108] sm:$0xff]
  %v889 = vld [vmem:[%s1 + $0x110] sm:$0xff]
  %v890 = vld [vmem:[%s1 + $0x118] sm:$0xff]
  %v891 = vld [vmem:[%s1 + $0x120] sm:$0xff]
  %v892 = vld [vmem:[%s1 + $0x128] sm:$0xff]
  %v893 = vld [vmem:[%s1 + $0x130] sm:$0xff]
  %v894 = vld [vmem:[%s1 + $0x138] sm:$0xff]
  %v895 = vld [vmem:[%s1 + $0x140] sm:$0xff]
  %v896 = vld [vmem:[%s1 + $0x148] sm:$0xff]
  %v897 = vld [vmem:[%s1 + $0x150] sm:$0xff]
  %v898 = vld [vmem:[%s1 + $0x158] sm:$0xff]
  %v899 = vld [vmem:[%s1 + $0x160] sm:$0xff]
  %v900 = vld [vmem:[%s1 + $0x168] sm:$0xff]
  %v901 = vld [vmem:[%s1 + $0x170] sm:$0xff]
  %v902 = vld [vmem:[%s1 + $0x178] sm:$0xff]
  %v903 = vld [vmem:[%s1 + $0x180] sm:$0xff]
  %v904 = vld [vmem:[%s1 + $0x188] sm:$0xff]
  %v905 = vld [vmem:[%s1 + $0x190] sm:$0xff]
  %v906 = vld [vmem:[%s1 + $0x198] sm:$0xff]
  %vm907 = vcmp.gt.f32.partialorder %v855, 0.0
  %vm908 = vcmp.gt.f32.partialorder %v856, 0.0
  %vm909 = vcmp.gt.f32.partialorder %v857, 0.0
  %vm910 = vcmp.gt.f32.partialorder %v858, 0.0
  %vm911 = vcmp.gt.f32.partialorder %v859, 0.0
  %vm912 = vcmp.gt.f32.partialorder %v860, 0.0
  %vm913 = vcmp.gt.f32.partialorder %v861, 0.0
  %vm914 = vcmp.gt.f32.partialorder %v862, 0.0
  %vm915 = vcmp.gt.f32.partialorder %v863, 0.0
  %vm916 = vcmp.gt.f32.partialorder %v864, 0.0
  %vm917 = vcmp.gt.f32.partialorder %v865, 0.0
  %vm918 = vcmp.gt.f32.partialorder %v866, 0.0
  %vm919 = vcmp.gt.f32.partialorder %v867, 0.0
  %vm920 = vcmp.gt.f32.partialorder %v868, 0.0
  %vm921 = vcmp.gt.f32.partialorder %v869, 0.0
  %vm922 = vcmp.gt.f32.partialorder %v870, 0.0
  %vm923 = vcmp.gt.f32.partialorder %v871, 0.0
  %vm924 = vcmp.gt.f32.partialorder %v872, 0.0
  %vm925 = vcmp.gt.f32.partialorder %v873, 0.0
  %vm926 = vcmp.gt.f32.partialorder %v874, 0.0
  %vm927 = vcmp.gt.f32.partialorder %v875, 0.0
  %vm928 = vcmp.gt.f32.partialorder %v876, 0.0
  %vm929 = vcmp.gt.f32.partialorder %v877, 0.0
  %vm930 = vcmp.gt.f32.partialorder %v878, 0.0
  %vm931 = vcmp.gt.f32.partialorder %v879, 0.0
  %vm932 = vcmp.gt.f32.partialorder %v880, 0.0
  %vm933 = vcmp.gt.f32.partialorder %v881, 0.0
  %vm934 = vcmp.gt.f32.partialorder %v882, 0.0
  %vm935 = vcmp.gt.f32.partialorder %v883, 0.0
  %vm936 = vcmp.gt.f32.partialorder %v884, 0.0
  %vm937 = vcmp.gt.f32.partialorder %v885, 0.0
  %vm938 = vcmp.gt.f32.partialorder %v886, 0.0
  %vm939 = vcmp.gt.f32.partialorder %v887, 0.0
  %vm940 = vcmp.gt.f32.partialorder %v888, 0.0
  %vm941 = vcmp.gt.f32.partialorder %v889, 0.0
  %vm942 = vcmp.gt.f32.partialorder %v890, 0.0
  %vm943 = vcmp.gt.f32.partialorder %v891, 0.0
  %vm944 = vcmp.gt.f32.partialorder %v892, 0.0
  %vm945 = vcmp.gt.f32.partialorder %v893, 0.0
  %vm946 = vcmp.gt.f32.partialorder %v894, 0.0
  %vm947 = vcmp.gt.f32.partialorder %v895, 0.0
  %vm948 = vcmp.gt.f32.partialorder %v896, 0.0
  %vm949 = vcmp.gt.f32.partialorder %v897, 0.0
  %vm950 = vcmp.gt.f32.partialorder %v898, 0.0
  %vm951 = vcmp.gt.f32.partialorder %v899, 0.0
  %vm952 = vcmp.gt.f32.partialorder %v900, 0.0
  %vm953 = vcmp.gt.f32.partialorder %v901, 0.0
  %vm954 = vcmp.gt.f32.partialorder %v902, 0.0
  %vm955 = vcmp.gt.f32.partialorder %v903, 0.0
  %vm956 = vcmp.gt.f32.partialorder %v904, 0.0
  %vm957 = vcmp.gt.f32.partialorder %v905, 0.0
  %vm958 = vcmp.gt.f32.partialorder %v906, 0.0
  %v959 = vsel %vm907, 1, 0
  %v960 = vsel %vm908, 1, 0
  %v961 = vsel %vm909, 1, 0
  %v962 = vsel %vm910, 1, 0
  %v963 = vsel %vm911, 1, 0
  %v964 = vsel %vm912, 1, 0
  %v965 = vsel %vm913, 1, 0
  %v966 = vsel %vm914, 1, 0
  %v967 = vsel %vm915, 1, 0
  %v968 = vsel %vm916, 1, 0
  %v969 = vsel %vm917, 1, 0
  %v970 = vsel %vm918, 1, 0
  %v971 = vsel %vm919, 1, 0
  %v972 = vsel %vm920, 1, 0
  %v973 = vsel %vm921, 1, 0
  %v974 = vsel %vm922, 1, 0
  %v975 = vsel %vm923, 1, 0
  %v976 = vsel %vm924, 1, 0
  %v977 = vsel %vm925, 1, 0
  %v978 = vsel %vm926, 1, 0
  %v979 = vsel %vm927, 1, 0
  %v980 = vsel %vm928, 1, 0
  %v981 = vsel %vm929, 1, 0
  %v982 = vsel %vm930, 1, 0
  %v983 = vsel %vm931, 1, 0
  %v984 = vsel %vm932, 1, 0
  %v985 = vsel %vm933, 1, 0
  %v986 = vsel %vm934, 1, 0
  %v987 = vsel %vm935, 1, 0
  %v988 = vsel %vm936, 1, 0
  %v989 = vsel %vm937, 1, 0
  %v990 = vsel %vm938, 1, 0
  %v991 = vsel %vm939, 1, 0
  %v992 = vsel %vm940, 1, 0
  %v993 = vsel %vm941, 1, 0
  %v994 = vsel %vm942, 1, 0
  %v995 = vsel %vm943, 1, 0
  %v996 = vsel %vm944, 1, 0
  %v997 = vsel %vm945, 1, 0
  %v998 = vsel %vm946, 1, 0
  %v999 = vsel %vm947, 1, 0
  %v1000 = vsel %vm948, 1, 0
  %v1001 = vsel %vm949, 1, 0
  %v1002 = vsel %vm950, 1, 0
  %v1003 = vsel %vm951, 1, 0
  %v1004 = vsel %vm952, 1, 0
  %v1005 = vsel %vm953, 1, 0
  %v1006 = vsel %vm954, 1, 0
  %v1007 = vsel %vm955, 1, 0
  %v1008 = vsel %vm956, 1, 0
  %v1009 = vsel %vm957, 1, 0
  %v1010 = vsel %vm958, 1, 0
  %1011 = vset.pattern.permute.xlu0 0
  %1012 = vperm.xlu0 %1011, %v959
  %v1013 = vpop.permute.xlu0 %1012
  %1014 = vset.pattern.permute.xlu0 0
  %1015 = vperm.xlu0 %1014, %v960
  %v1016 = vpop.permute.xlu0 %1015
  %1017 = vset.pattern.permute.xlu0 0
  %1018 = vperm.xlu0 %1017, %v961
  %v1019 = vpop.permute.xlu0 %1018
  %1020 = vset.pattern.permute.xlu0 0
  %1021 = vperm.xlu0 %1020, %v962
  %v1022 = vpop.permute.xlu0 %1021
  %1023 = vset.pattern.permute.xlu0 0
  %1024 = vperm.xlu0 %1023, %v963
  %v1025 = vpop.permute.xlu0 %1024
  %1026 = vset.pattern.permute.xlu0 0
  %1027 = vperm.xlu0 %1026, %v964
  %v1028 = vpop.permute.xlu0 %1027
  %1029 = vset.pattern.permute.xlu0 0
  %1030 = vperm.xlu0 %1029, %v965
  %v1031 = vpop.permute.xlu0 %1030
  %1032 = vset.pattern.permute.xlu0 0
  %1033 = vperm.xlu0 %1032, %v966
  %v1034 = vpop.permute.xlu0 %1033
  %1035 = vset.pattern.permute.xlu0 0
  %1036 = vperm.xlu0 %1035, %v967
  %v1037 = vpop.permute.xlu0 %1036
  %1038 = vset.pattern.permute.xlu0 0
  %1039 = vperm.xlu0 %1038, %v968
  %v1040 = vpop.permute.xlu0 %1039
  %1041 = vset.pattern.permute.xlu0 0
  %1042 = vperm.xlu0 %1041, %v969
  %v1043 = vpop.permute.xlu0 %1042
  %1044 = vset.pattern.permute.xlu0 0
  %1045 = vperm.xlu0 %1044, %v970
  %v1046 = vpop.permute.xlu0 %1045
  %1047 = vset.pattern.permute.xlu0 0
  %1048 = vperm.xlu0 %1047, %v971
  %v1049 = vpop.permute.xlu0 %1048
  %1050 = vset.pattern.permute.xlu0 0
  %1051 = vperm.xlu0 %1050, %v972
  %v1052 = vpop.permute.xlu0 %1051
  %1053 = vset.pattern.permute.xlu0 0
  %1054 = vperm.xlu0 %1053, %v973
  %v1055 = vpop.permute.xlu0 %1054
  %1056 = vset.pattern.permute.xlu0 0
  %1057 = vperm.xlu0 %1056, %v974
  %v1058 = vpop.permute.xlu0 %1057
  %1059 = vset.pattern.permute.xlu0 0
  %1060 = vperm.xlu0 %1059, %v975
  %v1061 = vpop.permute.xlu0 %1060
  %1062 = vset.pattern.permute.xlu0 0
  %1063 = vperm.xlu0 %1062, %v976
  %v1064 = vpop.permute.xlu0 %1063
  %1065 = vset.pattern.permute.xlu0 0
  %1066 = vperm.xlu0 %1065, %v977
  %v1067 = vpop.permute.xlu0 %1066
  %1068 = vset.pattern.permute.xlu0 0
  %1069 = vperm.xlu0 %1068, %v978
  %v1070 = vpop.permute.xlu0 %1069
  %1071 = vset.pattern.permute.xlu0 0
  %1072 = vperm.xlu0 %1071, %v979
  %v1073 = vpop.permute.xlu0 %1072
  %1074 = vset.pattern.permute.xlu0 0
  %1075 = vperm.xlu0 %1074, %v980
  %v1076 = vpop.permute.xlu0 %1075
  %1077 = vset.pattern.permute.xlu0 0
  %1078 = vperm.xlu0 %1077, %v981
  %v1079 = vpop.permute.xlu0 %1078
  %1080 = vset.pattern.permute.xlu0 0
  %1081 = vperm.xlu0 %1080, %v982
  %v1082 = vpop.permute.xlu0 %1081
  %1083 = vset.pattern.permute.xlu0 0
  %1084 = vperm.xlu0 %1083, %v983
  %v1085 = vpop.permute.xlu0 %1084
  %1086 = vset.pattern.permute.xlu0 0
  %1087 = vperm.xlu0 %1086, %v984
  %v1088 = vpop.permute.xlu0 %1087
  %1089 = vset.pattern.permute.xlu0 0
  %1090 = vperm.xlu0 %1089, %v985
  %v1091 = vpop.permute.xlu0 %1090
  %1092 = vset.pattern.permute.xlu0 0
  %1093 = vperm.xlu0 %1092, %v986
  %v1094 = vpop.permute.xlu0 %1093
  %1095 = vset.pattern.permute.xlu0 0
  %1096 = vperm.xlu0 %1095, %v987
  %v1097 = vpop.permute.xlu0 %1096
  %1098 = vset.pattern.permute.xlu0 0
  %1099 = vperm.xlu0 %1098, %v988
  %v1100 = vpop.permute.xlu0 %1099
  %1101 = vset.pattern.permute.xlu0 0
  %1102 = vperm.xlu0 %1101, %v989
  %v1103 = vpop.permute.xlu0 %1102
  %1104 = vset.pattern.permute.xlu0 0
  %1105 = vperm.xlu0 %1104, %v990
  %v1106 = vpop.permute.xlu0 %1105
  %1107 = vset.pattern.permute.xlu0 0
  %1108 = vperm.xlu0 %1107, %v991
  %v1109 = vpop.permute.xlu0 %1108
  %1110 = vset.pattern.permute.xlu0 0
  %1111 = vperm.xlu0 %1110, %v992
  %v1112 = vpop.permute.xlu0 %1111
  %1113 = vset.pattern.permute.xlu0 0
  %1114 = vperm.xlu0 %1113, %v993
  %v1115 = vpop.permute.xlu0 %1114
  %1116 = vset.pattern.permute.xlu0 0
  %1117 = vperm.xlu0 %1116, %v994
  %v1118 = vpop.permute.xlu0 %1117
  %1119 = vset.pattern.permute.xlu0 0
  %1120 = vperm.xlu0 %1119, %v995
  %v1121 = vpop.permute.xlu0 %1120
  %1122 = vset.pattern.permute.xlu0 0
  %1123 = vperm.xlu0 %1122, %v996
  %v1124 = vpop.permute.xlu0 %1123
  %1125 = vset.pattern.permute.xlu0 0
  %1126 = vperm.xlu0 %1125, %v997
  %v1127 = vpop.permute.xlu0 %1126
  %1128 = vset.pattern.permute.xlu0 0
  %1129 = vperm.xlu0 %1128, %v998
  %v1130 = vpop.permute.xlu0 %1129
  %1131 = vset.pattern.permute.xlu0 0
  %1132 = vperm.xlu0 %1131, %v999
  %v1133 = vpop.permute.xlu0 %1132
  %1134 = vset.pattern.permute.xlu0 0
  %1135 = vperm.xlu0 %1134, %v1000
  %v1136 = vpop.permute.xlu0 %1135
  %1137 = vset.pattern.permute.xlu0 0
  %1138 = vperm.xlu0 %1137, %v1001
  %v1139 = vpop.permute.xlu0 %1138
  %1140 = vset.pattern.permute.xlu0 0
  %1141 = vperm.xlu0 %1140, %v1002
  %v1142 = vpop.permute.xlu0 %1141
  %1143 = vset.pattern.permute.xlu0 0
  %1144 = vperm.xlu0 %1143, %v1003
  %v1145 = vpop.permute.xlu0 %1144
  %1146 = vset.pattern.permute.xlu0 0
  %1147 = vperm.xlu0 %1146, %v1004
  %v1148 = vpop.permute.xlu0 %1147
  %1149 = vset.pattern.permute.xlu0 0
  %1150 = vperm.xlu0 %1149, %v1005
  %v1151 = vpop.permute.xlu0 %1150
  %1152 = vset.pattern.permute.xlu0 0
  %1153 = vperm.xlu0 %1152, %v1006
  %v1154 = vpop.permute.xlu0 %1153
  %1155 = vset.pattern.permute.xlu0 0
  %1156 = vperm.xlu0 %1155, %v1007
  %v1157 = vpop.permute.xlu0 %1156
  %1158 = vset.pattern.permute.xlu0 0
  %1159 = vperm.xlu0 %1158, %v1008
  %v1160 = vpop.permute.xlu0 %1159
  %1161 = vset.pattern.permute.xlu0 0
  %1162 = vperm.xlu0 %1161, %v1009
  %v1163 = vpop.permute.xlu0 %1162
  %1164 = vset.pattern.permute.xlu0 0
  %1165 = vperm.xlu0 %1164, %v1010
  %v1166 = vpop.permute.xlu0 %1165
  %vm1167 = vcmp.eq.s32.totalorder %v1013, 1
  %vm1168 = vcmp.eq.s32.totalorder %v1016, 1
  %vm1169 = vcmp.eq.s32.totalorder %v1019, 1
  %vm1170 = vcmp.eq.s32.totalorder %v1022, 1
  %vm1171 = vcmp.eq.s32.totalorder %v1025, 1
  %vm1172 = vcmp.eq.s32.totalorder %v1028, 1
  %vm1173 = vcmp.eq.s32.totalorder %v1031, 1
  %vm1174 = vcmp.eq.s32.totalorder %v1034, 1
  %vm1175 = vcmp.eq.s32.totalorder %v1037, 1
  %vm1176 = vcmp.eq.s32.totalorder %v1040, 1
  %vm1177 = vcmp.eq.s32.totalorder %v1043, 1
  %vm1178 = vcmp.eq.s32.totalorder %v1046, 1
  %vm1179 = vcmp.eq.s32.totalorder %v1049, 1
  %vm1180 = vcmp.eq.s32.totalorder %v1052, 1
  %vm1181 = vcmp.eq.s32.totalorder %v1055, 1
  %vm1182 = vcmp.eq.s32.totalorder %v1058, 1
  %vm1183 = vcmp.eq.s32.totalorder %v1061, 1
  %vm1184 = vcmp.eq.s32.totalorder %v1064, 1
  %vm1185 = vcmp.eq.s32.totalorder %v1067, 1
  %vm1186 = vcmp.eq.s32.totalorder %v1070, 1
  %vm1187 = vcmp.eq.s32.totalorder %v1073, 1
  %vm1188 = vcmp.eq.s32.totalorder %v1076, 1
  %vm1189 = vcmp.eq.s32.totalorder %v1079, 1
  %vm1190 = vcmp.eq.s32.totalorder %v1082, 1
  %vm1191 = vcmp.eq.s32.totalorder %v1085, 1
  %vm1192 = vcmp.eq.s32.totalorder %v1088, 1
  %vm1193 = vcmp.eq.s32.totalorder %v1091, 1
  %vm1194 = vcmp.eq.s32.totalorder %v1094, 1
  %vm1195 = vcmp.eq.s32.totalorder %v1097, 1
  %vm1196 = vcmp.eq.s32.totalorder %v1100, 1
  %vm1197 = vcmp.eq.s32.totalorder %v1103, 1
  %vm1198 = vcmp.eq.s32.totalorder %v1106, 1
  %vm1199 = vcmp.eq.s32.totalorder %v1109, 1
  %vm1200 = vcmp.eq.s32.totalorder %v1112, 1
  %vm1201 = vcmp.eq.s32.totalorder %v1115, 1
  %vm1202 = vcmp.eq.s32.totalorder %v1118, 1
  %vm1203 = vcmp.eq.s32.totalorder %v1121, 1
  %vm1204 = vcmp.eq.s32.totalorder %v1124, 1
  %vm1205 = vcmp.eq.s32.totalorder %v1127, 1
  %vm1206 = vcmp.eq.s32.totalorder %v1130, 1
  %vm1207 = vcmp.eq.s32.totalorder %v1133, 1
  %vm1208 = vcmp.eq.s32.totalorder %v1136, 1
  %vm1209 = vcmp.eq.s32.totalorder %v1139, 1
  %vm1210 = vcmp.eq.s32.totalorder %v1142, 1
  %vm1211 = vcmp.eq.s32.totalorder %v1145, 1
  %vm1212 = vcmp.eq.s32.totalorder %v1148, 1
  %vm1213 = vcmp.eq.s32.totalorder %v1151, 1
  %vm1214 = vcmp.eq.s32.totalorder %v1154, 1
  %vm1215 = vcmp.eq.s32.totalorder %v1157, 1
  %vm1216 = vcmp.eq.s32.totalorder %v1160, 1
  %vm1217 = vcmp.eq.s32.totalorder %v1163, 1
  %vm1218 = vcmp.eq.s32.totalorder %v1166, 1
  %v1219 = vsel %vm1167, %v649, -1e+30
  %v1220 = vsel %vm1168, %v652, -1e+30
  %v1221 = vsel %vm1169, %v657, -1e+30
  %v1222 = vsel %vm1170, %v660, -1e+30
  %v1223 = vsel %vm1171, %v665, -1e+30
  %v1224 = vsel %vm1172, %v668, -1e+30
  %v1225 = vsel %vm1173, %v673, -1e+30
  %v1226 = vsel %vm1174, %v676, -1e+30
  %v1227 = vsel %vm1175, %v681, -1e+30
  %v1228 = vsel %vm1176, %v684, -1e+30
  %v1229 = vsel %vm1177, %v689, -1e+30
  %v1230 = vsel %vm1178, %v692, -1e+30
  %v1231 = vsel %vm1179, %v697, -1e+30
  %v1232 = vsel %vm1180, %v700, -1e+30
  %v1233 = vsel %vm1181, %v705, -1e+30
  %v1234 = vsel %vm1182, %v708, -1e+30
  %v1235 = vsel %vm1183, %v713, -1e+30
  %v1236 = vsel %vm1184, %v716, -1e+30
  %v1237 = vsel %vm1185, %v721, -1e+30
  %v1238 = vsel %vm1186, %v724, -1e+30
  %v1239 = vsel %vm1187, %v729, -1e+30
  %v1240 = vsel %vm1188, %v732, -1e+30
  %v1241 = vsel %vm1189, %v737, -1e+30
  %v1242 = vsel %vm1190, %v740, -1e+30
  %v1243 = vsel %vm1191, %v745, -1e+30
  %v1244 = vsel %vm1192, %v748, -1e+30
  %v1245 = vsel %vm1193, %v753, -1e+30
  %v1246 = vsel %vm1194, %v756, -1e+30
  %v1247 = vsel %vm1195, %v761, -1e+30
  %v1248 = vsel %vm1196, %v764, -1e+30
  %v1249 = vsel %vm1197, %v769, -1e+30
  %v1250 = vsel %vm1198, %v772, -1e+30
  %v1251 = vsel %vm1199, %v777, -1e+30
  %v1252 = vsel %vm1200, %v780, -1e+30
  %v1253 = vsel %vm1201, %v785, -1e+30
  %v1254 = vsel %vm1202, %v788, -1e+30
  %v1255 = vsel %vm1203, %v793, -1e+30
  %v1256 = vsel %vm1204, %v796, -1e+30
  %v1257 = vsel %vm1205, %v801, -1e+30
  %v1258 = vsel %vm1206, %v804, -1e+30
  %v1259 = vsel %vm1207, %v809, -1e+30
  %v1260 = vsel %vm1208, %v812, -1e+30
  %v1261 = vsel %vm1209, %v817, -1e+30
  %v1262 = vsel %vm1210, %v820, -1e+30
  %v1263 = vsel %vm1211, %v825, -1e+30
  %v1264 = vsel %vm1212, %v828, -1e+30
  %v1265 = vsel %vm1213, %v833, -1e+30
  %v1266 = vsel %vm1214, %v836, -1e+30
  %v1267 = vsel %vm1215, %v841, -1e+30
  %v1268 = vsel %vm1216, %v844, -1e+30
  %v1269 = vsel %vm1217, %v849, -1e+30
  %v1270 = vsel %vm1218, %v852, -1e+30
  %v1271 = vsel %vm535, %v1219, -inf
  %v1272 = vsel %vm535, %v1220, -inf
  %v1273 = vmax.f32 %v1271, %v1272
  %v1274 = vrot.slane %v1273, 4
  %v1275 = vmax.f32 %v1273, %v1274
  %v1276 = vrot.slane %v1275, 2
  %v1277 = vmax.f32 %v1275, %v1276
  %v1278 = vrot.slane %v1277, 1
  %v1279 = vmax.f32 %v1277, %v1278
  %v1280 = vsel %vm535, %v1221, -inf
  %v1281 = vsel %vm535, %v1222, -inf
  %v1282 = vmax.f32 %v1280, %v1281
  %v1283 = vrot.slane %v1282, 4
  %v1284 = vmax.f32 %v1282, %v1283
  %v1285 = vrot.slane %v1284, 2
  %v1286 = vmax.f32 %v1284, %v1285
  %v1287 = vrot.slane %v1286, 1
  %v1288 = vmax.f32 %v1286, %v1287
  %v1289 = vsel %vm535, %v1223, -inf
  %v1290 = vsel %vm535, %v1224, -inf
  %v1291 = vmax.f32 %v1289, %v1290
  %v1292 = vrot.slane %v1291, 4
  %v1293 = vmax.f32 %v1291, %v1292
  %v1294 = vrot.slane %v1293, 2
  %v1295 = vmax.f32 %v1293, %v1294
  %v1296 = vrot.slane %v1295, 1
  %v1297 = vmax.f32 %v1295, %v1296
  %v1298 = vsel %vm535, %v1225, -inf
  %v1299 = vsel %vm535, %v1226, -inf
  %v1300 = vmax.f32 %v1298, %v1299
  %v1301 = vrot.slane %v1300, 4
  %v1302 = vmax.f32 %v1300, %v1301
  %v1303 = vrot.slane %v1302, 2
  %v1304 = vmax.f32 %v1302, %v1303
  %v1305 = vrot.slane %v1304, 1
  %v1306 = vmax.f32 %v1304, %v1305
  %v1307 = vsel %vm535, %v1227, -inf
  %v1308 = vsel %vm535, %v1228, -inf
  %v1309 = vmax.f32 %v1307, %v1308
  %v1310 = vrot.slane %v1309, 4
  %v1311 = vmax.f32 %v1309, %v1310
  %v1312 = vrot.slane %v1311, 2
  %v1313 = vmax.f32 %v1311, %v1312
  %v1314 = vrot.slane %v1313, 1
  %v1315 = vmax.f32 %v1313, %v1314
  %v1316 = vsel %vm535, %v1229, -inf
  %v1317 = vsel %vm535, %v1230, -inf
  %v1318 = vmax.f32 %v1316, %v1317
  %v1319 = vrot.slane %v1318, 4
  %v1320 = vmax.f32 %v1318, %v1319
  %v1321 = vrot.slane %v1320, 2
  %v1322 = vmax.f32 %v1320, %v1321
  %v1323 = vrot.slane %v1322, 1
  %v1324 = vmax.f32 %v1322, %v1323
  %v1325 = vsel %vm535, %v1231, -inf
  %v1326 = vsel %vm535, %v1232, -inf
  %v1327 = vmax.f32 %v1325, %v1326
  %v1328 = vrot.slane %v1327, 4
  %v1329 = vmax.f32 %v1327, %v1328
  %v1330 = vrot.slane %v1329, 2
  %v1331 = vmax.f32 %v1329, %v1330
  %v1332 = vrot.slane %v1331, 1
  %v1333 = vmax.f32 %v1331, %v1332
  %v1334 = vsel %vm535, %v1233, -inf
  %v1335 = vsel %vm535, %v1234, -inf
  %v1336 = vmax.f32 %v1334, %v1335
  %v1337 = vrot.slane %v1336, 4
  %v1338 = vmax.f32 %v1336, %v1337
  %v1339 = vrot.slane %v1338, 2
  %v1340 = vmax.f32 %v1338, %v1339
  %v1341 = vrot.slane %v1340, 1
  %v1342 = vmax.f32 %v1340, %v1341
  %v1343 = vsel %vm535, %v1235, -inf
  %v1344 = vsel %vm535, %v1236, -inf
  %v1345 = vmax.f32 %v1343, %v1344
  %v1346 = vrot.slane %v1345, 4
  %v1347 = vmax.f32 %v1345, %v1346
  %v1348 = vrot.slane %v1347, 2
  %v1349 = vmax.f32 %v1347, %v1348
  %v1350 = vrot.slane %v1349, 1
  %v1351 = vmax.f32 %v1349, %v1350
  %v1352 = vsel %vm535, %v1237, -inf
  %v1353 = vsel %vm535, %v1238, -inf
  %v1354 = vmax.f32 %v1352, %v1353
  %v1355 = vrot.slane %v1354, 4
  %v1356 = vmax.f32 %v1354, %v1355
  %v1357 = vrot.slane %v1356, 2
  %v1358 = vmax.f32 %v1356, %v1357
  %v1359 = vrot.slane %v1358, 1
  %v1360 = vmax.f32 %v1358, %v1359
  %v1361 = vsel %vm535, %v1239, -inf
  %v1362 = vsel %vm535, %v1240, -inf
  %v1363 = vmax.f32 %v1361, %v1362
  %v1364 = vrot.slane %v1363, 4
  %v1365 = vmax.f32 %v1363, %v1364
  %v1366 = vrot.slane %v1365, 2
  %v1367 = vmax.f32 %v1365, %v1366
  %v1368 = vrot.slane %v1367, 1
  %v1369 = vmax.f32 %v1367, %v1368
  %v1370 = vsel %vm535, %v1241, -inf
  %v1371 = vsel %vm535, %v1242, -inf
  %v1372 = vmax.f32 %v1370, %v1371
  %v1373 = vrot.slane %v1372, 4
  %v1374 = vmax.f32 %v1372, %v1373
  %v1375 = vrot.slane %v1374, 2
  %v1376 = vmax.f32 %v1374, %v1375
  %v1377 = vrot.slane %v1376, 1
  %v1378 = vmax.f32 %v1376, %v1377
  %v1379 = vsel %vm535, %v1243, -inf
  %v1380 = vsel %vm535, %v1244, -inf
  %v1381 = vmax.f32 %v1379, %v1380
  %v1382 = vrot.slane %v1381, 4
  %v1383 = vmax.f32 %v1381, %v1382
  %v1384 = vrot.slane %v1383, 2
  %v1385 = vmax.f32 %v1383, %v1384
  %v1386 = vrot.slane %v1385, 1
  %v1387 = vmax.f32 %v1385, %v1386
  %v1388 = vsel %vm535, %v1245, -inf
  %v1389 = vsel %vm535, %v1246, -inf
  %v1390 = vmax.f32 %v1388, %v1389
  %v1391 = vrot.slane %v1390, 4
  %v1392 = vmax.f32 %v1390, %v1391
  %v1393 = vrot.slane %v1392, 2
  %v1394 = vmax.f32 %v1392, %v1393
  %v1395 = vrot.slane %v1394, 1
  %v1396 = vmax.f32 %v1394, %v1395
  %v1397 = vsel %vm535, %v1247, -inf
  %v1398 = vsel %vm535, %v1248, -inf
  %v1399 = vmax.f32 %v1397, %v1398
  %v1400 = vrot.slane %v1399, 4
  %v1401 = vmax.f32 %v1399, %v1400
  %v1402 = vrot.slane %v1401, 2
  %v1403 = vmax.f32 %v1401, %v1402
  %v1404 = vrot.slane %v1403, 1
  %v1405 = vmax.f32 %v1403, %v1404
  %v1406 = vsel %vm535, %v1249, -inf
  %v1407 = vsel %vm535, %v1250, -inf
  %v1408 = vmax.f32 %v1406, %v1407
  %v1409 = vrot.slane %v1408, 4
  %v1410 = vmax.f32 %v1408, %v1409
  %v1411 = vrot.slane %v1410, 2
  %v1412 = vmax.f32 %v1410, %v1411
  %v1413 = vrot.slane %v1412, 1
  %v1414 = vmax.f32 %v1412, %v1413
  %v1415 = vsel %vm535, %v1251, -inf
  %v1416 = vsel %vm535, %v1252, -inf
  %v1417 = vmax.f32 %v1415, %v1416
  %v1418 = vrot.slane %v1417, 4
  %v1419 = vmax.f32 %v1417, %v1418
  %v1420 = vrot.slane %v1419, 2
  %v1421 = vmax.f32 %v1419, %v1420
  %v1422 = vrot.slane %v1421, 1
  %v1423 = vmax.f32 %v1421, %v1422
  %v1424 = vsel %vm535, %v1253, -inf
  %v1425 = vsel %vm535, %v1254, -inf
  %v1426 = vmax.f32 %v1424, %v1425
  %v1427 = vrot.slane %v1426, 4
  %v1428 = vmax.f32 %v1426, %v1427
  %v1429 = vrot.slane %v1428, 2
  %v1430 = vmax.f32 %v1428, %v1429
  %v1431 = vrot.slane %v1430, 1
  %v1432 = vmax.f32 %v1430, %v1431
  %v1433 = vsel %vm535, %v1255, -inf
  %v1434 = vsel %vm535, %v1256, -inf
  %v1435 = vmax.f32 %v1433, %v1434
  %v1436 = vrot.slane %v1435, 4
  %v1437 = vmax.f32 %v1435, %v1436
  %v1438 = vrot.slane %v1437, 2
  %v1439 = vmax.f32 %v1437, %v1438
  %v1440 = vrot.slane %v1439, 1
  %v1441 = vmax.f32 %v1439, %v1440
  %v1442 = vsel %vm535, %v1257, -inf
  %v1443 = vsel %vm535, %v1258, -inf
  %v1444 = vmax.f32 %v1442, %v1443
  %v1445 = vrot.slane %v1444, 4
  %v1446 = vmax.f32 %v1444, %v1445
  %v1447 = vrot.slane %v1446, 2
  %v1448 = vmax.f32 %v1446, %v1447
  %v1449 = vrot.slane %v1448, 1
  %v1450 = vmax.f32 %v1448, %v1449
  %v1451 = vsel %vm535, %v1259, -inf
  %v1452 = vsel %vm535, %v1260, -inf
  %v1453 = vmax.f32 %v1451, %v1452
  %v1454 = vrot.slane %v1453, 4
  %v1455 = vmax.f32 %v1453, %v1454
  %v1456 = vrot.slane %v1455, 2
  %v1457 = vmax.f32 %v1455, %v1456
  %v1458 = vrot.slane %v1457, 1
  %v1459 = vmax.f32 %v1457, %v1458
  %v1460 = vsel %vm535, %v1261, -inf
  %v1461 = vsel %vm535, %v1262, -inf
  %v1462 = vmax.f32 %v1460, %v1461
  %v1463 = vrot.slane %v1462, 4
  %v1464 = vmax.f32 %v1462, %v1463
  %v1465 = vrot.slane %v1464, 2
  %v1466 = vmax.f32 %v1464, %v1465
  %v1467 = vrot.slane %v1466, 1
  %v1468 = vmax.f32 %v1466, %v1467
  %v1469 = vsel %vm535, %v1263, -inf
  %v1470 = vsel %vm535, %v1264, -inf
  %v1471 = vmax.f32 %v1469, %v1470
  %v1472 = vrot.slane %v1471, 4
  %v1473 = vmax.f32 %v1471, %v1472
  %v1474 = vrot.slane %v1473, 2
  %v1475 = vmax.f32 %v1473, %v1474
  %v1476 = vrot.slane %v1475, 1
  %v1477 = vmax.f32 %v1475, %v1476
  %v1478 = vsel %vm535, %v1265, -inf
  %v1479 = vsel %vm535, %v1266, -inf
  %v1480 = vmax.f32 %v1478, %v1479
  %v1481 = vrot.slane %v1480, 4
  %v1482 = vmax.f32 %v1480, %v1481
  %v1483 = vrot.slane %v1482, 2
  %v1484 = vmax.f32 %v1482, %v1483
  %v1485 = vrot.slane %v1484, 1
  %v1486 = vmax.f32 %v1484, %v1485
  %v1487 = vsel %vm535, %v1267, -inf
  %v1488 = vsel %vm535, %v1268, -inf
  %v1489 = vmax.f32 %v1487, %v1488
  %v1490 = vrot.slane %v1489, 4
  %v1491 = vmax.f32 %v1489, %v1490
  %v1492 = vrot.slane %v1491, 2
  %v1493 = vmax.f32 %v1491, %v1492
  %v1494 = vrot.slane %v1493, 1
  %v1495 = vmax.f32 %v1493, %v1494
  %v1496 = vsel %vm535, %v1269, -inf
  %v1497 = vsel %vm535, %v1270, -inf
  %v1498 = vmax.f32 %v1496, %v1497
  %v1499 = vrot.slane %v1498, 4
  %v1500 = vmax.f32 %v1498, %v1499
  %v1501 = vrot.slane %v1500, 2
  %v1502 = vmax.f32 %v1500, %v1501
  %v1503 = vrot.slane %v1502, 1
  %v1504 = vmax.f32 %v1502, %v1503
  %vm1505 = vcmask 7168
  %v1506 = vsel %vm1505, %v855, -inf
  %v1507 = vsel %vm1505, %v856, -inf
  %v1508 = vmax.f32 %v1506, %v1507
  %v1509 = vrot.slane %v1508, 4
  %v1510 = vmax.f32 %v1508, %v1509
  %v1511 = vrot.slane %v1510, 2
  %v1512 = vmax.f32 %v1510, %v1511
  %v1513 = vrot.slane %v1512, 1
  %v1514 = vmax.f32 %v1512, %v1513
  %v1515 = vsel %vm1505, %v857, -inf
  %v1516 = vsel %vm1505, %v858, -inf
  %v1517 = vmax.f32 %v1515, %v1516
  %v1518 = vrot.slane %v1517, 4
  %v1519 = vmax.f32 %v1517, %v1518
  %v1520 = vrot.slane %v1519, 2
  %v1521 = vmax.f32 %v1519, %v1520
  %v1522 = vrot.slane %v1521, 1
  %v1523 = vmax.f32 %v1521, %v1522
  %v1524 = vsel %vm1505, %v859, -inf
  %v1525 = vsel %vm1505, %v860, -inf
  %v1526 = vmax.f32 %v1524, %v1525
  %v1527 = vrot.slane %v1526, 4
  %v1528 = vmax.f32 %v1526, %v1527
  %v1529 = vrot.slane %v1528, 2
  %v1530 = vmax.f32 %v1528, %v1529
  %v1531 = vrot.slane %v1530, 1
  %v1532 = vmax.f32 %v1530, %v1531
  %v1533 = vsel %vm1505, %v861, -inf
  %v1534 = vsel %vm1505, %v862, -inf
  %v1535 = vmax.f32 %v1533, %v1534
  %v1536 = vrot.slane %v1535, 4
  %v1537 = vmax.f32 %v1535, %v1536
  %v1538 = vrot.slane %v1537, 2
  %v1539 = vmax.f32 %v1537, %v1538
  %v1540 = vrot.slane %v1539, 1
  %v1541 = vmax.f32 %v1539, %v1540
  %v1542 = vsel %vm1505, %v863, -inf
  %v1543 = vsel %vm1505, %v864, -inf
  %v1544 = vmax.f32 %v1542, %v1543
  %v1545 = vrot.slane %v1544, 4
  %v1546 = vmax.f32 %v1544, %v1545
  %v1547 = vrot.slane %v1546, 2
  %v1548 = vmax.f32 %v1546, %v1547
  %v1549 = vrot.slane %v1548, 1
  %v1550 = vmax.f32 %v1548, %v1549
  %v1551 = vsel %vm1505, %v865, -inf
  %v1552 = vsel %vm1505, %v866, -inf
  %v1553 = vmax.f32 %v1551, %v1552
  %v1554 = vrot.slane %v1553, 4
  %v1555 = vmax.f32 %v1553, %v1554
  %v1556 = vrot.slane %v1555, 2
  %v1557 = vmax.f32 %v1555, %v1556
  %v1558 = vrot.slane %v1557, 1
  %v1559 = vmax.f32 %v1557, %v1558
  %v1560 = vsel %vm1505, %v867, -inf
  %v1561 = vsel %vm1505, %v868, -inf
  %v1562 = vmax.f32 %v1560, %v1561
  %v1563 = vrot.slane %v1562, 4
  %v1564 = vmax.f32 %v1562, %v1563
  %v1565 = vrot.slane %v1564, 2
  %v1566 = vmax.f32 %v1564, %v1565
  %v1567 = vrot.slane %v1566, 1
  %v1568 = vmax.f32 %v1566, %v1567
  %v1569 = vsel %vm1505, %v869, -inf
  %v1570 = vsel %vm1505, %v870, -inf
  %v1571 = vmax.f32 %v1569, %v1570
  %v1572 = vrot.slane %v1571, 4
  %v1573 = vmax.f32 %v1571, %v1572
  %v1574 = vrot.slane %v1573, 2
  %v1575 = vmax.f32 %v1573, %v1574
  %v1576 = vrot.slane %v1575, 1
  %v1577 = vmax.f32 %v1575, %v1576
  %v1578 = vsel %vm1505, %v871, -inf
  %v1579 = vsel %vm1505, %v872, -inf
  %v1580 = vmax.f32 %v1578, %v1579
  %v1581 = vrot.slane %v1580, 4
  %v1582 = vmax.f32 %v1580, %v1581
  %v1583 = vrot.slane %v1582, 2
  %v1584 = vmax.f32 %v1582, %v1583
  %v1585 = vrot.slane %v1584, 1
  %v1586 = vmax.f32 %v1584, %v1585
  %v1587 = vsel %vm1505, %v873, -inf
  %v1588 = vsel %vm1505, %v874, -inf
  %v1589 = vmax.f32 %v1587, %v1588
  %v1590 = vrot.slane %v1589, 4
  %v1591 = vmax.f32 %v1589, %v1590
  %v1592 = vrot.slane %v1591, 2
  %v1593 = vmax.f32 %v1591, %v1592
  %v1594 = vrot.slane %v1593, 1
  %v1595 = vmax.f32 %v1593, %v1594
  %v1596 = vsel %vm1505, %v875, -inf
  %v1597 = vsel %vm1505, %v876, -inf
  %v1598 = vmax.f32 %v1596, %v1597
  %v1599 = vrot.slane %v1598, 4
  %v1600 = vmax.f32 %v1598, %v1599
  %v1601 = vrot.slane %v1600, 2
  %v1602 = vmax.f32 %v1600, %v1601
  %v1603 = vrot.slane %v1602, 1
  %v1604 = vmax.f32 %v1602, %v1603
  %v1605 = vsel %vm1505, %v877, -inf
  %v1606 = vsel %vm1505, %v878, -inf
  %v1607 = vmax.f32 %v1605, %v1606
  %v1608 = vrot.slane %v1607, 4
  %v1609 = vmax.f32 %v1607, %v1608
  %v1610 = vrot.slane %v1609, 2
  %v1611 = vmax.f32 %v1609, %v1610
  %v1612 = vrot.slane %v1611, 1
  %v1613 = vmax.f32 %v1611, %v1612
  %v1614 = vsel %vm1505, %v879, -inf
  %v1615 = vsel %vm1505, %v880, -inf
  %v1616 = vmax.f32 %v1614, %v1615
  %v1617 = vrot.slane %v1616, 4
  %v1618 = vmax.f32 %v1616, %v1617
  %v1619 = vrot.slane %v1618, 2
  %v1620 = vmax.f32 %v1618, %v1619
  %v1621 = vrot.slane %v1620, 1
  %v1622 = vmax.f32 %v1620, %v1621
  %v1623 = vsel %vm1505, %v881, -inf
  %v1624 = vsel %vm1505, %v882, -inf
  %v1625 = vmax.f32 %v1623, %v1624
  %v1626 = vrot.slane %v1625, 4
  %v1627 = vmax.f32 %v1625, %v1626
  %v1628 = vrot.slane %v1627, 2
  %v1629 = vmax.f32 %v1627, %v1628
  %v1630 = vrot.slane %v1629, 1
  %v1631 = vmax.f32 %v1629, %v1630
  %v1632 = vsel %vm1505, %v883, -inf
  %v1633 = vsel %vm1505, %v884, -inf
  %v1634 = vmax.f32 %v1632, %v1633
  %v1635 = vrot.slane %v1634, 4
  %v1636 = vmax.f32 %v1634, %v1635
  %v1637 = vrot.slane %v1636, 2
  %v1638 = vmax.f32 %v1636, %v1637
  %v1639 = vrot.slane %v1638, 1
  %v1640 = vmax.f32 %v1638, %v1639
  %v1641 = vsel %vm1505, %v885, -inf
  %v1642 = vsel %vm1505, %v886, -inf
  %v1643 = vmax.f32 %v1641, %v1642
  %v1644 = vrot.slane %v1643, 4
  %v1645 = vmax.f32 %v1643, %v1644
  %v1646 = vrot.slane %v1645, 2
  %v1647 = vmax.f32 %v1645, %v1646
  %v1648 = vrot.slane %v1647, 1
  %v1649 = vmax.f32 %v1647, %v1648
  %v1650 = vsel %vm1505, %v887, -inf
  %v1651 = vsel %vm1505, %v888, -inf
  %v1652 = vmax.f32 %v1650, %v1651
  %v1653 = vrot.slane %v1652, 4
  %v1654 = vmax.f32 %v1652, %v1653
  %v1655 = vrot.slane %v1654, 2
  %v1656 = vmax.f32 %v1654, %v1655
  %v1657 = vrot.slane %v1656, 1
  %v1658 = vmax.f32 %v1656, %v1657
  %v1659 = vsel %vm1505, %v889, -inf
  %v1660 = vsel %vm1505, %v890, -inf
  %v1661 = vmax.f32 %v1659, %v1660
  %v1662 = vrot.slane %v1661, 4
  %v1663 = vmax.f32 %v1661, %v1662
  %v1664 = vrot.slane %v1663, 2
  %v1665 = vmax.f32 %v1663, %v1664
  %v1666 = vrot.slane %v1665, 1
  %v1667 = vmax.f32 %v1665, %v1666
  %v1668 = vsel %vm1505, %v891, -inf
  %v1669 = vsel %vm1505, %v892, -inf
  %v1670 = vmax.f32 %v1668, %v1669
  %v1671 = vrot.slane %v1670, 4
  %v1672 = vmax.f32 %v1670, %v1671
  %v1673 = vrot.slane %v1672, 2
  %v1674 = vmax.f32 %v1672, %v1673
  %v1675 = vrot.slane %v1674, 1
  %v1676 = vmax.f32 %v1674, %v1675
  %v1677 = vsel %vm1505, %v893, -inf
  %v1678 = vsel %vm1505, %v894, -inf
  %v1679 = vmax.f32 %v1677, %v1678
  %v1680 = vrot.slane %v1679, 4
  %v1681 = vmax.f32 %v1679, %v1680
  %v1682 = vrot.slane %v1681, 2
  %v1683 = vmax.f32 %v1681, %v1682
  %v1684 = vrot.slane %v1683, 1
  %v1685 = vmax.f32 %v1683, %v1684
  %v1686 = vsel %vm1505, %v895, -inf
  %v1687 = vsel %vm1505, %v896, -inf
  %v1688 = vmax.f32 %v1686, %v1687
  %v1689 = vrot.slane %v1688, 4
  %v1690 = vmax.f32 %v1688, %v1689
  %v1691 = vrot.slane %v1690, 2
  %v1692 = vmax.f32 %v1690, %v1691
  %v1693 = vrot.slane %v1692, 1
  %v1694 = vmax.f32 %v1692, %v1693
  %v1695 = vsel %vm1505, %v897, -inf
  %v1696 = vsel %vm1505, %v898, -inf
  %v1697 = vmax.f32 %v1695, %v1696
  %v1698 = vrot.slane %v1697, 4
  %v1699 = vmax.f32 %v1697, %v1698
  %v1700 = vrot.slane %v1699, 2
  %v1701 = vmax.f32 %v1699, %v1700
  %v1702 = vrot.slane %v1701, 1
  %v1703 = vmax.f32 %v1701, %v1702
  %v1704 = vsel %vm1505, %v899, -inf
  %v1705 = vsel %vm1505, %v900, -inf
  %v1706 = vmax.f32 %v1704, %v1705
  %v1707 = vrot.slane %v1706, 4
  %v1708 = vmax.f32 %v1706, %v1707
  %v1709 = vrot.slane %v1708, 2
  %v1710 = vmax.f32 %v1708, %v1709
  %v1711 = vrot.slane %v1710, 1
  %v1712 = vmax.f32 %v1710, %v1711
  %v1713 = vsel %vm1505, %v901, -inf
  %v1714 = vsel %vm1505, %v902, -inf
  %v1715 = vmax.f32 %v1713, %v1714
  %v1716 = vrot.slane %v1715, 4
  %v1717 = vmax.f32 %v1715, %v1716
  %v1718 = vrot.slane %v1717, 2
  %v1719 = vmax.f32 %v1717, %v1718
  %v1720 = vrot.slane %v1719, 1
  %v1721 = vmax.f32 %v1719, %v1720
  %v1722 = vsel %vm1505, %v903, -inf
  %v1723 = vsel %vm1505, %v904, -inf
  %v1724 = vmax.f32 %v1722, %v1723
  %v1725 = vrot.slane %v1724, 4
  %v1726 = vmax.f32 %v1724, %v1725
  %v1727 = vrot.slane %v1726, 2
  %v1728 = vmax.f32 %v1726, %v1727
  %v1729 = vrot.slane %v1728, 1
  %v1730 = vmax.f32 %v1728, %v1729
  %v1731 = vsel %vm1505, %v905, -inf
  %v1732 = vsel %vm1505, %v906, -inf
  %v1733 = vmax.f32 %v1731, %v1732
  %v1734 = vrot.slane %v1733, 4
  %v1735 = vmax.f32 %v1733, %v1734
  %v1736 = vrot.slane %v1735, 2
  %v1737 = vmax.f32 %v1735, %v1736
  %v1738 = vrot.slane %v1737, 1
  %v1739 = vmax.f32 %v1737, %v1738
  %vm1740 = vcmp.gt.f32.partialorder %v1514, 0.0
  %vm1741 = vcmp.gt.f32.partialorder %v1523, 0.0
  %vm1742 = vcmp.gt.f32.partialorder %v1532, 0.0
  %vm1743 = vcmp.gt.f32.partialorder %v1541, 0.0
  %vm1744 = vcmp.gt.f32.partialorder %v1550, 0.0
  %vm1745 = vcmp.gt.f32.partialorder %v1559, 0.0
  %vm1746 = vcmp.gt.f32.partialorder %v1568, 0.0
  %vm1747 = vcmp.gt.f32.partialorder %v1577, 0.0
  %vm1748 = vcmp.gt.f32.partialorder %v1586, 0.0
  %vm1749 = vcmp.gt.f32.partialorder %v1595, 0.0
  %vm1750 = vcmp.gt.f32.partialorder %v1604, 0.0
  %vm1751 = vcmp.gt.f32.partialorder %v1613, 0.0
  %vm1752 = vcmp.gt.f32.partialorder %v1622, 0.0
  %vm1753 = vcmp.gt.f32.partialorder %v1631, 0.0
  %vm1754 = vcmp.gt.f32.partialorder %v1640, 0.0
  %vm1755 = vcmp.gt.f32.partialorder %v1649, 0.0
  %vm1756 = vcmp.gt.f32.partialorder %v1658, 0.0
  %vm1757 = vcmp.gt.f32.partialorder %v1667, 0.0
  %vm1758 = vcmp.gt.f32.partialorder %v1676, 0.0
  %vm1759 = vcmp.gt.f32.partialorder %v1685, 0.0
  %vm1760 = vcmp.gt.f32.partialorder %v1694, 0.0
  %vm1761 = vcmp.gt.f32.partialorder %v1703, 0.0
  %vm1762 = vcmp.gt.f32.partialorder %v1712, 0.0
  %vm1763 = vcmp.gt.f32.partialorder %v1721, 0.0
  %vm1764 = vcmp.gt.f32.partialorder %v1730, 0.0
  %vm1765 = vcmp.gt.f32.partialorder %v1739, 0.0
  %v1766 = vsel %vm1740, 1, 0
  %v1767 = vsel %vm1741, 1, 0
  %v1768 = vsel %vm1742, 1, 0
  %v1769 = vsel %vm1743, 1, 0
  %v1770 = vsel %vm1744, 1, 0
  %v1771 = vsel %vm1745, 1, 0
  %v1772 = vsel %vm1746, 1, 0
  %v1773 = vsel %vm1747, 1, 0
  %v1774 = vsel %vm1748, 1, 0
  %v1775 = vsel %vm1749, 1, 0
  %v1776 = vsel %vm1750, 1, 0
  %v1777 = vsel %vm1751, 1, 0
  %v1778 = vsel %vm1752, 1, 0
  %v1779 = vsel %vm1753, 1, 0
  %v1780 = vsel %vm1754, 1, 0
  %v1781 = vsel %vm1755, 1, 0
  %v1782 = vsel %vm1756, 1, 0
  %v1783 = vsel %vm1757, 1, 0
  %v1784 = vsel %vm1758, 1, 0
  %v1785 = vsel %vm1759, 1, 0
  %v1786 = vsel %vm1760, 1, 0
  %v1787 = vsel %vm1761, 1, 0
  %v1788 = vsel %vm1762, 1, 0
  %v1789 = vsel %vm1763, 1, 0
  %v1790 = vsel %vm1764, 1, 0
  %v1791 = vsel %vm1765, 1, 0
  %1792 = vset.pattern.permute.xlu0 0
  %1793 = vperm.xlu0 %1792, %v1766
  %v1794 = vpop.permute.xlu0 %1793
  %1795 = vset.pattern.permute.xlu0 0
  %1796 = vperm.xlu0 %1795, %v1767
  %v1797 = vpop.permute.xlu0 %1796
  %1798 = vset.pattern.permute.xlu0 0
  %1799 = vperm.xlu0 %1798, %v1768
  %v1800 = vpop.permute.xlu0 %1799
  %1801 = vset.pattern.permute.xlu0 0
  %1802 = vperm.xlu0 %1801, %v1769
  %v1803 = vpop.permute.xlu0 %1802
  %1804 = vset.pattern.permute.xlu0 0
  %1805 = vperm.xlu0 %1804, %v1770
  %v1806 = vpop.permute.xlu0 %1805
  %1807 = vset.pattern.permute.xlu0 0
  %1808 = vperm.xlu0 %1807, %v1771
  %v1809 = vpop.permute.xlu0 %1808
  %1810 = vset.pattern.permute.xlu0 0
  %1811 = vperm.xlu0 %1810, %v1772
  %v1812 = vpop.permute.xlu0 %1811
  %1813 = vset.pattern.permute.xlu0 0
  %1814 = vperm.xlu0 %1813, %v1773
  %v1815 = vpop.permute.xlu0 %1814
  %1816 = vset.pattern.permute.xlu0 0
  %1817 = vperm.xlu0 %1816, %v1774
  %v1818 = vpop.permute.xlu0 %1817
  %1819 = vset.pattern.permute.xlu0 0
  %1820 = vperm.xlu0 %1819, %v1775
  %v1821 = vpop.permute.xlu0 %1820
  %1822 = vset.pattern.permute.xlu0 0
  %1823 = vperm.xlu0 %1822, %v1776
  %v1824 = vpop.permute.xlu0 %1823
  %1825 = vset.pattern.permute.xlu0 0
  %1826 = vperm.xlu0 %1825, %v1777
  %v1827 = vpop.permute.xlu0 %1826
  %1828 = vset.pattern.permute.xlu0 0
  %1829 = vperm.xlu0 %1828, %v1778
  %v1830 = vpop.permute.xlu0 %1829
  %1831 = vset.pattern.permute.xlu0 0
  %1832 = vperm.xlu0 %1831, %v1779
  %v1833 = vpop.permute.xlu0 %1832
  %1834 = vset.pattern.permute.xlu0 0
  %1835 = vperm.xlu0 %1834, %v1780
  %v1836 = vpop.permute.xlu0 %1835
  %1837 = vset.pattern.permute.xlu0 0
  %1838 = vperm.xlu0 %1837, %v1781
  %v1839 = vpop.permute.xlu0 %1838
  %1840 = vset.pattern.permute.xlu0 0
  %1841 = vperm.xlu0 %1840, %v1782
  %v1842 = vpop.permute.xlu0 %1841
  %1843 = vset.pattern.permute.xlu0 0
  %1844 = vperm.xlu0 %1843, %v1783
  %v1845 = vpop.permute.xlu0 %1844
  %1846 = vset.pattern.permute.xlu0 0
  %1847 = vperm.xlu0 %1846, %v1784
  %v1848 = vpop.permute.xlu0 %1847
  %1849 = vset.pattern.permute.xlu0 0
  %1850 = vperm.xlu0 %1849, %v1785
  %v1851 = vpop.permute.xlu0 %1850
  %1852 = vset.pattern.permute.xlu0 0
  %1853 = vperm.xlu0 %1852, %v1786
  %v1854 = vpop.permute.xlu0 %1853
  %1855 = vset.pattern.permute.xlu0 0
  %1856 = vperm.xlu0 %1855, %v1787
  %v1857 = vpop.permute.xlu0 %1856
  %1858 = vset.pattern.permute.xlu0 0
  %1859 = vperm.xlu0 %1858, %v1788
  %v1860 = vpop.permute.xlu0 %1859
  %1861 = vset.pattern.permute.xlu0 0
  %1862 = vperm.xlu0 %1861, %v1789
  %v1863 = vpop.permute.xlu0 %1862
  %1864 = vset.pattern.permute.xlu0 0
  %1865 = vperm.xlu0 %1864, %v1790
  %v1866 = vpop.permute.xlu0 %1865
  %1867 = vset.pattern.permute.xlu0 0
  %1868 = vperm.xlu0 %1867, %v1791
  %v1869 = vpop.permute.xlu0 %1868
  %vm1870 = vcmp.eq.s32.totalorder %v1794, 1
  %vm1871 = vcmp.eq.s32.totalorder %v1797, 1
  %vm1872 = vcmp.eq.s32.totalorder %v1800, 1
  %vm1873 = vcmp.eq.s32.totalorder %v1803, 1
  %vm1874 = vcmp.eq.s32.totalorder %v1806, 1
  %vm1875 = vcmp.eq.s32.totalorder %v1809, 1
  %vm1876 = vcmp.eq.s32.totalorder %v1812, 1
  %vm1877 = vcmp.eq.s32.totalorder %v1815, 1
  %vm1878 = vcmp.eq.s32.totalorder %v1818, 1
  %vm1879 = vcmp.eq.s32.totalorder %v1821, 1
  %vm1880 = vcmp.eq.s32.totalorder %v1824, 1
  %vm1881 = vcmp.eq.s32.totalorder %v1827, 1
  %vm1882 = vcmp.eq.s32.totalorder %v1830, 1
  %vm1883 = vcmp.eq.s32.totalorder %v1833, 1
  %vm1884 = vcmp.eq.s32.totalorder %v1836, 1
  %vm1885 = vcmp.eq.s32.totalorder %v1839, 1
  %vm1886 = vcmp.eq.s32.totalorder %v1842, 1
  %vm1887 = vcmp.eq.s32.totalorder %v1845, 1
  %vm1888 = vcmp.eq.s32.totalorder %v1848, 1
  %vm1889 = vcmp.eq.s32.totalorder %v1851, 1
  %vm1890 = vcmp.eq.s32.totalorder %v1854, 1
  %vm1891 = vcmp.eq.s32.totalorder %v1857, 1
  %vm1892 = vcmp.eq.s32.totalorder %v1860, 1
  %vm1893 = vcmp.eq.s32.totalorder %v1863, 1
  %vm1894 = vcmp.eq.s32.totalorder %v1866, 1
  %vm1895 = vcmp.eq.s32.totalorder %v1869, 1
  %v1896 = vsel %vm1870, %v1279, 0.0
  %v1897 = vsel %vm1871, %v1288, 0.0
  %v1898 = vsel %vm1872, %v1297, 0.0
  %v1899 = vsel %vm1873, %v1306, 0.0
  %v1900 = vsel %vm1874, %v1315, 0.0
  %v1901 = vsel %vm1875, %v1324, 0.0
  %v1902 = vsel %vm1876, %v1333, 0.0
  %v1903 = vsel %vm1877, %v1342, 0.0
  %v1904 = vsel %vm1878, %v1351, 0.0
  %v1905 = vsel %vm1879, %v1360, 0.0
  %v1906 = vsel %vm1880, %v1369, 0.0
  %v1907 = vsel %vm1881, %v1378, 0.0
  %v1908 = vsel %vm1882, %v1387, 0.0
  %v1909 = vsel %vm1883, %v1396, 0.0
  %v1910 = vsel %vm1884, %v1405, 0.0
  %v1911 = vsel %vm1885, %v1414, 0.0
  %v1912 = vsel %vm1886, %v1423, 0.0
  %v1913 = vsel %vm1887, %v1432, 0.0
  %v1914 = vsel %vm1888, %v1441, 0.0
  %v1915 = vsel %vm1889, %v1450, 0.0
  %v1916 = vsel %vm1890, %v1459, 0.0
  %v1917 = vsel %vm1891, %v1468, 0.0
  %v1918 = vsel %vm1892, %v1477, 0.0
  %v1919 = vsel %vm1893, %v1486, 0.0
  %v1920 = vsel %vm1894, %v1495, 0.0
  %v1921 = vsel %vm1895, %v1504, 0.0
  %vm1948 = vcmask 1041409
  %v1949 = vsel %vm1948, %v1897, %v1896
  %vm1950 = vcmask 1042434
  %v1951 = vsel %vm1950, %v1898, %v1949
  %vm1952 = vcmask 1043459
  %v1953 = vsel %vm1952, %v1899, %v1951
  %vm1954 = vcmask 1044484
  %v1955 = vsel %vm1954, %v1900, %v1953
  %vm1956 = vcmask 1045509
  %v1957 = vsel %vm1956, %v1901, %v1955
  %vm1958 = vcmask 1046534
  %v1959 = vsel %vm1958, %v1902, %v1957
  %vm1960 = vcmask 1047559
  %v1961 = vsel %vm1960, %v1903, %v1959
  %v1962 = vsel %vm1948, %v1905, %v1904
  %v1963 = vsel %vm1950, %v1906, %v1962
  %v1964 = vsel %vm1952, %v1907, %v1963
  %v1965 = vsel %vm1954, %v1908, %v1964
  %v1966 = vsel %vm1956, %v1909, %v1965
  %v1967 = vsel %vm1958, %v1910, %v1966
  %v1968 = vsel %vm1960, %v1911, %v1967
  %v1969 = vsel %vm1948, %v1913, %v1912
  %v1970 = vsel %vm1950, %v1914, %v1969
  %v1971 = vsel %vm1952, %v1915, %v1970
  %v1972 = vsel %vm1954, %v1916, %v1971
  %v1973 = vsel %vm1956, %v1917, %v1972
  %v1974 = vsel %vm1958, %v1918, %v1973
  %v1975 = vsel %vm1960, %v1919, %v1974
  %v1976 = vsel %vm1948, %v1921, %v1920
  %1981 = vst.msk [vmem:[%s6] sm:$0xff] %vm535, %v1961
  %1982 = vst.msk [vmem:[%s6 + $0x8] sm:$0xff] %vm535, %v1968
  %1983 = vst.msk [vmem:[%s6 + $0x10] sm:$0xff] %vm535, %v1975
  %vm1984 = vcmask 254976
  %1985 = vst.msk [vmem:[%s6 + $0x18] sm:$0x3] %vm1984, %v1976
  // Predicated region
  $region26: #{matcher_device.8} parent=0 // pred_check
    _
  $region27: #{matcher_device.8} parent=0 // pred_check_branch
    %1987 = sbr.rel (0) target = $region29
  $region28: #{matcher_device.8} parent=0 // pred_region
    _
  $region29: #{matcher_device.8} parent=0 // pred_fallthru
    _
  // Predicated region
  $region30: #{matcher_device.8} parent=0 // pred_check
    _
  $region31: #{matcher_device.8} parent=0 // pred_check_branch
    %1989 = sbr.rel (0) target = $region33
  $region32: #{matcher_device.8} parent=0 // pred_region
    _
  $region33: #{matcher_device.8} parent=0 // pred_fallthru
    _

// kernel: matcher_device.10
$region0: #{matcher_device.10}
  #allocation0 [shape = 'u32[]', space=smem, size = 0x4, offset = 0x4, fixed_abs, tag = 'smem constant byte address 0x4 - core index']
  #allocation1 [shape = 'u32[144,128]{1,0:T(1,128)}', space=vmem, size = 0x12000, scoped, tag = 'internal scratch']
  %s0 = inlined_call_operand.vmem [shape: f32[8,67], index: 0, kind: input, shape index: {}]
  %s1 = inlined_call_operand.vmem [shape: f32[8,64], index: 1, kind: input, shape index: {}]
  %s2 = inlined_call_operand.vmem [shape: bf16[67,64], index: 2, kind: input, shape index: {}]
  %s3 = inlined_call_operand.vmem [shape: f32[1,64], index: 3, kind: input, shape index: {}]
  %s4 = inlined_call_operand.vmem [shape: bf16[64,64], index: 4, kind: input, shape index: {}]
  %s5 = inlined_call_operand.vmem [shape: f32[1,64], index: 5, kind: input, shape index: {}]
  %s6 = inlined_call_operand.vmem [shape: bf16[64,64], index: 6, kind: input, shape index: {}]
  %s7 = inlined_call_operand.vmem [shape: bf16[64,64], index: 7, kind: input, shape index: {}]
  %s8 = inlined_call_operand.vmem [shape: f32[1,64], index: 8, kind: input, shape index: {}]
  %s9 = inlined_call_operand.vmem [shape: bf16[64,64], index: 9, kind: input, shape index: {}]
  %s10 = inlined_call_operand.vmem [shape: f32[1,64], index: 10, kind: input, shape index: {}]
  %s11 = inlined_call_operand.vmem [shape: f32[8,64], index: 11, kind: output, shape index: {}]
  %s12 = sld [smem:[#allocation0]]
  $region54: #{matcher_device.10} parent=0
    _
  %s14 = ssub.s32 1, %s12
  %s15 = scalar_select 0, %s14, %s12
  // Predicated region
  $region2: #{matcher_device.10} parent=0 // pred_check
    _
  $region3: #{matcher_device.10} parent=0 // pred_check_branch
    %17 = sbr.rel (0) target = $region5
  $region4: #{matcher_device.10} parent=0 // pred_region
    _
  $region5: #{matcher_device.10} parent=0 // pred_fallthru
    _
  // Predicated region
  $region6: #{matcher_device.10} parent=0 // pred_check
    _
  $region7: #{matcher_device.10} parent=0 // pred_check_branch
    %19 = sbr.rel (0) target = $region9
  $region8: #{matcher_device.10} parent=0 // pred_region
    _
  $region9: #{matcher_device.10} parent=0 // pred_fallthru
    _
  // Predicated region
  $region10: #{matcher_device.10} parent=0 // pred_check
    _
  $region11: #{matcher_device.10} parent=0 // pred_check_branch
    %21 = sbr.rel (0) target = $region13
  $region12: #{matcher_device.10} parent=0 // pred_region
    _
  $region13: #{matcher_device.10} parent=0 // pred_fallthru
    _
  // Predicated region
  $region14: #{matcher_device.10} parent=0 // pred_check
    _
  $region15: #{matcher_device.10} parent=0 // pred_check_branch
    %23 = sbr.rel (0) target = $region17
  $region16: #{matcher_device.10} parent=0 // pred_region
    _
  $region17: #{matcher_device.10} parent=0 // pred_fallthru
    _
  // Predicated region
  $region18: #{matcher_device.10} parent=0 // pred_check
    _
  $region19: #{matcher_device.10} parent=0 // pred_check_branch
    %25 = sbr.rel (0) target = $region21
  $region20: #{matcher_device.10} parent=0 // pred_region
    _
  $region21: #{matcher_device.10} parent=0 // pred_fallthru
    _
  // Predicated region
  $region22: #{matcher_device.10} parent=0 // pred_check
    _
  $region23: #{matcher_device.10} parent=0 // pred_check_branch
    %27 = sbr.rel (0) target = $region25
  $region24: #{matcher_device.10} parent=0 // pred_region
    _
  $region25: #{matcher_device.10} parent=0 // pred_fallthru
    _
  // Predicated region
  $region26: #{matcher_device.10} parent=0 // pred_check
    _
  $region27: #{matcher_device.10} parent=0 // pred_check_branch
    %29 = sbr.rel (0) target = $region29
  $region28: #{matcher_device.10} parent=0 // pred_region
    _
  $region29: #{matcher_device.10} parent=0 // pred_fallthru
    _
  // Predicated region
  $region30: #{matcher_device.10} parent=0 // pred_check
    _
  $region31: #{matcher_device.10} parent=0 // pred_check_branch
    %31 = sbr.rel (0) target = $region33
  $region32: #{matcher_device.10} parent=0 // pred_region
    _
  $region33: #{matcher_device.10} parent=0 // pred_fallthru
    _
  // Predicated region
  $region34: #{matcher_device.10} parent=0 // pred_check
    _
  $region35: #{matcher_device.10} parent=0 // pred_check_branch
    %33 = sbr.rel (0) target = $region37
  $region36: #{matcher_device.10} parent=0 // pred_region
    _
  $region37: #{matcher_device.10} parent=0 // pred_fallthru
    _
  // Predicated region
  $region38: #{matcher_device.10} parent=0 // pred_check
    _
  $region39: #{matcher_device.10} parent=0 // pred_check_branch
    %35 = sbr.rel (0) target = $region41
  $region40: #{matcher_device.10} parent=0 // pred_region
    _
  $region41: #{matcher_device.10} parent=0 // pred_fallthru
    _
  // Predicated region
  $region42: #{matcher_device.10} parent=0 // pred_check
    _
  $region43: #{matcher_device.10} parent=0 // pred_check_branch
    %37 = sbr.rel (0) target = $region45
  $region44: #{matcher_device.10} parent=0 // pred_region
    _
  $region45: #{matcher_device.10} parent=0 // pred_fallthru
    _
  %v39 = vld [vmem:[%s0] sm:$0xff]
  %v40 = vpack.c.bf16 %v39, %v39
  %v41 = vld [vmem:[%s2] sm:$0xf]
  %v42 = vld [vmem:[%s2 + $0x4] sm:$0xf]
  %v43 = vld [vmem:[%s2 + $0x8] sm:$0xf]
  %v44 = vld [vmem:[%s2 + $0xc] sm:$0xf]
  %v45 = vld [vmem:[%s2 + $0x10] sm:$0xf]
  %v46 = vld [vmem:[%s2 + $0x14] sm:$0xf]
  %v47 = vld [vmem:[%s2 + $0x18] sm:$0xf]
  %v48 = vld [vmem:[%s2 + $0x1c] sm:$0xf]
  %v49 = vld [vmem:[%s2 + $0x20] sm:$0x3]
  %v50 = vld [vmem:[%s3] sm:$0x1]
  %v52 = vlaneseq
  %v53 = vshrl.u32 %v52, 7
  %v54 = vsub.s32 0, %v53
  %v55 = vrot.slane %v50, %v54
  %v66 = vunpack.c.l.b16 %v41
  %v67 = vunpack.c.l.b16 %v42
  %v68 = vunpack.c.l.b16 %v43
  %v69 = vunpack.c.l.b16 %v44
  %v70 = vunpack.c.l.b16 %v45
  %v71 = vunpack.c.l.b16 %v46
  %v72 = vunpack.c.l.b16 %v47
  %v73 = vunpack.c.l.b16 %v48
  %v74 = vunpack.c.l.b16 %v49
  %v75 = vpack.c.b16 %v67, %v66
  %v76 = vpack.c.b16 %v69, %v68
  %v77 = vpack.c.b16 %v71, %v70
  %v78 = vpack.c.b16 %v73, %v72
  %v79 = vpack.c.b16 %v74, %v74
  %vm84 = vcmask 547840
  %v86 = vsel %vm84, %v40, 0
  %vm88 = vcmask 1040384
  %vm89 = vcmask 1041408
  %v90 = vsel %vm88, 4294967295, 65535
  %v91 = vsel %vm89, %v90, 0
  %v93 = vand.u32 %v79, %v91
  %95 = vmatprep.subr.bf16.mxu0 0
  %96 = vmatpush1.bf16.msra.mxu0 %v75
  %97 = vmatprep.subr.bf16.mxu0 0
  %98 = vmatpush1.bf16.msra.mxu0 %v76
  %99 = vmatprep.subr.bf16.mxu0 0
  %100 = vmatpush1.bf16.msra.mxu0 %v77
  %101 = vmatprep.subr.bf16.mxu0 0
  %102 = vmatpush1.bf16.msra.mxu0 %v78
  %103 = vmatprep.subr.bf16.mxu0 0
  %104 = vmatpush1.bf16.msra.mxu0 %v93
  %105 = vmatprep.subr.bf16.mxu0 0
  %106 = vmatpush1.bf16.msra.mxu0 0
  %107 = vmatprep.subr.bf16.mxu0 0
  %108 = vmatpush1.bf16.msra.mxu0 0
  %109 = vmatprep.subr.bf16.mxu0 0
  %110 = vmatpush1.bf16.msra.mxu0 0
  %111 = vmatprep.subr.bf16.mxu0 0
  %112 = vmatpush1.bf16.msra.mxu0 0
  %113 = vmatprep.subr.bf16.mxu0 0
  %114 = vmatpush1.bf16.msra.mxu0 0
  %115 = vmatprep.subr.bf16.mxu0 0
  %116 = vmatpush1.bf16.msra.mxu0 0
  %117 = vmatprep.subr.bf16.mxu0 0
  %118 = vmatpush1.bf16.msra.mxu0 0
  %119 = vmatprep.subr.bf16.mxu0 0
  %120 = vmatpush1.bf16.msra.mxu0 0
  %121 = vmatprep.subr.bf16.mxu0 0
  %122 = vmatpush1.bf16.msra.mxu0 0
  %123 = vmatprep.subr.bf16.mxu0 0
  %124 = vmatpush1.bf16.msra.mxu0 0
  %125 = vmatprep.subr.bf16.mxu0 0
  %126 = vmatpush1.bf16.msra.mxu0 0
  %127 = vmatprep.mubr.bf16.mxu0 0
  %128 = vmatmul.mubr.bf16.gmra.mrb[0].mxu0 %v86
  %v129 = vpop.f32.mrb[0].mxu0
  %v130 = vadd.f32 %v55, %v129
  %v131 = vpop.f32.mrb[0].mxu0
  %v132 = vpop.f32.mrb[0].mxu0
  %v133 = vpop.f32.mrb[0].mxu0
  %134 = vdwg.mxu0
  %v135 = vmax.f32 %v130, 0.0
  %v136 = vpack.c.bf16 %v135, %v135
  %v137 = vld [vmem:[%s4] sm:$0xf]
  %v138 = vld [vmem:[%s4 + $0x4] sm:$0xf]
  %v139 = vld [vmem:[%s4 + $0x8] sm:$0xf]
  %v140 = vld [vmem:[%s4 + $0xc] sm:$0xf]
  %v141 = vld [vmem:[%s4 + $0x10] sm:$0xf]
  %v142 = vld [vmem:[%s4 + $0x14] sm:$0xf]
  %v143 = vld [vmem:[%s4 + $0x18] sm:$0xf]
  %v144 = vld [vmem:[%s4 + $0x1c] sm:$0xf]
  %v145 = vld [vmem:[%s5] sm:$0x1]
  %v147 = vlaneseq
  %v148 = vshrl.u32 %v147, 7
  %v149 = vsub.s32 0, %v148
  %v150 = vrot.slane %v145, %v149
  %v160 = vunpack.c.l.b16 %v137
  %v161 = vunpack.c.l.b16 %v138
  %v162 = vunpack.c.l.b16 %v139
  %v163 = vunpack.c.l.b16 %v140
  %v164 = vunpack.c.l.b16 %v141
  %v165 = vunpack.c.l.b16 %v142
  %v166 = vunpack.c.l.b16 %v143
  %v167 = vunpack.c.l.b16 %v144
  %v168 = vpack.c.b16 %v161, %v160
  %v169 = vpack.c.b16 %v163, %v162
  %v170 = vpack.c.b16 %v165, %v164
  %v171 = vpack.c.b16 %v167, %v166
  %vm176 = vcmask 523264
  %v178 = vsel %vm176, %v136, 0
  %180 = vmatprep.subr.bf16.mxu0 0
  %181 = vmatpush1.bf16.msra.mxu0 %v168
  %182 = vmatprep.subr.bf16.mxu0 0
  %183 = vmatpush1.bf16.msra.mxu0 %v169
  %184 = vmatprep.subr.bf16.mxu0 0
  %185 = vmatpush1.bf16.msra.mxu0 %v170
  %186 = vmatprep.subr.bf16.mxu0 0
  %187 = vmatpush1.bf16.msra.mxu0 %v171
  %188 = vmatprep.subr.bf16.mxu0 0
  %189 = vmatpush1.bf16.msra.mxu0 0
  %190 = vmatprep.subr.bf16.mxu0 0
  %191 = vmatpush1.bf16.msra.mxu0 0
  %192 = vmatprep.subr.bf16.mxu0 0
  %193 = vmatpush1.bf16.msra.mxu0 0
  %194 = vmatprep.subr.bf16.mxu0 0
  %195 = vmatpush1.bf16.msra.mxu0 0
  %196 = vmatprep.subr.bf16.mxu0 0
  %197 = vmatpush1.bf16.msra.mxu0 0
  %198 = vmatprep.subr.bf16.mxu0 0
  %199 = vmatpush1.bf16.msra.mxu0 0
  %200 = vmatprep.subr.bf16.mxu0 0
  %201 = vmatpush1.bf16.msra.mxu0 0
  %202 = vmatprep.subr.bf16.mxu0 0
  %203 = vmatpush1.bf16.msra.mxu0 0
  %204 = vmatprep.subr.bf16.mxu0 0
  %205 = vmatpush1.bf16.msra.mxu0 0
  %206 = vmatprep.subr.bf16.mxu0 0
  %207 = vmatpush1.bf16.msra.mxu0 0
  %208 = vmatprep.subr.bf16.mxu0 0
  %209 = vmatpush1.bf16.msra.mxu0 0
  %210 = vmatprep.subr.bf16.mxu0 0
  %211 = vmatpush1.bf16.msra.mxu0 0
  %212 = vmatprep.mubr.bf16.mxu0 0
  %213 = vmatmul.mubr.bf16.gmra.mrb[0].mxu0 %v178
  %v214 = vpop.f32.mrb[0].mxu0
  %v215 = vadd.f32 %v150, %v214
  %v216 = vpop.f32.mrb[0].mxu0
  %v217 = vpop.f32.mrb[0].mxu0
  %v218 = vpop.f32.mrb[0].mxu0
  %219 = vdwg.mxu0
  %v220 = vlaneseq
  %v221 = vshrl.u32 %v220, 7
  %vm222 = vcmp.lt.s32.totalorder %v221, 4
  %v223 = vsel %vm222, %v215, -1e+30
  %v224 = vsel %vm176, %v223, -inf
  %v225 = vrot.slane %v224, 4
  %v226 = vmax.f32 %v224, %v225
  %v227 = vrot.slane %v226, 2
  %v228 = vmax.f32 %v226, %v227
  %v229 = vrot.slane %v228, 1
  %v230 = vmax.f32 %v228, %v229
  %vm231 = vcmp.ge.s32.totalorder %v221, 4
  %v232 = vsel %vm231, %v215, -1e+30
  %v233 = vsel %vm176, %v232, -inf
  %v234 = vrot.slane %v233, 4
  %v235 = vmax.f32 %v233, %v234
  %v236 = vrot.slane %v235, 2
  %v237 = vmax.f32 %v235, %v236
  %v238 = vrot.slane %v237, 1
  %v239 = vmax.f32 %v237, %v238
  %v240 = vld [vmem:[%s1] sm:$0xff]
  %v241 = vpack.c.bf16 %v240, %v240
  %v242 = vld [vmem:[%s7] sm:$0xf]
  %v243 = vld [vmem:[%s7 + $0x4] sm:$0xf]
  %v244 = vld [vmem:[%s7 + $0x8] sm:$0xf]
  %v245 = vld [vmem:[%s7 + $0xc] sm:$0xf]
  %v246 = vld [vmem:[%s7 + $0x10] sm:$0xf]
  %v247 = vld [vmem:[%s7 + $0x14] sm:$0xf]
  %v248 = vld [vmem:[%s7 + $0x18] sm:$0xf]
  %v249 = vld [vmem:[%s7 + $0x1c] sm:$0xf]
  %v250 = vpack.c.bf16 %v230, %v230
  %v251 = vld [vmem:[%s6] sm:$0xf]
  %v252 = vld [vmem:[%s6 + $0x4] sm:$0xf]
  %v253 = vld [vmem:[%s6 + $0x8] sm:$0xf]
  %v254 = vld [vmem:[%s6 + $0xc] sm:$0xf]
  %v255 = vld [vmem:[%s6 + $0x10] sm:$0xf]
  %v256 = vld [vmem:[%s6 + $0x14] sm:$0xf]
  %v257 = vld [vmem:[%s6 + $0x18] sm:$0xf]
  %v258 = vld [vmem:[%s6 + $0x1c] sm:$0xf]
  %v267 = vunpack.c.l.b16 %v251
  %v268 = vunpack.c.l.b16 %v252
  %v269 = vunpack.c.l.b16 %v253
  %v270 = vunpack.c.l.b16 %v254
  %v271 = vunpack.c.l.b16 %v255
  %v272 = vunpack.c.l.b16 %v256
  %v273 = vunpack.c.l.b16 %v257
  %v274 = vunpack.c.l.b16 %v258
  %v275 = vpack.c.b16 %v268, %v267
  %v276 = vpack.c.b16 %v270, %v269
  %v277 = vpack.c.b16 %v272, %v271
  %v278 = vpack.c.b16 %v274, %v273
  %v284 = vsel %vm176, %v250, 0
  %286 = vmatprep.subr.bf16.mxu0 0
  %287 = vmatpush1.bf16.msra.mxu0 %v275
  %288 = vmatprep.subr.bf16.mxu0 0
  %289 = vmatpush1.bf16.msra.mxu0 %v276
  %290 = vmatprep.subr.bf16.mxu0 0
  %291 = vmatpush1.bf16.msra.mxu0 %v277
  %292 = vmatprep.subr.bf16.mxu0 0
  %293 = vmatpush1.bf16.msra.mxu0 %v278
  %294 = vmatprep.subr.bf16.mxu0 0
  %295 = vmatpush1.bf16.msra.mxu0 0
  %296 = vmatprep.subr.bf16.mxu0 0
  %297 = vmatpush1.bf16.msra.mxu0 0
  %298 = vmatprep.subr.bf16.mxu0 0
  %299 = vmatpush1.bf16.msra.mxu0 0
  %300 = vmatprep.subr.bf16.mxu0 0
  %301 = vmatpush1.bf16.msra.mxu0 0
  %302 = vmatprep.subr.bf16.mxu0 0
  %303 = vmatpush1.bf16.msra.mxu0 0
  %304 = vmatprep.subr.bf16.mxu0 0
  %305 = vmatpush1.bf16.msra.mxu0 0
  %306 = vmatprep.subr.bf16.mxu0 0
  %307 = vmatpush1.bf16.msra.mxu0 0
  %308 = vmatprep.subr.bf16.mxu0 0
  %309 = vmatpush1.bf16.msra.mxu0 0
  %310 = vmatprep.subr.bf16.mxu0 0
  %311 = vmatpush1.bf16.msra.mxu0 0
  %312 = vmatprep.subr.bf16.mxu0 0
  %313 = vmatpush1.bf16.msra.mxu0 0
  %314 = vmatprep.subr.bf16.mxu0 0
  %315 = vmatpush1.bf16.msra.mxu0 0
  %316 = vmatprep.subr.bf16.mxu0 0
  %317 = vmatpush1.bf16.msra.mxu0 0
  %318 = vmatprep.mubr.bf16.mxu0 0
  %319 = vmatmul.mubr.bf16.gmra.mrb[0].mxu0 %v284
  %v320 = vpop.f32.mrb[0].mxu0
  %v321 = vadd.f32 0.0, %v320
  %v322 = vpop.f32.mrb[0].mxu0
  %v323 = vpop.f32.mrb[0].mxu0
  %v324 = vpop.f32.mrb[0].mxu0
  %325 = vdwg.mxu0
  %v326 = vpack.c.bf16 %v239, %v239
  %v328 = vsel %vm176, %v326, 0
  %330 = vmatprep.subr.bf16.mxu0 0
  %331 = vmatpush1.bf16.msra.mxu0 %v275
  %332 = vmatprep.subr.bf16.mxu0 0
  %333 = vmatpush1.bf16.msra.mxu0 %v276
  %334 = vmatprep.subr.bf16.mxu0 0
  %335 = vmatpush1.bf16.msra.mxu0 %v277
  %336 = vmatprep.subr.bf16.mxu0 0
  %337 = vmatpush1.bf16.msra.mxu0 %v278
  %338 = vmatprep.subr.bf16.mxu0 0
  %339 = vmatpush1.bf16.msra.mxu0 0
  %340 = vmatprep.subr.bf16.mxu0 0
  %341 = vmatpush1.bf16.msra.mxu0 0
  %342 = vmatprep.subr.bf16.mxu0 0
  %343 = vmatpush1.bf16.msra.mxu0 0
  %344 = vmatprep.subr.bf16.mxu0 0
  %345 = vmatpush1.bf16.msra.mxu0 0
  %346 = vmatprep.subr.bf16.mxu0 0
  %347 = vmatpush1.bf16.msra.mxu0 0
  %348 = vmatprep.subr.bf16.mxu0 0
  %349 = vmatpush1.bf16.msra.mxu0 0
  %350 = vmatprep.subr.bf16.mxu0 0
  %351 = vmatpush1.bf16.msra.mxu0 0
  %352 = vmatprep.subr.bf16.mxu0 0
  %353 = vmatpush1.bf16.msra.mxu0 0
  %354 = vmatprep.subr.bf16.mxu0 0
  %355 = vmatpush1.bf16.msra.mxu0 0
  %356 = vmatprep.subr.bf16.mxu0 0
  %357 = vmatpush1.bf16.msra.mxu0 0
  %358 = vmatprep.subr.bf16.mxu0 0
  %359 = vmatpush1.bf16.msra.mxu0 0
  %360 = vmatprep.subr.bf16.mxu0 0
  %361 = vmatpush1.bf16.msra.mxu0 0
  %362 = vmatprep.mubr.bf16.mxu0 0
  %363 = vmatmul.mubr.bf16.gmra.mrb[0].mxu0 %v328
  %v364 = vpop.f32.mrb[0].mxu0
  %v365 = vadd.f32 0.0, %v364
  %v366 = vpop.f32.mrb[0].mxu0
  %v367 = vpop.f32.mrb[0].mxu0
  %v368 = vpop.f32.mrb[0].mxu0
  %369 = vdwg.mxu0
  %v370 = vlaneseq
  %v371 = vshrl.u32 %v370, 7
  %v372 = vsub.s32 0, %v371
  %v373 = vrot.slane %v321, %v372
  %v374 = vlaneseq
  %v375 = vshrl.u32 %v374, 7
  %v376 = vsub.s32 0, %v375
  %v377 = vrot.slane %v365, %v376
  %v378 = vsel %vm222, %v373, %v377
  %v387 = vunpack.c.l.b16 %v242
  %v388 = vunpack.c.l.b16 %v243
  %v389 = vunpack.c.l.b16 %v244
  %v390 = vunpack.c.l.b16 %v245
  %v391 = vunpack.c.l.b16 %v246
  %v392 = vunpack.c.l.b16 %v247
  %v393 = vunpack.c.l.b16 %v248
  %v394 = vunpack.c.l.b16 %v249
  %v395 = vpack.c.b16 %v388, %v387
  %v396 = vpack.c.b16 %v390, %v389
  %v397 = vpack.c.b16 %v392, %v391
  %v398 = vpack.c.b16 %v394, %v393
  %v404 = vsel %vm176, %v241, 0
  %406 = vmatprep.subr.bf16.mxu0 0
  %407 = vmatpush1.bf16.msra.mxu0 %v395
  %408 = vmatprep.subr.bf16.mxu0 0
  %409 = vmatpush1.bf16.msra.mxu0 %v396
  %410 = vmatprep.subr.bf16.mxu0 0
  %411 = vmatpush1.bf16.msra.mxu0 %v397
  %412 = vmatprep.subr.bf16.mxu0 0
  %413 = vmatpush1.bf16.msra.mxu0 %v398
  %414 = vmatprep.subr.bf16.mxu0 0
  %415 = vmatpush1.bf16.msra.mxu0 0
  %416 = vmatprep.subr.bf16.mxu0 0
  %417 = vmatpush1.bf16.msra.mxu0 0
  %418 = vmatprep.subr.bf16.mxu0 0
  %419 = vmatpush1.bf16.msra.mxu0 0
  %420 = vmatprep.subr.bf16.mxu0 0
  %421 = vmatpush1.bf16.msra.mxu0 0
  %422 = vmatprep.subr.bf16.mxu0 0
  %423 = vmatpush1.bf16.msra.mxu0 0
  %424 = vmatprep.subr.bf16.mxu0 0
  %425 = vmatpush1.bf16.msra.mxu0 0
  %426 = vmatprep.subr.bf16.mxu0 0
  %427 = vmatpush1.bf16.msra.mxu0 0
  %428 = vmatprep.subr.bf16.mxu0 0
  %429 = vmatpush1.bf16.msra.mxu0 0
  %430 = vmatprep.subr.bf16.mxu0 0
  %431 = vmatpush1.bf16.msra.mxu0 0
  %432 = vmatprep.subr.bf16.mxu0 0
  %433 = vmatpush1.bf16.msra.mxu0 0
  %434 = vmatprep.subr.bf16.mxu0 0
  %435 = vmatpush1.bf16.msra.mxu0 0
  %436 = vmatprep.subr.bf16.mxu0 0
  %437 = vmatpush1.bf16.msra.mxu0 0
  %438 = vmatprep.mubr.bf16.mxu0 0
  %439 = vmatmul.mubr.bf16.gmra.mrb[0].mxu0 %v404
  %v440 = vpop.f32.mrb[0].mxu0
  %v441 = vadd.f32 %v378, %v440
  %v442 = vpop.f32.mrb[0].mxu0
  %v443 = vpop.f32.mrb[0].mxu0
  %v444 = vpop.f32.mrb[0].mxu0
  %445 = vdwg.mxu0
  %v446 = vld [vmem:[%s8] sm:$0x1]
  %v448 = vlaneseq
  %v449 = vshrl.u32 %v448, 7
  %v450 = vsub.s32 0, %v449
  %v451 = vrot.slane %v446, %v450
  %v453 = vadd.f32 %v441, %v451
  %v454 = vmax.f32 %v453, 0.0
  %v455 = vpack.c.bf16 %v454, %v454
  %v456 = vld [vmem:[%s9] sm:$0xf]
  %v457 = vld [vmem:[%s9 + $0x4] sm:$0xf]
  %v458 = vld [vmem:[%s9 + $0x8] sm:$0xf]
  %v459 = vld [vmem:[%s9 + $0xc] sm:$0xf]
  %v460 = vld [vmem:[%s9 + $0x10] sm:$0xf]
  %v461 = vld [vmem:[%s9 + $0x14] sm:$0xf]
  %v462 = vld [vmem:[%s9 + $0x18] sm:$0xf]
  %v463 = vld [vmem:[%s9 + $0x1c] sm:$0xf]
  %v464 = vld [vmem:[%s10] sm:$0x1]
  %v466 = vlaneseq
  %v467 = vshrl.u32 %v466, 7
  %v468 = vsub.s32 0, %v467
  %v469 = vrot.slane %v464, %v468
  %v479 = vunpack.c.l.b16 %v456
  %v480 = vunpack.c.l.b16 %v457
  %v481 = vunpack.c.l.b16 %v458
  %v482 = vunpack.c.l.b16 %v459
  %v483 = vunpack.c.l.b16 %v460
  %v484 = vunpack.c.l.b16 %v461
  %v485 = vunpack.c.l.b16 %v462
  %v486 = vunpack.c.l.b16 %v463
  %v487 = vpack.c.b16 %v480, %v479
  %v488 = vpack.c.b16 %v482, %v481
  %v489 = vpack.c.b16 %v484, %v483
  %v490 = vpack.c.b16 %v486, %v485
  %v496 = vsel %vm176, %v455, 0
  %498 = vmatprep.subr.bf16.mxu0 0
  %499 = vmatpush1.bf16.msra.mxu0 %v487
  %500 = vmatprep.subr.bf16.mxu0 0
  %501 = vmatpush1.bf16.msra.mxu0 %v488
  %502 = vmatprep.subr.bf16.mxu0 0
  %503 = vmatpush1.bf16.msra.mxu0 %v489
  %504 = vmatprep.subr.bf16.mxu0 0
  %505 = vmatpush1.bf16.msra.mxu0 %v490
  %506 = vmatprep.subr.bf16.mxu0 0
  %507 = vmatpush1.bf16.msra.mxu0 0
  %508 = vmatprep.subr.bf16.mxu0 0
  %509 = vmatpush1.bf16.msra.mxu0 0
  %510 = vmatprep.subr.bf16.mxu0 0
  %511 = vmatpush1.bf16.msra.mxu0 0
  %512 = vmatprep.subr.bf16.mxu0 0
  %513 = vmatpush1.bf16.msra.mxu0 0
  %514 = vmatprep.subr.bf16.mxu0 0
  %515 = vmatpush1.bf16.msra.mxu0 0
  %516 = vmatprep.subr.bf16.mxu0 0
  %517 = vmatpush1.bf16.msra.mxu0 0
  %518 = vmatprep.subr.bf16.mxu0 0
  %519 = vmatpush1.bf16.msra.mxu0 0
  %520 = vmatprep.subr.bf16.mxu0 0
  %521 = vmatpush1.bf16.msra.mxu0 0
  %522 = vmatprep.subr.bf16.mxu0 0
  %523 = vmatpush1.bf16.msra.mxu0 0
  %524 = vmatprep.subr.bf16.mxu0 0
  %525 = vmatpush1.bf16.msra.mxu0 0
  %526 = vmatprep.subr.bf16.mxu0 0
  %527 = vmatpush1.bf16.msra.mxu0 0
  %528 = vmatprep.subr.bf16.mxu0 0
  %529 = vmatpush1.bf16.msra.mxu0 0
  %530 = vmatprep.mubr.bf16.mxu0 0
  %531 = vmatmul.mubr.bf16.gmra.mrb[0].mxu0 %v496
  %v532 = vpop.f32.mrb[0].mxu0
  %v533 = vadd.f32 %v469, %v532
  %v534 = vpop.f32.mrb[0].mxu0
  %v535 = vpop.f32.mrb[0].mxu0
  %v536 = vpop.f32.mrb[0].mxu0
  %537 = vdwg.mxu0
  %538 = vst.msk [vmem:[%s11] sm:$0xff] %vm176, %v533
  // Predicated region
  $region46: #{matcher_device.10} parent=0 // pred_check
    _
  $region47: #{matcher_device.10} parent=0 // pred_check_branch
    %540 = sbr.rel (0) target = $region49
  $region48: #{matcher_device.10} parent=0 // pred_region
    _
  $region49: #{matcher_device.10} parent=0 // pred_fallthru
    _
  // Predicated region
  $region50: #{matcher_device.10} parent=0 // pred_check
    _
  $region51: #{matcher_device.10} parent=0 // pred_check_branch
    %542 = sbr.rel (0) target = $region53
  $region52: #{matcher_device.10} parent=0 // pred_region
    _
  $region53: #{matcher_device.10} parent=0 // pred_fallthru
    _

// kernel: matcher_device.9
$region0: #{matcher_device.9}
  #allocation0 [shape = 'u32[]', space=smem, size = 0x4, offset = 0x4, fixed_abs, tag = 'smem constant byte address 0x4 - core index']
  #allocation1 [shape = 'u32[144,128]{1,0:T(1,128)}', space=vmem, size = 0x12000, scoped, tag = 'internal scratch']
  %s0 = inlined_call_operand.vmem [shape: f32[128,35], index: 0, kind: input, shape index: {}]
  %s1 = inlined_call_operand.vmem [shape: f32[8,16,1], index: 1, kind: input, shape index: {}]
  %s2 = inlined_call_operand.vmem [shape: bf16[35,32], index: 2, kind: input, shape index: {}]
  %s3 = inlined_call_operand.vmem [shape: f32[1,32], index: 3, kind: input, shape index: {}]
  %s4 = inlined_call_operand.vmem [shape: bf16[32,64], index: 4, kind: input, shape index: {}]
  %s5 = inlined_call_operand.vmem [shape: f32[1,64], index: 5, kind: input, shape index: {}]
  %s6 = inlined_call_operand.vmem [shape: f32[8,64], index: 6, kind: output, shape index: {}]
  %s7 = sld [smem:[#allocation0]]
  $region34: #{matcher_device.9} parent=0
    _
  %s9 = ssub.s32 1, %s7
  %s10 = scalar_select 0, %s9, %s7
  // Predicated region
  $region2: #{matcher_device.9} parent=0 // pred_check
    _
  $region3: #{matcher_device.9} parent=0 // pred_check_branch
    %12 = sbr.rel (0) target = $region5
  $region4: #{matcher_device.9} parent=0 // pred_region
    _
  $region5: #{matcher_device.9} parent=0 // pred_fallthru
    _
  // Predicated region
  $region6: #{matcher_device.9} parent=0 // pred_check
    _
  $region7: #{matcher_device.9} parent=0 // pred_check_branch
    %14 = sbr.rel (0) target = $region9
  $region8: #{matcher_device.9} parent=0 // pred_region
    _
  $region9: #{matcher_device.9} parent=0 // pred_fallthru
    _
  // Predicated region
  $region10: #{matcher_device.9} parent=0 // pred_check
    _
  $region11: #{matcher_device.9} parent=0 // pred_check_branch
    %16 = sbr.rel (0) target = $region13
  $region12: #{matcher_device.9} parent=0 // pred_region
    _
  $region13: #{matcher_device.9} parent=0 // pred_fallthru
    _
  // Predicated region
  $region14: #{matcher_device.9} parent=0 // pred_check
    _
  $region15: #{matcher_device.9} parent=0 // pred_check_branch
    %18 = sbr.rel (0) target = $region17
  $region16: #{matcher_device.9} parent=0 // pred_region
    _
  $region17: #{matcher_device.9} parent=0 // pred_fallthru
    _
  // Predicated region
  $region18: #{matcher_device.9} parent=0 // pred_check
    _
  $region19: #{matcher_device.9} parent=0 // pred_check_branch
    %20 = sbr.rel (0) target = $region21
  $region20: #{matcher_device.9} parent=0 // pred_region
    _
  $region21: #{matcher_device.9} parent=0 // pred_fallthru
    _
  // Predicated region
  $region22: #{matcher_device.9} parent=0 // pred_check
    _
  $region23: #{matcher_device.9} parent=0 // pred_check_branch
    %22 = sbr.rel (0) target = $region25
  $region24: #{matcher_device.9} parent=0 // pred_region
    _
  $region25: #{matcher_device.9} parent=0 // pred_fallthru
    _
  %v24 = vld [vmem:[%s0] sm:$0xff]
  %v25 = vld [vmem:[%s0 + $0x8] sm:$0xff]
  %v26 = vld [vmem:[%s0 + $0x10] sm:$0xff]
  %v27 = vld [vmem:[%s0 + $0x18] sm:$0xff]
  %v28 = vld [vmem:[%s0 + $0x20] sm:$0xff]
  %v29 = vld [vmem:[%s0 + $0x28] sm:$0xff]
  %v30 = vld [vmem:[%s0 + $0x30] sm:$0xff]
  %v31 = vld [vmem:[%s0 + $0x38] sm:$0xff]
  %v32 = vld [vmem:[%s0 + $0x40] sm:$0xff]
  %v33 = vld [vmem:[%s0 + $0x48] sm:$0xff]
  %v34 = vld [vmem:[%s0 + $0x50] sm:$0xff]
  %v35 = vld [vmem:[%s0 + $0x58] sm:$0xff]
  %v36 = vld [vmem:[%s0 + $0x60] sm:$0xff]
  %v37 = vld [vmem:[%s0 + $0x68] sm:$0xff]
  %v38 = vld [vmem:[%s0 + $0x70] sm:$0xff]
  %v39 = vld [vmem:[%s0 + $0x78] sm:$0xff]
  %v40 = vpack.c.bf16 %v25, %v24
  %v41 = vpack.c.bf16 %v27, %v26
  %v42 = vpack.c.bf16 %v29, %v28
  %v43 = vpack.c.bf16 %v31, %v30
  %v44 = vpack.c.bf16 %v33, %v32
  %v45 = vpack.c.bf16 %v35, %v34
  %v46 = vpack.c.bf16 %v37, %v36
  %v47 = vpack.c.bf16 %v39, %v38
  %v48 = vld [vmem:[%s2] sm:$0xf]
  %v49 = vld [vmem:[%s2 + $0x4] sm:$0xf]
  %v50 = vld [vmem:[%s2 + $0x8] sm:$0xf]
  %v51 = vld [vmem:[%s2 + $0xc] sm:$0xf]
  %v52 = vld [vmem:[%s2 + $0x10] sm:$0x3]
  %v53 = vld [vmem:[%s3] sm:$0x1]
  %v55 = vlaneseq
  %v56 = vshrl.u32 %v55, 7
  %v57 = vsub.s32 0, %v56
  %v58 = vrot.slane %v53, %v57
  %v65 = vunpack.c.l.b16 %v48
  %v66 = vunpack.c.l.b16 %v49
  %v67 = vunpack.c.l.b16 %v50
  %v68 = vunpack.c.l.b16 %v51
  %v69 = vunpack.c.l.b16 %v52
  %v70 = vpack.c.b16 %v66, %v65
  %v71 = vpack.c.b16 %v68, %v67
  %v72 = vpack.c.b16 %v69, %v69
  %vm75 = vcmask 285696
  %v77 = vsel %vm75, %v40, 0
  %v80 = vsel %vm75, %v41, 0
  %v83 = vsel %vm75, %v42, 0
  %v86 = vsel %vm75, %v43, 0
  %v89 = vsel %vm75, %v44, 0
  %v92 = vsel %vm75, %v45, 0
  %v95 = vsel %vm75, %v46, 0
  %v98 = vsel %vm75, %v47, 0
  %vm100 = vcmask 1040384
  %vm101 = vcmask 1041408
  %v102 = vsel %vm100, 4294967295, 65535
  %v103 = vsel %vm101, %v102, 0
  %v105 = vand.u32 %v72, %v103
  %107 = vmatprep.subr.bf16.mxu0 0
  %108 = vmatpush1.bf16.msra.mxu0 %v70
  %109 = vmatprep.subr.bf16.mxu0 0
  %110 = vmatpush1.bf16.msra.mxu0 %v71
  %111 = vmatprep.subr.bf16.mxu0 0
  %112 = vmatpush1.bf16.msra.mxu0 %v105
  %113 = vmatprep.subr.bf16.mxu0 0
  %114 = vmatpush1.bf16.msra.mxu0 0
  %115 = vmatprep.subr.bf16.mxu0 0
  %116 = vmatpush1.bf16.msra.mxu0 0
  %117 = vmatprep.subr.bf16.mxu0 0
  %118 = vmatpush1.bf16.msra.mxu0 0
  %119 = vmatprep.subr.bf16.mxu0 0
  %120 = vmatpush1.bf16.msra.mxu0 0
  %121 = vmatprep.subr.bf16.mxu0 0
  %122 = vmatpush1.bf16.msra.mxu0 0
  %123 = vmatprep.subr.bf16.mxu0 0
  %124 = vmatpush1.bf16.msra.mxu0 0
  %125 = vmatprep.subr.bf16.mxu0 0
  %126 = vmatpush1.bf16.msra.mxu0 0
  %127 = vmatprep.subr.bf16.mxu0 0
  %128 = vmatpush1.bf16.msra.mxu0 0
  %129 = vmatprep.subr.bf16.mxu0 0
  %130 = vmatpush1.bf16.msra.mxu0 0
  %131 = vmatprep.subr.bf16.mxu0 0
  %132 = vmatpush1.bf16.msra.mxu0 0
  %133 = vmatprep.subr.bf16.mxu0 0
  %134 = vmatpush1.bf16.msra.mxu0 0
  %135 = vmatprep.subr.bf16.mxu0 0
  %136 = vmatpush1.bf16.msra.mxu0 0
  %137 = vmatprep.subr.bf16.mxu0 0
  %138 = vmatpush1.bf16.msra.mxu0 0
  %139 = vmatprep.mubr.bf16.mxu0 0
  %140 = vmatmul.mubr.bf16.gmra.mrb[0].mxu0 %v77
  %v141 = vpop.f32.mrb[0].mxu0
  %v142 = vadd.f32 %v58, %v141
  %v143 = vpop.f32.mrb[0].mxu0
  %v144 = vpop.f32.mrb[0].mxu0
  %v145 = vadd.f32 %v58, %v144
  %v146 = vpop.f32.mrb[0].mxu0
  %147 = vmatprep.mubr.bf16.mxu0 0
  %148 = vmatmul.mubr.bf16.gmra.mrb[0].mxu0 %v80
  %v149 = vpop.f32.mrb[0].mxu0
  %v150 = vadd.f32 %v58, %v149
  %v151 = vpop.f32.mrb[0].mxu0
  %v152 = vpop.f32.mrb[0].mxu0
  %v153 = vadd.f32 %v58, %v152
  %v154 = vpop.f32.mrb[0].mxu0
  %155 = vmatprep.mubr.bf16.mxu0 0
  %156 = vmatmul.mubr.bf16.gmra.mrb[0].mxu0 %v83
  %v157 = vpop.f32.mrb[0].mxu0
  %v158 = vadd.f32 %v58, %v157
  %v159 = vpop.f32.mrb[0].mxu0
  %v160 = vpop.f32.mrb[0].mxu0
  %v161 = vadd.f32 %v58, %v160
  %v162 = vpop.f32.mrb[0].mxu0
  %163 = vmatprep.mubr.bf16.mxu0 0
  %164 = vmatmul.mubr.bf16.gmra.mrb[0].mxu0 %v86
  %v165 = vpop.f32.mrb[0].mxu0
  %v166 = vadd.f32 %v58, %v165
  %v167 = vpop.f32.mrb[0].mxu0
  %v168 = vpop.f32.mrb[0].mxu0
  %v169 = vadd.f32 %v58, %v168
  %v170 = vpop.f32.mrb[0].mxu0
  %171 = vmatprep.mubr.bf16.mxu0 0
  %172 = vmatmul.mubr.bf16.gmra.mrb[0].mxu0 %v89
  %v173 = vpop.f32.mrb[0].mxu0
  %v174 = vadd.f32 %v58, %v173
  %v175 = vpop.f32.mrb[0].mxu0
  %v176 = vpop.f32.mrb[0].mxu0
  %v177 = vadd.f32 %v58, %v176
  %v178 = vpop.f32.mrb[0].mxu0
  %179 = vmatprep.mubr.bf16.mxu0 0
  %180 = vmatmul.mubr.bf16.gmra.mrb[0].mxu0 %v92
  %v181 = vpop.f32.mrb[0].mxu0
  %v182 = vadd.f32 %v58, %v181
  %v183 = vpop.f32.mrb[0].mxu0
  %v184 = vpop.f32.mrb[0].mxu0
  %v185 = vadd.f32 %v58, %v184
  %v186 = vpop.f32.mrb[0].mxu0
  %187 = vmatprep.mubr.bf16.mxu0 0
  %188 = vmatmul.mubr.bf16.gmra.mrb[0].mxu0 %v95
  %v189 = vpop.f32.mrb[0].mxu0
  %v190 = vadd.f32 %v58, %v189
  %v191 = vpop.f32.mrb[0].mxu0
  %v192 = vpop.f32.mrb[0].mxu0
  %v193 = vadd.f32 %v58, %v192
  %v194 = vpop.f32.mrb[0].mxu0
  %195 = vmatprep.mubr.bf16.mxu0 0
  %196 = vmatmul.mubr.bf16.gmra.mrb[0].mxu0 %v98
  %v197 = vpop.f32.mrb[0].mxu0
  %v198 = vadd.f32 %v58, %v197
  %v199 = vpop.f32.mrb[0].mxu0
  %v200 = vpop.f32.mrb[0].mxu0
  %v201 = vadd.f32 %v58, %v200
  %v202 = vpop.f32.mrb[0].mxu0
  %203 = vdwg.mxu0
  %v204 = vmax.f32 %v142, 0.0
  %v205 = vmax.f32 %v145, 0.0
  %v206 = vmax.f32 %v150, 0.0
  %v207 = vmax.f32 %v153, 0.0
  %v208 = vmax.f32 %v158, 0.0
  %v209 = vmax.f32 %v161, 0.0
  %v210 = vmax.f32 %v166, 0.0
  %v211 = vmax.f32 %v169, 0.0
  %v212 = vmax.f32 %v174, 0.0
  %v213 = vmax.f32 %v177, 0.0
  %v214 = vmax.f32 %v182, 0.0
  %v215 = vmax.f32 %v185, 0.0
  %v216 = vmax.f32 %v190, 0.0
  %v217 = vmax.f32 %v193, 0.0
  %v218 = vmax.f32 %v198, 0.0
  %v219 = vmax.f32 %v201, 0.0
  %v220 = vpack.c.bf16 %v205, %v204
  %v221 = vpack.c.bf16 %v207, %v206
  %v222 = vpack.c.bf16 %v209, %v208
  %v223 = vpack.c.bf16 %v211, %v210
  %v224 = vpack.c.bf16 %v213, %v212
  %v225 = vpack.c.bf16 %v215, %v214
  %v226 = vpack.c.bf16 %v217, %v216
  %v227 = vpack.c.bf16 %v219, %v218
  %v228 = vld [vmem:[%s4] sm:$0xf]
  %v229 = vld [vmem:[%s4 + $0x4] sm:$0xf]
  %v230 = vld [vmem:[%s4 + $0x8] sm:$0xf]
  %v231 = vld [vmem:[%s4 + $0xc] sm:$0xf]
  %v232 = vld [vmem:[%s5] sm:$0x1]
  %v234 = vlaneseq
  %v235 = vshrl.u32 %v234, 7
  %v236 = vsub.s32 0, %v235
  %v237 = vrot.slane %v232, %v236
  %v243 = vunpack.c.l.b16 %v228
  %v244 = vunpack.c.l.b16 %v229
  %v245 = vunpack.c.l.b16 %v230
  %v246 = vunpack.c.l.b16 %v231
  %v247 = vpack.c.b16 %v244, %v243
  %v248 = vpack.c.b16 %v246, %v245
  %vm251 = vcmask 261120
  %v253 = vsel %vm251, %v220, 0
  %v256 = vsel %vm251, %v221, 0
  %v259 = vsel %vm251, %v222, 0
  %v262 = vsel %vm251, %v223, 0
  %v265 = vsel %vm251, %v224, 0
  %v268 = vsel %vm251, %v225, 0
  %v271 = vsel %vm251, %v226, 0
  %v274 = vsel %vm251, %v227, 0
  %276 = vmatprep.subr.bf16.mxu0 0
  %277 = vmatpush1.bf16.msra.mxu0 %v247
  %278 = vmatprep.subr.bf16.mxu0 0
  %279 = vmatpush1.bf16.msra.mxu0 %v248
  %280 = vmatprep.subr.bf16.mxu0 0
  %281 = vmatpush1.bf16.msra.mxu0 0
  %282 = vmatprep.subr.bf16.mxu0 0
  %283 = vmatpush1.bf16.msra.mxu0 0
  %284 = vmatprep.subr.bf16.mxu0 0
  %285 = vmatpush1.bf16.msra.mxu0 0
  %286 = vmatprep.subr.bf16.mxu0 0
  %287 = vmatpush1.bf16.msra.mxu0 0
  %288 = vmatprep.subr.bf16.mxu0 0
  %289 = vmatpush1.bf16.msra.mxu0 0
  %290 = vmatprep.subr.bf16.mxu0 0
  %291 = vmatpush1.bf16.msra.mxu0 0
  %292 = vmatprep.subr.bf16.mxu0 0
  %293 = vmatpush1.bf16.msra.mxu0 0
  %294 = vmatprep.subr.bf16.mxu0 0
  %295 = vmatpush1.bf16.msra.mxu0 0
  %296 = vmatprep.subr.bf16.mxu0 0
  %297 = vmatpush1.bf16.msra.mxu0 0
  %298 = vmatprep.subr.bf16.mxu0 0
  %299 = vmatpush1.bf16.msra.mxu0 0
  %300 = vmatprep.subr.bf16.mxu0 0
  %301 = vmatpush1.bf16.msra.mxu0 0
  %302 = vmatprep.subr.bf16.mxu0 0
  %303 = vmatpush1.bf16.msra.mxu0 0
  %304 = vmatprep.subr.bf16.mxu0 0
  %305 = vmatpush1.bf16.msra.mxu0 0
  %306 = vmatprep.subr.bf16.mxu0 0
  %307 = vmatpush1.bf16.msra.mxu0 0
  %308 = vmatprep.mubr.bf16.mxu0 0
  %309 = vmatmul.mubr.bf16.gmra.mrb[0].mxu0 %v253
  %v310 = vpop.f32.mrb[0].mxu0
  %v311 = vadd.f32 %v237, %v310
  %v312 = vpop.f32.mrb[0].mxu0
  %v313 = vpop.f32.mrb[0].mxu0
  %v314 = vadd.f32 %v237, %v313
  %v315 = vpop.f32.mrb[0].mxu0
  %316 = vmatprep.mubr.bf16.mxu0 0
  %317 = vmatmul.mubr.bf16.gmra.mrb[0].mxu0 %v256
  %v318 = vpop.f32.mrb[0].mxu0
  %v319 = vadd.f32 %v237, %v318
  %v320 = vpop.f32.mrb[0].mxu0
  %v321 = vpop.f32.mrb[0].mxu0
  %v322 = vadd.f32 %v237, %v321
  %v323 = vpop.f32.mrb[0].mxu0
  %324 = vmatprep.mubr.bf16.mxu0 0
  %325 = vmatmul.mubr.bf16.gmra.mrb[0].mxu0 %v259
  %v326 = vpop.f32.mrb[0].mxu0
  %v327 = vadd.f32 %v237, %v326
  %v328 = vpop.f32.mrb[0].mxu0
  %v329 = vpop.f32.mrb[0].mxu0
  %v330 = vadd.f32 %v237, %v329
  %v331 = vpop.f32.mrb[0].mxu0
  %332 = vmatprep.mubr.bf16.mxu0 0
  %333 = vmatmul.mubr.bf16.gmra.mrb[0].mxu0 %v262
  %v334 = vpop.f32.mrb[0].mxu0
  %v335 = vadd.f32 %v237, %v334
  %v336 = vpop.f32.mrb[0].mxu0
  %v337 = vpop.f32.mrb[0].mxu0
  %v338 = vadd.f32 %v237, %v337
  %v339 = vpop.f32.mrb[0].mxu0
  %340 = vmatprep.mubr.bf16.mxu0 0
  %341 = vmatmul.mubr.bf16.gmra.mrb[0].mxu0 %v265
  %v342 = vpop.f32.mrb[0].mxu0
  %v343 = vadd.f32 %v237, %v342
  %v344 = vpop.f32.mrb[0].mxu0
  %v345 = vpop.f32.mrb[0].mxu0
  %v346 = vadd.f32 %v237, %v345
  %v347 = vpop.f32.mrb[0].mxu0
  %348 = vmatprep.mubr.bf16.mxu0 0
  %349 = vmatmul.mubr.bf16.gmra.mrb[0].mxu0 %v268
  %v350 = vpop.f32.mrb[0].mxu0
  %v351 = vadd.f32 %v237, %v350
  %v352 = vpop.f32.mrb[0].mxu0
  %v353 = vpop.f32.mrb[0].mxu0
  %v354 = vadd.f32 %v237, %v353
  %v355 = vpop.f32.mrb[0].mxu0
  %356 = vmatprep.mubr.bf16.mxu0 0
  %357 = vmatmul.mubr.bf16.gmra.mrb[0].mxu0 %v271
  %v358 = vpop.f32.mrb[0].mxu0
  %v359 = vadd.f32 %v237, %v358
  %v360 = vpop.f32.mrb[0].mxu0
  %v361 = vpop.f32.mrb[0].mxu0
  %v362 = vadd.f32 %v237, %v361
  %v363 = vpop.f32.mrb[0].mxu0
  %364 = vmatprep.mubr.bf16.mxu0 0
  %365 = vmatmul.mubr.bf16.gmra.mrb[0].mxu0 %v274
  %v366 = vpop.f32.mrb[0].mxu0
  %v367 = vadd.f32 %v237, %v366
  %v368 = vpop.f32.mrb[0].mxu0
  %v369 = vpop.f32.mrb[0].mxu0
  %v370 = vadd.f32 %v237, %v369
  %v371 = vpop.f32.mrb[0].mxu0
  %372 = vdwg.mxu0
  %v373 = vld [vmem:[%s1] sm:$0xff]
  %v374 = vld [vmem:[%s1 + $0x8] sm:$0xff]
  %v375 = vld [vmem:[%s1 + $0x10] sm:$0xff]
  %v376 = vld [vmem:[%s1 + $0x18] sm:$0xff]
  %v377 = vld [vmem:[%s1 + $0x20] sm:$0xff]
  %v378 = vld [vmem:[%s1 + $0x28] sm:$0xff]
  %v379 = vld [vmem:[%s1 + $0x30] sm:$0xff]
  %v380 = vld [vmem:[%s1 + $0x38] sm:$0xff]
  %v381 = vld [vmem:[%s1 + $0x40] sm:$0xff]
  %v382 = vld [vmem:[%s1 + $0x48] sm:$0xff]
  %v383 = vld [vmem:[%s1 + $0x50] sm:$0xff]
  %v384 = vld [vmem:[%s1 + $0x58] sm:$0xff]
  %v385 = vld [vmem:[%s1 + $0x60] sm:$0xff]
  %v386 = vld [vmem:[%s1 + $0x68] sm:$0xff]
  %v387 = vld [vmem:[%s1 + $0x70] sm:$0xff]
  %v388 = vld [vmem:[%s1 + $0x78] sm:$0xff]
  %vm389 = vcmp.gt.f32.partialorder %v373, 0.0
  %vm390 = vcmp.gt.f32.partialorder %v374, 0.0
  %vm391 = vcmp.gt.f32.partialorder %v375, 0.0
  %vm392 = vcmp.gt.f32.partialorder %v376, 0.0
  %vm393 = vcmp.gt.f32.partialorder %v377, 0.0
  %vm394 = vcmp.gt.f32.partialorder %v378, 0.0
  %vm395 = vcmp.gt.f32.partialorder %v379, 0.0
  %vm396 = vcmp.gt.f32.partialorder %v380, 0.0
  %vm397 = vcmp.gt.f32.partialorder %v381, 0.0
  %vm398 = vcmp.gt.f32.partialorder %v382, 0.0
  %vm399 = vcmp.gt.f32.partialorder %v383, 0.0
  %vm400 = vcmp.gt.f32.partialorder %v384, 0.0
  %vm401 = vcmp.gt.f32.partialorder %v385, 0.0
  %vm402 = vcmp.gt.f32.partialorder %v386, 0.0
  %vm403 = vcmp.gt.f32.partialorder %v387, 0.0
  %vm404 = vcmp.gt.f32.partialorder %v388, 0.0
  %v405 = vsel %vm389, 1, 0
  %v406 = vsel %vm390, 1, 0
  %v407 = vsel %vm391, 1, 0
  %v408 = vsel %vm392, 1, 0
  %v409 = vsel %vm393, 1, 0
  %v410 = vsel %vm394, 1, 0
  %v411 = vsel %vm395, 1, 0
  %v412 = vsel %vm396, 1, 0
  %v413 = vsel %vm397, 1, 0
  %v414 = vsel %vm398, 1, 0
  %v415 = vsel %vm399, 1, 0
  %v416 = vsel %vm400, 1, 0
  %v417 = vsel %vm401, 1, 0
  %v418 = vsel %vm402, 1, 0
  %v419 = vsel %vm403, 1, 0
  %v420 = vsel %vm404, 1, 0
  %421 = vset.pattern.permute.xlu0 0
  %422 = vperm.xlu0 %421, %v405
  %v423 = vpop.permute.xlu0 %422
  %424 = vset.pattern.permute.xlu0 0
  %425 = vperm.xlu0 %424, %v406
  %v426 = vpop.permute.xlu0 %425
  %427 = vset.pattern.permute.xlu0 0
  %428 = vperm.xlu0 %427, %v407
  %v429 = vpop.permute.xlu0 %428
  %430 = vset.pattern.permute.xlu0 0
  %431 = vperm.xlu0 %430, %v408
  %v432 = vpop.permute.xlu0 %431
  %433 = vset.pattern.permute.xlu0 0
  %434 = vperm.xlu0 %433, %v409
  %v435 = vpop.permute.xlu0 %434
  %436 = vset.pattern.permute.xlu0 0
  %437 = vperm.xlu0 %436, %v410
  %v438 = vpop.permute.xlu0 %437
  %439 = vset.pattern.permute.xlu0 0
  %440 = vperm.xlu0 %439, %v411
  %v441 = vpop.permute.xlu0 %440
  %442 = vset.pattern.permute.xlu0 0
  %443 = vperm.xlu0 %442, %v412
  %v444 = vpop.permute.xlu0 %443
  %445 = vset.pattern.permute.xlu0 0
  %446 = vperm.xlu0 %445, %v413
  %v447 = vpop.permute.xlu0 %446
  %448 = vset.pattern.permute.xlu0 0
  %449 = vperm.xlu0 %448, %v414
  %v450 = vpop.permute.xlu0 %449
  %451 = vset.pattern.permute.xlu0 0
  %452 = vperm.xlu0 %451, %v415
  %v453 = vpop.permute.xlu0 %452
  %454 = vset.pattern.permute.xlu0 0
  %455 = vperm.xlu0 %454, %v416
  %v456 = vpop.permute.xlu0 %455
  %457 = vset.pattern.permute.xlu0 0
  %458 = vperm.xlu0 %457, %v417
  %v459 = vpop.permute.xlu0 %458
  %460 = vset.pattern.permute.xlu0 0
  %461 = vperm.xlu0 %460, %v418
  %v462 = vpop.permute.xlu0 %461
  %463 = vset.pattern.permute.xlu0 0
  %464 = vperm.xlu0 %463, %v419
  %v465 = vpop.permute.xlu0 %464
  %466 = vset.pattern.permute.xlu0 0
  %467 = vperm.xlu0 %466, %v420
  %v468 = vpop.permute.xlu0 %467
  %vm469 = vcmp.eq.s32.totalorder %v423, 1
  %vm470 = vcmp.eq.s32.totalorder %v426, 1
  %vm471 = vcmp.eq.s32.totalorder %v429, 1
  %vm472 = vcmp.eq.s32.totalorder %v432, 1
  %vm473 = vcmp.eq.s32.totalorder %v435, 1
  %vm474 = vcmp.eq.s32.totalorder %v438, 1
  %vm475 = vcmp.eq.s32.totalorder %v441, 1
  %vm476 = vcmp.eq.s32.totalorder %v444, 1
  %vm477 = vcmp.eq.s32.totalorder %v447, 1
  %vm478 = vcmp.eq.s32.totalorder %v450, 1
  %vm479 = vcmp.eq.s32.totalorder %v453, 1
  %vm480 = vcmp.eq.s32.totalorder %v456, 1
  %vm481 = vcmp.eq.s32.totalorder %v459, 1
  %vm482 = vcmp.eq.s32.totalorder %v462, 1
  %vm483 = vcmp.eq.s32.totalorder %v465, 1
  %vm484 = vcmp.eq.s32.totalorder %v468, 1
  %v485 = vsel %vm469, %v311, -1e+30
  %v486 = vsel %vm470, %v314, -1e+30
  %v487 = vsel %vm471, %v319, -1e+30
  %v488 = vsel %vm472, %v322, -1e+30
  %v489 = vsel %vm473, %v327, -1e+30
  %v490 = vsel %vm474, %v330, -1e+30
  %v491 = vsel %vm475, %v335, -1e+30
  %v492 = vsel %vm476, %v338, -1e+30
  %v493 = vsel %vm477, %v343, -1e+30
  %v494 = vsel %vm478, %v346, -1e+30
  %v495 = vsel %vm479, %v351, -1e+30
  %v496 = vsel %vm480, %v354, -1e+30
  %v497 = vsel %vm481, %v359, -1e+30
  %v498 = vsel %vm482, %v362, -1e+30
  %v499 = vsel %vm483, %v367, -1e+30
  %v500 = vsel %vm484, %v370, -1e+30
  %vm501 = vcmask 523264
  %v502 = vsel %vm501, %v485, -inf
  %v503 = vsel %vm501, %v486, -inf
  %v504 = vmax.f32 %v502, %v503
  %v505 = vrot.slane %v504, 4
  %v506 = vmax.f32 %v504, %v505
  %v507 = vrot.slane %v506, 2
  %v508 = vmax.f32 %v506, %v507
  %v509 = vrot.slane %v508, 1
  %v510 = vmax.f32 %v508, %v509
  %v511 = vsel %vm501, %v487, -inf
  %v512 = vsel %vm501, %v488, -inf
  %v513 = vmax.f32 %v511, %v512
  %v514 = vrot.slane %v513, 4
  %v515 = vmax.f32 %v513, %v514
  %v516 = vrot.slane %v515, 2
  %v517 = vmax.f32 %v515, %v516
  %v518 = vrot.slane %v517, 1
  %v519 = vmax.f32 %v517, %v518
  %v520 = vsel %vm501, %v489, -inf
  %v521 = vsel %vm501, %v490, -inf
  %v522 = vmax.f32 %v520, %v521
  %v523 = vrot.slane %v522, 4
  %v524 = vmax.f32 %v522, %v523
  %v525 = vrot.slane %v524, 2
  %v526 = vmax.f32 %v524, %v525
  %v527 = vrot.slane %v526, 1
  %v528 = vmax.f32 %v526, %v527
  %v529 = vsel %vm501, %v491, -inf
  %v530 = vsel %vm501, %v492, -inf
  %v531 = vmax.f32 %v529, %v530
  %v532 = vrot.slane %v531, 4
  %v533 = vmax.f32 %v531, %v532
  %v534 = vrot.slane %v533, 2
  %v535 = vmax.f32 %v533, %v534
  %v536 = vrot.slane %v535, 1
  %v537 = vmax.f32 %v535, %v536
  %v538 = vsel %vm501, %v493, -inf
  %v539 = vsel %vm501, %v494, -inf
  %v540 = vmax.f32 %v538, %v539
  %v541 = vrot.slane %v540, 4
  %v542 = vmax.f32 %v540, %v541
  %v543 = vrot.slane %v542, 2
  %v544 = vmax.f32 %v542, %v543
  %v545 = vrot.slane %v544, 1
  %v546 = vmax.f32 %v544, %v545
  %v547 = vsel %vm501, %v495, -inf
  %v548 = vsel %vm501, %v496, -inf
  %v549 = vmax.f32 %v547, %v548
  %v550 = vrot.slane %v549, 4
  %v551 = vmax.f32 %v549, %v550
  %v552 = vrot.slane %v551, 2
  %v553 = vmax.f32 %v551, %v552
  %v554 = vrot.slane %v553, 1
  %v555 = vmax.f32 %v553, %v554
  %v556 = vsel %vm501, %v497, -inf
  %v557 = vsel %vm501, %v498, -inf
  %v558 = vmax.f32 %v556, %v557
  %v559 = vrot.slane %v558, 4
  %v560 = vmax.f32 %v558, %v559
  %v561 = vrot.slane %v560, 2
  %v562 = vmax.f32 %v560, %v561
  %v563 = vrot.slane %v562, 1
  %v564 = vmax.f32 %v562, %v563
  %v565 = vsel %vm501, %v499, -inf
  %v566 = vsel %vm501, %v500, -inf
  %v567 = vmax.f32 %v565, %v566
  %v568 = vrot.slane %v567, 4
  %v569 = vmax.f32 %v567, %v568
  %v570 = vrot.slane %v569, 2
  %v571 = vmax.f32 %v569, %v570
  %v572 = vrot.slane %v571, 1
  %v573 = vmax.f32 %v571, %v572
  %vm574 = vcmask 7168
  %v575 = vsel %vm574, %v373, -inf
  %v576 = vsel %vm574, %v374, -inf
  %v577 = vmax.f32 %v575, %v576
  %v578 = vrot.slane %v577, 4
  %v579 = vmax.f32 %v577, %v578
  %v580 = vrot.slane %v579, 2
  %v581 = vmax.f32 %v579, %v580
  %v582 = vrot.slane %v581, 1
  %v583 = vmax.f32 %v581, %v582
  %v584 = vsel %vm574, %v375, -inf
  %v585 = vsel %vm574, %v376, -inf
  %v586 = vmax.f32 %v584, %v585
  %v587 = vrot.slane %v586, 4
  %v588 = vmax.f32 %v586, %v587
  %v589 = vrot.slane %v588, 2
  %v590 = vmax.f32 %v588, %v589
  %v591 = vrot.slane %v590, 1
  %v592 = vmax.f32 %v590, %v591
  %v593 = vsel %vm574, %v377, -inf
  %v594 = vsel %vm574, %v378, -inf
  %v595 = vmax.f32 %v593, %v594
  %v596 = vrot.slane %v595, 4
  %v597 = vmax.f32 %v595, %v596
  %v598 = vrot.slane %v597, 2
  %v599 = vmax.f32 %v597, %v598
  %v600 = vrot.slane %v599, 1
  %v601 = vmax.f32 %v599, %v600
  %v602 = vsel %vm574, %v379, -inf
  %v603 = vsel %vm574, %v380, -inf
  %v604 = vmax.f32 %v602, %v603
  %v605 = vrot.slane %v604, 4
  %v606 = vmax.f32 %v604, %v605
  %v607 = vrot.slane %v606, 2
  %v608 = vmax.f32 %v606, %v607
  %v609 = vrot.slane %v608, 1
  %v610 = vmax.f32 %v608, %v609
  %v611 = vsel %vm574, %v381, -inf
  %v612 = vsel %vm574, %v382, -inf
  %v613 = vmax.f32 %v611, %v612
  %v614 = vrot.slane %v613, 4
  %v615 = vmax.f32 %v613, %v614
  %v616 = vrot.slane %v615, 2
  %v617 = vmax.f32 %v615, %v616
  %v618 = vrot.slane %v617, 1
  %v619 = vmax.f32 %v617, %v618
  %v620 = vsel %vm574, %v383, -inf
  %v621 = vsel %vm574, %v384, -inf
  %v622 = vmax.f32 %v620, %v621
  %v623 = vrot.slane %v622, 4
  %v624 = vmax.f32 %v622, %v623
  %v625 = vrot.slane %v624, 2
  %v626 = vmax.f32 %v624, %v625
  %v627 = vrot.slane %v626, 1
  %v628 = vmax.f32 %v626, %v627
  %v629 = vsel %vm574, %v385, -inf
  %v630 = vsel %vm574, %v386, -inf
  %v631 = vmax.f32 %v629, %v630
  %v632 = vrot.slane %v631, 4
  %v633 = vmax.f32 %v631, %v632
  %v634 = vrot.slane %v633, 2
  %v635 = vmax.f32 %v633, %v634
  %v636 = vrot.slane %v635, 1
  %v637 = vmax.f32 %v635, %v636
  %v638 = vsel %vm574, %v387, -inf
  %v639 = vsel %vm574, %v388, -inf
  %v640 = vmax.f32 %v638, %v639
  %v641 = vrot.slane %v640, 4
  %v642 = vmax.f32 %v640, %v641
  %v643 = vrot.slane %v642, 2
  %v644 = vmax.f32 %v642, %v643
  %v645 = vrot.slane %v644, 1
  %v646 = vmax.f32 %v644, %v645
  %vm647 = vcmp.gt.f32.partialorder %v583, 0.0
  %vm648 = vcmp.gt.f32.partialorder %v592, 0.0
  %vm649 = vcmp.gt.f32.partialorder %v601, 0.0
  %vm650 = vcmp.gt.f32.partialorder %v610, 0.0
  %vm651 = vcmp.gt.f32.partialorder %v619, 0.0
  %vm652 = vcmp.gt.f32.partialorder %v628, 0.0
  %vm653 = vcmp.gt.f32.partialorder %v637, 0.0
  %vm654 = vcmp.gt.f32.partialorder %v646, 0.0
  %v655 = vsel %vm647, 1, 0
  %v656 = vsel %vm648, 1, 0
  %v657 = vsel %vm649, 1, 0
  %v658 = vsel %vm650, 1, 0
  %v659 = vsel %vm651, 1, 0
  %v660 = vsel %vm652, 1, 0
  %v661 = vsel %vm653, 1, 0
  %v662 = vsel %vm654, 1, 0
  %663 = vset.pattern.permute.xlu0 0
  %664 = vperm.xlu0 %663, %v655
  %v665 = vpop.permute.xlu0 %664
  %666 = vset.pattern.permute.xlu0 0
  %667 = vperm.xlu0 %666, %v656
  %v668 = vpop.permute.xlu0 %667
  %669 = vset.pattern.permute.xlu0 0
  %670 = vperm.xlu0 %669, %v657
  %v671 = vpop.permute.xlu0 %670
  %672 = vset.pattern.permute.xlu0 0
  %673 = vperm.xlu0 %672, %v658
  %v674 = vpop.permute.xlu0 %673
  %675 = vset.pattern.permute.xlu0 0
  %676 = vperm.xlu0 %675, %v659
  %v677 = vpop.permute.xlu0 %676
  %678 = vset.pattern.permute.xlu0 0
  %679 = vperm.xlu0 %678, %v660
  %v680 = vpop.permute.xlu0 %679
  %681 = vset.pattern.permute.xlu0 0
  %682 = vperm.xlu0 %681, %v661
  %v683 = vpop.permute.xlu0 %682
  %684 = vset.pattern.permute.xlu0 0
  %685 = vperm.xlu0 %684, %v662
  %v686 = vpop.permute.xlu0 %685
  %vm687 = vcmp.eq.s32.totalorder %v665, 1
  %vm688 = vcmp.eq.s32.totalorder %v668, 1
  %vm689 = vcmp.eq.s32.totalorder %v671, 1
  %vm690 = vcmp.eq.s32.totalorder %v674, 1
  %vm691 = vcmp.eq.s32.totalorder %v677, 1
  %vm692 = vcmp.eq.s32.totalorder %v680, 1
  %vm693 = vcmp.eq.s32.totalorder %v683, 1
  %vm694 = vcmp.eq.s32.totalorder %v686, 1
  %v695 = vsel %vm687, %v510, 0.0
  %v696 = vsel %vm688, %v519, 0.0
  %v697 = vsel %vm689, %v528, 0.0
  %v698 = vsel %vm690, %v537, 0.0
  %v699 = vsel %vm691, %v546, 0.0
  %v700 = vsel %vm692, %v555, 0.0
  %v701 = vsel %vm693, %v564, 0.0
  %v702 = vsel %vm694, %v573, 0.0
  %vm711 = vcmask 1041409
  %v712 = vsel %vm711, %v696, %v695
  %vm713 = vcmask 1042434
  %v714 = vsel %vm713, %v697, %v712
  %vm715 = vcmask 1043459
  %v716 = vsel %vm715, %v698, %v714
  %vm717 = vcmask 1044484
  %v718 = vsel %vm717, %v699, %v716
  %vm719 = vcmask 1045509
  %v720 = vsel %vm719, %v700, %v718
  %vm721 = vcmask 1046534
  %v722 = vsel %vm721, %v701, %v720
  %vm723 = vcmask 1047559
  %v724 = vsel %vm723, %v702, %v722
  %726 = vst.msk [vmem:[%s6] sm:$0xff] %vm501, %v724
  // Predicated region
  $region26: #{matcher_device.9} parent=0 // pred_check
    _
  $region27: #{matcher_device.9} parent=0 // pred_check_branch
    %728 = sbr.rel (0) target = $region29
  $region28: #{matcher_device.9} parent=0 // pred_region
    _
  $region29: #{matcher_device.9} parent=0 // pred_fallthru
    _
  // Predicated region
  $region30: #{matcher_device.9} parent=0 // pred_check
    _
  $region31: #{matcher_device.9} parent=0 // pred_check_branch
    %730 = sbr.rel (0) target = $region33
  $region32: #{matcher_device.9} parent=0 // pred_region
    _
  $region33: #{matcher_device.9} parent=0 // pred_fallthru
    _

// kernel: matcher_device.11
$region0: #{matcher_device.11}
  #allocation0 [shape = 'u32[]', space=smem, size = 0x4, offset = 0x4, fixed_abs, tag = 'smem constant byte address 0x4 - core index']
  #allocation1 [shape = 'u32[144,128]{1,0:T(1,128)}', space=vmem, size = 0x12000, scoped, tag = 'internal scratch']
  %s0 = inlined_call_operand.vmem [shape: f32[26,96], index: 0, kind: input, shape index: {}]
  %s1 = inlined_call_operand.vmem [shape: bf16[96,32], index: 1, kind: input, shape index: {}]
  %s2 = inlined_call_operand.vmem [shape: f32[1,32], index: 2, kind: input, shape index: {}]
  %s3 = inlined_call_operand.vmem [shape: bf16[32,32], index: 3, kind: input, shape index: {}]
  %s4 = inlined_call_operand.vmem [shape: f32[1,32], index: 4, kind: input, shape index: {}]
  %s5 = inlined_call_operand.vmem [shape: f32[26,32], index: 5, kind: output, shape index: {}]
  %s6 = sld [smem:[#allocation0]]
  $region30: #{matcher_device.11} parent=0
    _
  %s8 = ssub.s32 1, %s6
  %s9 = scalar_select 0, %s8, %s6
  // Predicated region
  $region2: #{matcher_device.11} parent=0 // pred_check
    _
  $region3: #{matcher_device.11} parent=0 // pred_check_branch
    %11 = sbr.rel (0) target = $region5
  $region4: #{matcher_device.11} parent=0 // pred_region
    _
  $region5: #{matcher_device.11} parent=0 // pred_fallthru
    _
  // Predicated region
  $region6: #{matcher_device.11} parent=0 // pred_check
    _
  $region7: #{matcher_device.11} parent=0 // pred_check_branch
    %13 = sbr.rel (0) target = $region9
  $region8: #{matcher_device.11} parent=0 // pred_region
    _
  $region9: #{matcher_device.11} parent=0 // pred_fallthru
    _
  // Predicated region
  $region10: #{matcher_device.11} parent=0 // pred_check
    _
  $region11: #{matcher_device.11} parent=0 // pred_check_branch
    %15 = sbr.rel (0) target = $region13
  $region12: #{matcher_device.11} parent=0 // pred_region
    _
  $region13: #{matcher_device.11} parent=0 // pred_fallthru
    _
  // Predicated region
  $region14: #{matcher_device.11} parent=0 // pred_check
    _
  $region15: #{matcher_device.11} parent=0 // pred_check_branch
    %17 = sbr.rel (0) target = $region17
  $region16: #{matcher_device.11} parent=0 // pred_region
    _
  $region17: #{matcher_device.11} parent=0 // pred_fallthru
    _
  // Predicated region
  $region18: #{matcher_device.11} parent=0 // pred_check
    _
  $region19: #{matcher_device.11} parent=0 // pred_check_branch
    %19 = sbr.rel (0) target = $region21
  $region20: #{matcher_device.11} parent=0 // pred_region
    _
  $region21: #{matcher_device.11} parent=0 // pred_fallthru
    _
  %v21 = vld [vmem:[%s0] sm:$0xff]
  %v22 = vld [vmem:[%s0 + $0x8] sm:$0xff]
  %v23 = vld [vmem:[%s0 + $0x10] sm:$0xff]
  %v24 = vld [vmem:[%s0 + $0x18] sm:$0x3]
  %v25 = vpack.c.bf16 %v22, %v21
  %v26 = vpack.c.bf16 %v24, %v23
  %v27 = vld [vmem:[%s1] sm:$0xf]
  %v28 = vld [vmem:[%s1 + $0x4] sm:$0xf]
  %v29 = vld [vmem:[%s1 + $0x8] sm:$0xf]
  %v30 = vld [vmem:[%s1 + $0xc] sm:$0xf]
  %v31 = vld [vmem:[%s1 + $0x10] sm:$0xf]
  %v32 = vld [vmem:[%s1 + $0x14] sm:$0xf]
  %v33 = vld [vmem:[%s1 + $0x18] sm:$0xf]
  %v34 = vld [vmem:[%s1 + $0x1c] sm:$0xf]
  %v35 = vld [vmem:[%s1 + $0x20] sm:$0xf]
  %v36 = vld [vmem:[%s1 + $0x24] sm:$0xf]
  %v37 = vld [vmem:[%s1 + $0x28] sm:$0xf]
  %v38 = vld [vmem:[%s1 + $0x2c] sm:$0xf]
  %v39 = vld [vmem:[%s2] sm:$0x1]
  %v41 = vlaneseq
  %v42 = vshrl.u32 %v41, 7
  %v43 = vsub.s32 0, %v42
  %v44 = vrot.slane %v39, %v43
  %v58 = vunpack.c.l.b16 %v27
  %v59 = vunpack.c.l.b16 %v28
  %v60 = vunpack.c.l.b16 %v29
  %v61 = vunpack.c.l.b16 %v30
  %v62 = vunpack.c.l.b16 %v31
  %v63 = vunpack.c.l.b16 %v32
  %v64 = vunpack.c.l.b16 %v33
  %v65 = vunpack.c.l.b16 %v34
  %v66 = vunpack.c.l.b16 %v35
  %v67 = vunpack.c.l.b16 %v36
  %v68 = vunpack.c.l.b16 %v37
  %v69 = vunpack.c.l.b16 %v38
  %v70 = vpack.c.b16 %v59, %v58
  %v71 = vpack.c.b16 %v61, %v60
  %v72 = vpack.c.b16 %v63, %v62
  %v73 = vpack.c.b16 %v65, %v64
  %v74 = vpack.c.b16 %v67, %v66
  %v75 = vpack.c.b16 %v69, %v68
  %vm82 = vcmask 785408
  %v84 = vsel %vm82, %v25, 0
  %v87 = vsel %vm82, %v26, 0
  %89 = vmatprep.subr.bf16.mxu0 0
  %90 = vmatpush1.bf16.msra.mxu0 %v70
  %91 = vmatprep.subr.bf16.mxu0 0
  %92 = vmatpush1.bf16.msra.mxu0 %v71
  %93 = vmatprep.subr.bf16.mxu0 0
  %94 = vmatpush1.bf16.msra.mxu0 %v72
  %95 = vmatprep.subr.bf16.mxu0 0
  %96 = vmatpush1.bf16.msra.mxu0 %v73
  %97 = vmatprep.subr.bf16.mxu0 0
  %98 = vmatpush1.bf16.msra.mxu0 %v74
  %99 = vmatprep.subr.bf16.mxu0 0
  %100 = vmatpush1.bf16.msra.mxu0 %v75
  %101 = vmatprep.subr.bf16.mxu0 0
  %102 = vmatpush1.bf16.msra.mxu0 0
  %103 = vmatprep.subr.bf16.mxu0 0
  %104 = vmatpush1.bf16.msra.mxu0 0
  %105 = vmatprep.subr.bf16.mxu0 0
  %106 = vmatpush1.bf16.msra.mxu0 0
  %107 = vmatprep.subr.bf16.mxu0 0
  %108 = vmatpush1.bf16.msra.mxu0 0
  %109 = vmatprep.subr.bf16.mxu0 0
  %110 = vmatpush1.bf16.msra.mxu0 0
  %111 = vmatprep.subr.bf16.mxu0 0
  %112 = vmatpush1.bf16.msra.mxu0 0
  %113 = vmatprep.subr.bf16.mxu0 0
  %114 = vmatpush1.bf16.msra.mxu0 0
  %115 = vmatprep.subr.bf16.mxu0 0
  %116 = vmatpush1.bf16.msra.mxu0 0
  %117 = vmatprep.subr.bf16.mxu0 0
  %118 = vmatpush1.bf16.msra.mxu0 0
  %119 = vmatprep.subr.bf16.mxu0 0
  %120 = vmatpush1.bf16.msra.mxu0 0
  %121 = vmatprep.mubr.bf16.mxu0 0
  %122 = vmatmul.mubr.bf16.gmra.mrb[0].mxu0 %v84
  %v123 = vpop.f32.mrb[0].mxu0
  %v124 = vadd.f32 %v44, %v123
  %v125 = vpop.f32.mrb[0].mxu0
  %v126 = vpop.f32.mrb[0].mxu0
  %v127 = vadd.f32 %v44, %v126
  %v128 = vpop.f32.mrb[0].mxu0
  %129 = vmatprep.mubr.bf16.mxu0 0
  %130 = vmatmul.mubr.bf16.gmra.mrb[0].mxu0 %v87
  %v131 = vpop.f32.mrb[0].mxu0
  %v132 = vadd.f32 %v44, %v131
  %v133 = vpop.f32.mrb[0].mxu0
  %v134 = vpop.f32.mrb[0].mxu0
  %v135 = vadd.f32 %v44, %v134
  %v136 = vpop.f32.mrb[0].mxu0
  %137 = vdwg.mxu0
  %v138 = vmax.f32 %v124, 0.0
  %v139 = vmax.f32 %v127, 0.0
  %v140 = vmax.f32 %v132, 0.0
  %v141 = vmax.f32 %v135, 0.0
  %v142 = vpack.c.bf16 %v139, %v138
  %v143 = vpack.c.bf16 %v141, %v140
  %v144 = vld [vmem:[%s3] sm:$0xf]
  %v145 = vld [vmem:[%s3 + $0x4] sm:$0xf]
  %v146 = vld [vmem:[%s3 + $0x8] sm:$0xf]
  %v147 = vld [vmem:[%s3 + $0xc] sm:$0xf]
  %v148 = vld [vmem:[%s4] sm:$0x1]
  %v150 = vlaneseq
  %v151 = vshrl.u32 %v150, 7
  %v152 = vsub.s32 0, %v151
  %v153 = vrot.slane %v148, %v152
  %v159 = vunpack.c.l.b16 %v144
  %v160 = vunpack.c.l.b16 %v145
  %v161 = vunpack.c.l.b16 %v146
  %v162 = vunpack.c.l.b16 %v147
  %v163 = vpack.c.b16 %v160, %v159
  %v164 = vpack.c.b16 %v162, %v161
  %vm167 = vcmask 261120
  %v169 = vsel %vm167, %v142, 0
  %v172 = vsel %vm167, %v143, 0
  %174 = vmatprep.subr.bf16.mxu0 0
  %175 = vmatpush1.bf16.msra.mxu0 %v163
  %176 = vmatprep.subr.bf16.mxu0 0
  %177 = vmatpush1.bf16.msra.mxu0 %v164
  %178 = vmatprep.subr.bf16.mxu0 0
  %179 = vmatpush1.bf16.msra.mxu0 0
  %180 = vmatprep.subr.bf16.mxu0 0
  %181 = vmatpush1.bf16.msra.mxu0 0
  %182 = vmatprep.subr.bf16.mxu0 0
  %183 = vmatpush1.bf16.msra.mxu0 0
  %184 = vmatprep.subr.bf16.mxu0 0
  %185 = vmatpush1.bf16.msra.mxu0 0
  %186 = vmatprep.subr.bf16.mxu0 0
  %187 = vmatpush1.bf16.msra.mxu0 0
  %188 = vmatprep.subr.bf16.mxu0 0
  %189 = vmatpush1.bf16.msra.mxu0 0
  %190 = vmatprep.subr.bf16.mxu0 0
  %191 = vmatpush1.bf16.msra.mxu0 0
  %192 = vmatprep.subr.bf16.mxu0 0
  %193 = vmatpush1.bf16.msra.mxu0 0
  %194 = vmatprep.subr.bf16.mxu0 0
  %195 = vmatpush1.bf16.msra.mxu0 0
  %196 = vmatprep.subr.bf16.mxu0 0
  %197 = vmatpush1.bf16.msra.mxu0 0
  %198 = vmatprep.subr.bf16.mxu0 0
  %199 = vmatpush1.bf16.msra.mxu0 0
  %200 = vmatprep.subr.bf16.mxu0 0
  %201 = vmatpush1.bf16.msra.mxu0 0
  %202 = vmatprep.subr.bf16.mxu0 0
  %203 = vmatpush1.bf16.msra.mxu0 0
  %204 = vmatprep.subr.bf16.mxu0 0
  %205 = vmatpush1.bf16.msra.mxu0 0
  %206 = vmatprep.mubr.bf16.mxu0 0
  %207 = vmatmul.mubr.bf16.gmra.mrb[0].mxu0 %v169
  %v208 = vpop.f32.mrb[0].mxu0
  %v209 = vadd.f32 %v153, %v208
  %v210 = vpop.f32.mrb[0].mxu0
  %v211 = vpop.f32.mrb[0].mxu0
  %v212 = vadd.f32 %v153, %v211
  %v213 = vpop.f32.mrb[0].mxu0
  %214 = vmatprep.mubr.bf16.mxu0 0
  %215 = vmatmul.mubr.bf16.gmra.mrb[0].mxu0 %v172
  %v216 = vpop.f32.mrb[0].mxu0
  %v217 = vadd.f32 %v153, %v216
  %v218 = vpop.f32.mrb[0].mxu0
  %v219 = vpop.f32.mrb[0].mxu0
  %v220 = vadd.f32 %v153, %v219
  %v221 = vpop.f32.mrb[0].mxu0
  %222 = vdwg.mxu0
  %223 = vst.msk [vmem:[%s5] sm:$0xff] %vm167, %v209
  %224 = vst.msk [vmem:[%s5 + $0x8] sm:$0xff] %vm167, %v212
  %225 = vst.msk [vmem:[%s5 + $0x10] sm:$0xff] %vm167, %v217
  %vm226 = vcmask 254976
  %227 = vst.msk [vmem:[%s5 + $0x18] sm:$0x3] %vm226, %v220
  // Predicated region
  $region22: #{matcher_device.11} parent=0 // pred_check
    _
  $region23: #{matcher_device.11} parent=0 // pred_check_branch
    %229 = sbr.rel (0) target = $region25
  $region24: #{matcher_device.11} parent=0 // pred_region
    _
  $region25: #{matcher_device.11} parent=0 // pred_fallthru
    _
  // Predicated region
  $region26: #{matcher_device.11} parent=0 // pred_check
    _
  $region27: #{matcher_device.11} parent=0 // pred_check_branch
    %231 = sbr.rel (0) target = $region29
  $region28: #{matcher_device.11} parent=0 // pred_region
    _
  $region29: #{matcher_device.11} parent=0 // pred_fallthru
    _

// kernel: matcher_device.12
$region0: #{matcher_device.12}
  #allocation0 [shape = 'u32[]', space=smem, size = 0x4, offset = 0x4, fixed_abs, tag = 'smem constant byte address 0x4 - core index']
  #allocation1 [shape = 'u32[144,128]{1,0:T(1,128)}', space=vmem, size = 0x12000, scoped, tag = 'internal scratch']
  #allocation2 [shape = 'f32[1,1]{1,0:T(1,128)S(1)}', space=vmem, size = 0x200, scoped, tag = 'scoped memory for matcher_device.12']
  %s0 = inlined_call_operand.vmem [shape: f32[128,33], index: 0, kind: input, shape index: {}]
  %s1 = inlined_call_operand.vmem [shape: bf16[33,32], index: 1, kind: input, shape index: {}]
  %s2 = inlined_call_operand.vmem [shape: f32[1,32], index: 2, kind: input, shape index: {}]
  %s3 = inlined_call_operand.vmem [shape: bf16[32,32], index: 3, kind: input, shape index: {}]
  %s4 = inlined_call_operand.vmem [shape: f32[1,32], index: 4, kind: input, shape index: {}]
  %s5 = inlined_call_operand.vmem [shape: bf16[32,32], index: 5, kind: input, shape index: {}]
  %s6 = inlined_call_operand.vmem [shape: f32[1,32], index: 6, kind: input, shape index: {}]
  %s7 = inlined_call_operand.vmem [shape: bf16[32,32], index: 7, kind: input, shape index: {}]
  %s8 = inlined_call_operand.vmem [shape: f32[1,32], index: 8, kind: input, shape index: {}]
  %s9 = inlined_call_operand.vmem [shape: bf16[32,32], index: 9, kind: input, shape index: {}]
  %s10 = inlined_call_operand.vmem [shape: f32[1,32], index: 10, kind: input, shape index: {}]
  %s11 = inlined_call_operand.vmem [shape: bf16[32,32], index: 11, kind: input, shape index: {}]
  %s12 = inlined_call_operand.vmem [shape: f32[1,32], index: 12, kind: input, shape index: {}]
  %s13 = inlined_call_operand.vmem [shape: bf16[32,16], index: 13, kind: input, shape index: {}]
  %s14 = inlined_call_operand.vmem [shape: f32[1,16], index: 14, kind: input, shape index: {}]
  %s15 = inlined_call_operand.vmem [shape: bf16[16,8], index: 15, kind: input, shape index: {}]
  %s16 = inlined_call_operand.vmem [shape: f32[1,8], index: 16, kind: input, shape index: {}]
  %s17 = inlined_call_operand.vmem [shape: bf16[8,1], index: 17, kind: input, shape index: {}]
  %s18 = inlined_call_operand.<no memory space> [shape: f32[1,1], index: 18, kind: input, shape index: {}]
  %s19 = inlined_call_operand.vmem [shape: f32[128,128], index: 19, kind: output, shape index: {}]
  %s20 = sld [smem:[#allocation0]]
  $region86: #{matcher_device.12} parent=0
    _
  %s22 = ssub.s32 1, %s20
  %s23 = scalar_select 0, %s22, %s20
  %v24 = vstv %s18
  %25 = vst [vmem:[#allocation2] sm:$0x1] %v24
  // Predicated region
  $region2: #{matcher_device.12} parent=0 // pred_check
    _
  $region3: #{matcher_device.12} parent=0 // pred_check_branch
    %27 = sbr.rel (0) target = $region5
  $region4: #{matcher_device.12} parent=0 // pred_region
    _
  $region5: #{matcher_device.12} parent=0 // pred_fallthru
    _
  // Predicated region
  $region6: #{matcher_device.12} parent=0 // pred_check
    _
  $region7: #{matcher_device.12} parent=0 // pred_check_branch
    %29 = sbr.rel (0) target = $region9
  $region8: #{matcher_device.12} parent=0 // pred_region
    _
  $region9: #{matcher_device.12} parent=0 // pred_fallthru
    _
  // Predicated region
  $region10: #{matcher_device.12} parent=0 // pred_check
    _
  $region11: #{matcher_device.12} parent=0 // pred_check_branch
    %31 = sbr.rel (0) target = $region13
  $region12: #{matcher_device.12} parent=0 // pred_region
    _
  $region13: #{matcher_device.12} parent=0 // pred_fallthru
    _
  // Predicated region
  $region14: #{matcher_device.12} parent=0 // pred_check
    _
  $region15: #{matcher_device.12} parent=0 // pred_check_branch
    %33 = sbr.rel (0) target = $region17
  $region16: #{matcher_device.12} parent=0 // pred_region
    _
  $region17: #{matcher_device.12} parent=0 // pred_fallthru
    _
  // Predicated region
  $region18: #{matcher_device.12} parent=0 // pred_check
    _
  $region19: #{matcher_device.12} parent=0 // pred_check_branch
    %35 = sbr.rel (0) target = $region21
  $region20: #{matcher_device.12} parent=0 // pred_region
    _
  $region21: #{matcher_device.12} parent=0 // pred_fallthru
    _
  // Predicated region
  $region22: #{matcher_device.12} parent=0 // pred_check
    _
  $region23: #{matcher_device.12} parent=0 // pred_check_branch
    %37 = sbr.rel (0) target = $region25
  $region24: #{matcher_device.12} parent=0 // pred_region
    _
  $region25: #{matcher_device.12} parent=0 // pred_fallthru
    _
  // Predicated region
  $region26: #{matcher_device.12} parent=0 // pred_check
    _
  $region27: #{matcher_device.12} parent=0 // pred_check_branch
    %39 = sbr.rel (0) target = $region29
  $region28: #{matcher_device.12} parent=0 // pred_region
    _
  $region29: #{matcher_device.12} parent=0 // pred_fallthru
    _
  // Predicated region
  $region30: #{matcher_device.12} parent=0 // pred_check
    _
  $region31: #{matcher_device.12} parent=0 // pred_check_branch
    %41 = sbr.rel (0) target = $region33
  $region32: #{matcher_device.12} parent=0 // pred_region
    _
  $region33: #{matcher_device.12} parent=0 // pred_fallthru
    _
  // Predicated region
  $region34: #{matcher_device.12} parent=0 // pred_check
    _
  $region35: #{matcher_device.12} parent=0 // pred_check_branch
    %43 = sbr.rel (0) target = $region37
  $region36: #{matcher_device.12} parent=0 // pred_region
    _
  $region37: #{matcher_device.12} parent=0 // pred_fallthru
    _
  // Predicated region
  $region38: #{matcher_device.12} parent=0 // pred_check
    _
  $region39: #{matcher_device.12} parent=0 // pred_check_branch
    %45 = sbr.rel (0) target = $region41
  $region40: #{matcher_device.12} parent=0 // pred_region
    _
  $region41: #{matcher_device.12} parent=0 // pred_fallthru
    _
  // Predicated region
  $region42: #{matcher_device.12} parent=0 // pred_check
    _
  $region43: #{matcher_device.12} parent=0 // pred_check_branch
    %47 = sbr.rel (0) target = $region45
  $region44: #{matcher_device.12} parent=0 // pred_region
    _
  $region45: #{matcher_device.12} parent=0 // pred_fallthru
    _
  // Predicated region
  $region46: #{matcher_device.12} parent=0 // pred_check
    _
  $region47: #{matcher_device.12} parent=0 // pred_check_branch
    %49 = sbr.rel (0) target = $region49
  $region48: #{matcher_device.12} parent=0 // pred_region
    _
  $region49: #{matcher_device.12} parent=0 // pred_fallthru
    _
  // Predicated region
  $region50: #{matcher_device.12} parent=0 // pred_check
    _
  $region51: #{matcher_device.12} parent=0 // pred_check_branch
    %51 = sbr.rel (0) target = $region53
  $region52: #{matcher_device.12} parent=0 // pred_region
    _
  $region53: #{matcher_device.12} parent=0 // pred_fallthru
    _
  // Predicated region
  $region54: #{matcher_device.12} parent=0 // pred_check
    _
  $region55: #{matcher_device.12} parent=0 // pred_check_branch
    %53 = sbr.rel (0) target = $region57
  $region56: #{matcher_device.12} parent=0 // pred_region
    _
  $region57: #{matcher_device.12} parent=0 // pred_fallthru
    _
  // Predicated region
  $region58: #{matcher_device.12} parent=0 // pred_check
    _
  $region59: #{matcher_device.12} parent=0 // pred_check_branch
    %55 = sbr.rel (0) target = $region61
  $region60: #{matcher_device.12} parent=0 // pred_region
    _
  $region61: #{matcher_device.12} parent=0 // pred_fallthru
    _
  // Predicated region
  $region62: #{matcher_device.12} parent=0 // pred_check
    _
  $region63: #{matcher_device.12} parent=0 // pred_check_branch
    %57 = sbr.rel (0) target = $region65
  $region64: #{matcher_device.12} parent=0 // pred_region
    _
  $region65: #{matcher_device.12} parent=0 // pred_fallthru
    _
  // Predicated region
  $region66: #{matcher_device.12} parent=0 // pred_check
    _
  $region67: #{matcher_device.12} parent=0 // pred_check_branch
    %59 = sbr.rel (0) target = $region69
  $region68: #{matcher_device.12} parent=0 // pred_region
    _
  $region69: #{matcher_device.12} parent=0 // pred_fallthru
    _
  // Predicated region
  $region70: #{matcher_device.12} parent=0 // pred_check
    _
  $region71: #{matcher_device.12} parent=0 // pred_check_branch
    %61 = sbr.rel (0) target = $region73
  $region72: #{matcher_device.12} parent=0 // pred_region
    _
  $region73: #{matcher_device.12} parent=0 // pred_fallthru
    _
  // Predicated region
  $region74: #{matcher_device.12} parent=0 // pred_check
    _
  $region75: #{matcher_device.12} parent=0 // pred_check_branch
    %63 = sbr.rel (0) target = $region77
  $region76: #{matcher_device.12} parent=0 // pred_region
    _
  $region77: #{matcher_device.12} parent=0 // pred_fallthru
    _
  %v65 = vld [vmem:[%s0] sm:$0xff]
  %v66 = vld [vmem:[%s0 + $0x8] sm:$0xff]
  %v67 = vld [vmem:[%s0 + $0x10] sm:$0xff]
  %v68 = vld [vmem:[%s0 + $0x18] sm:$0xff]
  %v69 = vld [vmem:[%s0 + $0x20] sm:$0xff]
  %v70 = vld [vmem:[%s0 + $0x28] sm:$0xff]
  %v71 = vld [vmem:[%s0 + $0x30] sm:$0xff]
  %v72 = vld [vmem:[%s0 + $0x38] sm:$0xff]
  %v73 = vld [vmem:[%s0 + $0x40] sm:$0xff]
  %v74 = vld [vmem:[%s0 + $0x48] sm:$0xff]
  %v75 = vld [vmem:[%s0 + $0x50] sm:$0xff]
  %v76 = vld [vmem:[%s0 + $0x58] sm:$0xff]
  %v77 = vld [vmem:[%s0 + $0x60] sm:$0xff]
  %v78 = vld [vmem:[%s0 + $0x68] sm:$0xff]
  %v79 = vld [vmem:[%s0 + $0x70] sm:$0xff]
  %v80 = vld [vmem:[%s0 + $0x78] sm:$0xff]
  %v81 = vpack.c.bf16 %v66, %v65
  %v82 = vpack.c.bf16 %v68, %v67
  %v83 = vpack.c.bf16 %v70, %v69
  %v84 = vpack.c.bf16 %v72, %v71
  %v85 = vpack.c.bf16 %v74, %v73
  %v86 = vpack.c.bf16 %v76, %v75
  %v87 = vpack.c.bf16 %v78, %v77
  %v88 = vpack.c.bf16 %v80, %v79
  %v89 = vld [vmem:[%s1] sm:$0xf]
  %v90 = vld [vmem:[%s1 + $0x4] sm:$0xf]
  %v91 = vld [vmem:[%s1 + $0x8] sm:$0xf]
  %v92 = vld [vmem:[%s1 + $0xc] sm:$0xf]
  %v93 = vld [vmem:[%s1 + $0x10] sm:$0x1]
  %v94 = vld [vmem:[%s2] sm:$0x1]
  %v96 = vlaneseq
  %v97 = vshrl.u32 %v96, 7
  %v98 = vsub.s32 0, %v97
  %v99 = vrot.slane %v94, %v98
  %v106 = vunpack.c.l.b16 %v89
  %v107 = vunpack.c.l.b16 %v90
  %v108 = vunpack.c.l.b16 %v91
  %v109 = vunpack.c.l.b16 %v92
  %v110 = vunpack.c.l.b16 %v93
  %v111 = vpack.c.b16 %v107, %v106
  %v112 = vpack.c.b16 %v109, %v108
  %v113 = vpack.c.b16 %v110, %v110
  %vm116 = vcmask 269312
  %v118 = vsel %vm116, %v81, 0
  %v121 = vsel %vm116, %v82, 0
  %v124 = vsel %vm116, %v83, 0
  %v127 = vsel %vm116, %v84, 0
  %v130 = vsel %vm116, %v85, 0
  %v133 = vsel %vm116, %v86, 0
  %v136 = vsel %vm116, %v87, 0
  %v139 = vsel %vm116, %v88, 0
  %vm141 = vcmask 1040384
  %v142 = vsel 0, 4294967295, 65535
  %v143 = vsel %vm141, %v142, 0
  %v145 = vand.u32 %v113, %v143
  %147 = vmatprep.subr.bf16.mxu0 0
  %148 = vmatpush1.bf16.msra.mxu0 %v111
  %149 = vmatprep.subr.bf16.mxu0 0
  %150 = vmatpush1.bf16.msra.mxu0 %v112
  %151 = vmatprep.subr.bf16.mxu0 0
  %152 = vmatpush1.bf16.msra.mxu0 %v145
  %153 = vmatprep.subr.bf16.mxu0 0
  %154 = vmatpush1.bf16.msra.mxu0 0
  %155 = vmatprep.subr.bf16.mxu0 0
  %156 = vmatpush1.bf16.msra.mxu0 0
  %157 = vmatprep.subr.bf16.mxu0 0
  %158 = vmatpush1.bf16.msra.mxu0 0
  %159 = vmatprep.subr.bf16.mxu0 0
  %160 = vmatpush1.bf16.msra.mxu0 0
  %161 = vmatprep.subr.bf16.mxu0 0
  %162 = vmatpush1.bf16.msra.mxu0 0
  %163 = vmatprep.subr.bf16.mxu0 0
  %164 = vmatpush1.bf16.msra.mxu0 0
  %165 = vmatprep.subr.bf16.mxu0 0
  %166 = vmatpush1.bf16.msra.mxu0 0
  %167 = vmatprep.subr.bf16.mxu0 0
  %168 = vmatpush1.bf16.msra.mxu0 0
  %169 = vmatprep.subr.bf16.mxu0 0
  %170 = vmatpush1.bf16.msra.mxu0 0
  %171 = vmatprep.subr.bf16.mxu0 0
  %172 = vmatpush1.bf16.msra.mxu0 0
  %173 = vmatprep.subr.bf16.mxu0 0
  %174 = vmatpush1.bf16.msra.mxu0 0
  %175 = vmatprep.subr.bf16.mxu0 0
  %176 = vmatpush1.bf16.msra.mxu0 0
  %177 = vmatprep.subr.bf16.mxu0 0
  %178 = vmatpush1.bf16.msra.mxu0 0
  %179 = vmatprep.mubr.bf16.mxu0 0
  %180 = vmatmul.mubr.bf16.gmra.mrb[0].mxu0 %v118
  %v181 = vpop.f32.mrb[0].mxu0
  %v182 = vadd.f32 %v99, %v181
  %v183 = vpop.f32.mrb[0].mxu0
  %v184 = vpop.f32.mrb[0].mxu0
  %v185 = vadd.f32 %v99, %v184
  %v186 = vpop.f32.mrb[0].mxu0
  %187 = vmatprep.mubr.bf16.mxu0 0
  %188 = vmatmul.mubr.bf16.gmra.mrb[0].mxu0 %v121
  %v189 = vpop.f32.mrb[0].mxu0
  %v190 = vadd.f32 %v99, %v189
  %v191 = vpop.f32.mrb[0].mxu0
  %v192 = vpop.f32.mrb[0].mxu0
  %v193 = vadd.f32 %v99, %v192
  %v194 = vpop.f32.mrb[0].mxu0
  %195 = vmatprep.mubr.bf16.mxu0 0
  %196 = vmatmul.mubr.bf16.gmra.mrb[0].mxu0 %v124
  %v197 = vpop.f32.mrb[0].mxu0
  %v198 = vadd.f32 %v99, %v197
  %v199 = vpop.f32.mrb[0].mxu0
  %v200 = vpop.f32.mrb[0].mxu0
  %v201 = vadd.f32 %v99, %v200
  %v202 = vpop.f32.mrb[0].mxu0
  %203 = vmatprep.mubr.bf16.mxu0 0
  %204 = vmatmul.mubr.bf16.gmra.mrb[0].mxu0 %v127
  %v205 = vpop.f32.mrb[0].mxu0
  %v206 = vadd.f32 %v99, %v205
  %v207 = vpop.f32.mrb[0].mxu0
  %v208 = vpop.f32.mrb[0].mxu0
  %v209 = vadd.f32 %v99, %v208
  %v210 = vpop.f32.mrb[0].mxu0
  %211 = vmatprep.mubr.bf16.mxu0 0
  %212 = vmatmul.mubr.bf16.gmra.mrb[0].mxu0 %v130
  %v213 = vpop.f32.mrb[0].mxu0
  %v214 = vadd.f32 %v99, %v213
  %v215 = vpop.f32.mrb[0].mxu0
  %v216 = vpop.f32.mrb[0].mxu0
  %v217 = vadd.f32 %v99, %v216
  %v218 = vpop.f32.mrb[0].mxu0
  %219 = vmatprep.mubr.bf16.mxu0 0
  %220 = vmatmul.mubr.bf16.gmra.mrb[0].mxu0 %v133
  %v221 = vpop.f32.mrb[0].mxu0
  %v222 = vadd.f32 %v99, %v221
  %v223 = vpop.f32.mrb[0].mxu0
  %v224 = vpop.f32.mrb[0].mxu0
  %v225 = vadd.f32 %v99, %v224
  %v226 = vpop.f32.mrb[0].mxu0
  %227 = vmatprep.mubr.bf16.mxu0 0
  %228 = vmatmul.mubr.bf16.gmra.mrb[0].mxu0 %v136
  %v229 = vpop.f32.mrb[0].mxu0
  %v230 = vadd.f32 %v99, %v229
  %v231 = vpop.f32.mrb[0].mxu0
  %v232 = vpop.f32.mrb[0].mxu0
  %v233 = vadd.f32 %v99, %v232
  %v234 = vpop.f32.mrb[0].mxu0
  %235 = vmatprep.mubr.bf16.mxu0 0
  %236 = vmatmul.mubr.bf16.gmra.mrb[0].mxu0 %v139
  %v237 = vpop.f32.mrb[0].mxu0
  %v238 = vadd.f32 %v99, %v237
  %v239 = vpop.f32.mrb[0].mxu0
  %v240 = vpop.f32.mrb[0].mxu0
  %v241 = vadd.f32 %v99, %v240
  %v242 = vpop.f32.mrb[0].mxu0
  %243 = vdwg.mxu0
  %v244 = vmax.f32 %v182, 0.0
  %v245 = vmax.f32 %v185, 0.0
  %v246 = vmax.f32 %v190, 0.0
  %v247 = vmax.f32 %v193, 0.0
  %v248 = vmax.f32 %v198, 0.0
  %v249 = vmax.f32 %v201, 0.0
  %v250 = vmax.f32 %v206, 0.0
  %v251 = vmax.f32 %v209, 0.0
  %v252 = vmax.f32 %v214, 0.0
  %v253 = vmax.f32 %v217, 0.0
  %v254 = vmax.f32 %v222, 0.0
  %v255 = vmax.f32 %v225, 0.0
  %v256 = vmax.f32 %v230, 0.0
  %v257 = vmax.f32 %v233, 0.0
  %v258 = vmax.f32 %v238, 0.0
  %v259 = vmax.f32 %v241, 0.0
  %v260 = vpack.c.bf16 %v245, %v244
  %v261 = vpack.c.bf16 %v247, %v246
  %v262 = vpack.c.bf16 %v249, %v248
  %v263 = vpack.c.bf16 %v251, %v250
  %v264 = vpack.c.bf16 %v253, %v252
  %v265 = vpack.c.bf16 %v255, %v254
  %v266 = vpack.c.bf16 %v257, %v256
  %v267 = vpack.c.bf16 %v259, %v258
  %v268 = vld [vmem:[%s3] sm:$0xf]
  %v269 = vld [vmem:[%s3 + $0x4] sm:$0xf]
  %v270 = vld [vmem:[%s3 + $0x8] sm:$0xf]
  %v271 = vld [vmem:[%s3 + $0xc] sm:$0xf]
  %v272 = vld [vmem:[%s4] sm:$0x1]
  %v274 = vlaneseq
  %v275 = vshrl.u32 %v274, 7
  %v276 = vsub.s32 0, %v275
  %v277 = vrot.slane %v272, %v276
  %v283 = vunpack.c.l.b16 %v268
  %v284 = vunpack.c.l.b16 %v269
  %v285 = vunpack.c.l.b16 %v270
  %v286 = vunpack.c.l.b16 %v271
  %v287 = vpack.c.b16 %v284, %v283
  %v288 = vpack.c.b16 %v286, %v285
  %vm291 = vcmask 261120
  %v293 = vsel %vm291, %v260, 0
  %v296 = vsel %vm291, %v261, 0
  %v299 = vsel %vm291, %v262, 0
  %v302 = vsel %vm291, %v263, 0
  %v305 = vsel %vm291, %v264, 0
  %v308 = vsel %vm291, %v265, 0
  %v311 = vsel %vm291, %v266, 0
  %v314 = vsel %vm291, %v267, 0
  %316 = vmatprep.subr.bf16.mxu0 0
  %317 = vmatpush1.bf16.msra.mxu0 %v287
  %318 = vmatprep.subr.bf16.mxu0 0
  %319 = vmatpush1.bf16.msra.mxu0 %v288
  %320 = vmatprep.subr.bf16.mxu0 0
  %321 = vmatpush1.bf16.msra.mxu0 0
  %322 = vmatprep.subr.bf16.mxu0 0
  %323 = vmatpush1.bf16.msra.mxu0 0
  %324 = vmatprep.subr.bf16.mxu0 0
  %325 = vmatpush1.bf16.msra.mxu0 0
  %326 = vmatprep.subr.bf16.mxu0 0
  %327 = vmatpush1.bf16.msra.mxu0 0
  %328 = vmatprep.subr.bf16.mxu0 0
  %329 = vmatpush1.bf16.msra.mxu0 0
  %330 = vmatprep.subr.bf16.mxu0 0
  %331 = vmatpush1.bf16.msra.mxu0 0
  %332 = vmatprep.subr.bf16.mxu0 0
  %333 = vmatpush1.bf16.msra.mxu0 0
  %334 = vmatprep.subr.bf16.mxu0 0
  %335 = vmatpush1.bf16.msra.mxu0 0
  %336 = vmatprep.subr.bf16.mxu0 0
  %337 = vmatpush1.bf16.msra.mxu0 0
  %338 = vmatprep.subr.bf16.mxu0 0
  %339 = vmatpush1.bf16.msra.mxu0 0
  %340 = vmatprep.subr.bf16.mxu0 0
  %341 = vmatpush1.bf16.msra.mxu0 0
  %342 = vmatprep.subr.bf16.mxu0 0
  %343 = vmatpush1.bf16.msra.mxu0 0
  %344 = vmatprep.subr.bf16.mxu0 0
  %345 = vmatpush1.bf16.msra.mxu0 0
  %346 = vmatprep.subr.bf16.mxu0 0
  %347 = vmatpush1.bf16.msra.mxu0 0
  %348 = vmatprep.mubr.bf16.mxu0 0
  %349 = vmatmul.mubr.bf16.gmra.mrb[0].mxu0 %v293
  %v350 = vpop.f32.mrb[0].mxu0
  %v351 = vadd.f32 %v277, %v350
  %v352 = vpop.f32.mrb[0].mxu0
  %v353 = vpop.f32.mrb[0].mxu0
  %v354 = vadd.f32 %v277, %v353
  %v355 = vpop.f32.mrb[0].mxu0
  %356 = vmatprep.mubr.bf16.mxu0 0
  %357 = vmatmul.mubr.bf16.gmra.mrb[0].mxu0 %v296
  %v358 = vpop.f32.mrb[0].mxu0
  %v359 = vadd.f32 %v277, %v358
  %v360 = vpop.f32.mrb[0].mxu0
  %v361 = vpop.f32.mrb[0].mxu0
  %v362 = vadd.f32 %v277, %v361
  %v363 = vpop.f32.mrb[0].mxu0
  %364 = vmatprep.mubr.bf16.mxu0 0
  %365 = vmatmul.mubr.bf16.gmra.mrb[0].mxu0 %v299
  %v366 = vpop.f32.mrb[0].mxu0
  %v367 = vadd.f32 %v277, %v366
  %v368 = vpop.f32.mrb[0].mxu0
  %v369 = vpop.f32.mrb[0].mxu0
  %v370 = vadd.f32 %v277, %v369
  %v371 = vpop.f32.mrb[0].mxu0
  %372 = vmatprep.mubr.bf16.mxu0 0
  %373 = vmatmul.mubr.bf16.gmra.mrb[0].mxu0 %v302
  %v374 = vpop.f32.mrb[0].mxu0
  %v375 = vadd.f32 %v277, %v374
  %v376 = vpop.f32.mrb[0].mxu0
  %v377 = vpop.f32.mrb[0].mxu0
  %v378 = vadd.f32 %v277, %v377
  %v379 = vpop.f32.mrb[0].mxu0
  %380 = vmatprep.mubr.bf16.mxu0 0
  %381 = vmatmul.mubr.bf16.gmra.mrb[0].mxu0 %v305
  %v382 = vpop.f32.mrb[0].mxu0
  %v383 = vadd.f32 %v277, %v382
  %v384 = vpop.f32.mrb[0].mxu0
  %v385 = vpop.f32.mrb[0].mxu0
  %v386 = vadd.f32 %v277, %v385
  %v387 = vpop.f32.mrb[0].mxu0
  %388 = vmatprep.mubr.bf16.mxu0 0
  %389 = vmatmul.mubr.bf16.gmra.mrb[0].mxu0 %v308
  %v390 = vpop.f32.mrb[0].mxu0
  %v391 = vadd.f32 %v277, %v390
  %v392 = vpop.f32.mrb[0].mxu0
  %v393 = vpop.f32.mrb[0].mxu0
  %v394 = vadd.f32 %v277, %v393
  %v395 = vpop.f32.mrb[0].mxu0
  %396 = vmatprep.mubr.bf16.mxu0 0
  %397 = vmatmul.mubr.bf16.gmra.mrb[0].mxu0 %v311
  %v398 = vpop.f32.mrb[0].mxu0
  %v399 = vadd.f32 %v277, %v398
  %v400 = vpop.f32.mrb[0].mxu0
  %v401 = vpop.f32.mrb[0].mxu0
  %v402 = vadd.f32 %v277, %v401
  %v403 = vpop.f32.mrb[0].mxu0
  %404 = vmatprep.mubr.bf16.mxu0 0
  %405 = vmatmul.mubr.bf16.gmra.mrb[0].mxu0 %v314
  %v406 = vpop.f32.mrb[0].mxu0
  %v407 = vadd.f32 %v277, %v406
  %v408 = vpop.f32.mrb[0].mxu0
  %v409 = vpop.f32.mrb[0].mxu0
  %v410 = vadd.f32 %v277, %v409
  %v411 = vpop.f32.mrb[0].mxu0
  %412 = vdwg.mxu0
  %v413 = vmax.f32 %v351, 0.0
  %v414 = vmax.f32 %v354, 0.0
  %v415 = vmax.f32 %v359, 0.0
  %v416 = vmax.f32 %v362, 0.0
  %v417 = vmax.f32 %v367, 0.0
  %v418 = vmax.f32 %v370, 0.0
  %v419 = vmax.f32 %v375, 0.0
  %v420 = vmax.f32 %v378, 0.0
  %v421 = vmax.f32 %v383, 0.0
  %v422 = vmax.f32 %v386, 0.0
  %v423 = vmax.f32 %v391, 0.0
  %v424 = vmax.f32 %v394, 0.0
  %v425 = vmax.f32 %v399, 0.0
  %v426 = vmax.f32 %v402, 0.0
  %v427 = vmax.f32 %v407, 0.0
  %v428 = vmax.f32 %v410, 0.0
  %v429 = vpack.c.bf16 %v414, %v413
  %v430 = vpack.c.bf16 %v416, %v415
  %v431 = vpack.c.bf16 %v418, %v417
  %v432 = vpack.c.bf16 %v420, %v419
  %v433 = vpack.c.bf16 %v422, %v421
  %v434 = vpack.c.bf16 %v424, %v423
  %v435 = vpack.c.bf16 %v426, %v425
  %v436 = vpack.c.bf16 %v428, %v427
  %v437 = vld [vmem:[%s5] sm:$0xf]
  %v438 = vld [vmem:[%s5 + $0x4] sm:$0xf]
  %v439 = vld [vmem:[%s5 + $0x8] sm:$0xf]
  %v440 = vld [vmem:[%s5 + $0xc] sm:$0xf]
  %v441 = vld [vmem:[%s6] sm:$0x1]
  %v443 = vlaneseq
  %v444 = vshrl.u32 %v443, 7
  %v445 = vsub.s32 0, %v444
  %v446 = vrot.slane %v441, %v445
  %v452 = vunpack.c.l.b16 %v437
  %v453 = vunpack.c.l.b16 %v438
  %v454 = vunpack.c.l.b16 %v439
  %v455 = vunpack.c.l.b16 %v440
  %v456 = vpack.c.b16 %v453, %v452
  %v457 = vpack.c.b16 %v455, %v454
  %v461 = vsel %vm291, %v429, 0
  %v464 = vsel %vm291, %v430, 0
  %v467 = vsel %vm291, %v431, 0
  %v470 = vsel %vm291, %v432, 0
  %v473 = vsel %vm291, %v433, 0
  %v476 = vsel %vm291, %v434, 0
  %v479 = vsel %vm291, %v435, 0
  %v482 = vsel %vm291, %v436, 0
  %484 = vmatprep.subr.bf16.mxu0 0
  %485 = vmatpush1.bf16.msra.mxu0 %v456
  %486 = vmatprep.subr.bf16.mxu0 0
  %487 = vmatpush1.bf16.msra.mxu0 %v457
  %488 = vmatprep.subr.bf16.mxu0 0
  %489 = vmatpush1.bf16.msra.mxu0 0
  %490 = vmatprep.subr.bf16.mxu0 0
  %491 = vmatpush1.bf16.msra.mxu0 0
  %492 = vmatprep.subr.bf16.mxu0 0
  %493 = vmatpush1.bf16.msra.mxu0 0
  %494 = vmatprep.subr.bf16.mxu0 0
  %495 = vmatpush1.bf16.msra.mxu0 0
  %496 = vmatprep.subr.bf16.mxu0 0
  %497 = vmatpush1.bf16.msra.mxu0 0
  %498 = vmatprep.subr.bf16.mxu0 0
  %499 = vmatpush1.bf16.msra.mxu0 0
  %500 = vmatprep.subr.bf16.mxu0 0
  %501 = vmatpush1.bf16.msra.mxu0 0
  %502 = vmatprep.subr.bf16.mxu0 0
  %503 = vmatpush1.bf16.msra.mxu0 0
  %504 = vmatprep.subr.bf16.mxu0 0
  %505 = vmatpush1.bf16.msra.mxu0 0
  %506 = vmatprep.subr.bf16.mxu0 0
  %507 = vmatpush1.bf16.msra.mxu0 0
  %508 = vmatprep.subr.bf16.mxu0 0
  %509 = vmatpush1.bf16.msra.mxu0 0
  %510 = vmatprep.subr.bf16.mxu0 0
  %511 = vmatpush1.bf16.msra.mxu0 0
  %512 = vmatprep.subr.bf16.mxu0 0
  %513 = vmatpush1.bf16.msra.mxu0 0
  %514 = vmatprep.subr.bf16.mxu0 0
  %515 = vmatpush1.bf16.msra.mxu0 0
  %516 = vmatprep.mubr.bf16.mxu0 0
  %517 = vmatmul.mubr.bf16.gmra.mrb[0].mxu0 %v461
  %v518 = vpop.f32.mrb[0].mxu0
  %v519 = vadd.f32 %v446, %v518
  %v520 = vpop.f32.mrb[0].mxu0
  %v521 = vpop.f32.mrb[0].mxu0
  %v522 = vadd.f32 %v446, %v521
  %v523 = vpop.f32.mrb[0].mxu0
  %524 = vmatprep.mubr.bf16.mxu0 0
  %525 = vmatmul.mubr.bf16.gmra.mrb[0].mxu0 %v464
  %v526 = vpop.f32.mrb[0].mxu0
  %v527 = vadd.f32 %v446, %v526
  %v528 = vpop.f32.mrb[0].mxu0
  %v529 = vpop.f32.mrb[0].mxu0
  %v530 = vadd.f32 %v446, %v529
  %v531 = vpop.f32.mrb[0].mxu0
  %532 = vmatprep.mubr.bf16.mxu0 0
  %533 = vmatmul.mubr.bf16.gmra.mrb[0].mxu0 %v467
  %v534 = vpop.f32.mrb[0].mxu0
  %v535 = vadd.f32 %v446, %v534
  %v536 = vpop.f32.mrb[0].mxu0
  %v537 = vpop.f32.mrb[0].mxu0
  %v538 = vadd.f32 %v446, %v537
  %v539 = vpop.f32.mrb[0].mxu0
  %540 = vmatprep.mubr.bf16.mxu0 0
  %541 = vmatmul.mubr.bf16.gmra.mrb[0].mxu0 %v470
  %v542 = vpop.f32.mrb[0].mxu0
  %v543 = vadd.f32 %v446, %v542
  %v544 = vpop.f32.mrb[0].mxu0
  %v545 = vpop.f32.mrb[0].mxu0
  %v546 = vadd.f32 %v446, %v545
  %v547 = vpop.f32.mrb[0].mxu0
  %548 = vmatprep.mubr.bf16.mxu0 0
  %549 = vmatmul.mubr.bf16.gmra.mrb[0].mxu0 %v473
  %v550 = vpop.f32.mrb[0].mxu0
  %v551 = vadd.f32 %v446, %v550
  %v552 = vpop.f32.mrb[0].mxu0
  %v553 = vpop.f32.mrb[0].mxu0
  %v554 = vadd.f32 %v446, %v553
  %v555 = vpop.f32.mrb[0].mxu0
  %556 = vmatprep.mubr.bf16.mxu0 0
  %557 = vmatmul.mubr.bf16.gmra.mrb[0].mxu0 %v476
  %v558 = vpop.f32.mrb[0].mxu0
  %v559 = vadd.f32 %v446, %v558
  %v560 = vpop.f32.mrb[0].mxu0
  %v561 = vpop.f32.mrb[0].mxu0
  %v562 = vadd.f32 %v446, %v561
  %v563 = vpop.f32.mrb[0].mxu0
  %564 = vmatprep.mubr.bf16.mxu0 0
  %565 = vmatmul.mubr.bf16.gmra.mrb[0].mxu0 %v479
  %v566 = vpop.f32.mrb[0].mxu0
  %v567 = vadd.f32 %v446, %v566
  %v568 = vpop.f32.mrb[0].mxu0
  %v569 = vpop.f32.mrb[0].mxu0
  %v570 = vadd.f32 %v446, %v569
  %v571 = vpop.f32.mrb[0].mxu0
  %572 = vmatprep.mubr.bf16.mxu0 0
  %573 = vmatmul.mubr.bf16.gmra.mrb[0].mxu0 %v482
  %v574 = vpop.f32.mrb[0].mxu0
  %v575 = vadd.f32 %v446, %v574
  %v576 = vpop.f32.mrb[0].mxu0
  %v577 = vpop.f32.mrb[0].mxu0
  %v578 = vadd.f32 %v446, %v577
  %v579 = vpop.f32.mrb[0].mxu0
  %580 = vdwg.mxu0
  %v581 = vpack.c.bf16 %v522, %v519
  %v582 = vpack.c.bf16 %v530, %v527
  %v583 = vpack.c.bf16 %v538, %v535
  %v584 = vpack.c.bf16 %v546, %v543
  %v585 = vpack.c.bf16 %v554, %v551
  %v586 = vpack.c.bf16 %v562, %v559
  %v587 = vpack.c.bf16 %v570, %v567
  %v588 = vpack.c.bf16 %v578, %v575
  %v589 = vld [vmem:[%s7] sm:$0xf]
  %v590 = vld [vmem:[%s7 + $0x4] sm:$0xf]
  %v591 = vld [vmem:[%s7 + $0x8] sm:$0xf]
  %v592 = vld [vmem:[%s7 + $0xc] sm:$0xf]
  %v593 = vld [vmem:[%s8] sm:$0x1]
  %v595 = vlaneseq
  %v596 = vshrl.u32 %v595, 7
  %v597 = vsub.s32 0, %v596
  %v598 = vrot.slane %v593, %v597
  %v604 = vunpack.c.l.b16 %v589
  %v605 = vunpack.c.l.b16 %v590
  %v606 = vunpack.c.l.b16 %v591
  %v607 = vunpack.c.l.b16 %v592
  %v608 = vpack.c.b16 %v605, %v604
  %v609 = vpack.c.b16 %v607, %v606
  %v613 = vsel %vm291, %v581, 0
  %v616 = vsel %vm291, %v582, 0
  %v619 = vsel %vm291, %v583, 0
  %v622 = vsel %vm291, %v584, 0
  %v625 = vsel %vm291, %v585, 0
  %v628 = vsel %vm291, %v586, 0
  %v631 = vsel %vm291, %v587, 0
  %v634 = vsel %vm291, %v588, 0
  %636 = vmatprep.subr.bf16.mxu0 0
  %637 = vmatpush1.bf16.msra.mxu0 %v608
  %638 = vmatprep.subr.bf16.mxu0 0
  %639 = vmatpush1.bf16.msra.mxu0 %v609
  %640 = vmatprep.subr.bf16.mxu0 0
  %641 = vmatpush1.bf16.msra.mxu0 0
  %642 = vmatprep.subr.bf16.mxu0 0
  %643 = vmatpush1.bf16.msra.mxu0 0
  %644 = vmatprep.subr.bf16.mxu0 0
  %645 = vmatpush1.bf16.msra.mxu0 0
  %646 = vmatprep.subr.bf16.mxu0 0
  %647 = vmatpush1.bf16.msra.mxu0 0
  %648 = vmatprep.subr.bf16.mxu0 0
  %649 = vmatpush1.bf16.msra.mxu0 0
  %650 = vmatprep.subr.bf16.mxu0 0
  %651 = vmatpush1.bf16.msra.mxu0 0
  %652 = vmatprep.subr.bf16.mxu0 0
  %653 = vmatpush1.bf16.msra.mxu0 0
  %654 = vmatprep.subr.bf16.mxu0 0
  %655 = vmatpush1.bf16.msra.mxu0 0
  %656 = vmatprep.subr.bf16.mxu0 0
  %657 = vmatpush1.bf16.msra.mxu0 0
  %658 = vmatprep.subr.bf16.mxu0 0
  %659 = vmatpush1.bf16.msra.mxu0 0
  %660 = vmatprep.subr.bf16.mxu0 0
  %661 = vmatpush1.bf16.msra.mxu0 0
  %662 = vmatprep.subr.bf16.mxu0 0
  %663 = vmatpush1.bf16.msra.mxu0 0
  %664 = vmatprep.subr.bf16.mxu0 0
  %665 = vmatpush1.bf16.msra.mxu0 0
  %666 = vmatprep.subr.bf16.mxu0 0
  %667 = vmatpush1.bf16.msra.mxu0 0
  %668 = vmatprep.mubr.bf16.mxu0 0
  %669 = vmatmul.mubr.bf16.gmra.mrb[0].mxu0 %v613
  %v670 = vpop.f32.mrb[0].mxu0
  %v671 = vadd.f32 %v598, %v670
  %v672 = vpop.f32.mrb[0].mxu0
  %v673 = vpop.f32.mrb[0].mxu0
  %v674 = vadd.f32 %v598, %v673
  %v675 = vpop.f32.mrb[0].mxu0
  %676 = vmatprep.mubr.bf16.mxu0 0
  %677 = vmatmul.mubr.bf16.gmra.mrb[0].mxu0 %v616
  %v678 = vpop.f32.mrb[0].mxu0
  %v679 = vadd.f32 %v598, %v678
  %v680 = vpop.f32.mrb[0].mxu0
  %v681 = vpop.f32.mrb[0].mxu0
  %v682 = vadd.f32 %v598, %v681
  %v683 = vpop.f32.mrb[0].mxu0
  %684 = vmatprep.mubr.bf16.mxu0 0
  %685 = vmatmul.mubr.bf16.gmra.mrb[0].mxu0 %v619
  %v686 = vpop.f32.mrb[0].mxu0
  %v687 = vadd.f32 %v598, %v686
  %v688 = vpop.f32.mrb[0].mxu0
  %v689 = vpop.f32.mrb[0].mxu0
  %v690 = vadd.f32 %v598, %v689
  %v691 = vpop.f32.mrb[0].mxu0
  %692 = vmatprep.mubr.bf16.mxu0 0
  %693 = vmatmul.mubr.bf16.gmra.mrb[0].mxu0 %v622
  %v694 = vpop.f32.mrb[0].mxu0
  %v695 = vadd.f32 %v598, %v694
  %v696 = vpop.f32.mrb[0].mxu0
  %v697 = vpop.f32.mrb[0].mxu0
  %v698 = vadd.f32 %v598, %v697
  %v699 = vpop.f32.mrb[0].mxu0
  %700 = vmatprep.mubr.bf16.mxu0 0
  %701 = vmatmul.mubr.bf16.gmra.mrb[0].mxu0 %v625
  %v702 = vpop.f32.mrb[0].mxu0
  %v703 = vadd.f32 %v598, %v702
  %v704 = vpop.f32.mrb[0].mxu0
  %v705 = vpop.f32.mrb[0].mxu0
  %v706 = vadd.f32 %v598, %v705
  %v707 = vpop.f32.mrb[0].mxu0
  %708 = vmatprep.mubr.bf16.mxu0 0
  %709 = vmatmul.mubr.bf16.gmra.mrb[0].mxu0 %v628
  %v710 = vpop.f32.mrb[0].mxu0
  %v711 = vadd.f32 %v598, %v710
  %v712 = vpop.f32.mrb[0].mxu0
  %v713 = vpop.f32.mrb[0].mxu0
  %v714 = vadd.f32 %v598, %v713
  %v715 = vpop.f32.mrb[0].mxu0
  %716 = vmatprep.mubr.bf16.mxu0 0
  %717 = vmatmul.mubr.bf16.gmra.mrb[0].mxu0 %v631
  %v718 = vpop.f32.mrb[0].mxu0
  %v719 = vadd.f32 %v598, %v718
  %v720 = vpop.f32.mrb[0].mxu0
  %v721 = vpop.f32.mrb[0].mxu0
  %v722 = vadd.f32 %v598, %v721
  %v723 = vpop.f32.mrb[0].mxu0
  %724 = vmatprep.mubr.bf16.mxu0 0
  %725 = vmatmul.mubr.bf16.gmra.mrb[0].mxu0 %v634
  %v726 = vpop.f32.mrb[0].mxu0
  %v727 = vadd.f32 %v598, %v726
  %v728 = vpop.f32.mrb[0].mxu0
  %v729 = vpop.f32.mrb[0].mxu0
  %v730 = vadd.f32 %v598, %v729
  %v731 = vpop.f32.mrb[0].mxu0
  %732 = vdwg.mxu0
  %v733 = vmax.f32 %v671, 0.0
  %v734 = vmax.f32 %v674, 0.0
  %v735 = vmax.f32 %v679, 0.0
  %v736 = vmax.f32 %v682, 0.0
  %v737 = vmax.f32 %v687, 0.0
  %v738 = vmax.f32 %v690, 0.0
  %v739 = vmax.f32 %v695, 0.0
  %v740 = vmax.f32 %v698, 0.0
  %v741 = vmax.f32 %v703, 0.0
  %v742 = vmax.f32 %v706, 0.0
  %v743 = vmax.f32 %v711, 0.0
  %v744 = vmax.f32 %v714, 0.0
  %v745 = vmax.f32 %v719, 0.0
  %v746 = vmax.f32 %v722, 0.0
  %v747 = vmax.f32 %v727, 0.0
  %v748 = vmax.f32 %v730, 0.0
  %v749 = vpack.c.bf16 %v734, %v733
  %v750 = vpack.c.bf16 %v736, %v735
  %v751 = vpack.c.bf16 %v738, %v737
  %v752 = vpack.c.bf16 %v740, %v739
  %v753 = vpack.c.bf16 %v742, %v741
  %v754 = vpack.c.bf16 %v744, %v743
  %v755 = vpack.c.bf16 %v746, %v745
  %v756 = vpack.c.bf16 %v748, %v747
  %v757 = vld [vmem:[%s9] sm:$0xf]
  %v758 = vld [vmem:[%s9 + $0x4] sm:$0xf]
  %v759 = vld [vmem:[%s9 + $0x8] sm:$0xf]
  %v760 = vld [vmem:[%s9 + $0xc] sm:$0xf]
  %v761 = vld [vmem:[%s10] sm:$0x1]
  %v763 = vlaneseq
  %v764 = vshrl.u32 %v763, 7
  %v765 = vsub.s32 0, %v764
  %v766 = vrot.slane %v761, %v765
  %v772 = vunpack.c.l.b16 %v757
  %v773 = vunpack.c.l.b16 %v758
  %v774 = vunpack.c.l.b16 %v759
  %v775 = vunpack.c.l.b16 %v760
  %v776 = vpack.c.b16 %v773, %v772
  %v777 = vpack.c.b16 %v775, %v774
  %v781 = vsel %vm291, %v749, 0
  %v784 = vsel %vm291, %v750, 0
  %v787 = vsel %vm291, %v751, 0
  %v790 = vsel %vm291, %v752, 0
  %v793 = vsel %vm291, %v753, 0
  %v796 = vsel %vm291, %v754, 0
  %v799 = vsel %vm291, %v755, 0
  %v802 = vsel %vm291, %v756, 0
  %804 = vmatprep.subr.bf16.mxu0 0
  %805 = vmatpush1.bf16.msra.mxu0 %v776
  %806 = vmatprep.subr.bf16.mxu0 0
  %807 = vmatpush1.bf16.msra.mxu0 %v777
  %808 = vmatprep.subr.bf16.mxu0 0
  %809 = vmatpush1.bf16.msra.mxu0 0
  %810 = vmatprep.subr.bf16.mxu0 0
  %811 = vmatpush1.bf16.msra.mxu0 0
  %812 = vmatprep.subr.bf16.mxu0 0
  %813 = vmatpush1.bf16.msra.mxu0 0
  %814 = vmatprep.subr.bf16.mxu0 0
  %815 = vmatpush1.bf16.msra.mxu0 0
  %816 = vmatprep.subr.bf16.mxu0 0
  %817 = vmatpush1.bf16.msra.mxu0 0
  %818 = vmatprep.subr.bf16.mxu0 0
  %819 = vmatpush1.bf16.msra.mxu0 0
  %820 = vmatprep.subr.bf16.mxu0 0
  %821 = vmatpush1.bf16.msra.mxu0 0
  %822 = vmatprep.subr.bf16.mxu0 0
  %823 = vmatpush1.bf16.msra.mxu0 0
  %824 = vmatprep.subr.bf16.mxu0 0
  %825 = vmatpush1.bf16.msra.mxu0 0
  %826 = vmatprep.subr.bf16.mxu0 0
  %827 = vmatpush1.bf16.msra.mxu0 0
  %828 = vmatprep.subr.bf16.mxu0 0
  %829 = vmatpush1.bf16.msra.mxu0 0
  %830 = vmatprep.subr.bf16.mxu0 0
  %831 = vmatpush1.bf16.msra.mxu0 0
  %832 = vmatprep.subr.bf16.mxu0 0
  %833 = vmatpush1.bf16.msra.mxu0 0
  %834 = vmatprep.subr.bf16.mxu0 0
  %835 = vmatpush1.bf16.msra.mxu0 0
  %836 = vmatprep.mubr.bf16.mxu0 0
  %837 = vmatmul.mubr.bf16.gmra.mrb[0].mxu0 %v781
  %v838 = vpop.f32.mrb[0].mxu0
  %v839 = vadd.f32 %v766, %v838
  %v840 = vpop.f32.mrb[0].mxu0
  %v841 = vpop.f32.mrb[0].mxu0
  %v842 = vadd.f32 %v766, %v841
  %v843 = vpop.f32.mrb[0].mxu0
  %844 = vmatprep.mubr.bf16.mxu0 0
  %845 = vmatmul.mubr.bf16.gmra.mrb[0].mxu0 %v784
  %v846 = vpop.f32.mrb[0].mxu0
  %v847 = vadd.f32 %v766, %v846
  %v848 = vpop.f32.mrb[0].mxu0
  %v849 = vpop.f32.mrb[0].mxu0
  %v850 = vadd.f32 %v766, %v849
  %v851 = vpop.f32.mrb[0].mxu0
  %852 = vmatprep.mubr.bf16.mxu0 0
  %853 = vmatmul.mubr.bf16.gmra.mrb[0].mxu0 %v787
  %v854 = vpop.f32.mrb[0].mxu0
  %v855 = vadd.f32 %v766, %v854
  %v856 = vpop.f32.mrb[0].mxu0
  %v857 = vpop.f32.mrb[0].mxu0
  %v858 = vadd.f32 %v766, %v857
  %v859 = vpop.f32.mrb[0].mxu0
  %860 = vmatprep.mubr.bf16.mxu0 0
  %861 = vmatmul.mubr.bf16.gmra.mrb[0].mxu0 %v790
  %v862 = vpop.f32.mrb[0].mxu0
  %v863 = vadd.f32 %v766, %v862
  %v864 = vpop.f32.mrb[0].mxu0
  %v865 = vpop.f32.mrb[0].mxu0
  %v866 = vadd.f32 %v766, %v865
  %v867 = vpop.f32.mrb[0].mxu0
  %868 = vmatprep.mubr.bf16.mxu0 0
  %869 = vmatmul.mubr.bf16.gmra.mrb[0].mxu0 %v793
  %v870 = vpop.f32.mrb[0].mxu0
  %v871 = vadd.f32 %v766, %v870
  %v872 = vpop.f32.mrb[0].mxu0
  %v873 = vpop.f32.mrb[0].mxu0
  %v874 = vadd.f32 %v766, %v873
  %v875 = vpop.f32.mrb[0].mxu0
  %876 = vmatprep.mubr.bf16.mxu0 0
  %877 = vmatmul.mubr.bf16.gmra.mrb[0].mxu0 %v796
  %v878 = vpop.f32.mrb[0].mxu0
  %v879 = vadd.f32 %v766, %v878
  %v880 = vpop.f32.mrb[0].mxu0
  %v881 = vpop.f32.mrb[0].mxu0
  %v882 = vadd.f32 %v766, %v881
  %v883 = vpop.f32.mrb[0].mxu0
  %884 = vmatprep.mubr.bf16.mxu0 0
  %885 = vmatmul.mubr.bf16.gmra.mrb[0].mxu0 %v799
  %v886 = vpop.f32.mrb[0].mxu0
  %v887 = vadd.f32 %v766, %v886
  %v888 = vpop.f32.mrb[0].mxu0
  %v889 = vpop.f32.mrb[0].mxu0
  %v890 = vadd.f32 %v766, %v889
  %v891 = vpop.f32.mrb[0].mxu0
  %892 = vmatprep.mubr.bf16.mxu0 0
  %893 = vmatmul.mubr.bf16.gmra.mrb[0].mxu0 %v802
  %v894 = vpop.f32.mrb[0].mxu0
  %v895 = vadd.f32 %v766, %v894
  %v896 = vpop.f32.mrb[0].mxu0
  %v897 = vpop.f32.mrb[0].mxu0
  %v898 = vadd.f32 %v766, %v897
  %v899 = vpop.f32.mrb[0].mxu0
  %900 = vdwg.mxu0
  %v901 = vmax.f32 %v839, 0.0
  %v902 = vmax.f32 %v842, 0.0
  %v903 = vmax.f32 %v847, 0.0
  %v904 = vmax.f32 %v850, 0.0
  %v905 = vmax.f32 %v855, 0.0
  %v906 = vmax.f32 %v858, 0.0
  %v907 = vmax.f32 %v863, 0.0
  %v908 = vmax.f32 %v866, 0.0
  %v909 = vmax.f32 %v871, 0.0
  %v910 = vmax.f32 %v874, 0.0
  %v911 = vmax.f32 %v879, 0.0
  %v912 = vmax.f32 %v882, 0.0
  %v913 = vmax.f32 %v887, 0.0
  %v914 = vmax.f32 %v890, 0.0
  %v915 = vmax.f32 %v895, 0.0
  %v916 = vmax.f32 %v898, 0.0
  %v917 = vpack.c.bf16 %v902, %v901
  %v918 = vpack.c.bf16 %v904, %v903
  %v919 = vpack.c.bf16 %v906, %v905
  %v920 = vpack.c.bf16 %v908, %v907
  %v921 = vpack.c.bf16 %v910, %v909
  %v922 = vpack.c.bf16 %v912, %v911
  %v923 = vpack.c.bf16 %v914, %v913
  %v924 = vpack.c.bf16 %v916, %v915
  %v925 = vld [vmem:[%s11] sm:$0xf]
  %v926 = vld [vmem:[%s11 + $0x4] sm:$0xf]
  %v927 = vld [vmem:[%s11 + $0x8] sm:$0xf]
  %v928 = vld [vmem:[%s11 + $0xc] sm:$0xf]
  %v929 = vld [vmem:[%s12] sm:$0x1]
  %v931 = vlaneseq
  %v932 = vshrl.u32 %v931, 7
  %v933 = vsub.s32 0, %v932
  %v934 = vrot.slane %v929, %v933
  %v940 = vunpack.c.l.b16 %v925
  %v941 = vunpack.c.l.b16 %v926
  %v942 = vunpack.c.l.b16 %v927
  %v943 = vunpack.c.l.b16 %v928
  %v944 = vpack.c.b16 %v941, %v940
  %v945 = vpack.c.b16 %v943, %v942
  %v949 = vsel %vm291, %v917, 0
  %v952 = vsel %vm291, %v918, 0
  %v955 = vsel %vm291, %v919, 0
  %v958 = vsel %vm291, %v920, 0
  %v961 = vsel %vm291, %v921, 0
  %v964 = vsel %vm291, %v922, 0
  %v967 = vsel %vm291, %v923, 0
  %v970 = vsel %vm291, %v924, 0
  %972 = vmatprep.subr.bf16.mxu0 0
  %973 = vmatpush1.bf16.msra.mxu0 %v944
  %974 = vmatprep.subr.bf16.mxu0 0
  %975 = vmatpush1.bf16.msra.mxu0 %v945
  %976 = vmatprep.subr.bf16.mxu0 0
  %977 = vmatpush1.bf16.msra.mxu0 0
  %978 = vmatprep.subr.bf16.mxu0 0
  %979 = vmatpush1.bf16.msra.mxu0 0
  %980 = vmatprep.subr.bf16.mxu0 0
  %981 = vmatpush1.bf16.msra.mxu0 0
  %982 = vmatprep.subr.bf16.mxu0 0
  %983 = vmatpush1.bf16.msra.mxu0 0
  %984 = vmatprep.subr.bf16.mxu0 0
  %985 = vmatpush1.bf16.msra.mxu0 0
  %986 = vmatprep.subr.bf16.mxu0 0
  %987 = vmatpush1.bf16.msra.mxu0 0
  %988 = vmatprep.subr.bf16.mxu0 0
  %989 = vmatpush1.bf16.msra.mxu0 0
  %990 = vmatprep.subr.bf16.mxu0 0
  %991 = vmatpush1.bf16.msra.mxu0 0
  %992 = vmatprep.subr.bf16.mxu0 0
  %993 = vmatpush1.bf16.msra.mxu0 0
  %994 = vmatprep.subr.bf16.mxu0 0
  %995 = vmatpush1.bf16.msra.mxu0 0
  %996 = vmatprep.subr.bf16.mxu0 0
  %997 = vmatpush1.bf16.msra.mxu0 0
  %998 = vmatprep.subr.bf16.mxu0 0
  %999 = vmatpush1.bf16.msra.mxu0 0
  %1000 = vmatprep.subr.bf16.mxu0 0
  %1001 = vmatpush1.bf16.msra.mxu0 0
  %1002 = vmatprep.subr.bf16.mxu0 0
  %1003 = vmatpush1.bf16.msra.mxu0 0
  %1004 = vmatprep.mubr.bf16.mxu0 0
  %1005 = vmatmul.mubr.bf16.gmra.mrb[0].mxu0 %v949
  %v1006 = vpop.f32.mrb[0].mxu0
  %v1007 = vadd.f32 %v934, %v1006
  %v1008 = vpop.f32.mrb[0].mxu0
  %v1009 = vpop.f32.mrb[0].mxu0
  %v1010 = vadd.f32 %v934, %v1009
  %v1011 = vpop.f32.mrb[0].mxu0
  %1012 = vmatprep.mubr.bf16.mxu0 0
  %1013 = vmatmul.mubr.bf16.gmra.mrb[0].mxu0 %v952
  %v1014 = vpop.f32.mrb[0].mxu0
  %v1015 = vadd.f32 %v934, %v1014
  %v1016 = vpop.f32.mrb[0].mxu0
  %v1017 = vpop.f32.mrb[0].mxu0
  %v1018 = vadd.f32 %v934, %v1017
  %v1019 = vpop.f32.mrb[0].mxu0
  %1020 = vmatprep.mubr.bf16.mxu0 0
  %1021 = vmatmul.mubr.bf16.gmra.mrb[0].mxu0 %v955
  %v1022 = vpop.f32.mrb[0].mxu0
  %v1023 = vadd.f32 %v934, %v1022
  %v1024 = vpop.f32.mrb[0].mxu0
  %v1025 = vpop.f32.mrb[0].mxu0
  %v1026 = vadd.f32 %v934, %v1025
  %v1027 = vpop.f32.mrb[0].mxu0
  %1028 = vmatprep.mubr.bf16.mxu0 0
  %1029 = vmatmul.mubr.bf16.gmra.mrb[0].mxu0 %v958
  %v1030 = vpop.f32.mrb[0].mxu0
  %v1031 = vadd.f32 %v934, %v1030
  %v1032 = vpop.f32.mrb[0].mxu0
  %v1033 = vpop.f32.mrb[0].mxu0
  %v1034 = vadd.f32 %v934, %v1033
  %v1035 = vpop.f32.mrb[0].mxu0
  %1036 = vmatprep.mubr.bf16.mxu0 0
  %1037 = vmatmul.mubr.bf16.gmra.mrb[0].mxu0 %v961
  %v1038 = vpop.f32.mrb[0].mxu0
  %v1039 = vadd.f32 %v934, %v1038
  %v1040 = vpop.f32.mrb[0].mxu0
  %v1041 = vpop.f32.mrb[0].mxu0
  %v1042 = vadd.f32 %v934, %v1041
  %v1043 = vpop.f32.mrb[0].mxu0
  %1044 = vmatprep.mubr.bf16.mxu0 0
  %1045 = vmatmul.mubr.bf16.gmra.mrb[0].mxu0 %v964
  %v1046 = vpop.f32.mrb[0].mxu0
  %v1047 = vadd.f32 %v934, %v1046
  %v1048 = vpop.f32.mrb[0].mxu0
  %v1049 = vpop.f32.mrb[0].mxu0
  %v1050 = vadd.f32 %v934, %v1049
  %v1051 = vpop.f32.mrb[0].mxu0
  %1052 = vmatprep.mubr.bf16.mxu0 0
  %1053 = vmatmul.mubr.bf16.gmra.mrb[0].mxu0 %v967
  %v1054 = vpop.f32.mrb[0].mxu0
  %v1055 = vadd.f32 %v934, %v1054
  %v1056 = vpop.f32.mrb[0].mxu0
  %v1057 = vpop.f32.mrb[0].mxu0
  %v1058 = vadd.f32 %v934, %v1057
  %v1059 = vpop.f32.mrb[0].mxu0
  %1060 = vmatprep.mubr.bf16.mxu0 0
  %1061 = vmatmul.mubr.bf16.gmra.mrb[0].mxu0 %v970
  %v1062 = vpop.f32.mrb[0].mxu0
  %v1063 = vadd.f32 %v934, %v1062
  %v1064 = vpop.f32.mrb[0].mxu0
  %v1065 = vpop.f32.mrb[0].mxu0
  %v1066 = vadd.f32 %v934, %v1065
  %v1067 = vpop.f32.mrb[0].mxu0
  %1068 = vdwg.mxu0
  %v1069 = vpack.c.bf16 %v1010, %v1007
  %v1070 = vpack.c.bf16 %v1018, %v1015
  %v1071 = vpack.c.bf16 %v1026, %v1023
  %v1072 = vpack.c.bf16 %v1034, %v1031
  %v1073 = vpack.c.bf16 %v1042, %v1039
  %v1074 = vpack.c.bf16 %v1050, %v1047
  %v1075 = vpack.c.bf16 %v1058, %v1055
  %v1076 = vpack.c.bf16 %v1066, %v1063
  %v1077 = vld [vmem:[%s13] sm:$0xf]
  %v1078 = vld [vmem:[%s13 + $0x4] sm:$0xf]
  %v1079 = vld [vmem:[%s13 + $0x8] sm:$0xf]
  %v1080 = vld [vmem:[%s13 + $0xc] sm:$0xf]
  %v1081 = vld [vmem:[%s14] sm:$0x1]
  %v1083 = vlaneseq
  %v1084 = vshrl.u32 %v1083, 7
  %v1085 = vsub.s32 0, %v1084
  %v1086 = vrot.slane %v1081, %v1085
  %v1092 = vunpack.c.l.b16 %v1077
  %v1093 = vunpack.c.l.b16 %v1078
  %v1094 = vunpack.c.l.b16 %v1079
  %v1095 = vunpack.c.l.b16 %v1080
  %v1096 = vpack.c.b16 %v1093, %v1092
  %v1097 = vpack.c.b16 %v1095, %v1094
  %v1101 = vsel %vm291, %v1069, 0
  %v1104 = vsel %vm291, %v1070, 0
  %v1107 = vsel %vm291, %v1071, 0
  %v1110 = vsel %vm291, %v1072, 0
  %v1113 = vsel %vm291, %v1073, 0
  %v1116 = vsel %vm291, %v1074, 0
  %v1119 = vsel %vm291, %v1075, 0
  %v1122 = vsel %vm291, %v1076, 0
  %1124 = vmatprep.subr.bf16.mxu0 0
  %1125 = vmatpush1.bf16.msra.mxu0 %v1096
  %1126 = vmatprep.subr.bf16.mxu0 0
  %1127 = vmatpush1.bf16.msra.mxu0 %v1097
  %1128 = vmatprep.subr.bf16.mxu0 0
  %1129 = vmatpush1.bf16.msra.mxu0 0
  %1130 = vmatprep.subr.bf16.mxu0 0
  %1131 = vmatpush1.bf16.msra.mxu0 0
  %1132 = vmatprep.subr.bf16.mxu0 0
  %1133 = vmatpush1.bf16.msra.mxu0 0
  %1134 = vmatprep.subr.bf16.mxu0 0
  %1135 = vmatpush1.bf16.msra.mxu0 0
  %1136 = vmatprep.subr.bf16.mxu0 0
  %1137 = vmatpush1.bf16.msra.mxu0 0
  %1138 = vmatprep.subr.bf16.mxu0 0
  %1139 = vmatpush1.bf16.msra.mxu0 0
  %1140 = vmatprep.subr.bf16.mxu0 0
  %1141 = vmatpush1.bf16.msra.mxu0 0
  %1142 = vmatprep.subr.bf16.mxu0 0
  %1143 = vmatpush1.bf16.msra.mxu0 0
  %1144 = vmatprep.subr.bf16.mxu0 0
  %1145 = vmatpush1.bf16.msra.mxu0 0
  %1146 = vmatprep.subr.bf16.mxu0 0
  %1147 = vmatpush1.bf16.msra.mxu0 0
  %1148 = vmatprep.subr.bf16.mxu0 0
  %1149 = vmatpush1.bf16.msra.mxu0 0
  %1150 = vmatprep.subr.bf16.mxu0 0
  %1151 = vmatpush1.bf16.msra.mxu0 0
  %1152 = vmatprep.subr.bf16.mxu0 0
  %1153 = vmatpush1.bf16.msra.mxu0 0
  %1154 = vmatprep.subr.bf16.mxu0 0
  %1155 = vmatpush1.bf16.msra.mxu0 0
  %1156 = vmatprep.mubr.bf16.mxu0 0
  %1157 = vmatmul.mubr.bf16.gmra.mrb[0].mxu0 %v1101
  %v1158 = vpop.f32.mrb[0].mxu0
  %v1159 = vadd.f32 %v1086, %v1158
  %v1160 = vpop.f32.mrb[0].mxu0
  %v1161 = vpop.f32.mrb[0].mxu0
  %v1162 = vadd.f32 %v1086, %v1161
  %v1163 = vpop.f32.mrb[0].mxu0
  %1164 = vmatprep.mubr.bf16.mxu0 0
  %1165 = vmatmul.mubr.bf16.gmra.mrb[0].mxu0 %v1104
  %v1166 = vpop.f32.mrb[0].mxu0
  %v1167 = vadd.f32 %v1086, %v1166
  %v1168 = vpop.f32.mrb[0].mxu0
  %v1169 = vpop.f32.mrb[0].mxu0
  %v1170 = vadd.f32 %v1086, %v1169
  %v1171 = vpop.f32.mrb[0].mxu0
  %1172 = vmatprep.mubr.bf16.mxu0 0
  %1173 = vmatmul.mubr.bf16.gmra.mrb[0].mxu0 %v1107
  %v1174 = vpop.f32.mrb[0].mxu0
  %v1175 = vadd.f32 %v1086, %v1174
  %v1176 = vpop.f32.mrb[0].mxu0
  %v1177 = vpop.f32.mrb[0].mxu0
  %v1178 = vadd.f32 %v1086, %v1177
  %v1179 = vpop.f32.mrb[0].mxu0
  %1180 = vmatprep.mubr.bf16.mxu0 0
  %1181 = vmatmul.mubr.bf16.gmra.mrb[0].mxu0 %v1110
  %v1182 = vpop.f32.mrb[0].mxu0
  %v1183 = vadd.f32 %v1086, %v1182
  %v1184 = vpop.f32.mrb[0].mxu0
  %v1185 = vpop.f32.mrb[0].mxu0
  %v1186 = vadd.f32 %v1086, %v1185
  %v1187 = vpop.f32.mrb[0].mxu0
  %1188 = vmatprep.mubr.bf16.mxu0 0
  %1189 = vmatmul.mubr.bf16.gmra.mrb[0].mxu0 %v1113
  %v1190 = vpop.f32.mrb[0].mxu0
  %v1191 = vadd.f32 %v1086, %v1190
  %v1192 = vpop.f32.mrb[0].mxu0
  %v1193 = vpop.f32.mrb[0].mxu0
  %v1194 = vadd.f32 %v1086, %v1193
  %v1195 = vpop.f32.mrb[0].mxu0
  %1196 = vmatprep.mubr.bf16.mxu0 0
  %1197 = vmatmul.mubr.bf16.gmra.mrb[0].mxu0 %v1116
  %v1198 = vpop.f32.mrb[0].mxu0
  %v1199 = vadd.f32 %v1086, %v1198
  %v1200 = vpop.f32.mrb[0].mxu0
  %v1201 = vpop.f32.mrb[0].mxu0
  %v1202 = vadd.f32 %v1086, %v1201
  %v1203 = vpop.f32.mrb[0].mxu0
  %1204 = vmatprep.mubr.bf16.mxu0 0
  %1205 = vmatmul.mubr.bf16.gmra.mrb[0].mxu0 %v1119
  %v1206 = vpop.f32.mrb[0].mxu0
  %v1207 = vadd.f32 %v1086, %v1206
  %v1208 = vpop.f32.mrb[0].mxu0
  %v1209 = vpop.f32.mrb[0].mxu0
  %v1210 = vadd.f32 %v1086, %v1209
  %v1211 = vpop.f32.mrb[0].mxu0
  %1212 = vmatprep.mubr.bf16.mxu0 0
  %1213 = vmatmul.mubr.bf16.gmra.mrb[0].mxu0 %v1122
  %v1214 = vpop.f32.mrb[0].mxu0
  %v1215 = vadd.f32 %v1086, %v1214
  %v1216 = vpop.f32.mrb[0].mxu0
  %v1217 = vpop.f32.mrb[0].mxu0
  %v1218 = vadd.f32 %v1086, %v1217
  %v1219 = vpop.f32.mrb[0].mxu0
  %1220 = vdwg.mxu0
  %v1221 = vmax.f32 %v1159, 0.0
  %v1222 = vmax.f32 %v1162, 0.0
  %v1223 = vmax.f32 %v1167, 0.0
  %v1224 = vmax.f32 %v1170, 0.0
  %v1225 = vmax.f32 %v1175, 0.0
  %v1226 = vmax.f32 %v1178, 0.0
  %v1227 = vmax.f32 %v1183, 0.0
  %v1228 = vmax.f32 %v1186, 0.0
  %v1229 = vmax.f32 %v1191, 0.0
  %v1230 = vmax.f32 %v1194, 0.0
  %v1231 = vmax.f32 %v1199, 0.0
  %v1232 = vmax.f32 %v1202, 0.0
  %v1233 = vmax.f32 %v1207, 0.0
  %v1234 = vmax.f32 %v1210, 0.0
  %v1235 = vmax.f32 %v1215, 0.0
  %v1236 = vmax.f32 %v1218, 0.0
  %v1237 = vpack.c.bf16 %v1222, %v1221
  %v1238 = vpack.c.bf16 %v1224, %v1223
  %v1239 = vpack.c.bf16 %v1226, %v1225
  %v1240 = vpack.c.bf16 %v1228, %v1227
  %v1241 = vpack.c.bf16 %v1230, %v1229
  %v1242 = vpack.c.bf16 %v1232, %v1231
  %v1243 = vpack.c.bf16 %v1234, %v1233
  %v1244 = vpack.c.bf16 %v1236, %v1235
  %v1245 = vld [vmem:[%s15] sm:$0xf]
  %v1246 = vld [vmem:[%s15 + $0x4] sm:$0xf]
  %v1247 = vld [vmem:[%s16] sm:$0x1]
  %v1249 = vlaneseq
  %v1250 = vshrl.u32 %v1249, 7
  %v1251 = vsub.s32 0, %v1250
  %v1252 = vrot.slane %v1247, %v1251
  %v1256 = vunpack.c.l.b16 %v1245
  %v1257 = vunpack.c.l.b16 %v1246
  %v1258 = vpack.c.b16 %v1257, %v1256
  %vm1260 = vcmask 130048
  %v1262 = vsel %vm1260, %v1237, 0
  %v1265 = vsel %vm1260, %v1238, 0
  %v1268 = vsel %vm1260, %v1239, 0
  %v1271 = vsel %vm1260, %v1240, 0
  %v1274 = vsel %vm1260, %v1241, 0
  %v1277 = vsel %vm1260, %v1242, 0
  %v1280 = vsel %vm1260, %v1243, 0
  %v1283 = vsel %vm1260, %v1244, 0
  %1285 = vmatprep.subr.bf16.mxu0 0
  %1286 = vmatpush1.bf16.msra.mxu0 %v1258
  %1287 = vmatprep.subr.bf16.mxu0 0
  %1288 = vmatpush1.bf16.msra.mxu0 0
  %1289 = vmatprep.subr.bf16.mxu0 0
  %1290 = vmatpush1.bf16.msra.mxu0 0
  %1291 = vmatprep.subr.bf16.mxu0 0
  %1292 = vmatpush1.bf16.msra.mxu0 0
  %1293 = vmatprep.subr.bf16.mxu0 0
  %1294 = vmatpush1.bf16.msra.mxu0 0
  %1295 = vmatprep.subr.bf16.mxu0 0
  %1296 = vmatpush1.bf16.msra.mxu0 0
  %1297 = vmatprep.subr.bf16.mxu0 0
  %1298 = vmatpush1.bf16.msra.mxu0 0
  %1299 = vmatprep.subr.bf16.mxu0 0
  %1300 = vmatpush1.bf16.msra.mxu0 0
  %1301 = vmatprep.subr.bf16.mxu0 0
  %1302 = vmatpush1.bf16.msra.mxu0 0
  %1303 = vmatprep.subr.bf16.mxu0 0
  %1304 = vmatpush1.bf16.msra.mxu0 0
  %1305 = vmatprep.subr.bf16.mxu0 0
  %1306 = vmatpush1.bf16.msra.mxu0 0
  %1307 = vmatprep.subr.bf16.mxu0 0
  %1308 = vmatpush1.bf16.msra.mxu0 0
  %1309 = vmatprep.subr.bf16.mxu0 0
  %1310 = vmatpush1.bf16.msra.mxu0 0
  %1311 = vmatprep.subr.bf16.mxu0 0
  %1312 = vmatpush1.bf16.msra.mxu0 0
  %1313 = vmatprep.subr.bf16.mxu0 0
  %1314 = vmatpush1.bf16.msra.mxu0 0
  %1315 = vmatprep.subr.bf16.mxu0 0
  %1316 = vmatpush1.bf16.msra.mxu0 0
  %1317 = vmatprep.mubr.bf16.mxu0 0
  %1318 = vmatmul.mubr.bf16.gmra.mrb[0].mxu0 %v1262
  %v1319 = vpop.f32.mrb[0].mxu0
  %v1320 = vadd.f32 %v1252, %v1319
  %v1321 = vpop.f32.mrb[0].mxu0
  %v1322 = vpop.f32.mrb[0].mxu0
  %v1323 = vadd.f32 %v1252, %v1322
  %v1324 = vpop.f32.mrb[0].mxu0
  %1325 = vmatprep.mubr.bf16.mxu0 0
  %1326 = vmatmul.mubr.bf16.gmra.mrb[0].mxu0 %v1265
  %v1327 = vpop.f32.mrb[0].mxu0
  %v1328 = vadd.f32 %v1252, %v1327
  %v1329 = vpop.f32.mrb[0].mxu0
  %v1330 = vpop.f32.mrb[0].mxu0
  %v1331 = vadd.f32 %v1252, %v1330
  %v1332 = vpop.f32.mrb[0].mxu0
  %1333 = vmatprep.mubr.bf16.mxu0 0
  %1334 = vmatmul.mubr.bf16.gmra.mrb[0].mxu0 %v1268
  %v1335 = vpop.f32.mrb[0].mxu0
  %v1336 = vadd.f32 %v1252, %v1335
  %v1337 = vpop.f32.mrb[0].mxu0
  %v1338 = vpop.f32.mrb[0].mxu0
  %v1339 = vadd.f32 %v1252, %v1338
  %v1340 = vpop.f32.mrb[0].mxu0
  %1341 = vmatprep.mubr.bf16.mxu0 0
  %1342 = vmatmul.mubr.bf16.gmra.mrb[0].mxu0 %v1271
  %v1343 = vpop.f32.mrb[0].mxu0
  %v1344 = vadd.f32 %v1252, %v1343
  %v1345 = vpop.f32.mrb[0].mxu0
  %v1346 = vpop.f32.mrb[0].mxu0
  %v1347 = vadd.f32 %v1252, %v1346
  %v1348 = vpop.f32.mrb[0].mxu0
  %1349 = vmatprep.mubr.bf16.mxu0 0
  %1350 = vmatmul.mubr.bf16.gmra.mrb[0].mxu0 %v1274
  %v1351 = vpop.f32.mrb[0].mxu0
  %v1352 = vadd.f32 %v1252, %v1351
  %v1353 = vpop.f32.mrb[0].mxu0
  %v1354 = vpop.f32.mrb[0].mxu0
  %v1355 = vadd.f32 %v1252, %v1354
  %v1356 = vpop.f32.mrb[0].mxu0
  %1357 = vmatprep.mubr.bf16.mxu0 0
  %1358 = vmatmul.mubr.bf16.gmra.mrb[0].mxu0 %v1277
  %v1359 = vpop.f32.mrb[0].mxu0
  %v1360 = vadd.f32 %v1252, %v1359
  %v1361 = vpop.f32.mrb[0].mxu0
  %v1362 = vpop.f32.mrb[0].mxu0
  %v1363 = vadd.f32 %v1252, %v1362
  %v1364 = vpop.f32.mrb[0].mxu0
  %1365 = vmatprep.mubr.bf16.mxu0 0
  %1366 = vmatmul.mubr.bf16.gmra.mrb[0].mxu0 %v1280
  %v1367 = vpop.f32.mrb[0].mxu0
  %v1368 = vadd.f32 %v1252, %v1367
  %v1369 = vpop.f32.mrb[0].mxu0
  %v1370 = vpop.f32.mrb[0].mxu0
  %v1371 = vadd.f32 %v1252, %v1370
  %v1372 = vpop.f32.mrb[0].mxu0
  %1373 = vmatprep.mubr.bf16.mxu0 0
  %1374 = vmatmul.mubr.bf16.gmra.mrb[0].mxu0 %v1283
  %v1375 = vpop.f32.mrb[0].mxu0
  %v1376 = vadd.f32 %v1252, %v1375
  %v1377 = vpop.f32.mrb[0].mxu0
  %v1378 = vpop.f32.mrb[0].mxu0
  %v1379 = vadd.f32 %v1252, %v1378
  %v1380 = vpop.f32.mrb[0].mxu0
  %1381 = vdwg.mxu0
  %v1382 = vpack.c.bf16 %v1323, %v1320
  %v1383 = vpack.c.bf16 %v1331, %v1328
  %v1384 = vpack.c.bf16 %v1339, %v1336
  %v1385 = vpack.c.bf16 %v1347, %v1344
  %v1386 = vpack.c.bf16 %v1355, %v1352
  %v1387 = vpack.c.bf16 %v1363, %v1360
  %v1388 = vpack.c.bf16 %v1371, %v1368
  %v1389 = vpack.c.bf16 %v1379, %v1376
  %v1390 = vld [vmem:[%s17] sm:$0xf]
  %v1391 = vld [vmem:[#allocation2] sm:$0x1]
  %v1393 = vlaneseq
  %v1394 = vshrl.u32 %v1393, 7
  %v1395 = vsub.s32 0, %v1394
  %v1396 = vrot.slane %v1391, %v1395
  %vm1398 = vcmask 64512
  %v1400 = vsel %vm1398, %v1382, 0
  %v1403 = vsel %vm1398, %v1383, 0
  %v1406 = vsel %vm1398, %v1384, 0
  %v1409 = vsel %vm1398, %v1385, 0
  %v1412 = vsel %vm1398, %v1386, 0
  %v1415 = vsel %vm1398, %v1387, 0
  %v1418 = vsel %vm1398, %v1388, 0
  %v1421 = vsel %vm1398, %v1389, 0
  %vm1423 = vcmask 1043456
  %v1425 = vsel %vm1423, %v1390, 0
  %1427 = vmatprep.subr.bf16.mxu0 0
  %1428 = vmatpush1.bf16.msra.mxu0 %v1425
  %1429 = vmatprep.subr.bf16.mxu0 0
  %1430 = vmatpush1.bf16.msra.mxu0 0
  %1431 = vmatprep.subr.bf16.mxu0 0
  %1432 = vmatpush1.bf16.msra.mxu0 0
  %1433 = vmatprep.subr.bf16.mxu0 0
  %1434 = vmatpush1.bf16.msra.mxu0 0
  %1435 = vmatprep.subr.bf16.mxu0 0
  %1436 = vmatpush1.bf16.msra.mxu0 0
  %1437 = vmatprep.subr.bf16.mxu0 0
  %1438 = vmatpush1.bf16.msra.mxu0 0
  %1439 = vmatprep.subr.bf16.mxu0 0
  %1440 = vmatpush1.bf16.msra.mxu0 0
  %1441 = vmatprep.subr.bf16.mxu0 0
  %1442 = vmatpush1.bf16.msra.mxu0 0
  %1443 = vmatprep.subr.bf16.mxu0 0
  %1444 = vmatpush1.bf16.msra.mxu0 0
  %1445 = vmatprep.subr.bf16.mxu0 0
  %1446 = vmatpush1.bf16.msra.mxu0 0
  %1447 = vmatprep.subr.bf16.mxu0 0
  %1448 = vmatpush1.bf16.msra.mxu0 0
  %1449 = vmatprep.subr.bf16.mxu0 0
  %1450 = vmatpush1.bf16.msra.mxu0 0
  %1451 = vmatprep.subr.bf16.mxu0 0
  %1452 = vmatpush1.bf16.msra.mxu0 0
  %1453 = vmatprep.subr.bf16.mxu0 0
  %1454 = vmatpush1.bf16.msra.mxu0 0
  %1455 = vmatprep.subr.bf16.mxu0 0
  %1456 = vmatpush1.bf16.msra.mxu0 0
  %1457 = vmatprep.subr.bf16.mxu0 0
  %1458 = vmatpush1.bf16.msra.mxu0 0
  %1459 = vmatprep.mubr.bf16.mxu0 0
  %1460 = vmatmul.mubr.bf16.gmra.mrb[0].mxu0 %v1400
  %v1461 = vpop.f32.mrb[0].mxu0
  %v1462 = vadd.f32 %v1396, %v1461
  %v1463 = vpop.f32.mrb[0].mxu0
  %v1464 = vpop.f32.mrb[0].mxu0
  %v1465 = vadd.f32 %v1396, %v1464
  %v1466 = vpop.f32.mrb[0].mxu0
  %1467 = vmatprep.mubr.bf16.mxu0 0
  %1468 = vmatmul.mubr.bf16.gmra.mrb[0].mxu0 %v1403
  %v1469 = vpop.f32.mrb[0].mxu0
  %v1470 = vadd.f32 %v1396, %v1469
  %v1471 = vpop.f32.mrb[0].mxu0
  %v1472 = vpop.f32.mrb[0].mxu0
  %v1473 = vadd.f32 %v1396, %v1472
  %v1474 = vpop.f32.mrb[0].mxu0
  %1475 = vmatprep.mubr.bf16.mxu0 0
  %1476 = vmatmul.mubr.bf16.gmra.mrb[0].mxu0 %v1406
  %v1477 = vpop.f32.mrb[0].mxu0
  %v1478 = vadd.f32 %v1396, %v1477
  %v1479 = vpop.f32.mrb[0].mxu0
  %v1480 = vpop.f32.mrb[0].mxu0
  %v1481 = vadd.f32 %v1396, %v1480
  %v1482 = vpop.f32.mrb[0].mxu0
  %1483 = vmatprep.mubr.bf16.mxu0 0
  %1484 = vmatmul.mubr.bf16.gmra.mrb[0].mxu0 %v1409
  %v1485 = vpop.f32.mrb[0].mxu0
  %v1486 = vadd.f32 %v1396, %v1485
  %v1487 = vpop.f32.mrb[0].mxu0
  %v1488 = vpop.f32.mrb[0].mxu0
  %v1489 = vadd.f32 %v1396, %v1488
  %v1490 = vpop.f32.mrb[0].mxu0
  %1491 = vmatprep.mubr.bf16.mxu0 0
  %1492 = vmatmul.mubr.bf16.gmra.mrb[0].mxu0 %v1412
  %v1493 = vpop.f32.mrb[0].mxu0
  %v1494 = vadd.f32 %v1396, %v1493
  %v1495 = vpop.f32.mrb[0].mxu0
  %v1496 = vpop.f32.mrb[0].mxu0
  %v1497 = vadd.f32 %v1396, %v1496
  %v1498 = vpop.f32.mrb[0].mxu0
  %1499 = vmatprep.mubr.bf16.mxu0 0
  %1500 = vmatmul.mubr.bf16.gmra.mrb[0].mxu0 %v1415
  %v1501 = vpop.f32.mrb[0].mxu0
  %v1502 = vadd.f32 %v1396, %v1501
  %v1503 = vpop.f32.mrb[0].mxu0
  %v1504 = vpop.f32.mrb[0].mxu0
  %v1505 = vadd.f32 %v1396, %v1504
  %v1506 = vpop.f32.mrb[0].mxu0
  %1507 = vmatprep.mubr.bf16.mxu0 0
  %1508 = vmatmul.mubr.bf16.gmra.mrb[0].mxu0 %v1418
  %v1509 = vpop.f32.mrb[0].mxu0
  %v1510 = vadd.f32 %v1396, %v1509
  %v1511 = vpop.f32.mrb[0].mxu0
  %v1512 = vpop.f32.mrb[0].mxu0
  %v1513 = vadd.f32 %v1396, %v1512
  %v1514 = vpop.f32.mrb[0].mxu0
  %1515 = vmatprep.mubr.bf16.mxu0 0
  %1516 = vmatmul.mubr.bf16.gmra.mrb[0].mxu0 %v1421
  %v1517 = vpop.f32.mrb[0].mxu0
  %v1518 = vadd.f32 %v1396, %v1517
  %v1519 = vpop.f32.mrb[0].mxu0
  %v1520 = vpop.f32.mrb[0].mxu0
  %v1521 = vadd.f32 %v1396, %v1520
  %v1522 = vpop.f32.mrb[0].mxu0
  %1523 = vdwg.mxu0
  %vm1524 = vcmp.gt.f32.partialorder %v1462, 20.0
  %vm1525 = vcmp.gt.f32.partialorder %v1465, 20.0
  %vm1526 = vcmp.gt.f32.partialorder %v1470, 20.0
  %vm1527 = vcmp.gt.f32.partialorder %v1473, 20.0
  %vm1528 = vcmp.gt.f32.partialorder %v1478, 20.0
  %vm1529 = vcmp.gt.f32.partialorder %v1481, 20.0
  %vm1530 = vcmp.gt.f32.partialorder %v1486, 20.0
  %vm1531 = vcmp.gt.f32.partialorder %v1489, 20.0
  %vm1532 = vcmp.gt.f32.partialorder %v1494, 20.0
  %vm1533 = vcmp.gt.f32.partialorder %v1497, 20.0
  %vm1534 = vcmp.gt.f32.partialorder %v1502, 20.0
  %vm1535 = vcmp.gt.f32.partialorder %v1505, 20.0
  %vm1536 = vcmp.gt.f32.partialorder %v1510, 20.0
  %vm1537 = vcmp.gt.f32.partialorder %v1513, 20.0
  %vm1538 = vcmp.gt.f32.partialorder %v1518, 20.0
  %vm1539 = vcmp.gt.f32.partialorder %v1521, 20.0
  %v1540 = vmin.f32 %v1462, 20.0
  %v1541 = vmin.f32 %v1465, 20.0
  %v1542 = vmin.f32 %v1470, 20.0
  %v1543 = vmin.f32 %v1473, 20.0
  %v1544 = vmin.f32 %v1478, 20.0
  %v1545 = vmin.f32 %v1481, 20.0
  %v1546 = vmin.f32 %v1486, 20.0
  %v1547 = vmin.f32 %v1489, 20.0
  %v1548 = vmin.f32 %v1494, 20.0
  %v1549 = vmin.f32 %v1497, 20.0
  %v1550 = vmin.f32 %v1502, 20.0
  %v1551 = vmin.f32 %v1505, 20.0
  %v1552 = vmin.f32 %v1510, 20.0
  %v1553 = vmin.f32 %v1513, 20.0
  %v1554 = vmin.f32 %v1518, 20.0
  %v1555 = vmin.f32 %v1521, 20.0
  %v1556 = vmul.f32 %v1540, 1.442695
  %v1557 = vpow.pop %v1556
  %v1558 = vmul.f32 %v1541, 1.442695
  %v1559 = vpow.pop %v1558
  %v1560 = vmul.f32 %v1542, 1.442695
  %v1561 = vpow.pop %v1560
  %v1562 = vmul.f32 %v1543, 1.442695
  %v1563 = vpow.pop %v1562
  %v1564 = vmul.f32 %v1544, 1.442695
  %v1565 = vpow.pop %v1564
  %v1566 = vmul.f32 %v1545, 1.442695
  %v1567 = vpow.pop %v1566
  %v1568 = vmul.f32 %v1546, 1.442695
  %v1569 = vpow.pop %v1568
  %v1570 = vmul.f32 %v1547, 1.442695
  %v1571 = vpow.pop %v1570
  %v1572 = vmul.f32 %v1548, 1.442695
  %v1573 = vpow.pop %v1572
  %v1574 = vmul.f32 %v1549, 1.442695
  %v1575 = vpow.pop %v1574
  %v1576 = vmul.f32 %v1550, 1.442695
  %v1577 = vpow.pop %v1576
  %v1578 = vmul.f32 %v1551, 1.442695
  %v1579 = vpow.pop %v1578
  %v1580 = vmul.f32 %v1552, 1.442695
  %v1581 = vpow.pop %v1580
  %v1582 = vmul.f32 %v1553, 1.442695
  %v1583 = vpow.pop %v1582
  %v1584 = vmul.f32 %v1554, 1.442695
  %v1585 = vpow.pop %v1584
  %v1586 = vmul.f32 %v1555, 1.442695
  %v1587 = vpow.pop %v1586
  %v1588 = vadd.f32 %v1557, 1.0
  %v1589 = vlog2.pop %v1588
  %v1590 = vmul.f32 %v1589, 0.6931472
  %v1591 = vmul.f32 -0.5, %v1557
  %v1592 = vadd.f32 %v1591, 1.0
  %v1593 = vmul.f32 %v1592, %v1557
  %v1594 = vand.u32 2147483647, %v1557
  %vm1595 = vcmp.lt.f32.partialorder %v1594, 0.0004427343
  %v1596 = vsel %vm1595, %v1593, %v1590
  %v1597 = vadd.f32 %v1559, 1.0
  %v1598 = vlog2.pop %v1597
  %v1599 = vmul.f32 %v1598, 0.6931472
  %v1600 = vmul.f32 -0.5, %v1559
  %v1601 = vadd.f32 %v1600, 1.0
  %v1602 = vmul.f32 %v1601, %v1559
  %v1603 = vand.u32 2147483647, %v1559
  %vm1604 = vcmp.lt.f32.partialorder %v1603, 0.0004427343
  %v1605 = vsel %vm1604, %v1602, %v1599
  %v1606 = vadd.f32 %v1561, 1.0
  %v1607 = vlog2.pop %v1606
  %v1608 = vmul.f32 %v1607, 0.6931472
  %v1609 = vmul.f32 -0.5, %v1561
  %v1610 = vadd.f32 %v1609, 1.0
  %v1611 = vmul.f32 %v1610, %v1561
  %v1612 = vand.u32 2147483647, %v1561
  %vm1613 = vcmp.lt.f32.partialorder %v1612, 0.0004427343
  %v1614 = vsel %vm1613, %v1611, %v1608
  %v1615 = vadd.f32 %v1563, 1.0
  %v1616 = vlog2.pop %v1615
  %v1617 = vmul.f32 %v1616, 0.6931472
  %v1618 = vmul.f32 -0.5, %v1563
  %v1619 = vadd.f32 %v1618, 1.0
  %v1620 = vmul.f32 %v1619, %v1563
  %v1621 = vand.u32 2147483647, %v1563
  %vm1622 = vcmp.lt.f32.partialorder %v1621, 0.0004427343
  %v1623 = vsel %vm1622, %v1620, %v1617
  %v1624 = vadd.f32 %v1565, 1.0
  %v1625 = vlog2.pop %v1624
  %v1626 = vmul.f32 %v1625, 0.6931472
  %v1627 = vmul.f32 -0.5, %v1565
  %v1628 = vadd.f32 %v1627, 1.0
  %v1629 = vmul.f32 %v1628, %v1565
  %v1630 = vand.u32 2147483647, %v1565
  %vm1631 = vcmp.lt.f32.partialorder %v1630, 0.0004427343
  %v1632 = vsel %vm1631, %v1629, %v1626
  %v1633 = vadd.f32 %v1567, 1.0
  %v1634 = vlog2.pop %v1633
  %v1635 = vmul.f32 %v1634, 0.6931472
  %v1636 = vmul.f32 -0.5, %v1567
  %v1637 = vadd.f32 %v1636, 1.0
  %v1638 = vmul.f32 %v1637, %v1567
  %v1639 = vand.u32 2147483647, %v1567
  %vm1640 = vcmp.lt.f32.partialorder %v1639, 0.0004427343
  %v1641 = vsel %vm1640, %v1638, %v1635
  %v1642 = vadd.f32 %v1569, 1.0
  %v1643 = vlog2.pop %v1642
  %v1644 = vmul.f32 %v1643, 0.6931472
  %v1645 = vmul.f32 -0.5, %v1569
  %v1646 = vadd.f32 %v1645, 1.0
  %v1647 = vmul.f32 %v1646, %v1569
  %v1648 = vand.u32 2147483647, %v1569
  %vm1649 = vcmp.lt.f32.partialorder %v1648, 0.0004427343
  %v1650 = vsel %vm1649, %v1647, %v1644
  %v1651 = vadd.f32 %v1571, 1.0
  %v1652 = vlog2.pop %v1651
  %v1653 = vmul.f32 %v1652, 0.6931472
  %v1654 = vmul.f32 -0.5, %v1571
  %v1655 = vadd.f32 %v1654, 1.0
  %v1656 = vmul.f32 %v1655, %v1571
  %v1657 = vand.u32 2147483647, %v1571
  %vm1658 = vcmp.lt.f32.partialorder %v1657, 0.0004427343
  %v1659 = vsel %vm1658, %v1656, %v1653
  %v1660 = vadd.f32 %v1573, 1.0
  %v1661 = vlog2.pop %v1660
  %v1662 = vmul.f32 %v1661, 0.6931472
  %v1663 = vmul.f32 -0.5, %v1573
  %v1664 = vadd.f32 %v1663, 1.0
  %v1665 = vmul.f32 %v1664, %v1573
  %v1666 = vand.u32 2147483647, %v1573
  %vm1667 = vcmp.lt.f32.partialorder %v1666, 0.0004427343
  %v1668 = vsel %vm1667, %v1665, %v1662
  %v1669 = vadd.f32 %v1575, 1.0
  %v1670 = vlog2.pop %v1669
  %v1671 = vmul.f32 %v1670, 0.6931472
  %v1672 = vmul.f32 -0.5, %v1575
  %v1673 = vadd.f32 %v1672, 1.0
  %v1674 = vmul.f32 %v1673, %v1575
  %v1675 = vand.u32 2147483647, %v1575
  %vm1676 = vcmp.lt.f32.partialorder %v1675, 0.0004427343
  %v1677 = vsel %vm1676, %v1674, %v1671
  %v1678 = vadd.f32 %v1577, 1.0
  %v1679 = vlog2.pop %v1678
  %v1680 = vmul.f32 %v1679, 0.6931472
  %v1681 = vmul.f32 -0.5, %v1577
  %v1682 = vadd.f32 %v1681, 1.0
  %v1683 = vmul.f32 %v1682, %v1577
  %v1684 = vand.u32 2147483647, %v1577
  %vm1685 = vcmp.lt.f32.partialorder %v1684, 0.0004427343
  %v1686 = vsel %vm1685, %v1683, %v1680
  %v1687 = vadd.f32 %v1579, 1.0
  %v1688 = vlog2.pop %v1687
  %v1689 = vmul.f32 %v1688, 0.6931472
  %v1690 = vmul.f32 -0.5, %v1579
  %v1691 = vadd.f32 %v1690, 1.0
  %v1692 = vmul.f32 %v1691, %v1579
  %v1693 = vand.u32 2147483647, %v1579
  %vm1694 = vcmp.lt.f32.partialorder %v1693, 0.0004427343
  %v1695 = vsel %vm1694, %v1692, %v1689
  %v1696 = vadd.f32 %v1581, 1.0
  %v1697 = vlog2.pop %v1696
  %v1698 = vmul.f32 %v1697, 0.6931472
  %v1699 = vmul.f32 -0.5, %v1581
  %v1700 = vadd.f32 %v1699, 1.0
  %v1701 = vmul.f32 %v1700, %v1581
  %v1702 = vand.u32 2147483647, %v1581
  %vm1703 = vcmp.lt.f32.partialorder %v1702, 0.0004427343
  %v1704 = vsel %vm1703, %v1701, %v1698
  %v1705 = vadd.f32 %v1583, 1.0
  %v1706 = vlog2.pop %v1705
  %v1707 = vmul.f32 %v1706, 0.6931472
  %v1708 = vmul.f32 -0.5, %v1583
  %v1709 = vadd.f32 %v1708, 1.0
  %v1710 = vmul.f32 %v1709, %v1583
  %v1711 = vand.u32 2147483647, %v1583
  %vm1712 = vcmp.lt.f32.partialorder %v1711, 0.0004427343
  %v1713 = vsel %vm1712, %v1710, %v1707
  %v1714 = vadd.f32 %v1585, 1.0
  %v1715 = vlog2.pop %v1714
  %v1716 = vmul.f32 %v1715, 0.6931472
  %v1717 = vmul.f32 -0.5, %v1585
  %v1718 = vadd.f32 %v1717, 1.0
  %v1719 = vmul.f32 %v1718, %v1585
  %v1720 = vand.u32 2147483647, %v1585
  %vm1721 = vcmp.lt.f32.partialorder %v1720, 0.0004427343
  %v1722 = vsel %vm1721, %v1719, %v1716
  %v1723 = vadd.f32 %v1587, 1.0
  %v1724 = vlog2.pop %v1723
  %v1725 = vmul.f32 %v1724, 0.6931472
  %v1726 = vmul.f32 -0.5, %v1587
  %v1727 = vadd.f32 %v1726, 1.0
  %v1728 = vmul.f32 %v1727, %v1587
  %v1729 = vand.u32 2147483647, %v1587
  %vm1730 = vcmp.lt.f32.partialorder %v1729, 0.0004427343
  %v1731 = vsel %vm1730, %v1728, %v1725
  %v1732 = vsel %vm1524, %v1462, %v1596
  %v1733 = vsel %vm1525, %v1465, %v1605
  %v1734 = vsel %vm1526, %v1470, %v1614
  %v1735 = vsel %vm1527, %v1473, %v1623
  %v1736 = vsel %vm1528, %v1478, %v1632
  %v1737 = vsel %vm1529, %v1481, %v1641
  %v1738 = vsel %vm1530, %v1486, %v1650
  %v1739 = vsel %vm1531, %v1489, %v1659
  %v1740 = vsel %vm1532, %v1494, %v1668
  %v1741 = vsel %vm1533, %v1497, %v1677
  %v1742 = vsel %vm1534, %v1502, %v1686
  %v1743 = vsel %vm1535, %v1505, %v1695
  %v1744 = vsel %vm1536, %v1510, %v1704
  %v1745 = vsel %vm1537, %v1513, %v1713
  %v1746 = vsel %vm1538, %v1518, %v1722
  %v1747 = vsel %vm1539, %v1521, %v1731
  %1749 = vset.pattern.permute.xlu0 0
  %1750 = vperm.xlu0 %1749, %v1732
  %v1751 = vpop.permute.xlu0 %1750
  %1754 = vset.pattern.permute.xlu0 0
  %1755 = vperm.xlu0 %1754, %v1733
  %v1756 = vpop.permute.xlu0 %1755
  %1759 = vset.pattern.permute.xlu0 0
  %1760 = vperm.xlu0 %1759, %v1734
  %v1761 = vpop.permute.xlu0 %1760
  %1764 = vset.pattern.permute.xlu0 0
  %1765 = vperm.xlu0 %1764, %v1735
  %v1766 = vpop.permute.xlu0 %1765
  %1769 = vset.pattern.permute.xlu0 0
  %1770 = vperm.xlu0 %1769, %v1736
  %v1771 = vpop.permute.xlu0 %1770
  %1774 = vset.pattern.permute.xlu0 0
  %1775 = vperm.xlu0 %1774, %v1737
  %v1776 = vpop.permute.xlu0 %1775
  %1779 = vset.pattern.permute.xlu0 0
  %1780 = vperm.xlu0 %1779, %v1738
  %v1781 = vpop.permute.xlu0 %1780
  %1784 = vset.pattern.permute.xlu0 0
  %1785 = vperm.xlu0 %1784, %v1739
  %v1786 = vpop.permute.xlu0 %1785
  %1789 = vset.pattern.permute.xlu0 0
  %1790 = vperm.xlu0 %1789, %v1740
  %v1791 = vpop.permute.xlu0 %1790
  %1794 = vset.pattern.permute.xlu0 0
  %1795 = vperm.xlu0 %1794, %v1741
  %v1796 = vpop.permute.xlu0 %1795
  %1799 = vset.pattern.permute.xlu0 0
  %1800 = vperm.xlu0 %1799, %v1742
  %v1801 = vpop.permute.xlu0 %1800
  %1804 = vset.pattern.permute.xlu0 0
  %1805 = vperm.xlu0 %1804, %v1743
  %v1806 = vpop.permute.xlu0 %1805
  %1809 = vset.pattern.permute.xlu0 0
  %1810 = vperm.xlu0 %1809, %v1744
  %v1811 = vpop.permute.xlu0 %1810
  %1814 = vset.pattern.permute.xlu0 0
  %1815 = vperm.xlu0 %1814, %v1745
  %v1816 = vpop.permute.xlu0 %1815
  %1819 = vset.pattern.permute.xlu0 0
  %1820 = vperm.xlu0 %1819, %v1746
  %v1821 = vpop.permute.xlu0 %1820
  %1824 = vset.pattern.permute.xlu0 0
  %1825 = vperm.xlu0 %1824, %v1747
  %v1826 = vpop.permute.xlu0 %1825
  %v1828 = vsel %vm291, %v1007, %v1751
  %v1829 = vsel %vm291, %v1010, %v1756
  %v1830 = vsel %vm291, %v1015, %v1761
  %v1831 = vsel %vm291, %v1018, %v1766
  %v1832 = vsel %vm291, %v1023, %v1771
  %v1833 = vsel %vm291, %v1026, %v1776
  %v1834 = vsel %vm291, %v1031, %v1781
  %v1835 = vsel %vm291, %v1034, %v1786
  %v1836 = vsel %vm291, %v1039, %v1791
  %v1837 = vsel %vm291, %v1042, %v1796
  %v1838 = vsel %vm291, %v1047, %v1801
  %v1839 = vsel %vm291, %v1050, %v1806
  %v1840 = vsel %vm291, %v1055, %v1811
  %v1841 = vsel %vm291, %v1058, %v1816
  %v1842 = vsel %vm291, %v1063, %v1821
  %v1843 = vsel %vm291, %v1066, %v1826
  %1844 = vst [vmem:[%s19] sm:$0xff] %v1828
  %1845 = vst [vmem:[%s19 + $0x8] sm:$0xff] %v1829
  %1846 = vst [vmem:[%s19 + $0x10] sm:$0xff] %v1830
  %1847 = vst [vmem:[%s19 + $0x18] sm:$0xff] %v1831
  %1848 = vst [vmem:[%s19 + $0x20] sm:$0xff] %v1832
  %1849 = vst [vmem:[%s19 + $0x28] sm:$0xff] %v1833
  %1850 = vst [vmem:[%s19 + $0x30] sm:$0xff] %v1834
  %1851 = vst [vmem:[%s19 + $0x38] sm:$0xff] %v1835
  %1852 = vst [vmem:[%s19 + $0x40] sm:$0xff] %v1836
  %1853 = vst [vmem:[%s19 + $0x48] sm:$0xff] %v1837
  %1854 = vst [vmem:[%s19 + $0x50] sm:$0xff] %v1838
  %1855 = vst [vmem:[%s19 + $0x58] sm:$0xff] %v1839
  %1856 = vst [vmem:[%s19 + $0x60] sm:$0xff] %v1840
  %1857 = vst [vmem:[%s19 + $0x68] sm:$0xff] %v1841
  %1858 = vst [vmem:[%s19 + $0x70] sm:$0xff] %v1842
  %1859 = vst [vmem:[%s19 + $0x78] sm:$0xff] %v1843
  // Predicated region
  $region78: #{matcher_device.12} parent=0 // pred_check
    _
  $region79: #{matcher_device.12} parent=0 // pred_check_branch
    %1861 = sbr.rel (0) target = $region81
  $region80: #{matcher_device.12} parent=0 // pred_region
    _
  $region81: #{matcher_device.12} parent=0 // pred_fallthru
    _
  // Predicated region
  $region82: #{matcher_device.12} parent=0 // pred_check
    _
  $region83: #{matcher_device.12} parent=0 // pred_check_branch
    %1863 = sbr.rel (0) target = $region85
  $region84: #{matcher_device.12} parent=0 // pred_region
    _
  $region85: #{matcher_device.12} parent=0 // pred_fallthru
    _

// kernel: matcher_device.13
$region0: #{matcher_device.13}
  #allocation0 [shape = 'u32[]', space=smem, size = 0x4, offset = 0x4, fixed_abs, tag = 'smem constant byte address 0x4 - core index']
  #allocation1 [shape = 'u32[144,128]{1,0:T(1,128)}', space=vmem, size = 0x12000, scoped, tag = 'internal scratch']
  %s0 = inlined_call_operand.vmem [shape: f32[512,35], index: 0, kind: input, shape index: {}]
  %s1 = inlined_call_operand.vmem [shape: f32[32,16,1], index: 1, kind: input, shape index: {}]
  %s2 = inlined_call_operand.vmem [shape: bf16[35,32], index: 2, kind: input, shape index: {}]
  %s3 = inlined_call_operand.vmem [shape: f32[1,32], index: 3, kind: input, shape index: {}]
  %s4 = inlined_call_operand.vmem [shape: bf16[32,32], index: 4, kind: input, shape index: {}]
  %s5 = inlined_call_operand.vmem [shape: f32[1,32], index: 5, kind: input, shape index: {}]
  %s6 = inlined_call_operand.hbm [shape: f32[32,32], index: 6, kind: output, shape index: {}]
  %s7 = sld [smem:[#allocation0]]
  $region34: #{matcher_device.13} parent=0
    _
  %s9 = ssub.s32 1, %s7
  %s10 = scalar_select 0, %s9, %s7
  $region1: #{matcher_device.13} parent=0
    #allocation2 [shape = 'u8[16384]{0}', space=vmem, size = 0x4000, scoped, tag = 'output window, operand 0, single buffered']
    #allocation3 [shape = 's32[1]{0}', space=sflag, size = 0x4, scoped, tag = 'scoped memory for matcher_device.13']
    %11 = vsyncpa [#allocation3], 0
    // Predicated region
    $region2: #{matcher_device.13} parent=1 // pred_check
      _
    $region3: #{matcher_device.13} parent=1 // pred_check_branch
      %13 = sbr.rel (0) target = $region5
    $region4: #{matcher_device.13} parent=1 // pred_region
      _
    $region5: #{matcher_device.13} parent=1 // pred_fallthru
      _
    // Predicated region
    $region6: #{matcher_device.13} parent=1 // pred_check
      _
    $region7: #{matcher_device.13} parent=1 // pred_check_branch
      %15 = sbr.rel (0) target = $region9
    $region8: #{matcher_device.13} parent=1 // pred_region
      _
    $region9: #{matcher_device.13} parent=1 // pred_fallthru
      _
    // Predicated region
    $region10: #{matcher_device.13} parent=1 // pred_check
      _
    $region11: #{matcher_device.13} parent=1 // pred_check_branch
      %17 = sbr.rel (0) target = $region13
    $region12: #{matcher_device.13} parent=1 // pred_region
      _
    $region13: #{matcher_device.13} parent=1 // pred_fallthru
      _
    // Predicated region
    $region14: #{matcher_device.13} parent=1 // pred_check
      _
    $region15: #{matcher_device.13} parent=1 // pred_check_branch
      %19 = sbr.rel (0) target = $region17
    $region16: #{matcher_device.13} parent=1 // pred_region
      _
    $region17: #{matcher_device.13} parent=1 // pred_fallthru
      _
    // Predicated region
    $region18: #{matcher_device.13} parent=1 // pred_check
      _
    $region19: #{matcher_device.13} parent=1 // pred_check_branch
      %21 = sbr.rel (0) target = $region21
    $region20: #{matcher_device.13} parent=1 // pred_region
      _
    $region21: #{matcher_device.13} parent=1 // pred_fallthru
      _
    // Predicated region
    $region22: #{matcher_device.13} parent=1 // pred_check
      _
    $region23: #{matcher_device.13} parent=1 // pred_check_branch
      %23 = sbr.rel (0) target = $region25
    $region24: #{matcher_device.13} parent=1 // pred_region
      _
    $region25: #{matcher_device.13} parent=1 // pred_fallthru
      _
    %v25 = vld [vmem:[%s0] sm:$0xff]
    %v26 = vld [vmem:[%s0 + $0x8] sm:$0xff]
    %v27 = vld [vmem:[%s0 + $0x10] sm:$0xff]
    %v28 = vld [vmem:[%s0 + $0x18] sm:$0xff]
    %v29 = vld [vmem:[%s0 + $0x20] sm:$0xff]
    %v30 = vld [vmem:[%s0 + $0x28] sm:$0xff]
    %v31 = vld [vmem:[%s0 + $0x30] sm:$0xff]
    %v32 = vld [vmem:[%s0 + $0x38] sm:$0xff]
    %v33 = vld [vmem:[%s0 + $0x40] sm:$0xff]
    %v34 = vld [vmem:[%s0 + $0x48] sm:$0xff]
    %v35 = vld [vmem:[%s0 + $0x50] sm:$0xff]
    %v36 = vld [vmem:[%s0 + $0x58] sm:$0xff]
    %v37 = vld [vmem:[%s0 + $0x60] sm:$0xff]
    %v38 = vld [vmem:[%s0 + $0x68] sm:$0xff]
    %v39 = vld [vmem:[%s0 + $0x70] sm:$0xff]
    %v40 = vld [vmem:[%s0 + $0x78] sm:$0xff]
    %v41 = vld [vmem:[%s0 + $0x80] sm:$0xff]
    %v42 = vld [vmem:[%s0 + $0x88] sm:$0xff]
    %v43 = vld [vmem:[%s0 + $0x90] sm:$0xff]
    %v44 = vld [vmem:[%s0 + $0x98] sm:$0xff]
    %v45 = vld [vmem:[%s0 + $0xa0] sm:$0xff]
    %v46 = vld [vmem:[%s0 + $0xa8] sm:$0xff]
    %v47 = vld [vmem:[%s0 + $0xb0] sm:$0xff]
    %v48 = vld [vmem:[%s0 + $0xb8] sm:$0xff]
    %v49 = vld [vmem:[%s0 + $0xc0] sm:$0xff]
    %v50 = vld [vmem:[%s0 + $0xc8] sm:$0xff]
    %v51 = vld [vmem:[%s0 + $0xd0] sm:$0xff]
    %v52 = vld [vmem:[%s0 + $0xd8] sm:$0xff]
    %v53 = vld [vmem:[%s0 + $0xe0] sm:$0xff]
    %v54 = vld [vmem:[%s0 + $0xe8] sm:$0xff]
    %v55 = vld [vmem:[%s0 + $0xf0] sm:$0xff]
    %v56 = vld [vmem:[%s0 + $0xf8] sm:$0xff]
    %v57 = vld [vmem:[%s0 + $0x100] sm:$0xff]
    %v58 = vld [vmem:[%s0 + $0x108] sm:$0xff]
    %v59 = vld [vmem:[%s0 + $0x110] sm:$0xff]
    %v60 = vld [vmem:[%s0 + $0x118] sm:$0xff]
    %v61 = vld [vmem:[%s0 + $0x120] sm:$0xff]
    %v62 = vld [vmem:[%s0 + $0x128] sm:$0xff]
    %v63 = vld [vmem:[%s0 + $0x130] sm:$0xff]
    %v64 = vld [vmem:[%s0 + $0x138] sm:$0xff]
    %v65 = vld [vmem:[%s0 + $0x140] sm:$0xff]
    %v66 = vld [vmem:[%s0 + $0x148] sm:$0xff]
    %v67 = vld [vmem:[%s0 + $0x150] sm:$0xff]
    %v68 = vld [vmem:[%s0 + $0x158] sm:$0xff]
    %v69 = vld [vmem:[%s0 + $0x160] sm:$0xff]
    %v70 = vld [vmem:[%s0 + $0x168] sm:$0xff]
    %v71 = vld [vmem:[%s0 + $0x170] sm:$0xff]
    %v72 = vld [vmem:[%s0 + $0x178] sm:$0xff]
    %v73 = vld [vmem:[%s0 + $0x180] sm:$0xff]
    %v74 = vld [vmem:[%s0 + $0x188] sm:$0xff]
    %v75 = vld [vmem:[%s0 + $0x190] sm:$0xff]
    %v76 = vld [vmem:[%s0 + $0x198] sm:$0xff]
    %v77 = vld [vmem:[%s0 + $0x1a0] sm:$0xff]
    %v78 = vld [vmem:[%s0 + $0x1a8] sm:$0xff]
    %v79 = vld [vmem:[%s0 + $0x1b0] sm:$0xff]
    %v80 = vld [vmem:[%s0 + $0x1b8] sm:$0xff]
    %v81 = vld [vmem:[%s0 + $0x1c0] sm:$0xff]
    %v82 = vld [vmem:[%s0 + $0x1c8] sm:$0xff]
    %v83 = vld [vmem:[%s0 + $0x1d0] sm:$0xff]
    %v84 = vld [vmem:[%s0 + $0x1d8] sm:$0xff]
    %v85 = vld [vmem:[%s0 + $0x1e0] sm:$0xff]
    %v86 = vld [vmem:[%s0 + $0x1e8] sm:$0xff]
    %v87 = vld [vmem:[%s0 + $0x1f0] sm:$0xff]
    %v88 = vld [vmem:[%s0 + $0x1f8] sm:$0xff]
    %v89 = vpack.c.bf16 %v26, %v25
    %v90 = vpack.c.bf16 %v28, %v27
    %v91 = vpack.c.bf16 %v30, %v29
    %v92 = vpack.c.bf16 %v32, %v31
    %v93 = vpack.c.bf16 %v34, %v33
    %v94 = vpack.c.bf16 %v36, %v35
    %v95 = vpack.c.bf16 %v38, %v37
    %v96 = vpack.c.bf16 %v40, %v39
    %v97 = vpack.c.bf16 %v42, %v41
    %v98 = vpack.c.bf16 %v44, %v43
    %v99 = vpack.c.bf16 %v46, %v45
    %v100 = vpack.c.bf16 %v48, %v47
    %v101 = vpack.c.bf16 %v50, %v49
    %v102 = vpack.c.bf16 %v52, %v51
    %v103 = vpack.c.bf16 %v54, %v53
    %v104 = vpack.c.bf16 %v56, %v55
    %v105 = vpack.c.bf16 %v58, %v57
    %v106 = vpack.c.bf16 %v60, %v59
    %v107 = vpack.c.bf16 %v62, %v61
    %v108 = vpack.c.bf16 %v64, %v63
    %v109 = vpack.c.bf16 %v66, %v65
    %v110 = vpack.c.bf16 %v68, %v67
    %v111 = vpack.c.bf16 %v70, %v69
    %v112 = vpack.c.bf16 %v72, %v71
    %v113 = vpack.c.bf16 %v74, %v73
    %v114 = vpack.c.bf16 %v76, %v75
    %v115 = vpack.c.bf16 %v78, %v77
    %v116 = vpack.c.bf16 %v80, %v79
    %v117 = vpack.c.bf16 %v82, %v81
    %v118 = vpack.c.bf16 %v84, %v83
    %v119 = vpack.c.bf16 %v86, %v85
    %v120 = vpack.c.bf16 %v88, %v87
    %v121 = vld [vmem:[%s2] sm:$0xf]
    %v122 = vld [vmem:[%s2 + $0x4] sm:$0xf]
    %v123 = vld [vmem:[%s2 + $0x8] sm:$0xf]
    %v124 = vld [vmem:[%s2 + $0xc] sm:$0xf]
    %v125 = vld [vmem:[%s2 + $0x10] sm:$0x3]
    %v126 = vld [vmem:[%s3] sm:$0x1]
    %v128 = vlaneseq
    %v129 = vshrl.u32 %v128, 7
    %v130 = vsub.s32 0, %v129
    %v131 = vrot.slane %v126, %v130
    %v138 = vunpack.c.l.b16 %v121
    %v139 = vunpack.c.l.b16 %v122
    %v140 = vunpack.c.l.b16 %v123
    %v141 = vunpack.c.l.b16 %v124
    %v142 = vunpack.c.l.b16 %v125
    %v143 = vpack.c.b16 %v139, %v138
    %v144 = vpack.c.b16 %v141, %v140
    %v145 = vpack.c.b16 %v142, %v142
    %vm148 = vcmask 285696
    %v150 = vsel %vm148, %v89, 0
    %v153 = vsel %vm148, %v90, 0
    %v156 = vsel %vm148, %v91, 0
    %v159 = vsel %vm148, %v92, 0
    %v162 = vsel %vm148, %v93, 0
    %v165 = vsel %vm148, %v94, 0
    %v168 = vsel %vm148, %v95, 0
    %v171 = vsel %vm148, %v96, 0
    %v174 = vsel %vm148, %v97, 0
    %v177 = vsel %vm148, %v98, 0
    %v180 = vsel %vm148, %v99, 0
    %v183 = vsel %vm148, %v100, 0
    %v186 = vsel %vm148, %v101, 0
    %v189 = vsel %vm148, %v102, 0
    %v192 = vsel %vm148, %v103, 0
    %v195 = vsel %vm148, %v104, 0
    %v198 = vsel %vm148, %v105, 0
    %v201 = vsel %vm148, %v106, 0
    %v204 = vsel %vm148, %v107, 0
    %v207 = vsel %vm148, %v108, 0
    %v210 = vsel %vm148, %v109, 0
    %v213 = vsel %vm148, %v110, 0
    %v216 = vsel %vm148, %v111, 0
    %v219 = vsel %vm148, %v112, 0
    %v222 = vsel %vm148, %v113, 0
    %v225 = vsel %vm148, %v114, 0
    %v228 = vsel %vm148, %v115, 0
    %v231 = vsel %vm148, %v116, 0
    %v234 = vsel %vm148, %v117, 0
    %v237 = vsel %vm148, %v118, 0
    %v240 = vsel %vm148, %v119, 0
    %v243 = vsel %vm148, %v120, 0
    %vm245 = vcmask 1040384
    %vm246 = vcmask 1041408
    %v247 = vsel %vm245, 4294967295, 65535
    %v248 = vsel %vm246, %v247, 0
    %v250 = vand.u32 %v145, %v248
    %252 = vmatprep.subr.bf16.mxu0 0
    %253 = vmatpush1.bf16.msra.mxu0 %v143
    %254 = vmatprep.subr.bf16.mxu0 0
    %255 = vmatpush1.bf16.msra.mxu0 %v144
    %256 = vmatprep.subr.bf16.mxu0 0
    %257 = vmatpush1.bf16.msra.mxu0 %v250
    %258 = vmatprep.subr.bf16.mxu0 0
    %259 = vmatpush1.bf16.msra.mxu0 0
    %260 = vmatprep.subr.bf16.mxu0 0
    %261 = vmatpush1.bf16.msra.mxu0 0
    %262 = vmatprep.subr.bf16.mxu0 0
    %263 = vmatpush1.bf16.msra.mxu0 0
    %264 = vmatprep.subr.bf16.mxu0 0
    %265 = vmatpush1.bf16.msra.mxu0 0
    %266 = vmatprep.subr.bf16.mxu0 0
    %267 = vmatpush1.bf16.msra.mxu0 0
    %268 = vmatprep.subr.bf16.mxu0 0
    %269 = vmatpush1.bf16.msra.mxu0 0
    %270 = vmatprep.subr.bf16.mxu0 0
    %271 = vmatpush1.bf16.msra.mxu0 0
    %272 = vmatprep.subr.bf16.mxu0 0
    %273 = vmatpush1.bf16.msra.mxu0 0
    %274 = vmatprep.subr.bf16.mxu0 0
    %275 = vmatpush1.bf16.msra.mxu0 0
    %276 = vmatprep.subr.bf16.mxu0 0
    %277 = vmatpush1.bf16.msra.mxu0 0
    %278 = vmatprep.subr.bf16.mxu0 0
    %279 = vmatpush1.bf16.msra.mxu0 0
    %280 = vmatprep.subr.bf16.mxu0 0
    %281 = vmatpush1.bf16.msra.mxu0 0
    %282 = vmatprep.subr.bf16.mxu0 0
    %283 = vmatpush1.bf16.msra.mxu0 0
    %284 = vmatprep.mubr.bf16.mxu0 0
    %285 = vmatmul.mubr.bf16.gmra.mrb[0].mxu0 %v150
    %v286 = vpop.f32.mrb[0].mxu0
    %v287 = vadd.f32 %v131, %v286
    %v288 = vpop.f32.mrb[0].mxu0
    %v289 = vpop.f32.mrb[0].mxu0
    %v290 = vadd.f32 %v131, %v289
    %v291 = vpop.f32.mrb[0].mxu0
    %292 = vmatprep.mubr.bf16.mxu0 0
    %293 = vmatmul.mubr.bf16.gmra.mrb[0].mxu0 %v153
    %v294 = vpop.f32.mrb[0].mxu0
    %v295 = vadd.f32 %v131, %v294
    %v296 = vpop.f32.mrb[0].mxu0
    %v297 = vpop.f32.mrb[0].mxu0
    %v298 = vadd.f32 %v131, %v297
    %v299 = vpop.f32.mrb[0].mxu0
    %300 = vmatprep.mubr.bf16.mxu0 0
    %301 = vmatmul.mubr.bf16.gmra.mrb[0].mxu0 %v156
    %v302 = vpop.f32.mrb[0].mxu0
    %v303 = vadd.f32 %v131, %v302
    %v304 = vpop.f32.mrb[0].mxu0
    %v305 = vpop.f32.mrb[0].mxu0
    %v306 = vadd.f32 %v131, %v305
    %v307 = vpop.f32.mrb[0].mxu0
    %308 = vmatprep.mubr.bf16.mxu0 0
    %309 = vmatmul.mubr.bf16.gmra.mrb[0].mxu0 %v159
    %v310 = vpop.f32.mrb[0].mxu0
    %v311 = vadd.f32 %v131, %v310
    %v312 = vpop.f32.mrb[0].mxu0
    %v313 = vpop.f32.mrb[0].mxu0
    %v314 = vadd.f32 %v131, %v313
    %v315 = vpop.f32.mrb[0].mxu0
    %316 = vmatprep.mubr.bf16.mxu0 0
    %317 = vmatmul.mubr.bf16.gmra.mrb[0].mxu0 %v162
    %v318 = vpop.f32.mrb[0].mxu0
    %v319 = vadd.f32 %v131, %v318
    %v320 = vpop.f32.mrb[0].mxu0
    %v321 = vpop.f32.mrb[0].mxu0
    %v322 = vadd.f32 %v131, %v321
    %v323 = vpop.f32.mrb[0].mxu0
    %324 = vmatprep.mubr.bf16.mxu0 0
    %325 = vmatmul.mubr.bf16.gmra.mrb[0].mxu0 %v165
    %v326 = vpop.f32.mrb[0].mxu0
    %v327 = vadd.f32 %v131, %v326
    %v328 = vpop.f32.mrb[0].mxu0
    %v329 = vpop.f32.mrb[0].mxu0
    %v330 = vadd.f32 %v131, %v329
    %v331 = vpop.f32.mrb[0].mxu0
    %332 = vmatprep.mubr.bf16.mxu0 0
    %333 = vmatmul.mubr.bf16.gmra.mrb[0].mxu0 %v168
    %v334 = vpop.f32.mrb[0].mxu0
    %v335 = vadd.f32 %v131, %v334
    %v336 = vpop.f32.mrb[0].mxu0
    %v337 = vpop.f32.mrb[0].mxu0
    %v338 = vadd.f32 %v131, %v337
    %v339 = vpop.f32.mrb[0].mxu0
    %340 = vmatprep.mubr.bf16.mxu0 0
    %341 = vmatmul.mubr.bf16.gmra.mrb[0].mxu0 %v171
    %v342 = vpop.f32.mrb[0].mxu0
    %v343 = vadd.f32 %v131, %v342
    %v344 = vpop.f32.mrb[0].mxu0
    %v345 = vpop.f32.mrb[0].mxu0
    %v346 = vadd.f32 %v131, %v345
    %v347 = vpop.f32.mrb[0].mxu0
    %348 = vmatprep.mubr.bf16.mxu0 0
    %349 = vmatmul.mubr.bf16.gmra.mrb[0].mxu0 %v174
    %v350 = vpop.f32.mrb[0].mxu0
    %v351 = vadd.f32 %v131, %v350
    %v352 = vpop.f32.mrb[0].mxu0
    %v353 = vpop.f32.mrb[0].mxu0
    %v354 = vadd.f32 %v131, %v353
    %v355 = vpop.f32.mrb[0].mxu0
    %356 = vmatprep.mubr.bf16.mxu0 0
    %357 = vmatmul.mubr.bf16.gmra.mrb[0].mxu0 %v177
    %v358 = vpop.f32.mrb[0].mxu0
    %v359 = vadd.f32 %v131, %v358
    %v360 = vpop.f32.mrb[0].mxu0
    %v361 = vpop.f32.mrb[0].mxu0
    %v362 = vadd.f32 %v131, %v361
    %v363 = vpop.f32.mrb[0].mxu0
    %364 = vmatprep.mubr.bf16.mxu0 0
    %365 = vmatmul.mubr.bf16.gmra.mrb[0].mxu0 %v180
    %v366 = vpop.f32.mrb[0].mxu0
    %v367 = vadd.f32 %v131, %v366
    %v368 = vpop.f32.mrb[0].mxu0
    %v369 = vpop.f32.mrb[0].mxu0
    %v370 = vadd.f32 %v131, %v369
    %v371 = vpop.f32.mrb[0].mxu0
    %372 = vmatprep.mubr.bf16.mxu0 0
    %373 = vmatmul.mubr.bf16.gmra.mrb[0].mxu0 %v183
    %v374 = vpop.f32.mrb[0].mxu0
    %v375 = vadd.f32 %v131, %v374
    %v376 = vpop.f32.mrb[0].mxu0
    %v377 = vpop.f32.mrb[0].mxu0
    %v378 = vadd.f32 %v131, %v377
    %v379 = vpop.f32.mrb[0].mxu0
    %380 = vmatprep.mubr.bf16.mxu0 0
    %381 = vmatmul.mubr.bf16.gmra.mrb[0].mxu0 %v186
    %v382 = vpop.f32.mrb[0].mxu0
    %v383 = vadd.f32 %v131, %v382
    %v384 = vpop.f32.mrb[0].mxu0
    %v385 = vpop.f32.mrb[0].mxu0
    %v386 = vadd.f32 %v131, %v385
    %v387 = vpop.f32.mrb[0].mxu0
    %388 = vmatprep.mubr.bf16.mxu0 0
    %389 = vmatmul.mubr.bf16.gmra.mrb[0].mxu0 %v189
    %v390 = vpop.f32.mrb[0].mxu0
    %v391 = vadd.f32 %v131, %v390
    %v392 = vpop.f32.mrb[0].mxu0
    %v393 = vpop.f32.mrb[0].mxu0
    %v394 = vadd.f32 %v131, %v393
    %v395 = vpop.f32.mrb[0].mxu0
    %396 = vmatprep.mubr.bf16.mxu0 0
    %397 = vmatmul.mubr.bf16.gmra.mrb[0].mxu0 %v192
    %v398 = vpop.f32.mrb[0].mxu0
    %v399 = vadd.f32 %v131, %v398
    %v400 = vpop.f32.mrb[0].mxu0
    %v401 = vpop.f32.mrb[0].mxu0
    %v402 = vadd.f32 %v131, %v401
    %v403 = vpop.f32.mrb[0].mxu0
    %404 = vmatprep.mubr.bf16.mxu0 0
    %405 = vmatmul.mubr.bf16.gmra.mrb[0].mxu0 %v195
    %v406 = vpop.f32.mrb[0].mxu0
    %v407 = vadd.f32 %v131, %v406
    %v408 = vpop.f32.mrb[0].mxu0
    %v409 = vpop.f32.mrb[0].mxu0
    %v410 = vadd.f32 %v131, %v409
    %v411 = vpop.f32.mrb[0].mxu0
    %412 = vmatprep.mubr.bf16.mxu0 0
    %413 = vmatmul.mubr.bf16.gmra.mrb[0].mxu0 %v198
    %v414 = vpop.f32.mrb[0].mxu0
    %v415 = vadd.f32 %v131, %v414
    %v416 = vpop.f32.mrb[0].mxu0
    %v417 = vpop.f32.mrb[0].mxu0
    %v418 = vadd.f32 %v131, %v417
    %v419 = vpop.f32.mrb[0].mxu0
    %420 = vmatprep.mubr.bf16.mxu0 0
    %421 = vmatmul.mubr.bf16.gmra.mrb[0].mxu0 %v201
    %v422 = vpop.f32.mrb[0].mxu0
    %v423 = vadd.f32 %v131, %v422
    %v424 = vpop.f32.mrb[0].mxu0
    %v425 = vpop.f32.mrb[0].mxu0
    %v426 = vadd.f32 %v131, %v425
    %v427 = vpop.f32.mrb[0].mxu0
    %428 = vmatprep.mubr.bf16.mxu0 0
    %429 = vmatmul.mubr.bf16.gmra.mrb[0].mxu0 %v204
    %v430 = vpop.f32.mrb[0].mxu0
    %v431 = vadd.f32 %v131, %v430
    %v432 = vpop.f32.mrb[0].mxu0
    %v433 = vpop.f32.mrb[0].mxu0
    %v434 = vadd.f32 %v131, %v433
    %v435 = vpop.f32.mrb[0].mxu0
    %436 = vmatprep.mubr.bf16.mxu0 0
    %437 = vmatmul.mubr.bf16.gmra.mrb[0].mxu0 %v207
    %v438 = vpop.f32.mrb[0].mxu0
    %v439 = vadd.f32 %v131, %v438
    %v440 = vpop.f32.mrb[0].mxu0
    %v441 = vpop.f32.mrb[0].mxu0
    %v442 = vadd.f32 %v131, %v441
    %v443 = vpop.f32.mrb[0].mxu0
    %444 = vmatprep.mubr.bf16.mxu0 0
    %445 = vmatmul.mubr.bf16.gmra.mrb[0].mxu0 %v210
    %v446 = vpop.f32.mrb[0].mxu0
    %v447 = vadd.f32 %v131, %v446
    %v448 = vpop.f32.mrb[0].mxu0
    %v449 = vpop.f32.mrb[0].mxu0
    %v450 = vadd.f32 %v131, %v449
    %v451 = vpop.f32.mrb[0].mxu0
    %452 = vmatprep.mubr.bf16.mxu0 0
    %453 = vmatmul.mubr.bf16.gmra.mrb[0].mxu0 %v213
    %v454 = vpop.f32.mrb[0].mxu0
    %v455 = vadd.f32 %v131, %v454
    %v456 = vpop.f32.mrb[0].mxu0
    %v457 = vpop.f32.mrb[0].mxu0
    %v458 = vadd.f32 %v131, %v457
    %v459 = vpop.f32.mrb[0].mxu0
    %460 = vmatprep.mubr.bf16.mxu0 0
    %461 = vmatmul.mubr.bf16.gmra.mrb[0].mxu0 %v216
    %v462 = vpop.f32.mrb[0].mxu0
    %v463 = vadd.f32 %v131, %v462
    %v464 = vpop.f32.mrb[0].mxu0
    %v465 = vpop.f32.mrb[0].mxu0
    %v466 = vadd.f32 %v131, %v465
    %v467 = vpop.f32.mrb[0].mxu0
    %468 = vmatprep.mubr.bf16.mxu0 0
    %469 = vmatmul.mubr.bf16.gmra.mrb[0].mxu0 %v219
    %v470 = vpop.f32.mrb[0].mxu0
    %v471 = vadd.f32 %v131, %v470
    %v472 = vpop.f32.mrb[0].mxu0
    %v473 = vpop.f32.mrb[0].mxu0
    %v474 = vadd.f32 %v131, %v473
    %v475 = vpop.f32.mrb[0].mxu0
    %476 = vmatprep.mubr.bf16.mxu0 0
    %477 = vmatmul.mubr.bf16.gmra.mrb[0].mxu0 %v222
    %v478 = vpop.f32.mrb[0].mxu0
    %v479 = vadd.f32 %v131, %v478
    %v480 = vpop.f32.mrb[0].mxu0
    %v481 = vpop.f32.mrb[0].mxu0
    %v482 = vadd.f32 %v131, %v481
    %v483 = vpop.f32.mrb[0].mxu0
    %484 = vmatprep.mubr.bf16.mxu0 0
    %485 = vmatmul.mubr.bf16.gmra.mrb[0].mxu0 %v225
    %v486 = vpop.f32.mrb[0].mxu0
    %v487 = vadd.f32 %v131, %v486
    %v488 = vpop.f32.mrb[0].mxu0
    %v489 = vpop.f32.mrb[0].mxu0
    %v490 = vadd.f32 %v131, %v489
    %v491 = vpop.f32.mrb[0].mxu0
    %492 = vmatprep.mubr.bf16.mxu0 0
    %493 = vmatmul.mubr.bf16.gmra.mrb[0].mxu0 %v228
    %v494 = vpop.f32.mrb[0].mxu0
    %v495 = vadd.f32 %v131, %v494
    %v496 = vpop.f32.mrb[0].mxu0
    %v497 = vpop.f32.mrb[0].mxu0
    %v498 = vadd.f32 %v131, %v497
    %v499 = vpop.f32.mrb[0].mxu0
    %500 = vmatprep.mubr.bf16.mxu0 0
    %501 = vmatmul.mubr.bf16.gmra.mrb[0].mxu0 %v231
    %v502 = vpop.f32.mrb[0].mxu0
    %v503 = vadd.f32 %v131, %v502
    %v504 = vpop.f32.mrb[0].mxu0
    %v505 = vpop.f32.mrb[0].mxu0
    %v506 = vadd.f32 %v131, %v505
    %v507 = vpop.f32.mrb[0].mxu0
    %508 = vmatprep.mubr.bf16.mxu0 0
    %509 = vmatmul.mubr.bf16.gmra.mrb[0].mxu0 %v234
    %v510 = vpop.f32.mrb[0].mxu0
    %v511 = vadd.f32 %v131, %v510
    %v512 = vpop.f32.mrb[0].mxu0
    %v513 = vpop.f32.mrb[0].mxu0
    %v514 = vadd.f32 %v131, %v513
    %v515 = vpop.f32.mrb[0].mxu0
    %516 = vmatprep.mubr.bf16.mxu0 0
    %517 = vmatmul.mubr.bf16.gmra.mrb[0].mxu0 %v237
    %v518 = vpop.f32.mrb[0].mxu0
    %v519 = vadd.f32 %v131, %v518
    %v520 = vpop.f32.mrb[0].mxu0
    %v521 = vpop.f32.mrb[0].mxu0
    %v522 = vadd.f32 %v131, %v521
    %v523 = vpop.f32.mrb[0].mxu0
    %524 = vmatprep.mubr.bf16.mxu0 0
    %525 = vmatmul.mubr.bf16.gmra.mrb[0].mxu0 %v240
    %v526 = vpop.f32.mrb[0].mxu0
    %v527 = vadd.f32 %v131, %v526
    %v528 = vpop.f32.mrb[0].mxu0
    %v529 = vpop.f32.mrb[0].mxu0
    %v530 = vadd.f32 %v131, %v529
    %v531 = vpop.f32.mrb[0].mxu0
    %532 = vmatprep.mubr.bf16.mxu0 0
    %533 = vmatmul.mubr.bf16.gmra.mrb[0].mxu0 %v243
    %v534 = vpop.f32.mrb[0].mxu0
    %v535 = vadd.f32 %v131, %v534
    %v536 = vpop.f32.mrb[0].mxu0
    %v537 = vpop.f32.mrb[0].mxu0
    %v538 = vadd.f32 %v131, %v537
    %v539 = vpop.f32.mrb[0].mxu0
    %540 = vdwg.mxu0
    %v541 = vmax.f32 %v287, 0.0
    %v542 = vmax.f32 %v290, 0.0
    %v543 = vmax.f32 %v295, 0.0
    %v544 = vmax.f32 %v298, 0.0
    %v545 = vmax.f32 %v303, 0.0
    %v546 = vmax.f32 %v306, 0.0
    %v547 = vmax.f32 %v311, 0.0
    %v548 = vmax.f32 %v314, 0.0
    %v549 = vmax.f32 %v319, 0.0
    %v550 = vmax.f32 %v322, 0.0
    %v551 = vmax.f32 %v327, 0.0
    %v552 = vmax.f32 %v330, 0.0
    %v553 = vmax.f32 %v335, 0.0
    %v554 = vmax.f32 %v338, 0.0
    %v555 = vmax.f32 %v343, 0.0
    %v556 = vmax.f32 %v346, 0.0
    %v557 = vmax.f32 %v351, 0.0
    %v558 = vmax.f32 %v354, 0.0
    %v559 = vmax.f32 %v359, 0.0
    %v560 = vmax.f32 %v362, 0.0
    %v561 = vmax.f32 %v367, 0.0
    %v562 = vmax.f32 %v370, 0.0
    %v563 = vmax.f32 %v375, 0.0
    %v564 = vmax.f32 %v378, 0.0
    %v565 = vmax.f32 %v383, 0.0
    %v566 = vmax.f32 %v386, 0.0
    %v567 = vmax.f32 %v391, 0.0
    %v568 = vmax.f32 %v394, 0.0
    %v569 = vmax.f32 %v399, 0.0
    %v570 = vmax.f32 %v402, 0.0
    %v571 = vmax.f32 %v407, 0.0
    %v572 = vmax.f32 %v410, 0.0
    %v573 = vmax.f32 %v415, 0.0
    %v574 = vmax.f32 %v418, 0.0
    %v575 = vmax.f32 %v423, 0.0
    %v576 = vmax.f32 %v426, 0.0
    %v577 = vmax.f32 %v431, 0.0
    %v578 = vmax.f32 %v434, 0.0
    %v579 = vmax.f32 %v439, 0.0
    %v580 = vmax.f32 %v442, 0.0
    %v581 = vmax.f32 %v447, 0.0
    %v582 = vmax.f32 %v450, 0.0
    %v583 = vmax.f32 %v455, 0.0
    %v584 = vmax.f32 %v458, 0.0
    %v585 = vmax.f32 %v463, 0.0
    %v586 = vmax.f32 %v466, 0.0
    %v587 = vmax.f32 %v471, 0.0
    %v588 = vmax.f32 %v474, 0.0
    %v589 = vmax.f32 %v479, 0.0
    %v590 = vmax.f32 %v482, 0.0
    %v591 = vmax.f32 %v487, 0.0
    %v592 = vmax.f32 %v490, 0.0
    %v593 = vmax.f32 %v495, 0.0
    %v594 = vmax.f32 %v498, 0.0
    %v595 = vmax.f32 %v503, 0.0
    %v596 = vmax.f32 %v506, 0.0
    %v597 = vmax.f32 %v511, 0.0
    %v598 = vmax.f32 %v514, 0.0
    %v599 = vmax.f32 %v519, 0.0
    %v600 = vmax.f32 %v522, 0.0
    %v601 = vmax.f32 %v527, 0.0
    %v602 = vmax.f32 %v530, 0.0
    %v603 = vmax.f32 %v535, 0.0
    %v604 = vmax.f32 %v538, 0.0
    %v605 = vpack.c.bf16 %v542, %v541
    %v606 = vpack.c.bf16 %v544, %v543
    %v607 = vpack.c.bf16 %v546, %v545
    %v608 = vpack.c.bf16 %v548, %v547
    %v609 = vpack.c.bf16 %v550, %v549
    %v610 = vpack.c.bf16 %v552, %v551
    %v611 = vpack.c.bf16 %v554, %v553
    %v612 = vpack.c.bf16 %v556, %v555
    %v613 = vpack.c.bf16 %v558, %v557
    %v614 = vpack.c.bf16 %v560, %v559
    %v615 = vpack.c.bf16 %v562, %v561
    %v616 = vpack.c.bf16 %v564, %v563
    %v617 = vpack.c.bf16 %v566, %v565
    %v618 = vpack.c.bf16 %v568, %v567
    %v619 = vpack.c.bf16 %v570, %v569
    %v620 = vpack.c.bf16 %v572, %v571
    %v621 = vpack.c.bf16 %v574, %v573
    %v622 = vpack.c.bf16 %v576, %v575
    %v623 = vpack.c.bf16 %v578, %v577
    %v624 = vpack.c.bf16 %v580, %v579
    %v625 = vpack.c.bf16 %v582, %v581
    %v626 = vpack.c.bf16 %v584, %v583
    %v627 = vpack.c.bf16 %v586, %v585
    %v628 = vpack.c.bf16 %v588, %v587
    %v629 = vpack.c.bf16 %v590, %v589
    %v630 = vpack.c.bf16 %v592, %v591
    %v631 = vpack.c.bf16 %v594, %v593
    %v632 = vpack.c.bf16 %v596, %v595
    %v633 = vpack.c.bf16 %v598, %v597
    %v634 = vpack.c.bf16 %v600, %v599
    %v635 = vpack.c.bf16 %v602, %v601
    %v636 = vpack.c.bf16 %v604, %v603
    %v637 = vld [vmem:[%s4] sm:$0xf]
    %v638 = vld [vmem:[%s4 + $0x4] sm:$0xf]
    %v639 = vld [vmem:[%s4 + $0x8] sm:$0xf]
    %v640 = vld [vmem:[%s4 + $0xc] sm:$0xf]
    %v641 = vld [vmem:[%s5] sm:$0x1]
    %v643 = vlaneseq
    %v644 = vshrl.u32 %v643, 7
    %v645 = vsub.s32 0, %v644
    %v646 = vrot.slane %v641, %v645
    %v652 = vunpack.c.l.b16 %v637
    %v653 = vunpack.c.l.b16 %v638
    %v654 = vunpack.c.l.b16 %v639
    %v655 = vunpack.c.l.b16 %v640
    %v656 = vpack.c.b16 %v653, %v652
    %v657 = vpack.c.b16 %v655, %v654
    %vm660 = vcmask 261120
    %v662 = vsel %vm660, %v605, 0
    %v665 = vsel %vm660, %v606, 0
    %v668 = vsel %vm660, %v607, 0
    %v671 = vsel %vm660, %v608, 0
    %v674 = vsel %vm660, %v609, 0
    %v677 = vsel %vm660, %v610, 0
    %v680 = vsel %vm660, %v611, 0
    %v683 = vsel %vm660, %v612, 0
    %v686 = vsel %vm660, %v613, 0
    %v689 = vsel %vm660, %v614, 0
    %v692 = vsel %vm660, %v615, 0
    %v695 = vsel %vm660, %v616, 0
    %v698 = vsel %vm660, %v617, 0
    %v701 = vsel %vm660, %v618, 0
    %v704 = vsel %vm660, %v619, 0
    %v707 = vsel %vm660, %v620, 0
    %v710 = vsel %vm660, %v621, 0
    %v713 = vsel %vm660, %v622, 0
    %v716 = vsel %vm660, %v623, 0
    %v719 = vsel %vm660, %v624, 0
    %v722 = vsel %vm660, %v625, 0
    %v725 = vsel %vm660, %v626, 0
    %v728 = vsel %vm660, %v627, 0
    %v731 = vsel %vm660, %v628, 0
    %v734 = vsel %vm660, %v629, 0
    %v737 = vsel %vm660, %v630, 0
    %v740 = vsel %vm660, %v631, 0
    %v743 = vsel %vm660, %v632, 0
    %v746 = vsel %vm660, %v633, 0
    %v749 = vsel %vm660, %v634, 0
    %v752 = vsel %vm660, %v635, 0
    %v755 = vsel %vm660, %v636, 0
    %757 = vmatprep.subr.bf16.mxu0 0
    %758 = vmatpush1.bf16.msra.mxu0 %v656
    %759 = vmatprep.subr.bf16.mxu0 0
    %760 = vmatpush1.bf16.msra.mxu0 %v657
    %761 = vmatprep.subr.bf16.mxu0 0
    %762 = vmatpush1.bf16.msra.mxu0 0
    %763 = vmatprep.subr.bf16.mxu0 0
    %764 = vmatpush1.bf16.msra.mxu0 0
    %765 = vmatprep.subr.bf16.mxu0 0
    %766 = vmatpush1.bf16.msra.mxu0 0
    %767 = vmatprep.subr.bf16.mxu0 0
    %768 = vmatpush1.bf16.msra.mxu0 0
    %769 = vmatprep.subr.bf16.mxu0 0
    %770 = vmatpush1.bf16.msra.mxu0 0
    %771 = vmatprep.subr.bf16.mxu0 0
    %772 = vmatpush1.bf16.msra.mxu0 0
    %773 = vmatprep.subr.bf16.mxu0 0
    %774 = vmatpush1.bf16.msra.mxu0 0
    %775 = vmatprep.subr.bf16.mxu0 0
    %776 = vmatpush1.bf16.msra.mxu0 0
    %777 = vmatprep.subr.bf16.mxu0 0
    %778 = vmatpush1.bf16.msra.mxu0 0
    %779 = vmatprep.subr.bf16.mxu0 0
    %780 = vmatpush1.bf16.msra.mxu0 0
    %781 = vmatprep.subr.bf16.mxu0 0
    %782 = vmatpush1.bf16.msra.mxu0 0
    %783 = vmatprep.subr.bf16.mxu0 0
    %784 = vmatpush1.bf16.msra.mxu0 0
    %785 = vmatprep.subr.bf16.mxu0 0
    %786 = vmatpush1.bf16.msra.mxu0 0
    %787 = vmatprep.subr.bf16.mxu0 0
    %788 = vmatpush1.bf16.msra.mxu0 0
    %789 = vmatprep.mubr.bf16.mxu0 0
    %790 = vmatmul.mubr.bf16.gmra.mrb[0].mxu0 %v662
    %v791 = vpop.f32.mrb[0].mxu0
    %v792 = vadd.f32 %v646, %v791
    %v793 = vpop.f32.mrb[0].mxu0
    %v794 = vpop.f32.mrb[0].mxu0
    %v795 = vadd.f32 %v646, %v794
    %v796 = vpop.f32.mrb[0].mxu0
    %797 = vmatprep.mubr.bf16.mxu0 0
    %798 = vmatmul.mubr.bf16.gmra.mrb[0].mxu0 %v665
    %v799 = vpop.f32.mrb[0].mxu0
    %v800 = vadd.f32 %v646, %v799
    %v801 = vpop.f32.mrb[0].mxu0
    %v802 = vpop.f32.mrb[0].mxu0
    %v803 = vadd.f32 %v646, %v802
    %v804 = vpop.f32.mrb[0].mxu0
    %805 = vmatprep.mubr.bf16.mxu0 0
    %806 = vmatmul.mubr.bf16.gmra.mrb[0].mxu0 %v668
    %v807 = vpop.f32.mrb[0].mxu0
    %v808 = vadd.f32 %v646, %v807
    %v809 = vpop.f32.mrb[0].mxu0
    %v810 = vpop.f32.mrb[0].mxu0
    %v811 = vadd.f32 %v646, %v810
    %v812 = vpop.f32.mrb[0].mxu0
    %813 = vmatprep.mubr.bf16.mxu0 0
    %814 = vmatmul.mubr.bf16.gmra.mrb[0].mxu0 %v671
    %v815 = vpop.f32.mrb[0].mxu0
    %v816 = vadd.f32 %v646, %v815
    %v817 = vpop.f32.mrb[0].mxu0
    %v818 = vpop.f32.mrb[0].mxu0
    %v819 = vadd.f32 %v646, %v818
    %v820 = vpop.f32.mrb[0].mxu0
    %821 = vmatprep.mubr.bf16.mxu0 0
    %822 = vmatmul.mubr.bf16.gmra.mrb[0].mxu0 %v674
    %v823 = vpop.f32.mrb[0].mxu0
    %v824 = vadd.f32 %v646, %v823
    %v825 = vpop.f32.mrb[0].mxu0
    %v826 = vpop.f32.mrb[0].mxu0
    %v827 = vadd.f32 %v646, %v826
    %v828 = vpop.f32.mrb[0].mxu0
    %829 = vmatprep.mubr.bf16.mxu0 0
    %830 = vmatmul.mubr.bf16.gmra.mrb[0].mxu0 %v677
    %v831 = vpop.f32.mrb[0].mxu0
    %v832 = vadd.f32 %v646, %v831
    %v833 = vpop.f32.mrb[0].mxu0
    %v834 = vpop.f32.mrb[0].mxu0
    %v835 = vadd.f32 %v646, %v834
    %v836 = vpop.f32.mrb[0].mxu0
    %837 = vmatprep.mubr.bf16.mxu0 0
    %838 = vmatmul.mubr.bf16.gmra.mrb[0].mxu0 %v680
    %v839 = vpop.f32.mrb[0].mxu0
    %v840 = vadd.f32 %v646, %v839
    %v841 = vpop.f32.mrb[0].mxu0
    %v842 = vpop.f32.mrb[0].mxu0
    %v843 = vadd.f32 %v646, %v842
    %v844 = vpop.f32.mrb[0].mxu0
    %845 = vmatprep.mubr.bf16.mxu0 0
    %846 = vmatmul.mubr.bf16.gmra.mrb[0].mxu0 %v683
    %v847 = vpop.f32.mrb[0].mxu0
    %v848 = vadd.f32 %v646, %v847
    %v849 = vpop.f32.mrb[0].mxu0
    %v850 = vpop.f32.mrb[0].mxu0
    %v851 = vadd.f32 %v646, %v850
    %v852 = vpop.f32.mrb[0].mxu0
    %853 = vmatprep.mubr.bf16.mxu0 0
    %854 = vmatmul.mubr.bf16.gmra.mrb[0].mxu0 %v686
    %v855 = vpop.f32.mrb[0].mxu0
    %v856 = vadd.f32 %v646, %v855
    %v857 = vpop.f32.mrb[0].mxu0
    %v858 = vpop.f32.mrb[0].mxu0
    %v859 = vadd.f32 %v646, %v858
    %v860 = vpop.f32.mrb[0].mxu0
    %861 = vmatprep.mubr.bf16.mxu0 0
    %862 = vmatmul.mubr.bf16.gmra.mrb[0].mxu0 %v689
    %v863 = vpop.f32.mrb[0].mxu0
    %v864 = vadd.f32 %v646, %v863
    %v865 = vpop.f32.mrb[0].mxu0
    %v866 = vpop.f32.mrb[0].mxu0
    %v867 = vadd.f32 %v646, %v866
    %v868 = vpop.f32.mrb[0].mxu0
    %869 = vmatprep.mubr.bf16.mxu0 0
    %870 = vmatmul.mubr.bf16.gmra.mrb[0].mxu0 %v692
    %v871 = vpop.f32.mrb[0].mxu0
    %v872 = vadd.f32 %v646, %v871
    %v873 = vpop.f32.mrb[0].mxu0
    %v874 = vpop.f32.mrb[0].mxu0
    %v875 = vadd.f32 %v646, %v874
    %v876 = vpop.f32.mrb[0].mxu0
    %877 = vmatprep.mubr.bf16.mxu0 0
    %878 = vmatmul.mubr.bf16.gmra.mrb[0].mxu0 %v695
    %v879 = vpop.f32.mrb[0].mxu0
    %v880 = vadd.f32 %v646, %v879
    %v881 = vpop.f32.mrb[0].mxu0
    %v882 = vpop.f32.mrb[0].mxu0
    %v883 = vadd.f32 %v646, %v882
    %v884 = vpop.f32.mrb[0].mxu0
    %885 = vmatprep.mubr.bf16.mxu0 0
    %886 = vmatmul.mubr.bf16.gmra.mrb[0].mxu0 %v698
    %v887 = vpop.f32.mrb[0].mxu0
    %v888 = vadd.f32 %v646, %v887
    %v889 = vpop.f32.mrb[0].mxu0
    %v890 = vpop.f32.mrb[0].mxu0
    %v891 = vadd.f32 %v646, %v890
    %v892 = vpop.f32.mrb[0].mxu0
    %893 = vmatprep.mubr.bf16.mxu0 0
    %894 = vmatmul.mubr.bf16.gmra.mrb[0].mxu0 %v701
    %v895 = vpop.f32.mrb[0].mxu0
    %v896 = vadd.f32 %v646, %v895
    %v897 = vpop.f32.mrb[0].mxu0
    %v898 = vpop.f32.mrb[0].mxu0
    %v899 = vadd.f32 %v646, %v898
    %v900 = vpop.f32.mrb[0].mxu0
    %901 = vmatprep.mubr.bf16.mxu0 0
    %902 = vmatmul.mubr.bf16.gmra.mrb[0].mxu0 %v704
    %v903 = vpop.f32.mrb[0].mxu0
    %v904 = vadd.f32 %v646, %v903
    %v905 = vpop.f32.mrb[0].mxu0
    %v906 = vpop.f32.mrb[0].mxu0
    %v907 = vadd.f32 %v646, %v906
    %v908 = vpop.f32.mrb[0].mxu0
    %909 = vmatprep.mubr.bf16.mxu0 0
    %910 = vmatmul.mubr.bf16.gmra.mrb[0].mxu0 %v707
    %v911 = vpop.f32.mrb[0].mxu0
    %v912 = vadd.f32 %v646, %v911
    %v913 = vpop.f32.mrb[0].mxu0
    %v914 = vpop.f32.mrb[0].mxu0
    %v915 = vadd.f32 %v646, %v914
    %v916 = vpop.f32.mrb[0].mxu0
    %917 = vmatprep.mubr.bf16.mxu0 0
    %918 = vmatmul.mubr.bf16.gmra.mrb[0].mxu0 %v710
    %v919 = vpop.f32.mrb[0].mxu0
    %v920 = vadd.f32 %v646, %v919
    %v921 = vpop.f32.mrb[0].mxu0
    %v922 = vpop.f32.mrb[0].mxu0
    %v923 = vadd.f32 %v646, %v922
    %v924 = vpop.f32.mrb[0].mxu0
    %925 = vmatprep.mubr.bf16.mxu0 0
    %926 = vmatmul.mubr.bf16.gmra.mrb[0].mxu0 %v713
    %v927 = vpop.f32.mrb[0].mxu0
    %v928 = vadd.f32 %v646, %v927
    %v929 = vpop.f32.mrb[0].mxu0
    %v930 = vpop.f32.mrb[0].mxu0
    %v931 = vadd.f32 %v646, %v930
    %v932 = vpop.f32.mrb[0].mxu0
    %933 = vmatprep.mubr.bf16.mxu0 0
    %934 = vmatmul.mubr.bf16.gmra.mrb[0].mxu0 %v716
    %v935 = vpop.f32.mrb[0].mxu0
    %v936 = vadd.f32 %v646, %v935
    %v937 = vpop.f32.mrb[0].mxu0
    %v938 = vpop.f32.mrb[0].mxu0
    %v939 = vadd.f32 %v646, %v938
    %v940 = vpop.f32.mrb[0].mxu0
    %941 = vmatprep.mubr.bf16.mxu0 0
    %942 = vmatmul.mubr.bf16.gmra.mrb[0].mxu0 %v719
    %v943 = vpop.f32.mrb[0].mxu0
    %v944 = vadd.f32 %v646, %v943
    %v945 = vpop.f32.mrb[0].mxu0
    %v946 = vpop.f32.mrb[0].mxu0
    %v947 = vadd.f32 %v646, %v946
    %v948 = vpop.f32.mrb[0].mxu0
    %949 = vmatprep.mubr.bf16.mxu0 0
    %950 = vmatmul.mubr.bf16.gmra.mrb[0].mxu0 %v722
    %v951 = vpop.f32.mrb[0].mxu0
    %v952 = vadd.f32 %v646, %v951
    %v953 = vpop.f32.mrb[0].mxu0
    %v954 = vpop.f32.mrb[0].mxu0
    %v955 = vadd.f32 %v646, %v954
    %v956 = vpop.f32.mrb[0].mxu0
    %957 = vmatprep.mubr.bf16.mxu0 0
    %958 = vmatmul.mubr.bf16.gmra.mrb[0].mxu0 %v725
    %v959 = vpop.f32.mrb[0].mxu0
    %v960 = vadd.f32 %v646, %v959
    %v961 = vpop.f32.mrb[0].mxu0
    %v962 = vpop.f32.mrb[0].mxu0
    %v963 = vadd.f32 %v646, %v962
    %v964 = vpop.f32.mrb[0].mxu0
    %965 = vmatprep.mubr.bf16.mxu0 0
    %966 = vmatmul.mubr.bf16.gmra.mrb[0].mxu0 %v728
    %v967 = vpop.f32.mrb[0].mxu0
    %v968 = vadd.f32 %v646, %v967
    %v969 = vpop.f32.mrb[0].mxu0
    %v970 = vpop.f32.mrb[0].mxu0
    %v971 = vadd.f32 %v646, %v970
    %v972 = vpop.f32.mrb[0].mxu0
    %973 = vmatprep.mubr.bf16.mxu0 0
    %974 = vmatmul.mubr.bf16.gmra.mrb[0].mxu0 %v731
    %v975 = vpop.f32.mrb[0].mxu0
    %v976 = vadd.f32 %v646, %v975
    %v977 = vpop.f32.mrb[0].mxu0
    %v978 = vpop.f32.mrb[0].mxu0
    %v979 = vadd.f32 %v646, %v978
    %v980 = vpop.f32.mrb[0].mxu0
    %981 = vmatprep.mubr.bf16.mxu0 0
    %982 = vmatmul.mubr.bf16.gmra.mrb[0].mxu0 %v734
    %v983 = vpop.f32.mrb[0].mxu0
    %v984 = vadd.f32 %v646, %v983
    %v985 = vpop.f32.mrb[0].mxu0
    %v986 = vpop.f32.mrb[0].mxu0
    %v987 = vadd.f32 %v646, %v986
    %v988 = vpop.f32.mrb[0].mxu0
    %989 = vmatprep.mubr.bf16.mxu0 0
    %990 = vmatmul.mubr.bf16.gmra.mrb[0].mxu0 %v737
    %v991 = vpop.f32.mrb[0].mxu0
    %v992 = vadd.f32 %v646, %v991
    %v993 = vpop.f32.mrb[0].mxu0
    %v994 = vpop.f32.mrb[0].mxu0
    %v995 = vadd.f32 %v646, %v994
    %v996 = vpop.f32.mrb[0].mxu0
    %997 = vmatprep.mubr.bf16.mxu0 0
    %998 = vmatmul.mubr.bf16.gmra.mrb[0].mxu0 %v740
    %v999 = vpop.f32.mrb[0].mxu0
    %v1000 = vadd.f32 %v646, %v999
    %v1001 = vpop.f32.mrb[0].mxu0
    %v1002 = vpop.f32.mrb[0].mxu0
    %v1003 = vadd.f32 %v646, %v1002
    %v1004 = vpop.f32.mrb[0].mxu0
    %1005 = vmatprep.mubr.bf16.mxu0 0
    %1006 = vmatmul.mubr.bf16.gmra.mrb[0].mxu0 %v743
    %v1007 = vpop.f32.mrb[0].mxu0
    %v1008 = vadd.f32 %v646, %v1007
    %v1009 = vpop.f32.mrb[0].mxu0
    %v1010 = vpop.f32.mrb[0].mxu0
    %v1011 = vadd.f32 %v646, %v1010
    %v1012 = vpop.f32.mrb[0].mxu0
    %1013 = vmatprep.mubr.bf16.mxu0 0
    %1014 = vmatmul.mubr.bf16.gmra.mrb[0].mxu0 %v746
    %v1015 = vpop.f32.mrb[0].mxu0
    %v1016 = vadd.f32 %v646, %v1015
    %v1017 = vpop.f32.mrb[0].mxu0
    %v1018 = vpop.f32.mrb[0].mxu0
    %v1019 = vadd.f32 %v646, %v1018
    %v1020 = vpop.f32.mrb[0].mxu0
    %1021 = vmatprep.mubr.bf16.mxu0 0
    %1022 = vmatmul.mubr.bf16.gmra.mrb[0].mxu0 %v749
    %v1023 = vpop.f32.mrb[0].mxu0
    %v1024 = vadd.f32 %v646, %v1023
    %v1025 = vpop.f32.mrb[0].mxu0
    %v1026 = vpop.f32.mrb[0].mxu0
    %v1027 = vadd.f32 %v646, %v1026
    %v1028 = vpop.f32.mrb[0].mxu0
    %1029 = vmatprep.mubr.bf16.mxu0 0
    %1030 = vmatmul.mubr.bf16.gmra.mrb[0].mxu0 %v752
    %v1031 = vpop.f32.mrb[0].mxu0
    %v1032 = vadd.f32 %v646, %v1031
    %v1033 = vpop.f32.mrb[0].mxu0
    %v1034 = vpop.f32.mrb[0].mxu0
    %v1035 = vadd.f32 %v646, %v1034
    %v1036 = vpop.f32.mrb[0].mxu0
    %1037 = vmatprep.mubr.bf16.mxu0 0
    %1038 = vmatmul.mubr.bf16.gmra.mrb[0].mxu0 %v755
    %v1039 = vpop.f32.mrb[0].mxu0
    %v1040 = vadd.f32 %v646, %v1039
    %v1041 = vpop.f32.mrb[0].mxu0
    %v1042 = vpop.f32.mrb[0].mxu0
    %v1043 = vadd.f32 %v646, %v1042
    %v1044 = vpop.f32.mrb[0].mxu0
    %1045 = vdwg.mxu0
    %v1046 = vld [vmem:[%s1] sm:$0xff]
    %v1047 = vld [vmem:[%s1 + $0x8] sm:$0xff]
    %v1048 = vld [vmem:[%s1 + $0x10] sm:$0xff]
    %v1049 = vld [vmem:[%s1 + $0x18] sm:$0xff]
    %v1050 = vld [vmem:[%s1 + $0x20] sm:$0xff]
    %v1051 = vld [vmem:[%s1 + $0x28] sm:$0xff]
    %v1052 = vld [vmem:[%s1 + $0x30] sm:$0xff]
    %v1053 = vld [vmem:[%s1 + $0x38] sm:$0xff]
    %v1054 = vld [vmem:[%s1 + $0x40] sm:$0xff]
    %v1055 = vld [vmem:[%s1 + $0x48] sm:$0xff]
    %v1056 = vld [vmem:[%s1 + $0x50] sm:$0xff]
    %v1057 = vld [vmem:[%s1 + $0x58] sm:$0xff]
    %v1058 = vld [vmem:[%s1 + $0x60] sm:$0xff]
    %v1059 = vld [vmem:[%s1 + $0x68] sm:$0xff]
    %v1060 = vld [vmem:[%s1 + $0x70] sm:$0xff]
    %v1061 = vld [vmem:[%s1 + $0x78] sm:$0xff]
    %v1062 = vld [vmem:[%s1 + $0x80] sm:$0xff]
    %v1063 = vld [vmem:[%s1 + $0x88] sm:$0xff]
    %v1064 = vld [vmem:[%s1 + $0x90] sm:$0xff]
    %v1065 = vld [vmem:[%s1 + $0x98] sm:$0xff]
    %v1066 = vld [vmem:[%s1 + $0xa0] sm:$0xff]
    %v1067 = vld [vmem:[%s1 + $0xa8] sm:$0xff]
    %v1068 = vld [vmem:[%s1 + $0xb0] sm:$0xff]
    %v1069 = vld [vmem:[%s1 + $0xb8] sm:$0xff]
    %v1070 = vld [vmem:[%s1 + $0xc0] sm:$0xff]
    %v1071 = vld [vmem:[%s1 + $0xc8] sm:$0xff]
    %v1072 = vld [vmem:[%s1 + $0xd0] sm:$0xff]
    %v1073 = vld [vmem:[%s1 + $0xd8] sm:$0xff]
    %v1074 = vld [vmem:[%s1 + $0xe0] sm:$0xff]
    %v1075 = vld [vmem:[%s1 + $0xe8] sm:$0xff]
    %v1076 = vld [vmem:[%s1 + $0xf0] sm:$0xff]
    %v1077 = vld [vmem:[%s1 + $0xf8] sm:$0xff]
    %v1078 = vld [vmem:[%s1 + $0x100] sm:$0xff]
    %v1079 = vld [vmem:[%s1 + $0x108] sm:$0xff]
    %v1080 = vld [vmem:[%s1 + $0x110] sm:$0xff]
    %v1081 = vld [vmem:[%s1 + $0x118] sm:$0xff]
    %v1082 = vld [vmem:[%s1 + $0x120] sm:$0xff]
    %v1083 = vld [vmem:[%s1 + $0x128] sm:$0xff]
    %v1084 = vld [vmem:[%s1 + $0x130] sm:$0xff]
    %v1085 = vld [vmem:[%s1 + $0x138] sm:$0xff]
    %v1086 = vld [vmem:[%s1 + $0x140] sm:$0xff]
    %v1087 = vld [vmem:[%s1 + $0x148] sm:$0xff]
    %v1088 = vld [vmem:[%s1 + $0x150] sm:$0xff]
    %v1089 = vld [vmem:[%s1 + $0x158] sm:$0xff]
    %v1090 = vld [vmem:[%s1 + $0x160] sm:$0xff]
    %v1091 = vld [vmem:[%s1 + $0x168] sm:$0xff]
    %v1092 = vld [vmem:[%s1 + $0x170] sm:$0xff]
    %v1093 = vld [vmem:[%s1 + $0x178] sm:$0xff]
    %v1094 = vld [vmem:[%s1 + $0x180] sm:$0xff]
    %v1095 = vld [vmem:[%s1 + $0x188] sm:$0xff]
    %v1096 = vld [vmem:[%s1 + $0x190] sm:$0xff]
    %v1097 = vld [vmem:[%s1 + $0x198] sm:$0xff]
    %v1098 = vld [vmem:[%s1 + $0x1a0] sm:$0xff]
    %v1099 = vld [vmem:[%s1 + $0x1a8] sm:$0xff]
    %v1100 = vld [vmem:[%s1 + $0x1b0] sm:$0xff]
    %v1101 = vld [vmem:[%s1 + $0x1b8] sm:$0xff]
    %v1102 = vld [vmem:[%s1 + $0x1c0] sm:$0xff]
    %v1103 = vld [vmem:[%s1 + $0x1c8] sm:$0xff]
    %v1104 = vld [vmem:[%s1 + $0x1d0] sm:$0xff]
    %v1105 = vld [vmem:[%s1 + $0x1d8] sm:$0xff]
    %v1106 = vld [vmem:[%s1 + $0x1e0] sm:$0xff]
    %v1107 = vld [vmem:[%s1 + $0x1e8] sm:$0xff]
    %v1108 = vld [vmem:[%s1 + $0x1f0] sm:$0xff]
    %v1109 = vld [vmem:[%s1 + $0x1f8] sm:$0xff]
    %vm1110 = vcmp.gt.f32.partialorder %v1046, 0.0
    %vm1111 = vcmp.gt.f32.partialorder %v1047, 0.0
    %vm1112 = vcmp.gt.f32.partialorder %v1048, 0.0
    %vm1113 = vcmp.gt.f32.partialorder %v1049, 0.0
    %vm1114 = vcmp.gt.f32.partialorder %v1050, 0.0
    %vm1115 = vcmp.gt.f32.partialorder %v1051, 0.0
    %vm1116 = vcmp.gt.f32.partialorder %v1052, 0.0
    %vm1117 = vcmp.gt.f32.partialorder %v1053, 0.0
    %vm1118 = vcmp.gt.f32.partialorder %v1054, 0.0
    %vm1119 = vcmp.gt.f32.partialorder %v1055, 0.0
    %vm1120 = vcmp.gt.f32.partialorder %v1056, 0.0
    %vm1121 = vcmp.gt.f32.partialorder %v1057, 0.0
    %vm1122 = vcmp.gt.f32.partialorder %v1058, 0.0
    %vm1123 = vcmp.gt.f32.partialorder %v1059, 0.0
    %vm1124 = vcmp.gt.f32.partialorder %v1060, 0.0
    %vm1125 = vcmp.gt.f32.partialorder %v1061, 0.0
    %vm1126 = vcmp.gt.f32.partialorder %v1062, 0.0
    %vm1127 = vcmp.gt.f32.partialorder %v1063, 0.0
    %vm1128 = vcmp.gt.f32.partialorder %v1064, 0.0
    %vm1129 = vcmp.gt.f32.partialorder %v1065, 0.0
    %vm1130 = vcmp.gt.f32.partialorder %v1066, 0.0
    %vm1131 = vcmp.gt.f32.partialorder %v1067, 0.0
    %vm1132 = vcmp.gt.f32.partialorder %v1068, 0.0
    %vm1133 = vcmp.gt.f32.partialorder %v1069, 0.0
    %vm1134 = vcmp.gt.f32.partialorder %v1070, 0.0
    %vm1135 = vcmp.gt.f32.partialorder %v1071, 0.0
    %vm1136 = vcmp.gt.f32.partialorder %v1072, 0.0
    %vm1137 = vcmp.gt.f32.partialorder %v1073, 0.0
    %vm1138 = vcmp.gt.f32.partialorder %v1074, 0.0
    %vm1139 = vcmp.gt.f32.partialorder %v1075, 0.0
    %vm1140 = vcmp.gt.f32.partialorder %v1076, 0.0
    %vm1141 = vcmp.gt.f32.partialorder %v1077, 0.0
    %vm1142 = vcmp.gt.f32.partialorder %v1078, 0.0
    %vm1143 = vcmp.gt.f32.partialorder %v1079, 0.0
    %vm1144 = vcmp.gt.f32.partialorder %v1080, 0.0
    %vm1145 = vcmp.gt.f32.partialorder %v1081, 0.0
    %vm1146 = vcmp.gt.f32.partialorder %v1082, 0.0
    %vm1147 = vcmp.gt.f32.partialorder %v1083, 0.0
    %vm1148 = vcmp.gt.f32.partialorder %v1084, 0.0
    %vm1149 = vcmp.gt.f32.partialorder %v1085, 0.0
    %vm1150 = vcmp.gt.f32.partialorder %v1086, 0.0
    %vm1151 = vcmp.gt.f32.partialorder %v1087, 0.0
    %vm1152 = vcmp.gt.f32.partialorder %v1088, 0.0
    %vm1153 = vcmp.gt.f32.partialorder %v1089, 0.0
    %vm1154 = vcmp.gt.f32.partialorder %v1090, 0.0
    %vm1155 = vcmp.gt.f32.partialorder %v1091, 0.0
    %vm1156 = vcmp.gt.f32.partialorder %v1092, 0.0
    %vm1157 = vcmp.gt.f32.partialorder %v1093, 0.0
    %vm1158 = vcmp.gt.f32.partialorder %v1094, 0.0
    %vm1159 = vcmp.gt.f32.partialorder %v1095, 0.0
    %vm1160 = vcmp.gt.f32.partialorder %v1096, 0.0
    %vm1161 = vcmp.gt.f32.partialorder %v1097, 0.0
    %vm1162 = vcmp.gt.f32.partialorder %v1098, 0.0
    %vm1163 = vcmp.gt.f32.partialorder %v1099, 0.0
    %vm1164 = vcmp.gt.f32.partialorder %v1100, 0.0
    %vm1165 = vcmp.gt.f32.partialorder %v1101, 0.0
    %vm1166 = vcmp.gt.f32.partialorder %v1102, 0.0
    %vm1167 = vcmp.gt.f32.partialorder %v1103, 0.0
    %vm1168 = vcmp.gt.f32.partialorder %v1104, 0.0
    %vm1169 = vcmp.gt.f32.partialorder %v1105, 0.0
    %vm1170 = vcmp.gt.f32.partialorder %v1106, 0.0
    %vm1171 = vcmp.gt.f32.partialorder %v1107, 0.0
    %vm1172 = vcmp.gt.f32.partialorder %v1108, 0.0
    %vm1173 = vcmp.gt.f32.partialorder %v1109, 0.0
    %v1174 = vsel %vm1110, 1, 0
    %v1175 = vsel %vm1111, 1, 0
    %v1176 = vsel %vm1112, 1, 0
    %v1177 = vsel %vm1113, 1, 0
    %v1178 = vsel %vm1114, 1, 0
    %v1179 = vsel %vm1115, 1, 0
    %v1180 = vsel %vm1116, 1, 0
    %v1181 = vsel %vm1117, 1, 0
    %v1182 = vsel %vm1118, 1, 0
    %v1183 = vsel %vm1119, 1, 0
    %v1184 = vsel %vm1120, 1, 0
    %v1185 = vsel %vm1121, 1, 0
    %v1186 = vsel %vm1122, 1, 0
    %v1187 = vsel %vm1123, 1, 0
    %v1188 = vsel %vm1124, 1, 0
    %v1189 = vsel %vm1125, 1, 0
    %v1190 = vsel %vm1126, 1, 0
    %v1191 = vsel %vm1127, 1, 0
    %v1192 = vsel %vm1128, 1, 0
    %v1193 = vsel %vm1129, 1, 0
    %v1194 = vsel %vm1130, 1, 0
    %v1195 = vsel %vm1131, 1, 0
    %v1196 = vsel %vm1132, 1, 0
    %v1197 = vsel %vm1133, 1, 0
    %v1198 = vsel %vm1134, 1, 0
    %v1199 = vsel %vm1135, 1, 0
    %v1200 = vsel %vm1136, 1, 0
    %v1201 = vsel %vm1137, 1, 0
    %v1202 = vsel %vm1138, 1, 0
    %v1203 = vsel %vm1139, 1, 0
    %v1204 = vsel %vm1140, 1, 0
    %v1205 = vsel %vm1141, 1, 0
    %v1206 = vsel %vm1142, 1, 0
    %v1207 = vsel %vm1143, 1, 0
    %v1208 = vsel %vm1144, 1, 0
    %v1209 = vsel %vm1145, 1, 0
    %v1210 = vsel %vm1146, 1, 0
    %v1211 = vsel %vm1147, 1, 0
    %v1212 = vsel %vm1148, 1, 0
    %v1213 = vsel %vm1149, 1, 0
    %v1214 = vsel %vm1150, 1, 0
    %v1215 = vsel %vm1151, 1, 0
    %v1216 = vsel %vm1152, 1, 0
    %v1217 = vsel %vm1153, 1, 0
    %v1218 = vsel %vm1154, 1, 0
    %v1219 = vsel %vm1155, 1, 0
    %v1220 = vsel %vm1156, 1, 0
    %v1221 = vsel %vm1157, 1, 0
    %v1222 = vsel %vm1158, 1, 0
    %v1223 = vsel %vm1159, 1, 0
    %v1224 = vsel %vm1160, 1, 0
    %v1225 = vsel %vm1161, 1, 0
    %v1226 = vsel %vm1162, 1, 0
    %v1227 = vsel %vm1163, 1, 0
    %v1228 = vsel %vm1164, 1, 0
    %v1229 = vsel %vm1165, 1, 0
    %v1230 = vsel %vm1166, 1, 0
    %v1231 = vsel %vm1167, 1, 0
    %v1232 = vsel %vm1168, 1, 0
    %v1233 = vsel %vm1169, 1, 0
    %v1234 = vsel %vm1170, 1, 0
    %v1235 = vsel %vm1171, 1, 0
    %v1236 = vsel %vm1172, 1, 0
    %v1237 = vsel %vm1173, 1, 0
    %1238 = vset.pattern.permute.xlu0 0
    %1239 = vperm.xlu0 %1238, %v1174
    %v1240 = vpop.permute.xlu0 %1239
    %1241 = vset.pattern.permute.xlu0 0
    %1242 = vperm.xlu0 %1241, %v1175
    %v1243 = vpop.permute.xlu0 %1242
    %1244 = vset.pattern.permute.xlu0 0
    %1245 = vperm.xlu0 %1244, %v1176
    %v1246 = vpop.permute.xlu0 %1245
    %1247 = vset.pattern.permute.xlu0 0
    %1248 = vperm.xlu0 %1247, %v1177
    %v1249 = vpop.permute.xlu0 %1248
    %1250 = vset.pattern.permute.xlu0 0
    %1251 = vperm.xlu0 %1250, %v1178
    %v1252 = vpop.permute.xlu0 %1251
    %1253 = vset.pattern.permute.xlu0 0
    %1254 = vperm.xlu0 %1253, %v1179
    %v1255 = vpop.permute.xlu0 %1254
    %1256 = vset.pattern.permute.xlu0 0
    %1257 = vperm.xlu0 %1256, %v1180
    %v1258 = vpop.permute.xlu0 %1257
    %1259 = vset.pattern.permute.xlu0 0
    %1260 = vperm.xlu0 %1259, %v1181
    %v1261 = vpop.permute.xlu0 %1260
    %1262 = vset.pattern.permute.xlu0 0
    %1263 = vperm.xlu0 %1262, %v1182
    %v1264 = vpop.permute.xlu0 %1263
    %1265 = vset.pattern.permute.xlu0 0
    %1266 = vperm.xlu0 %1265, %v1183
    %v1267 = vpop.permute.xlu0 %1266
    %1268 = vset.pattern.permute.xlu0 0
    %1269 = vperm.xlu0 %1268, %v1184
    %v1270 = vpop.permute.xlu0 %1269
    %1271 = vset.pattern.permute.xlu0 0
    %1272 = vperm.xlu0 %1271, %v1185
    %v1273 = vpop.permute.xlu0 %1272
    %1274 = vset.pattern.permute.xlu0 0
    %1275 = vperm.xlu0 %1274, %v1186
    %v1276 = vpop.permute.xlu0 %1275
    %1277 = vset.pattern.permute.xlu0 0
    %1278 = vperm.xlu0 %1277, %v1187
    %v1279 = vpop.permute.xlu0 %1278
    %1280 = vset.pattern.permute.xlu0 0
    %1281 = vperm.xlu0 %1280, %v1188
    %v1282 = vpop.permute.xlu0 %1281
    %1283 = vset.pattern.permute.xlu0 0
    %1284 = vperm.xlu0 %1283, %v1189
    %v1285 = vpop.permute.xlu0 %1284
    %1286 = vset.pattern.permute.xlu0 0
    %1287 = vperm.xlu0 %1286, %v1190
    %v1288 = vpop.permute.xlu0 %1287
    %1289 = vset.pattern.permute.xlu0 0
    %1290 = vperm.xlu0 %1289, %v1191
    %v1291 = vpop.permute.xlu0 %1290
    %1292 = vset.pattern.permute.xlu0 0
    %1293 = vperm.xlu0 %1292, %v1192
    %v1294 = vpop.permute.xlu0 %1293
    %1295 = vset.pattern.permute.xlu0 0
    %1296 = vperm.xlu0 %1295, %v1193
    %v1297 = vpop.permute.xlu0 %1296
    %1298 = vset.pattern.permute.xlu0 0
    %1299 = vperm.xlu0 %1298, %v1194
    %v1300 = vpop.permute.xlu0 %1299
    %1301 = vset.pattern.permute.xlu0 0
    %1302 = vperm.xlu0 %1301, %v1195
    %v1303 = vpop.permute.xlu0 %1302
    %1304 = vset.pattern.permute.xlu0 0
    %1305 = vperm.xlu0 %1304, %v1196
    %v1306 = vpop.permute.xlu0 %1305
    %1307 = vset.pattern.permute.xlu0 0
    %1308 = vperm.xlu0 %1307, %v1197
    %v1309 = vpop.permute.xlu0 %1308
    %1310 = vset.pattern.permute.xlu0 0
    %1311 = vperm.xlu0 %1310, %v1198
    %v1312 = vpop.permute.xlu0 %1311
    %1313 = vset.pattern.permute.xlu0 0
    %1314 = vperm.xlu0 %1313, %v1199
    %v1315 = vpop.permute.xlu0 %1314
    %1316 = vset.pattern.permute.xlu0 0
    %1317 = vperm.xlu0 %1316, %v1200
    %v1318 = vpop.permute.xlu0 %1317
    %1319 = vset.pattern.permute.xlu0 0
    %1320 = vperm.xlu0 %1319, %v1201
    %v1321 = vpop.permute.xlu0 %1320
    %1322 = vset.pattern.permute.xlu0 0
    %1323 = vperm.xlu0 %1322, %v1202
    %v1324 = vpop.permute.xlu0 %1323
    %1325 = vset.pattern.permute.xlu0 0
    %1326 = vperm.xlu0 %1325, %v1203
    %v1327 = vpop.permute.xlu0 %1326
    %1328 = vset.pattern.permute.xlu0 0
    %1329 = vperm.xlu0 %1328, %v1204
    %v1330 = vpop.permute.xlu0 %1329
    %1331 = vset.pattern.permute.xlu0 0
    %1332 = vperm.xlu0 %1331, %v1205
    %v1333 = vpop.permute.xlu0 %1332
    %1334 = vset.pattern.permute.xlu0 0
    %1335 = vperm.xlu0 %1334, %v1206
    %v1336 = vpop.permute.xlu0 %1335
    %1337 = vset.pattern.permute.xlu0 0
    %1338 = vperm.xlu0 %1337, %v1207
    %v1339 = vpop.permute.xlu0 %1338
    %1340 = vset.pattern.permute.xlu0 0
    %1341 = vperm.xlu0 %1340, %v1208
    %v1342 = vpop.permute.xlu0 %1341
    %1343 = vset.pattern.permute.xlu0 0
    %1344 = vperm.xlu0 %1343, %v1209
    %v1345 = vpop.permute.xlu0 %1344
    %1346 = vset.pattern.permute.xlu0 0
    %1347 = vperm.xlu0 %1346, %v1210
    %v1348 = vpop.permute.xlu0 %1347
    %1349 = vset.pattern.permute.xlu0 0
    %1350 = vperm.xlu0 %1349, %v1211
    %v1351 = vpop.permute.xlu0 %1350
    %1352 = vset.pattern.permute.xlu0 0
    %1353 = vperm.xlu0 %1352, %v1212
    %v1354 = vpop.permute.xlu0 %1353
    %1355 = vset.pattern.permute.xlu0 0
    %1356 = vperm.xlu0 %1355, %v1213
    %v1357 = vpop.permute.xlu0 %1356
    %1358 = vset.pattern.permute.xlu0 0
    %1359 = vperm.xlu0 %1358, %v1214
    %v1360 = vpop.permute.xlu0 %1359
    %1361 = vset.pattern.permute.xlu0 0
    %1362 = vperm.xlu0 %1361, %v1215
    %v1363 = vpop.permute.xlu0 %1362
    %1364 = vset.pattern.permute.xlu0 0
    %1365 = vperm.xlu0 %1364, %v1216
    %v1366 = vpop.permute.xlu0 %1365
    %1367 = vset.pattern.permute.xlu0 0
    %1368 = vperm.xlu0 %1367, %v1217
    %v1369 = vpop.permute.xlu0 %1368
    %1370 = vset.pattern.permute.xlu0 0
    %1371 = vperm.xlu0 %1370, %v1218
    %v1372 = vpop.permute.xlu0 %1371
    %1373 = vset.pattern.permute.xlu0 0
    %1374 = vperm.xlu0 %1373, %v1219
    %v1375 = vpop.permute.xlu0 %1374
    %1376 = vset.pattern.permute.xlu0 0
    %1377 = vperm.xlu0 %1376, %v1220
    %v1378 = vpop.permute.xlu0 %1377
    %1379 = vset.pattern.permute.xlu0 0
    %1380 = vperm.xlu0 %1379, %v1221
    %v1381 = vpop.permute.xlu0 %1380
    %1382 = vset.pattern.permute.xlu0 0
    %1383 = vperm.xlu0 %1382, %v1222
    %v1384 = vpop.permute.xlu0 %1383
    %1385 = vset.pattern.permute.xlu0 0
    %1386 = vperm.xlu0 %1385, %v1223
    %v1387 = vpop.permute.xlu0 %1386
    %1388 = vset.pattern.permute.xlu0 0
    %1389 = vperm.xlu0 %1388, %v1224
    %v1390 = vpop.permute.xlu0 %1389
    %1391 = vset.pattern.permute.xlu0 0
    %1392 = vperm.xlu0 %1391, %v1225
    %v1393 = vpop.permute.xlu0 %1392
    %1394 = vset.pattern.permute.xlu0 0
    %1395 = vperm.xlu0 %1394, %v1226
    %v1396 = vpop.permute.xlu0 %1395
    %1397 = vset.pattern.permute.xlu0 0
    %1398 = vperm.xlu0 %1397, %v1227
    %v1399 = vpop.permute.xlu0 %1398
    %1400 = vset.pattern.permute.xlu0 0
    %1401 = vperm.xlu0 %1400, %v1228
    %v1402 = vpop.permute.xlu0 %1401
    %1403 = vset.pattern.permute.xlu0 0
    %1404 = vperm.xlu0 %1403, %v1229
    %v1405 = vpop.permute.xlu0 %1404
    %1406 = vset.pattern.permute.xlu0 0
    %1407 = vperm.xlu0 %1406, %v1230
    %v1408 = vpop.permute.xlu0 %1407
    %1409 = vset.pattern.permute.xlu0 0
    %1410 = vperm.xlu0 %1409, %v1231
    %v1411 = vpop.permute.xlu0 %1410
    %1412 = vset.pattern.permute.xlu0 0
    %1413 = vperm.xlu0 %1412, %v1232
    %v1414 = vpop.permute.xlu0 %1413
    %1415 = vset.pattern.permute.xlu0 0
    %1416 = vperm.xlu0 %1415, %v1233
    %v1417 = vpop.permute.xlu0 %1416
    %1418 = vset.pattern.permute.xlu0 0
    %1419 = vperm.xlu0 %1418, %v1234
    %v1420 = vpop.permute.xlu0 %1419
    %1421 = vset.pattern.permute.xlu0 0
    %1422 = vperm.xlu0 %1421, %v1235
    %v1423 = vpop.permute.xlu0 %1422
    %1424 = vset.pattern.permute.xlu0 0
    %1425 = vperm.xlu0 %1424, %v1236
    %v1426 = vpop.permute.xlu0 %1425
    %1427 = vset.pattern.permute.xlu0 0
    %1428 = vperm.xlu0 %1427, %v1237
    %v1429 = vpop.permute.xlu0 %1428
    %vm1430 = vcmp.eq.s32.totalorder %v1240, 1
    %vm1431 = vcmp.eq.s32.totalorder %v1243, 1
    %vm1432 = vcmp.eq.s32.totalorder %v1246, 1
    %vm1433 = vcmp.eq.s32.totalorder %v1249, 1
    %vm1434 = vcmp.eq.s32.totalorder %v1252, 1
    %vm1435 = vcmp.eq.s32.totalorder %v1255, 1
    %vm1436 = vcmp.eq.s32.totalorder %v1258, 1
    %vm1437 = vcmp.eq.s32.totalorder %v1261, 1
    %vm1438 = vcmp.eq.s32.totalorder %v1264, 1
    %vm1439 = vcmp.eq.s32.totalorder %v1267, 1
    %vm1440 = vcmp.eq.s32.totalorder %v1270, 1
    %vm1441 = vcmp.eq.s32.totalorder %v1273, 1
    %vm1442 = vcmp.eq.s32.totalorder %v1276, 1
    %vm1443 = vcmp.eq.s32.totalorder %v1279, 1
    %vm1444 = vcmp.eq.s32.totalorder %v1282, 1
    %vm1445 = vcmp.eq.s32.totalorder %v1285, 1
    %vm1446 = vcmp.eq.s32.totalorder %v1288, 1
    %vm1447 = vcmp.eq.s32.totalorder %v1291, 1
    %vm1448 = vcmp.eq.s32.totalorder %v1294, 1
    %vm1449 = vcmp.eq.s32.totalorder %v1297, 1
    %vm1450 = vcmp.eq.s32.totalorder %v1300, 1
    %vm1451 = vcmp.eq.s32.totalorder %v1303, 1
    %vm1452 = vcmp.eq.s32.totalorder %v1306, 1
    %vm1453 = vcmp.eq.s32.totalorder %v1309, 1
    %vm1454 = vcmp.eq.s32.totalorder %v1312, 1
    %vm1455 = vcmp.eq.s32.totalorder %v1315, 1
    %vm1456 = vcmp.eq.s32.totalorder %v1318, 1
    %vm1457 = vcmp.eq.s32.totalorder %v1321, 1
    %vm1458 = vcmp.eq.s32.totalorder %v1324, 1
    %vm1459 = vcmp.eq.s32.totalorder %v1327, 1
    %vm1460 = vcmp.eq.s32.totalorder %v1330, 1
    %vm1461 = vcmp.eq.s32.totalorder %v1333, 1
    %vm1462 = vcmp.eq.s32.totalorder %v1336, 1
    %vm1463 = vcmp.eq.s32.totalorder %v1339, 1
    %vm1464 = vcmp.eq.s32.totalorder %v1342, 1
    %vm1465 = vcmp.eq.s32.totalorder %v1345, 1
    %vm1466 = vcmp.eq.s32.totalorder %v1348, 1
    %vm1467 = vcmp.eq.s32.totalorder %v1351, 1
    %vm1468 = vcmp.eq.s32.totalorder %v1354, 1
    %vm1469 = vcmp.eq.s32.totalorder %v1357, 1
    %vm1470 = vcmp.eq.s32.totalorder %v1360, 1
    %vm1471 = vcmp.eq.s32.totalorder %v1363, 1
    %vm1472 = vcmp.eq.s32.totalorder %v1366, 1
    %vm1473 = vcmp.eq.s32.totalorder %v1369, 1
    %vm1474 = vcmp.eq.s32.totalorder %v1372, 1
    %vm1475 = vcmp.eq.s32.totalorder %v1375, 1
    %vm1476 = vcmp.eq.s32.totalorder %v1378, 1
    %vm1477 = vcmp.eq.s32.totalorder %v1381, 1
    %vm1478 = vcmp.eq.s32.totalorder %v1384, 1
    %vm1479 = vcmp.eq.s32.totalorder %v1387, 1
    %vm1480 = vcmp.eq.s32.totalorder %v1390, 1
    %vm1481 = vcmp.eq.s32.totalorder %v1393, 1
    %vm1482 = vcmp.eq.s32.totalorder %v1396, 1
    %vm1483 = vcmp.eq.s32.totalorder %v1399, 1
    %vm1484 = vcmp.eq.s32.totalorder %v1402, 1
    %vm1485 = vcmp.eq.s32.totalorder %v1405, 1
    %vm1486 = vcmp.eq.s32.totalorder %v1408, 1
    %vm1487 = vcmp.eq.s32.totalorder %v1411, 1
    %vm1488 = vcmp.eq.s32.totalorder %v1414, 1
    %vm1489 = vcmp.eq.s32.totalorder %v1417, 1
    %vm1490 = vcmp.eq.s32.totalorder %v1420, 1
    %vm1491 = vcmp.eq.s32.totalorder %v1423, 1
    %vm1492 = vcmp.eq.s32.totalorder %v1426, 1
    %vm1493 = vcmp.eq.s32.totalorder %v1429, 1
    %v1494 = vsel %vm1430, %v792, -1e+30
    %v1495 = vsel %vm1431, %v795, -1e+30
    %v1496 = vsel %vm1432, %v800, -1e+30
    %v1497 = vsel %vm1433, %v803, -1e+30
    %v1498 = vsel %vm1434, %v808, -1e+30
    %v1499 = vsel %vm1435, %v811, -1e+30
    %v1500 = vsel %vm1436, %v816, -1e+30
    %v1501 = vsel %vm1437, %v819, -1e+30
    %v1502 = vsel %vm1438, %v824, -1e+30
    %v1503 = vsel %vm1439, %v827, -1e+30
    %v1504 = vsel %vm1440, %v832, -1e+30
    %v1505 = vsel %vm1441, %v835, -1e+30
    %v1506 = vsel %vm1442, %v840, -1e+30
    %v1507 = vsel %vm1443, %v843, -1e+30
    %v1508 = vsel %vm1444, %v848, -1e+30
    %v1509 = vsel %vm1445, %v851, -1e+30
    %v1510 = vsel %vm1446, %v856, -1e+30
    %v1511 = vsel %vm1447, %v859, -1e+30
    %v1512 = vsel %vm1448, %v864, -1e+30
    %v1513 = vsel %vm1449, %v867, -1e+30
    %v1514 = vsel %vm1450, %v872, -1e+30
    %v1515 = vsel %vm1451, %v875, -1e+30
    %v1516 = vsel %vm1452, %v880, -1e+30
    %v1517 = vsel %vm1453, %v883, -1e+30
    %v1518 = vsel %vm1454, %v888, -1e+30
    %v1519 = vsel %vm1455, %v891, -1e+30
    %v1520 = vsel %vm1456, %v896, -1e+30
    %v1521 = vsel %vm1457, %v899, -1e+30
    %v1522 = vsel %vm1458, %v904, -1e+30
    %v1523 = vsel %vm1459, %v907, -1e+30
    %v1524 = vsel %vm1460, %v912, -1e+30
    %v1525 = vsel %vm1461, %v915, -1e+30
    %v1526 = vsel %vm1462, %v920, -1e+30
    %v1527 = vsel %vm1463, %v923, -1e+30
    %v1528 = vsel %vm1464, %v928, -1e+30
    %v1529 = vsel %vm1465, %v931, -1e+30
    %v1530 = vsel %vm1466, %v936, -1e+30
    %v1531 = vsel %vm1467, %v939, -1e+30
    %v1532 = vsel %vm1468, %v944, -1e+30
    %v1533 = vsel %vm1469, %v947, -1e+30
    %v1534 = vsel %vm1470, %v952, -1e+30
    %v1535 = vsel %vm1471, %v955, -1e+30
    %v1536 = vsel %vm1472, %v960, -1e+30
    %v1537 = vsel %vm1473, %v963, -1e+30
    %v1538 = vsel %vm1474, %v968, -1e+30
    %v1539 = vsel %vm1475, %v971, -1e+30
    %v1540 = vsel %vm1476, %v976, -1e+30
    %v1541 = vsel %vm1477, %v979, -1e+30
    %v1542 = vsel %vm1478, %v984, -1e+30
    %v1543 = vsel %vm1479, %v987, -1e+30
    %v1544 = vsel %vm1480, %v992, -1e+30
    %v1545 = vsel %vm1481, %v995, -1e+30
    %v1546 = vsel %vm1482, %v1000, -1e+30
    %v1547 = vsel %vm1483, %v1003, -1e+30
    %v1548 = vsel %vm1484, %v1008, -1e+30
    %v1549 = vsel %vm1485, %v1011, -1e+30
    %v1550 = vsel %vm1486, %v1016, -1e+30
    %v1551 = vsel %vm1487, %v1019, -1e+30
    %v1552 = vsel %vm1488, %v1024, -1e+30
    %v1553 = vsel %vm1489, %v1027, -1e+30
    %v1554 = vsel %vm1490, %v1032, -1e+30
    %v1555 = vsel %vm1491, %v1035, -1e+30
    %v1556 = vsel %vm1492, %v1040, -1e+30
    %v1557 = vsel %vm1493, %v1043, -1e+30
    %v1558 = vsel %vm660, %v1494, -inf
    %v1559 = vsel %vm660, %v1495, -inf
    %v1560 = vmax.f32 %v1558, %v1559
    %v1561 = vrot.slane %v1560, 4
    %v1562 = vmax.f32 %v1560, %v1561
    %v1563 = vrot.slane %v1562, 2
    %v1564 = vmax.f32 %v1562, %v1563
    %v1565 = vrot.slane %v1564, 1
    %v1566 = vmax.f32 %v1564, %v1565
    %v1567 = vsel %vm660, %v1496, -inf
    %v1568 = vsel %vm660, %v1497, -inf
    %v1569 = vmax.f32 %v1567, %v1568
    %v1570 = vrot.slane %v1569, 4
    %v1571 = vmax.f32 %v1569, %v1570
    %v1572 = vrot.slane %v1571, 2
    %v1573 = vmax.f32 %v1571, %v1572
    %v1574 = vrot.slane %v1573, 1
    %v1575 = vmax.f32 %v1573, %v1574
    %v1576 = vsel %vm660, %v1498, -inf
    %v1577 = vsel %vm660, %v1499, -inf
    %v1578 = vmax.f32 %v1576, %v1577
    %v1579 = vrot.slane %v1578, 4
    %v1580 = vmax.f32 %v1578, %v1579
    %v1581 = vrot.slane %v1580, 2
    %v1582 = vmax.f32 %v1580, %v1581
    %v1583 = vrot.slane %v1582, 1
    %v1584 = vmax.f32 %v1582, %v1583
    %v1585 = vsel %vm660, %v1500, -inf
    %v1586 = vsel %vm660, %v1501, -inf
    %v1587 = vmax.f32 %v1585, %v1586
    %v1588 = vrot.slane %v1587, 4
    %v1589 = vmax.f32 %v1587, %v1588
    %v1590 = vrot.slane %v1589, 2
    %v1591 = vmax.f32 %v1589, %v1590
    %v1592 = vrot.slane %v1591, 1
    %v1593 = vmax.f32 %v1591, %v1592
    %v1594 = vsel %vm660, %v1502, -inf
    %v1595 = vsel %vm660, %v1503, -inf
    %v1596 = vmax.f32 %v1594, %v1595
    %v1597 = vrot.slane %v1596, 4
    %v1598 = vmax.f32 %v1596, %v1597
    %v1599 = vrot.slane %v1598, 2
    %v1600 = vmax.f32 %v1598, %v1599
    %v1601 = vrot.slane %v1600, 1
    %v1602 = vmax.f32 %v1600, %v1601
    %v1603 = vsel %vm660, %v1504, -inf
    %v1604 = vsel %vm660, %v1505, -inf
    %v1605 = vmax.f32 %v1603, %v1604
    %v1606 = vrot.slane %v1605, 4
    %v1607 = vmax.f32 %v1605, %v1606
    %v1608 = vrot.slane %v1607, 2
    %v1609 = vmax.f32 %v1607, %v1608
    %v1610 = vrot.slane %v1609, 1
    %v1611 = vmax.f32 %v1609, %v1610
    %v1612 = vsel %vm660, %v1506, -inf
    %v1613 = vsel %vm660, %v1507, -inf
    %v1614 = vmax.f32 %v1612, %v1613
    %v1615 = vrot.slane %v1614, 4
    %v1616 = vmax.f32 %v1614, %v1615
    %v1617 = vrot.slane %v1616, 2
    %v1618 = vmax.f32 %v1616, %v1617
    %v1619 = vrot.slane %v1618, 1
    %v1620 = vmax.f32 %v1618, %v1619
    %v1621 = vsel %vm660, %v1508, -inf
    %v1622 = vsel %vm660, %v1509, -inf
    %v1623 = vmax.f32 %v1621, %v1622
    %v1624 = vrot.slane %v1623, 4
    %v1625 = vmax.f32 %v1623, %v1624
    %v1626 = vrot.slane %v1625, 2
    %v1627 = vmax.f32 %v1625, %v1626
    %v1628 = vrot.slane %v1627, 1
    %v1629 = vmax.f32 %v1627, %v1628
    %v1630 = vsel %vm660, %v1510, -inf
    %v1631 = vsel %vm660, %v1511, -inf
    %v1632 = vmax.f32 %v1630, %v1631
    %v1633 = vrot.slane %v1632, 4
    %v1634 = vmax.f32 %v1632, %v1633
    %v1635 = vrot.slane %v1634, 2
    %v1636 = vmax.f32 %v1634, %v1635
    %v1637 = vrot.slane %v1636, 1
    %v1638 = vmax.f32 %v1636, %v1637
    %v1639 = vsel %vm660, %v1512, -inf
    %v1640 = vsel %vm660, %v1513, -inf
    %v1641 = vmax.f32 %v1639, %v1640
    %v1642 = vrot.slane %v1641, 4
    %v1643 = vmax.f32 %v1641, %v1642
    %v1644 = vrot.slane %v1643, 2
    %v1645 = vmax.f32 %v1643, %v1644
    %v1646 = vrot.slane %v1645, 1
    %v1647 = vmax.f32 %v1645, %v1646
    %v1648 = vsel %vm660, %v1514, -inf
    %v1649 = vsel %vm660, %v1515, -inf
    %v1650 = vmax.f32 %v1648, %v1649
    %v1651 = vrot.slane %v1650, 4
    %v1652 = vmax.f32 %v1650, %v1651
    %v1653 = vrot.slane %v1652, 2
    %v1654 = vmax.f32 %v1652, %v1653
    %v1655 = vrot.slane %v1654, 1
    %v1656 = vmax.f32 %v1654, %v1655
    %v1657 = vsel %vm660, %v1516, -inf
    %v1658 = vsel %vm660, %v1517, -inf
    %v1659 = vmax.f32 %v1657, %v1658
    %v1660 = vrot.slane %v1659, 4
    %v1661 = vmax.f32 %v1659, %v1660
    %v1662 = vrot.slane %v1661, 2
    %v1663 = vmax.f32 %v1661, %v1662
    %v1664 = vrot.slane %v1663, 1
    %v1665 = vmax.f32 %v1663, %v1664
    %v1666 = vsel %vm660, %v1518, -inf
    %v1667 = vsel %vm660, %v1519, -inf
    %v1668 = vmax.f32 %v1666, %v1667
    %v1669 = vrot.slane %v1668, 4
    %v1670 = vmax.f32 %v1668, %v1669
    %v1671 = vrot.slane %v1670, 2
    %v1672 = vmax.f32 %v1670, %v1671
    %v1673 = vrot.slane %v1672, 1
    %v1674 = vmax.f32 %v1672, %v1673
    %v1675 = vsel %vm660, %v1520, -inf
    %v1676 = vsel %vm660, %v1521, -inf
    %v1677 = vmax.f32 %v1675, %v1676
    %v1678 = vrot.slane %v1677, 4
    %v1679 = vmax.f32 %v1677, %v1678
    %v1680 = vrot.slane %v1679, 2
    %v1681 = vmax.f32 %v1679, %v1680
    %v1682 = vrot.slane %v1681, 1
    %v1683 = vmax.f32 %v1681, %v1682
    %v1684 = vsel %vm660, %v1522, -inf
    %v1685 = vsel %vm660, %v1523, -inf
    %v1686 = vmax.f32 %v1684, %v1685
    %v1687 = vrot.slane %v1686, 4
    %v1688 = vmax.f32 %v1686, %v1687
    %v1689 = vrot.slane %v1688, 2
    %v1690 = vmax.f32 %v1688, %v1689
    %v1691 = vrot.slane %v1690, 1
    %v1692 = vmax.f32 %v1690, %v1691
    %v1693 = vsel %vm660, %v1524, -inf
    %v1694 = vsel %vm660, %v1525, -inf
    %v1695 = vmax.f32 %v1693, %v1694
    %v1696 = vrot.slane %v1695, 4
    %v1697 = vmax.f32 %v1695, %v1696
    %v1698 = vrot.slane %v1697, 2
    %v1699 = vmax.f32 %v1697, %v1698
    %v1700 = vrot.slane %v1699, 1
    %v1701 = vmax.f32 %v1699, %v1700
    %v1702 = vsel %vm660, %v1526, -inf
    %v1703 = vsel %vm660, %v1527, -inf
    %v1704 = vmax.f32 %v1702, %v1703
    %v1705 = vrot.slane %v1704, 4
    %v1706 = vmax.f32 %v1704, %v1705
    %v1707 = vrot.slane %v1706, 2
    %v1708 = vmax.f32 %v1706, %v1707
    %v1709 = vrot.slane %v1708, 1
    %v1710 = vmax.f32 %v1708, %v1709
    %v1711 = vsel %vm660, %v1528, -inf
    %v1712 = vsel %vm660, %v1529, -inf
    %v1713 = vmax.f32 %v1711, %v1712
    %v1714 = vrot.slane %v1713, 4
    %v1715 = vmax.f32 %v1713, %v1714
    %v1716 = vrot.slane %v1715, 2
    %v1717 = vmax.f32 %v1715, %v1716
    %v1718 = vrot.slane %v1717, 1
    %v1719 = vmax.f32 %v1717, %v1718
    %v1720 = vsel %vm660, %v1530, -inf
    %v1721 = vsel %vm660, %v1531, -inf
    %v1722 = vmax.f32 %v1720, %v1721
    %v1723 = vrot.slane %v1722, 4
    %v1724 = vmax.f32 %v1722, %v1723
    %v1725 = vrot.slane %v1724, 2
    %v1726 = vmax.f32 %v1724, %v1725
    %v1727 = vrot.slane %v1726, 1
    %v1728 = vmax.f32 %v1726, %v1727
    %v1729 = vsel %vm660, %v1532, -inf
    %v1730 = vsel %vm660, %v1533, -inf
    %v1731 = vmax.f32 %v1729, %v1730
    %v1732 = vrot.slane %v1731, 4
    %v1733 = vmax.f32 %v1731, %v1732
    %v1734 = vrot.slane %v1733, 2
    %v1735 = vmax.f32 %v1733, %v1734
    %v1736 = vrot.slane %v1735, 1
    %v1737 = vmax.f32 %v1735, %v1736
    %v1738 = vsel %vm660, %v1534, -inf
    %v1739 = vsel %vm660, %v1535, -inf
    %v1740 = vmax.f32 %v1738, %v1739
    %v1741 = vrot.slane %v1740, 4
    %v1742 = vmax.f32 %v1740, %v1741
    %v1743 = vrot.slane %v1742, 2
    %v1744 = vmax.f32 %v1742, %v1743
    %v1745 = vrot.slane %v1744, 1
    %v1746 = vmax.f32 %v1744, %v1745
    %v1747 = vsel %vm660, %v1536, -inf
    %v1748 = vsel %vm660, %v1537, -inf
    %v1749 = vmax.f32 %v1747, %v1748
    %v1750 = vrot.slane %v1749, 4
    %v1751 = vmax.f32 %v1749, %v1750
    %v1752 = vrot.slane %v1751, 2
    %v1753 = vmax.f32 %v1751, %v1752
    %v1754 = vrot.slane %v1753, 1
    %v1755 = vmax.f32 %v1753, %v1754
    %v1756 = vsel %vm660, %v1538, -inf
    %v1757 = vsel %vm660, %v1539, -inf
    %v1758 = vmax.f32 %v1756, %v1757
    %v1759 = vrot.slane %v1758, 4
    %v1760 = vmax.f32 %v1758, %v1759
    %v1761 = vrot.slane %v1760, 2
    %v1762 = vmax.f32 %v1760, %v1761
    %v1763 = vrot.slane %v1762, 1
    %v1764 = vmax.f32 %v1762, %v1763
    %v1765 = vsel %vm660, %v1540, -inf
    %v1766 = vsel %vm660, %v1541, -inf
    %v1767 = vmax.f32 %v1765, %v1766
    %v1768 = vrot.slane %v1767, 4
    %v1769 = vmax.f32 %v1767, %v1768
    %v1770 = vrot.slane %v1769, 2
    %v1771 = vmax.f32 %v1769, %v1770
    %v1772 = vrot.slane %v1771, 1
    %v1773 = vmax.f32 %v1771, %v1772
    %v1774 = vsel %vm660, %v1542, -inf
    %v1775 = vsel %vm660, %v1543, -inf
    %v1776 = vmax.f32 %v1774, %v1775
    %v1777 = vrot.slane %v1776, 4
    %v1778 = vmax.f32 %v1776, %v1777
    %v1779 = vrot.slane %v1778, 2
    %v1780 = vmax.f32 %v1778, %v1779
    %v1781 = vrot.slane %v1780, 1
    %v1782 = vmax.f32 %v1780, %v1781
    %v1783 = vsel %vm660, %v1544, -inf
    %v1784 = vsel %vm660, %v1545, -inf
    %v1785 = vmax.f32 %v1783, %v1784
    %v1786 = vrot.slane %v1785, 4
    %v1787 = vmax.f32 %v1785, %v1786
    %v1788 = vrot.slane %v1787, 2
    %v1789 = vmax.f32 %v1787, %v1788
    %v1790 = vrot.slane %v1789, 1
    %v1791 = vmax.f32 %v1789, %v1790
    %v1792 = vsel %vm660, %v1546, -inf
    %v1793 = vsel %vm660, %v1547, -inf
    %v1794 = vmax.f32 %v1792, %v1793
    %v1795 = vrot.slane %v1794, 4
    %v1796 = vmax.f32 %v1794, %v1795
    %v1797 = vrot.slane %v1796, 2
    %v1798 = vmax.f32 %v1796, %v1797
    %v1799 = vrot.slane %v1798, 1
    %v1800 = vmax.f32 %v1798, %v1799
    %v1801 = vsel %vm660, %v1548, -inf
    %v1802 = vsel %vm660, %v1549, -inf
    %v1803 = vmax.f32 %v1801, %v1802
    %v1804 = vrot.slane %v1803, 4
    %v1805 = vmax.f32 %v1803, %v1804
    %v1806 = vrot.slane %v1805, 2
    %v1807 = vmax.f32 %v1805, %v1806
    %v1808 = vrot.slane %v1807, 1
    %v1809 = vmax.f32 %v1807, %v1808
    %v1810 = vsel %vm660, %v1550, -inf
    %v1811 = vsel %vm660, %v1551, -inf
    %v1812 = vmax.f32 %v1810, %v1811
    %v1813 = vrot.slane %v1812, 4
    %v1814 = vmax.f32 %v1812, %v1813
    %v1815 = vrot.slane %v1814, 2
    %v1816 = vmax.f32 %v1814, %v1815
    %v1817 = vrot.slane %v1816, 1
    %v1818 = vmax.f32 %v1816, %v1817
    %v1819 = vsel %vm660, %v1552, -inf
    %v1820 = vsel %vm660, %v1553, -inf
    %v1821 = vmax.f32 %v1819, %v1820
    %v1822 = vrot.slane %v1821, 4
    %v1823 = vmax.f32 %v1821, %v1822
    %v1824 = vrot.slane %v1823, 2
    %v1825 = vmax.f32 %v1823, %v1824
    %v1826 = vrot.slane %v1825, 1
    %v1827 = vmax.f32 %v1825, %v1826
    %v1828 = vsel %vm660, %v1554, -inf
    %v1829 = vsel %vm660, %v1555, -inf
    %v1830 = vmax.f32 %v1828, %v1829
    %v1831 = vrot.slane %v1830, 4
    %v1832 = vmax.f32 %v1830, %v1831
    %v1833 = vrot.slane %v1832, 2
    %v1834 = vmax.f32 %v1832, %v1833
    %v1835 = vrot.slane %v1834, 1
    %v1836 = vmax.f32 %v1834, %v1835
    %v1837 = vsel %vm660, %v1556, -inf
    %v1838 = vsel %vm660, %v1557, -inf
    %v1839 = vmax.f32 %v1837, %v1838
    %v1840 = vrot.slane %v1839, 4
    %v1841 = vmax.f32 %v1839, %v1840
    %v1842 = vrot.slane %v1841, 2
    %v1843 = vmax.f32 %v1841, %v1842
    %v1844 = vrot.slane %v1843, 1
    %v1845 = vmax.f32 %v1843, %v1844
    %vm1846 = vcmask 7168
    %v1847 = vsel %vm1846, %v1046, -inf
    %v1848 = vsel %vm1846, %v1047, -inf
    %v1849 = vmax.f32 %v1847, %v1848
    %v1850 = vrot.slane %v1849, 4
    %v1851 = vmax.f32 %v1849, %v1850
    %v1852 = vrot.slane %v1851, 2
    %v1853 = vmax.f32 %v1851, %v1852
    %v1854 = vrot.slane %v1853, 1
    %v1855 = vmax.f32 %v1853, %v1854
    %v1856 = vsel %vm1846, %v1048, -inf
    %v1857 = vsel %vm1846, %v1049, -inf
    %v1858 = vmax.f32 %v1856, %v1857
    %v1859 = vrot.slane %v1858, 4
    %v1860 = vmax.f32 %v1858, %v1859
    %v1861 = vrot.slane %v1860, 2
    %v1862 = vmax.f32 %v1860, %v1861
    %v1863 = vrot.slane %v1862, 1
    %v1864 = vmax.f32 %v1862, %v1863
    %v1865 = vsel %vm1846, %v1050, -inf
    %v1866 = vsel %vm1846, %v1051, -inf
    %v1867 = vmax.f32 %v1865, %v1866
    %v1868 = vrot.slane %v1867, 4
    %v1869 = vmax.f32 %v1867, %v1868
    %v1870 = vrot.slane %v1869, 2
    %v1871 = vmax.f32 %v1869, %v1870
    %v1872 = vrot.slane %v1871, 1
    %v1873 = vmax.f32 %v1871, %v1872
    %v1874 = vsel %vm1846, %v1052, -inf
    %v1875 = vsel %vm1846, %v1053, -inf
    %v1876 = vmax.f32 %v1874, %v1875
    %v1877 = vrot.slane %v1876, 4
    %v1878 = vmax.f32 %v1876, %v1877
    %v1879 = vrot.slane %v1878, 2
    %v1880 = vmax.f32 %v1878, %v1879
    %v1881 = vrot.slane %v1880, 1
    %v1882 = vmax.f32 %v1880, %v1881
    %v1883 = vsel %vm1846, %v1054, -inf
    %v1884 = vsel %vm1846, %v1055, -inf
    %v1885 = vmax.f32 %v1883, %v1884
    %v1886 = vrot.slane %v1885, 4
    %v1887 = vmax.f32 %v1885, %v1886
    %v1888 = vrot.slane %v1887, 2
    %v1889 = vmax.f32 %v1887, %v1888
    %v1890 = vrot.slane %v1889, 1
    %v1891 = vmax.f32 %v1889, %v1890
    %v1892 = vsel %vm1846, %v1056, -inf
    %v1893 = vsel %vm1846, %v1057, -inf
    %v1894 = vmax.f32 %v1892, %v1893
    %v1895 = vrot.slane %v1894, 4
    %v1896 = vmax.f32 %v1894, %v1895
    %v1897 = vrot.slane %v1896, 2
    %v1898 = vmax.f32 %v1896, %v1897
    %v1899 = vrot.slane %v1898, 1
    %v1900 = vmax.f32 %v1898, %v1899
    %v1901 = vsel %vm1846, %v1058, -inf
    %v1902 = vsel %vm1846, %v1059, -inf
    %v1903 = vmax.f32 %v1901, %v1902
    %v1904 = vrot.slane %v1903, 4
    %v1905 = vmax.f32 %v1903, %v1904
    %v1906 = vrot.slane %v1905, 2
    %v1907 = vmax.f32 %v1905, %v1906
    %v1908 = vrot.slane %v1907, 1
    %v1909 = vmax.f32 %v1907, %v1908
    %v1910 = vsel %vm1846, %v1060, -inf
    %v1911 = vsel %vm1846, %v1061, -inf
    %v1912 = vmax.f32 %v1910, %v1911
    %v1913 = vrot.slane %v1912, 4
    %v1914 = vmax.f32 %v1912, %v1913
    %v1915 = vrot.slane %v1914, 2
    %v1916 = vmax.f32 %v1914, %v1915
    %v1917 = vrot.slane %v1916, 1
    %v1918 = vmax.f32 %v1916, %v1917
    %v1919 = vsel %vm1846, %v1062, -inf
    %v1920 = vsel %vm1846, %v1063, -inf
    %v1921 = vmax.f32 %v1919, %v1920
    %v1922 = vrot.slane %v1921, 4
    %v1923 = vmax.f32 %v1921, %v1922
    %v1924 = vrot.slane %v1923, 2
    %v1925 = vmax.f32 %v1923, %v1924
    %v1926 = vrot.slane %v1925, 1
    %v1927 = vmax.f32 %v1925, %v1926
    %v1928 = vsel %vm1846, %v1064, -inf
    %v1929 = vsel %vm1846, %v1065, -inf
    %v1930 = vmax.f32 %v1928, %v1929
    %v1931 = vrot.slane %v1930, 4
    %v1932 = vmax.f32 %v1930, %v1931
    %v1933 = vrot.slane %v1932, 2
    %v1934 = vmax.f32 %v1932, %v1933
    %v1935 = vrot.slane %v1934, 1
    %v1936 = vmax.f32 %v1934, %v1935
    %v1937 = vsel %vm1846, %v1066, -inf
    %v1938 = vsel %vm1846, %v1067, -inf
    %v1939 = vmax.f32 %v1937, %v1938
    %v1940 = vrot.slane %v1939, 4
    %v1941 = vmax.f32 %v1939, %v1940
    %v1942 = vrot.slane %v1941, 2
    %v1943 = vmax.f32 %v1941, %v1942
    %v1944 = vrot.slane %v1943, 1
    %v1945 = vmax.f32 %v1943, %v1944
    %v1946 = vsel %vm1846, %v1068, -inf
    %v1947 = vsel %vm1846, %v1069, -inf
    %v1948 = vmax.f32 %v1946, %v1947
    %v1949 = vrot.slane %v1948, 4
    %v1950 = vmax.f32 %v1948, %v1949
    %v1951 = vrot.slane %v1950, 2
    %v1952 = vmax.f32 %v1950, %v1951
    %v1953 = vrot.slane %v1952, 1
    %v1954 = vmax.f32 %v1952, %v1953
    %v1955 = vsel %vm1846, %v1070, -inf
    %v1956 = vsel %vm1846, %v1071, -inf
    %v1957 = vmax.f32 %v1955, %v1956
    %v1958 = vrot.slane %v1957, 4
    %v1959 = vmax.f32 %v1957, %v1958
    %v1960 = vrot.slane %v1959, 2
    %v1961 = vmax.f32 %v1959, %v1960
    %v1962 = vrot.slane %v1961, 1
    %v1963 = vmax.f32 %v1961, %v1962
    %v1964 = vsel %vm1846, %v1072, -inf
    %v1965 = vsel %vm1846, %v1073, -inf
    %v1966 = vmax.f32 %v1964, %v1965
    %v1967 = vrot.slane %v1966, 4
    %v1968 = vmax.f32 %v1966, %v1967
    %v1969 = vrot.slane %v1968, 2
    %v1970 = vmax.f32 %v1968, %v1969
    %v1971 = vrot.slane %v1970, 1
    %v1972 = vmax.f32 %v1970, %v1971
    %v1973 = vsel %vm1846, %v1074, -inf
    %v1974 = vsel %vm1846, %v1075, -inf
    %v1975 = vmax.f32 %v1973, %v1974
    %v1976 = vrot.slane %v1975, 4
    %v1977 = vmax.f32 %v1975, %v1976
    %v1978 = vrot.slane %v1977, 2
    %v1979 = vmax.f32 %v1977, %v1978
    %v1980 = vrot.slane %v1979, 1
    %v1981 = vmax.f32 %v1979, %v1980
    %v1982 = vsel %vm1846, %v1076, -inf
    %v1983 = vsel %vm1846, %v1077, -inf
    %v1984 = vmax.f32 %v1982, %v1983
    %v1985 = vrot.slane %v1984, 4
    %v1986 = vmax.f32 %v1984, %v1985
    %v1987 = vrot.slane %v1986, 2
    %v1988 = vmax.f32 %v1986, %v1987
    %v1989 = vrot.slane %v1988, 1
    %v1990 = vmax.f32 %v1988, %v1989
    %v1991 = vsel %vm1846, %v1078, -inf
    %v1992 = vsel %vm1846, %v1079, -inf
    %v1993 = vmax.f32 %v1991, %v1992
    %v1994 = vrot.slane %v1993, 4
    %v1995 = vmax.f32 %v1993, %v1994
    %v1996 = vrot.slane %v1995, 2
    %v1997 = vmax.f32 %v1995, %v1996
    %v1998 = vrot.slane %v1997, 1
    %v1999 = vmax.f32 %v1997, %v1998
    %v2000 = vsel %vm1846, %v1080, -inf
    %v2001 = vsel %vm1846, %v1081, -inf
    %v2002 = vmax.f32 %v2000, %v2001
    %v2003 = vrot.slane %v2002, 4
    %v2004 = vmax.f32 %v2002, %v2003
    %v2005 = vrot.slane %v2004, 2
    %v2006 = vmax.f32 %v2004, %v2005
    %v2007 = vrot.slane %v2006, 1
    %v2008 = vmax.f32 %v2006, %v2007
    %v2009 = vsel %vm1846, %v1082, -inf
    %v2010 = vsel %vm1846, %v1083, -inf
    %v2011 = vmax.f32 %v2009, %v2010
    %v2012 = vrot.slane %v2011, 4
    %v2013 = vmax.f32 %v2011, %v2012
    %v2014 = vrot.slane %v2013, 2
    %v2015 = vmax.f32 %v2013, %v2014
    %v2016 = vrot.slane %v2015, 1
    %v2017 = vmax.f32 %v2015, %v2016
    %v2018 = vsel %vm1846, %v1084, -inf
    %v2019 = vsel %vm1846, %v1085, -inf
    %v2020 = vmax.f32 %v2018, %v2019
    %v2021 = vrot.slane %v2020, 4
    %v2022 = vmax.f32 %v2020, %v2021
    %v2023 = vrot.slane %v2022, 2
    %v2024 = vmax.f32 %v2022, %v2023
    %v2025 = vrot.slane %v2024, 1
    %v2026 = vmax.f32 %v2024, %v2025
    %v2027 = vsel %vm1846, %v1086, -inf
    %v2028 = vsel %vm1846, %v1087, -inf
    %v2029 = vmax.f32 %v2027, %v2028
    %v2030 = vrot.slane %v2029, 4
    %v2031 = vmax.f32 %v2029, %v2030
    %v2032 = vrot.slane %v2031, 2
    %v2033 = vmax.f32 %v2031, %v2032
    %v2034 = vrot.slane %v2033, 1
    %v2035 = vmax.f32 %v2033, %v2034
    %v2036 = vsel %vm1846, %v1088, -inf
    %v2037 = vsel %vm1846, %v1089, -inf
    %v2038 = vmax.f32 %v2036, %v2037
    %v2039 = vrot.slane %v2038, 4
    %v2040 = vmax.f32 %v2038, %v2039
    %v2041 = vrot.slane %v2040, 2
    %v2042 = vmax.f32 %v2040, %v2041
    %v2043 = vrot.slane %v2042, 1
    %v2044 = vmax.f32 %v2042, %v2043
    %v2045 = vsel %vm1846, %v1090, -inf
    %v2046 = vsel %vm1846, %v1091, -inf
    %v2047 = vmax.f32 %v2045, %v2046
    %v2048 = vrot.slane %v2047, 4
    %v2049 = vmax.f32 %v2047, %v2048
    %v2050 = vrot.slane %v2049, 2
    %v2051 = vmax.f32 %v2049, %v2050
    %v2052 = vrot.slane %v2051, 1
    %v2053 = vmax.f32 %v2051, %v2052
    %v2054 = vsel %vm1846, %v1092, -inf
    %v2055 = vsel %vm1846, %v1093, -inf
    %v2056 = vmax.f32 %v2054, %v2055
    %v2057 = vrot.slane %v2056, 4
    %v2058 = vmax.f32 %v2056, %v2057
    %v2059 = vrot.slane %v2058, 2
    %v2060 = vmax.f32 %v2058, %v2059
    %v2061 = vrot.slane %v2060, 1
    %v2062 = vmax.f32 %v2060, %v2061
    %v2063 = vsel %vm1846, %v1094, -inf
    %v2064 = vsel %vm1846, %v1095, -inf
    %v2065 = vmax.f32 %v2063, %v2064
    %v2066 = vrot.slane %v2065, 4
    %v2067 = vmax.f32 %v2065, %v2066
    %v2068 = vrot.slane %v2067, 2
    %v2069 = vmax.f32 %v2067, %v2068
    %v2070 = vrot.slane %v2069, 1
    %v2071 = vmax.f32 %v2069, %v2070
    %v2072 = vsel %vm1846, %v1096, -inf
    %v2073 = vsel %vm1846, %v1097, -inf
    %v2074 = vmax.f32 %v2072, %v2073
    %v2075 = vrot.slane %v2074, 4
    %v2076 = vmax.f32 %v2074, %v2075
    %v2077 = vrot.slane %v2076, 2
    %v2078 = vmax.f32 %v2076, %v2077
    %v2079 = vrot.slane %v2078, 1
    %v2080 = vmax.f32 %v2078, %v2079
    %v2081 = vsel %vm1846, %v1098, -inf
    %v2082 = vsel %vm1846, %v1099, -inf
    %v2083 = vmax.f32 %v2081, %v2082
    %v2084 = vrot.slane %v2083, 4
    %v2085 = vmax.f32 %v2083, %v2084
    %v2086 = vrot.slane %v2085, 2
    %v2087 = vmax.f32 %v2085, %v2086
    %v2088 = vrot.slane %v2087, 1
    %v2089 = vmax.f32 %v2087, %v2088
    %v2090 = vsel %vm1846, %v1100, -inf
    %v2091 = vsel %vm1846, %v1101, -inf
    %v2092 = vmax.f32 %v2090, %v2091
    %v2093 = vrot.slane %v2092, 4
    %v2094 = vmax.f32 %v2092, %v2093
    %v2095 = vrot.slane %v2094, 2
    %v2096 = vmax.f32 %v2094, %v2095
    %v2097 = vrot.slane %v2096, 1
    %v2098 = vmax.f32 %v2096, %v2097
    %v2099 = vsel %vm1846, %v1102, -inf
    %v2100 = vsel %vm1846, %v1103, -inf
    %v2101 = vmax.f32 %v2099, %v2100
    %v2102 = vrot.slane %v2101, 4
    %v2103 = vmax.f32 %v2101, %v2102
    %v2104 = vrot.slane %v2103, 2
    %v2105 = vmax.f32 %v2103, %v2104
    %v2106 = vrot.slane %v2105, 1
    %v2107 = vmax.f32 %v2105, %v2106
    %v2108 = vsel %vm1846, %v1104, -inf
    %v2109 = vsel %vm1846, %v1105, -inf
    %v2110 = vmax.f32 %v2108, %v2109
    %v2111 = vrot.slane %v2110, 4
    %v2112 = vmax.f32 %v2110, %v2111
    %v2113 = vrot.slane %v2112, 2
    %v2114 = vmax.f32 %v2112, %v2113
    %v2115 = vrot.slane %v2114, 1
    %v2116 = vmax.f32 %v2114, %v2115
    %v2117 = vsel %vm1846, %v1106, -inf
    %v2118 = vsel %vm1846, %v1107, -inf
    %v2119 = vmax.f32 %v2117, %v2118
    %v2120 = vrot.slane %v2119, 4
    %v2121 = vmax.f32 %v2119, %v2120
    %v2122 = vrot.slane %v2121, 2
    %v2123 = vmax.f32 %v2121, %v2122
    %v2124 = vrot.slane %v2123, 1
    %v2125 = vmax.f32 %v2123, %v2124
    %v2126 = vsel %vm1846, %v1108, -inf
    %v2127 = vsel %vm1846, %v1109, -inf
    %v2128 = vmax.f32 %v2126, %v2127
    %v2129 = vrot.slane %v2128, 4
    %v2130 = vmax.f32 %v2128, %v2129
    %v2131 = vrot.slane %v2130, 2
    %v2132 = vmax.f32 %v2130, %v2131
    %v2133 = vrot.slane %v2132, 1
    %v2134 = vmax.f32 %v2132, %v2133
    %vm2135 = vcmp.gt.f32.partialorder %v1855, 0.0
    %vm2136 = vcmp.gt.f32.partialorder %v1864, 0.0
    %vm2137 = vcmp.gt.f32.partialorder %v1873, 0.0
    %vm2138 = vcmp.gt.f32.partialorder %v1882, 0.0
    %vm2139 = vcmp.gt.f32.partialorder %v1891, 0.0
    %vm2140 = vcmp.gt.f32.partialorder %v1900, 0.0
    %vm2141 = vcmp.gt.f32.partialorder %v1909, 0.0
    %vm2142 = vcmp.gt.f32.partialorder %v1918, 0.0
    %vm2143 = vcmp.gt.f32.partialorder %v1927, 0.0
    %vm2144 = vcmp.gt.f32.partialorder %v1936, 0.0
    %vm2145 = vcmp.gt.f32.partialorder %v1945, 0.0
    %vm2146 = vcmp.gt.f32.partialorder %v1954, 0.0
    %vm2147 = vcmp.gt.f32.partialorder %v1963, 0.0
    %vm2148 = vcmp.gt.f32.partialorder %v1972, 0.0
    %vm2149 = vcmp.gt.f32.partialorder %v1981, 0.0
    %vm2150 = vcmp.gt.f32.partialorder %v1990, 0.0
    %vm2151 = vcmp.gt.f32.partialorder %v1999, 0.0
    %vm2152 = vcmp.gt.f32.partialorder %v2008, 0.0
    %vm2153 = vcmp.gt.f32.partialorder %v2017, 0.0
    %vm2154 = vcmp.gt.f32.partialorder %v2026, 0.0
    %vm2155 = vcmp.gt.f32.partialorder %v2035, 0.0
    %vm2156 = vcmp.gt.f32.partialorder %v2044, 0.0
    %vm2157 = vcmp.gt.f32.partialorder %v2053, 0.0
    %vm2158 = vcmp.gt.f32.partialorder %v2062, 0.0
    %vm2159 = vcmp.gt.f32.partialorder %v2071, 0.0
    %vm2160 = vcmp.gt.f32.partialorder %v2080, 0.0
    %vm2161 = vcmp.gt.f32.partialorder %v2089, 0.0
    %vm2162 = vcmp.gt.f32.partialorder %v2098, 0.0
    %vm2163 = vcmp.gt.f32.partialorder %v2107, 0.0
    %vm2164 = vcmp.gt.f32.partialorder %v2116, 0.0
    %vm2165 = vcmp.gt.f32.partialorder %v2125, 0.0
    %vm2166 = vcmp.gt.f32.partialorder %v2134, 0.0
    %v2167 = vsel %vm2135, 1, 0
    %v2168 = vsel %vm2136, 1, 0
    %v2169 = vsel %vm2137, 1, 0
    %v2170 = vsel %vm2138, 1, 0
    %v2171 = vsel %vm2139, 1, 0
    %v2172 = vsel %vm2140, 1, 0
    %v2173 = vsel %vm2141, 1, 0
    %v2174 = vsel %vm2142, 1, 0
    %v2175 = vsel %vm2143, 1, 0
    %v2176 = vsel %vm2144, 1, 0
    %v2177 = vsel %vm2145, 1, 0
    %v2178 = vsel %vm2146, 1, 0
    %v2179 = vsel %vm2147, 1, 0
    %v2180 = vsel %vm2148, 1, 0
    %v2181 = vsel %vm2149, 1, 0
    %v2182 = vsel %vm2150, 1, 0
    %v2183 = vsel %vm2151, 1, 0
    %v2184 = vsel %vm2152, 1, 0
    %v2185 = vsel %vm2153, 1, 0
    %v2186 = vsel %vm2154, 1, 0
    %v2187 = vsel %vm2155, 1, 0
    %v2188 = vsel %vm2156, 1, 0
    %v2189 = vsel %vm2157, 1, 0
    %v2190 = vsel %vm2158, 1, 0
    %v2191 = vsel %vm2159, 1, 0
    %v2192 = vsel %vm2160, 1, 0
    %v2193 = vsel %vm2161, 1, 0
    %v2194 = vsel %vm2162, 1, 0
    %v2195 = vsel %vm2163, 1, 0
    %v2196 = vsel %vm2164, 1, 0
    %v2197 = vsel %vm2165, 1, 0
    %v2198 = vsel %vm2166, 1, 0
    %2199 = vset.pattern.permute.xlu0 0
    %2200 = vperm.xlu0 %2199, %v2167
    %v2201 = vpop.permute.xlu0 %2200
    %2202 = vset.pattern.permute.xlu0 0
    %2203 = vperm.xlu0 %2202, %v2168
    %v2204 = vpop.permute.xlu0 %2203
    %2205 = vset.pattern.permute.xlu0 0
    %2206 = vperm.xlu0 %2205, %v2169
    %v2207 = vpop.permute.xlu0 %2206
    %2208 = vset.pattern.permute.xlu0 0
    %2209 = vperm.xlu0 %2208, %v2170
    %v2210 = vpop.permute.xlu0 %2209
    %2211 = vset.pattern.permute.xlu0 0
    %2212 = vperm.xlu0 %2211, %v2171
    %v2213 = vpop.permute.xlu0 %2212
    %2214 = vset.pattern.permute.xlu0 0
    %2215 = vperm.xlu0 %2214, %v2172
    %v2216 = vpop.permute.xlu0 %2215
    %2217 = vset.pattern.permute.xlu0 0
    %2218 = vperm.xlu0 %2217, %v2173
    %v2219 = vpop.permute.xlu0 %2218
    %2220 = vset.pattern.permute.xlu0 0
    %2221 = vperm.xlu0 %2220, %v2174
    %v2222 = vpop.permute.xlu0 %2221
    %2223 = vset.pattern.permute.xlu0 0
    %2224 = vperm.xlu0 %2223, %v2175
    %v2225 = vpop.permute.xlu0 %2224
    %2226 = vset.pattern.permute.xlu0 0
    %2227 = vperm.xlu0 %2226, %v2176
    %v2228 = vpop.permute.xlu0 %2227
    %2229 = vset.pattern.permute.xlu0 0
    %2230 = vperm.xlu0 %2229, %v2177
    %v2231 = vpop.permute.xlu0 %2230
    %2232 = vset.pattern.permute.xlu0 0
    %2233 = vperm.xlu0 %2232, %v2178
    %v2234 = vpop.permute.xlu0 %2233
    %2235 = vset.pattern.permute.xlu0 0
    %2236 = vperm.xlu0 %2235, %v2179
    %v2237 = vpop.permute.xlu0 %2236
    %2238 = vset.pattern.permute.xlu0 0
    %2239 = vperm.xlu0 %2238, %v2180
    %v2240 = vpop.permute.xlu0 %2239
    %2241 = vset.pattern.permute.xlu0 0
    %2242 = vperm.xlu0 %2241, %v2181
    %v2243 = vpop.permute.xlu0 %2242
    %2244 = vset.pattern.permute.xlu0 0
    %2245 = vperm.xlu0 %2244, %v2182
    %v2246 = vpop.permute.xlu0 %2245
    %2247 = vset.pattern.permute.xlu0 0
    %2248 = vperm.xlu0 %2247, %v2183
    %v2249 = vpop.permute.xlu0 %2248
    %2250 = vset.pattern.permute.xlu0 0
    %2251 = vperm.xlu0 %2250, %v2184
    %v2252 = vpop.permute.xlu0 %2251
    %2253 = vset.pattern.permute.xlu0 0
    %2254 = vperm.xlu0 %2253, %v2185
    %v2255 = vpop.permute.xlu0 %2254
    %2256 = vset.pattern.permute.xlu0 0
    %2257 = vperm.xlu0 %2256, %v2186
    %v2258 = vpop.permute.xlu0 %2257
    %2259 = vset.pattern.permute.xlu0 0
    %2260 = vperm.xlu0 %2259, %v2187
    %v2261 = vpop.permute.xlu0 %2260
    %2262 = vset.pattern.permute.xlu0 0
    %2263 = vperm.xlu0 %2262, %v2188
    %v2264 = vpop.permute.xlu0 %2263
    %2265 = vset.pattern.permute.xlu0 0
    %2266 = vperm.xlu0 %2265, %v2189
    %v2267 = vpop.permute.xlu0 %2266
    %2268 = vset.pattern.permute.xlu0 0
    %2269 = vperm.xlu0 %2268, %v2190
    %v2270 = vpop.permute.xlu0 %2269
    %2271 = vset.pattern.permute.xlu0 0
    %2272 = vperm.xlu0 %2271, %v2191
    %v2273 = vpop.permute.xlu0 %2272
    %2274 = vset.pattern.permute.xlu0 0
    %2275 = vperm.xlu0 %2274, %v2192
    %v2276 = vpop.permute.xlu0 %2275
    %2277 = vset.pattern.permute.xlu0 0
    %2278 = vperm.xlu0 %2277, %v2193
    %v2279 = vpop.permute.xlu0 %2278
    %2280 = vset.pattern.permute.xlu0 0
    %2281 = vperm.xlu0 %2280, %v2194
    %v2282 = vpop.permute.xlu0 %2281
    %2283 = vset.pattern.permute.xlu0 0
    %2284 = vperm.xlu0 %2283, %v2195
    %v2285 = vpop.permute.xlu0 %2284
    %2286 = vset.pattern.permute.xlu0 0
    %2287 = vperm.xlu0 %2286, %v2196
    %v2288 = vpop.permute.xlu0 %2287
    %2289 = vset.pattern.permute.xlu0 0
    %2290 = vperm.xlu0 %2289, %v2197
    %v2291 = vpop.permute.xlu0 %2290
    %2292 = vset.pattern.permute.xlu0 0
    %2293 = vperm.xlu0 %2292, %v2198
    %v2294 = vpop.permute.xlu0 %2293
    %vm2295 = vcmp.eq.s32.totalorder %v2201, 1
    %vm2296 = vcmp.eq.s32.totalorder %v2204, 1
    %vm2297 = vcmp.eq.s32.totalorder %v2207, 1
    %vm2298 = vcmp.eq.s32.totalorder %v2210, 1
    %vm2299 = vcmp.eq.s32.totalorder %v2213, 1
    %vm2300 = vcmp.eq.s32.totalorder %v2216, 1
    %vm2301 = vcmp.eq.s32.totalorder %v2219, 1
    %vm2302 = vcmp.eq.s32.totalorder %v2222, 1
    %vm2303 = vcmp.eq.s32.totalorder %v2225, 1
    %vm2304 = vcmp.eq.s32.totalorder %v2228, 1
    %vm2305 = vcmp.eq.s32.totalorder %v2231, 1
    %vm2306 = vcmp.eq.s32.totalorder %v2234, 1
    %vm2307 = vcmp.eq.s32.totalorder %v2237, 1
    %vm2308 = vcmp.eq.s32.totalorder %v2240, 1
    %vm2309 = vcmp.eq.s32.totalorder %v2243, 1
    %vm2310 = vcmp.eq.s32.totalorder %v2246, 1
    %vm2311 = vcmp.eq.s32.totalorder %v2249, 1
    %vm2312 = vcmp.eq.s32.totalorder %v2252, 1
    %vm2313 = vcmp.eq.s32.totalorder %v2255, 1
    %vm2314 = vcmp.eq.s32.totalorder %v2258, 1
    %vm2315 = vcmp.eq.s32.totalorder %v2261, 1
    %vm2316 = vcmp.eq.s32.totalorder %v2264, 1
    %vm2317 = vcmp.eq.s32.totalorder %v2267, 1
    %vm2318 = vcmp.eq.s32.totalorder %v2270, 1
    %vm2319 = vcmp.eq.s32.totalorder %v2273, 1
    %vm2320 = vcmp.eq.s32.totalorder %v2276, 1
    %vm2321 = vcmp.eq.s32.totalorder %v2279, 1
    %vm2322 = vcmp.eq.s32.totalorder %v2282, 1
    %vm2323 = vcmp.eq.s32.totalorder %v2285, 1
    %vm2324 = vcmp.eq.s32.totalorder %v2288, 1
    %vm2325 = vcmp.eq.s32.totalorder %v2291, 1
    %vm2326 = vcmp.eq.s32.totalorder %v2294, 1
    %v2327 = vsel %vm2295, %v1566, 0.0
    %v2328 = vsel %vm2296, %v1575, 0.0
    %v2329 = vsel %vm2297, %v1584, 0.0
    %v2330 = vsel %vm2298, %v1593, 0.0
    %v2331 = vsel %vm2299, %v1602, 0.0
    %v2332 = vsel %vm2300, %v1611, 0.0
    %v2333 = vsel %vm2301, %v1620, 0.0
    %v2334 = vsel %vm2302, %v1629, 0.0
    %v2335 = vsel %vm2303, %v1638, 0.0
    %v2336 = vsel %vm2304, %v1647, 0.0
    %v2337 = vsel %vm2305, %v1656, 0.0
    %v2338 = vsel %vm2306, %v1665, 0.0
    %v2339 = vsel %vm2307, %v1674, 0.0
    %v2340 = vsel %vm2308, %v1683, 0.0
    %v2341 = vsel %vm2309, %v1692, 0.0
    %v2342 = vsel %vm2310, %v1701, 0.0
    %v2343 = vsel %vm2311, %v1710, 0.0
    %v2344 = vsel %vm2312, %v1719, 0.0
    %v2345 = vsel %vm2313, %v1728, 0.0
    %v2346 = vsel %vm2314, %v1737, 0.0
    %v2347 = vsel %vm2315, %v1746, 0.0
    %v2348 = vsel %vm2316, %v1755, 0.0
    %v2349 = vsel %vm2317, %v1764, 0.0
    %v2350 = vsel %vm2318, %v1773, 0.0
    %v2351 = vsel %vm2319, %v1782, 0.0
    %v2352 = vsel %vm2320, %v1791, 0.0
    %v2353 = vsel %vm2321, %v1800, 0.0
    %v2354 = vsel %vm2322, %v1809, 0.0
    %v2355 = vsel %vm2323, %v1818, 0.0
    %v2356 = vsel %vm2324, %v1827, 0.0
    %v2357 = vsel %vm2325, %v1836, 0.0
    %v2358 = vsel %vm2326, %v1845, 0.0
    %v2359 = vmul.f32 %v2327, %v2327
    %v2360 = vmul.f32 %v2328, %v2328
    %v2361 = vmul.f32 %v2329, %v2329
    %v2362 = vmul.f32 %v2330, %v2330
    %v2363 = vmul.f32 %v2331, %v2331
    %v2364 = vmul.f32 %v2332, %v2332
    %v2365 = vmul.f32 %v2333, %v2333
    %v2366 = vmul.f32 %v2334, %v2334
    %v2367 = vmul.f32 %v2335, %v2335
    %v2368 = vmul.f32 %v2336, %v2336
    %v2369 = vmul.f32 %v2337, %v2337
    %v2370 = vmul.f32 %v2338, %v2338
    %v2371 = vmul.f32 %v2339, %v2339
    %v2372 = vmul.f32 %v2340, %v2340
    %v2373 = vmul.f32 %v2341, %v2341
    %v2374 = vmul.f32 %v2342, %v2342
    %v2375 = vmul.f32 %v2343, %v2343
    %v2376 = vmul.f32 %v2344, %v2344
    %v2377 = vmul.f32 %v2345, %v2345
    %v2378 = vmul.f32 %v2346, %v2346
    %v2379 = vmul.f32 %v2347, %v2347
    %v2380 = vmul.f32 %v2348, %v2348
    %v2381 = vmul.f32 %v2349, %v2349
    %v2382 = vmul.f32 %v2350, %v2350
    %v2383 = vmul.f32 %v2351, %v2351
    %v2384 = vmul.f32 %v2352, %v2352
    %v2385 = vmul.f32 %v2353, %v2353
    %v2386 = vmul.f32 %v2354, %v2354
    %v2387 = vmul.f32 %v2355, %v2355
    %v2388 = vmul.f32 %v2356, %v2356
    %v2389 = vmul.f32 %v2357, %v2357
    %v2390 = vmul.f32 %v2358, %v2358
    %vm2423 = vcmask 1041409
    %v2424 = vsel %vm2423, %v2360, %v2359
    %vm2425 = vcmask 1042434
    %v2426 = vsel %vm2425, %v2361, %v2424
    %vm2427 = vcmask 1043459
    %v2428 = vsel %vm2427, %v2362, %v2426
    %vm2429 = vcmask 1044484
    %v2430 = vsel %vm2429, %v2363, %v2428
    %vm2431 = vcmask 1045509
    %v2432 = vsel %vm2431, %v2364, %v2430
    %vm2433 = vcmask 1046534
    %v2434 = vsel %vm2433, %v2365, %v2432
    %vm2435 = vcmask 1047559
    %v2436 = vsel %vm2435, %v2366, %v2434
    %v2437 = vsel %vm2423, %v2368, %v2367
    %v2438 = vsel %vm2425, %v2369, %v2437
    %v2439 = vsel %vm2427, %v2370, %v2438
    %v2440 = vsel %vm2429, %v2371, %v2439
    %v2441 = vsel %vm2431, %v2372, %v2440
    %v2442 = vsel %vm2433, %v2373, %v2441
    %v2443 = vsel %vm2435, %v2374, %v2442
    %v2444 = vsel %vm2423, %v2376, %v2375
    %v2445 = vsel %vm2425, %v2377, %v2444
    %v2446 = vsel %vm2427, %v2378, %v2445
    %v2447 = vsel %vm2429, %v2379, %v2446
    %v2448 = vsel %vm2431, %v2380, %v2447
    %v2449 = vsel %vm2433, %v2381, %v2448
    %v2450 = vsel %vm2435, %v2382, %v2449
    %v2451 = vsel %vm2423, %v2384, %v2383
    %v2452 = vsel %vm2425, %v2385, %v2451
    %v2453 = vsel %vm2427, %v2386, %v2452
    %v2454 = vsel %vm2429, %v2387, %v2453
    %v2455 = vsel %vm2431, %v2388, %v2454
    %v2456 = vsel %vm2433, %v2389, %v2455
    %v2457 = vsel %vm2435, %v2390, %v2456
    %v2462 = vsel %vm660, %v2436, 0.0
    %2463 = vadd.xlane.f32.xlu0 %v2462
    %v2464 = vpop.xlane.xlu0 %2463
    %v2465 = vsel %vm660, %v2443, 0.0
    %2466 = vadd.xlane.f32.xlu0 %v2465
    %v2467 = vpop.xlane.xlu0 %2466
    %v2468 = vsel %vm660, %v2450, 0.0
    %2469 = vadd.xlane.f32.xlu0 %v2468
    %v2470 = vpop.xlane.xlu0 %2469
    %v2471 = vsel %vm660, %v2457, 0.0
    %2472 = vadd.xlane.f32.xlu0 %v2471
    %v2473 = vpop.xlane.xlu0 %2472
    %v2474 = vmax.f32 %v2464, 1e-24
    %v2475 = vmax.f32 %v2467, 1e-24
    %v2476 = vmax.f32 %v2470, 1e-24
    %v2477 = vmax.f32 %v2473, 1e-24
    %v2478 = vrsqrt.pop %v2474
    %v2479 = vrsqrt.pop %v2475
    %v2480 = vrsqrt.pop %v2476
    %v2481 = vrsqrt.pop %v2477
    %v2486 = vrot.slane %v2478, 1
    %v2487 = vrot.slane %v2478, 2
    %v2488 = vrot.slane %v2478, 3
    %v2489 = vrot.slane %v2478, 4
    %v2490 = vrot.slane %v2478, 5
    %v2491 = vrot.slane %v2478, 6
    %v2492 = vrot.slane %v2478, 7
    %v2493 = vrot.slane %v2479, 1
    %v2494 = vrot.slane %v2479, 2
    %v2495 = vrot.slane %v2479, 3
    %v2496 = vrot.slane %v2479, 4
    %v2497 = vrot.slane %v2479, 5
    %v2498 = vrot.slane %v2479, 6
    %v2499 = vrot.slane %v2479, 7
    %v2500 = vrot.slane %v2480, 1
    %v2501 = vrot.slane %v2480, 2
    %v2502 = vrot.slane %v2480, 3
    %v2503 = vrot.slane %v2480, 4
    %v2504 = vrot.slane %v2480, 5
    %v2505 = vrot.slane %v2480, 6
    %v2506 = vrot.slane %v2480, 7
    %v2507 = vrot.slane %v2481, 1
    %v2508 = vrot.slane %v2481, 2
    %v2509 = vrot.slane %v2481, 3
    %v2510 = vrot.slane %v2481, 4
    %v2511 = vrot.slane %v2481, 5
    %v2512 = vrot.slane %v2481, 6
    %v2513 = vrot.slane %v2481, 7
    %v2546 = vmul.f32 %v2327, %v2478
    %v2547 = vmul.f32 %v2328, %v2486
    %v2548 = vmul.f32 %v2329, %v2487
    %v2549 = vmul.f32 %v2330, %v2488
    %v2550 = vmul.f32 %v2331, %v2489
    %v2551 = vmul.f32 %v2332, %v2490
    %v2552 = vmul.f32 %v2333, %v2491
    %v2553 = vmul.f32 %v2334, %v2492
    %v2554 = vmul.f32 %v2335, %v2479
    %v2555 = vmul.f32 %v2336, %v2493
    %v2556 = vmul.f32 %v2337, %v2494
    %v2557 = vmul.f32 %v2338, %v2495
    %v2558 = vmul.f32 %v2339, %v2496
    %v2559 = vmul.f32 %v2340, %v2497
    %v2560 = vmul.f32 %v2341, %v2498
    %v2561 = vmul.f32 %v2342, %v2499
    %v2562 = vmul.f32 %v2343, %v2480
    %v2563 = vmul.f32 %v2344, %v2500
    %v2564 = vmul.f32 %v2345, %v2501
    %v2565 = vmul.f32 %v2346, %v2502
    %v2566 = vmul.f32 %v2347, %v2503
    %v2567 = vmul.f32 %v2348, %v2504
    %v2568 = vmul.f32 %v2349, %v2505
    %v2569 = vmul.f32 %v2350, %v2506
    %v2570 = vmul.f32 %v2351, %v2481
    %v2571 = vmul.f32 %v2352, %v2507
    %v2572 = vmul.f32 %v2353, %v2508
    %v2573 = vmul.f32 %v2354, %v2509
    %v2574 = vmul.f32 %v2355, %v2510
    %v2575 = vmul.f32 %v2356, %v2511
    %v2576 = vmul.f32 %v2357, %v2512
    %v2577 = vmul.f32 %v2358, %v2513
    %v2610 = vrot.slane %v2547, 7
    %v2611 = vsel %vm2423, %v2610, %v2546
    %v2612 = vrot.slane %v2548, 6
    %v2613 = vsel %vm2425, %v2612, %v2611
    %v2614 = vrot.slane %v2549, 5
    %v2615 = vsel %vm2427, %v2614, %v2613
    %v2616 = vrot.slane %v2550, 4
    %v2617 = vsel %vm2429, %v2616, %v2615
    %v2618 = vrot.slane %v2551, 3
    %v2619 = vsel %vm2431, %v2618, %v2617
    %v2620 = vrot.slane %v2552, 2
    %v2621 = vsel %vm2433, %v2620, %v2619
    %v2622 = vrot.slane %v2553, 1
    %v2623 = vsel %vm2435, %v2622, %v2621
    %v2624 = vrot.slane %v2555, 7
    %v2625 = vsel %vm2423, %v2624, %v2554
    %v2626 = vrot.slane %v2556, 6
    %v2627 = vsel %vm2425, %v2626, %v2625
    %v2628 = vrot.slane %v2557, 5
    %v2629 = vsel %vm2427, %v2628, %v2627
    %v2630 = vrot.slane %v2558, 4
    %v2631 = vsel %vm2429, %v2630, %v2629
    %v2632 = vrot.slane %v2559, 3
    %v2633 = vsel %vm2431, %v2632, %v2631
    %v2634 = vrot.slane %v2560, 2
    %v2635 = vsel %vm2433, %v2634, %v2633
    %v2636 = vrot.slane %v2561, 1
    %v2637 = vsel %vm2435, %v2636, %v2635
    %v2638 = vrot.slane %v2563, 7
    %v2639 = vsel %vm2423, %v2638, %v2562
    %v2640 = vrot.slane %v2564, 6
    %v2641 = vsel %vm2425, %v2640, %v2639
    %v2642 = vrot.slane %v2565, 5
    %v2643 = vsel %vm2427, %v2642, %v2641
    %v2644 = vrot.slane %v2566, 4
    %v2645 = vsel %vm2429, %v2644, %v2643
    %v2646 = vrot.slane %v2567, 3
    %v2647 = vsel %vm2431, %v2646, %v2645
    %v2648 = vrot.slane %v2568, 2
    %v2649 = vsel %vm2433, %v2648, %v2647
    %v2650 = vrot.slane %v2569, 1
    %v2651 = vsel %vm2435, %v2650, %v2649
    %v2652 = vrot.slane %v2571, 7
    %v2653 = vsel %vm2423, %v2652, %v2570
    %v2654 = vrot.slane %v2572, 6
    %v2655 = vsel %vm2425, %v2654, %v2653
    %v2656 = vrot.slane %v2573, 5
    %v2657 = vsel %vm2427, %v2656, %v2655
    %v2658 = vrot.slane %v2574, 4
    %v2659 = vsel %vm2429, %v2658, %v2657
    %v2660 = vrot.slane %v2575, 3
    %v2661 = vsel %vm2431, %v2660, %v2659
    %v2662 = vrot.slane %v2576, 2
    %v2663 = vsel %vm2433, %v2662, %v2661
    %v2664 = vrot.slane %v2577, 1
    %v2665 = vsel %vm2435, %v2664, %v2663
    %2670 = vst.msk [vmem:[#allocation2] sm:$0xff] %vm660, %v2623
    %2671 = vst.msk [vmem:[#allocation2 + $0x8] sm:$0xff] %vm660, %v2637
    %2672 = vst.msk [vmem:[#allocation2 + $0x10] sm:$0xff] %vm660, %v2651
    %2673 = vst.msk [vmem:[#allocation2 + $0x18] sm:$0xff] %vm660, %v2665
    // Predicated region
    $region26: #{matcher_device.13} parent=1 // pred_check
      _
    $region27: #{matcher_device.13} parent=1 // pred_check_branch
      %2675 = sbr.rel (0) target = $region29
    $region28: #{matcher_device.13} parent=1 // pred_region
      %s2677 = ssub.s32 512, 512
      %2678 = vsyncadd [#allocation3], %s2677
      %s2679 = sshll.u32 [#allocation2], 4
      %s2680 = int_to_ptr.vmem [resolvable:$true] %s2679
      %2685 = dma.vmem_to_hbm [thread:$0]  %s2680, 512, %s6, [#allocation3], 128, 128, 8
    $region29: #{matcher_device.13} parent=1 // pred_fallthru
      _
    // Predicated region
    $region30: #{matcher_device.13} parent=1 // pred_check
      _
    $region31: #{matcher_device.13} parent=1 // pred_check_branch
      %2687 = sbr.rel (0) target = $region33
    $region32: #{matcher_device.13} parent=1 // pred_region
      %2688 = dma.done [#allocation3], 512
    $region33: #{matcher_device.13} parent=1 // pred_fallthru
      _
    %2689 = vsyncpa [#allocation3], 1

</llo_original>
